<compile_context>
chip_gen: v5e
topology: v5e:2x2
jax: 0.10.0
libtpu: 0.0.40
codegen_flags: <defaults>
</compile_context>

<pallas_src>
import functools

import numpy as np
import jax
import jax.numpy as jnp
from jax import lax
from jax.experimental import pallas as pl
from jax.experimental.pallas import tpu as pltpu

_LN_EPS = 1e-5  # torch.nn.LayerNorm default


# ----------------------------------------------------------------------------
# In-kernel math helpers
# ----------------------------------------------------------------------------
def _gelu_tanh(x):
    # tanh-approx GELU: tanh lives on the EUP (separate issue slot), keeping the
    # VALU free.  ~1e-3 deviation from exact-erf GELU.
    c = 0.7978845608028654  # sqrt(2/pi)
    return 0.5 * x * (1.0 + jnp.tanh(c * (x + 0.044715 * x * x * x)))


def _layernorm(x, g, b):
    mu = jnp.mean(x, axis=-1, keepdims=True)
    xc = x - mu
    var = jnp.mean(xc * xc, axis=-1, keepdims=True)
    return xc * jax.lax.rsqrt(var + _LN_EPS) * g + b


# ----------------------------------------------------------------------------
# Pallas kernels
# ----------------------------------------------------------------------------
def _ln_linear_kernel(x_ref, g_ref, b_ref, w_ref, wb_ref, o_ref):
    # LayerNorm fused with the following Linear.
    xn = _layernorm(x_ref[...], g_ref[...], b_ref[...])
    y = jnp.dot(xn, w_ref[...], preferred_element_type=jnp.float32) + wb_ref[...]
    o_ref[...] = y.astype(o_ref.dtype)


def _proj_mlp_kernel(a_ref, res_ref, pw_ref, pb_ref, g_ref, b_ref,
                     w1_ref, b1_ref, w2_ref, b2_ref, o_ref):
    # attention output projection -> +shortcut -> LN2 -> fc1 -> GELU -> fc2 -> +residual
    proj = jnp.dot(a_ref[...], pw_ref[...], preferred_element_type=jnp.float32) + pb_ref[...]
    x = res_ref[...] + proj
    xn = _layernorm(x, g_ref[...], b_ref[...])
    h = _gelu_tanh(jnp.dot(xn, w1_ref[...], preferred_element_type=jnp.float32) + b1_ref[...])
    y = jnp.dot(h, w2_ref[...], preferred_element_type=jnp.float32) + b2_ref[...]
    o_ref[...] = (x + y).astype(o_ref.dtype)


def _window_attn_kernel(qkv_ref, bias_ref, o_ref, *, num_heads, scale):
    # qkv_ref : (1, ws, ws, 3C)   one spatial window, gathered via BlockSpec
    # bias_ref: (1, nH, Nw, Nw)   rel-pos bias (+ shift mask) for this window
    # o_ref   : (1, ws, ws, C)    written straight back into spatial layout
    _, ws, _, C3 = qkv_ref.shape
    C = C3 // 3
    hd = C // num_heads
    Nw = ws * ws
    qkv = qkv_ref[0].reshape(Nw, C3)           # sublane-merge reshape (layout-free)

    outs = []
    for h in range(num_heads):                 # static channel slices, no transposes
        q = qkv[:, h * hd:(h + 1) * hd] * scale
        k = qkv[:, C + h * hd:C + (h + 1) * hd]
        v = qkv[:, 2 * C + h * hd:2 * C + (h + 1) * hd]
        s = lax.dot_general(q, k, (((1,), (1,)), ((), ())),
                            preferred_element_type=jnp.float32)      # (Nw, Nw)
        s = s + bias_ref[0, h]
        s = s - jnp.max(s, axis=-1, keepdims=True)
        p = jnp.exp(s)
        p = p * pl.reciprocal(jnp.sum(p, axis=-1, keepdims=True), approx=True)
        outs.append(jnp.dot(p, v, preferred_element_type=jnp.float32))
    o = outs[0] if num_heads == 1 else jnp.concatenate(outs, axis=-1)
    o_ref[...] = o.reshape(1, ws, ws, C).astype(o_ref.dtype)


# ----------------------------------------------------------------------------
# Tiling policy
# ----------------------------------------------------------------------------
_NUM_TC_CACHE = None


def _num_tensorcores():
    global _NUM_TC_CACHE
    if _NUM_TC_CACHE is None:
        try:
            kind = jax.devices()[0].device_kind.lower()
            _NUM_TC_CACHE = 2 if "v7" in kind else 1   # v5e/v6e: 1 TC per chip
        except Exception:
            _NUM_TC_CACHE = 1
    return _NUM_TC_CACHE


def _row_tile(n, max_tile=1024):
    # Biggest multiple-of-8 divisor of n, capped by VMEM budget; on dual-TC
    # chips also capped so the grid has >= num_tc steps on the parallel axis.
    tc = _num_tensorcores()
    cap = min(max_tile, n)
    if tc > 1 and n >= 16:
        cap = min(cap, max(8, n // tc))
    t = max(8, (cap // 8) * 8)
    while t > 8 and n % t:
        t -= 8
    return t


def _pad_rows(x, tile):
    # Fallback only: current shapes always divide, so no pad/slice copies occur.
    n = x.shape[0]
    pad = (-n) % tile
    if pad:
        x = jnp.pad(x, ((0, pad), (0, 0)))
    return x, n


# ----------------------------------------------------------------------------
# Pallas wrappers
# ----------------------------------------------------------------------------
def ln_linear(x, gamma, beta, w, wb=None):
    # x: (N, Cin); gamma/beta: (1, Cin); w: (Cin, Cout); wb: (Cout,) or None
    N, Cin = x.shape
    Cout = w.shape[1]
    if wb is None:
        wb = jnp.zeros((Cout,), x.dtype)
    tile = _row_tile(N)
    xp, n = _pad_rows(x, tile)
    out = pl.pallas_call(
        _ln_linear_kernel,
        out_shape=jax.ShapeDtypeStruct((xp.shape[0], Cout), x.dtype),
        grid=(xp.shape[0] // tile,),
        in_specs=[
            pl.BlockSpec((tile, Cin), lambda i: (i, 0)),
            pl.BlockSpec((1, Cin), lambda i: (0, 0)),
            pl.BlockSpec((1, Cin), lambda i: (0, 0)),
            pl.BlockSpec((Cin, Cout), lambda i: (0, 0)),
            pl.BlockSpec((1, Cout), lambda i: (0, 0)),
        ],
        out_specs=pl.BlockSpec((tile, Cout), lambda i: (i, 0)),
        compiler_params=pltpu.CompilerParams(dimension_semantics=("parallel",)),
    )(xp, gamma, beta, w, wb.reshape(1, Cout))
    return out if n == xp.shape[0] else out[:n]


def proj_mlp(attn, shortcut, p):
    # Fused attn-proj + residual + LN2 + MLP + residual.  attn/shortcut: (N, C)
    N, C = attn.shape
    Hd = p["fc1_w"].shape[1]
    tile = _row_tile(N)
    ap, n = _pad_rows(attn, tile)
    rp, _ = _pad_rows(shortcut, tile)
    out = pl.pallas_call(
        _proj_mlp_kernel,
        out_shape=jax.ShapeDtypeStruct((ap.shape[0], C), attn.dtype),
        grid=(ap.shape[0] // tile,),
        in_specs=[
            pl.BlockSpec((tile, C), lambda i: (i, 0)),
            pl.BlockSpec((tile, C), lambda i: (i, 0)),
            pl.BlockSpec((C, C), lambda i: (0, 0)),
            pl.BlockSpec((1, C), lambda i: (0, 0)),
            pl.BlockSpec((1, C), lambda i: (0, 0)),
            pl.BlockSpec((1, C), lambda i: (0, 0)),
            pl.BlockSpec((C, Hd), lambda i: (0, 0)),
            pl.BlockSpec((1, Hd), lambda i: (0, 0)),
            pl.BlockSpec((Hd, C), lambda i: (0, 0)),
            pl.BlockSpec((1, C), lambda i: (0, 0)),
        ],
        out_specs=pl.BlockSpec((tile, C), lambda i: (i, 0)),
        compiler_params=pltpu.CompilerParams(dimension_semantics=("parallel",)),
    )(ap, rp, p["proj_w"], p["proj_b"].reshape(1, C),
      p["norm2_g"], p["norm2_b"],
      p["fc1_w"], p["fc1_b"].reshape(1, Hd),
      p["fc2_w"], p["fc2_b"].reshape(1, C))
    return out if n == ap.shape[0] else out[:n]


def window_attention(qkv_spatial, bias, num_heads, scale, ws, shifted):
    # qkv_spatial: (B, H, W, 3C); bias: (nW or 1, nH, Nw, Nw)
    # One spatial window per grid step; the BlockSpec index_map does the window
    # gather/scatter -> no XLA window_partition / window_reverse passes.
    B, H, W, C3 = qkv_spatial.shape
    C = C3 // 3
    nWh, nWw = H // ws, W // ws
    Nw = ws * ws
    if shifted:
        bias_map = lambda b, i, j: (i * nWw + j, 0, 0, 0)
    else:
        bias_map = lambda b, i, j: (0, 0, 0, 0)
    return pl.pallas_call(
        functools.partial(_window_attn_kernel, num_heads=num_heads, scale=scale),
        out_shape=jax.ShapeDtypeStruct((B, H, W, C), qkv_spatial.dtype),
        grid=(B, nWh, nWw),
        in_specs=[
            pl.BlockSpec((1, ws, ws, C3), lambda b, i, j: (b, i, j, 0)),
            pl.BlockSpec((1, num_heads, Nw, Nw), bias_map),
        ],
        out_specs=pl.BlockSpec((1, ws, ws, C), lambda b, i, j: (b, i, j, 0)),
        compiler_params=pltpu.CompilerParams(
            dimension_semantics=("parallel", "parallel", "parallel")),
    )(qkv_spatial, bias)


# ----------------------------------------------------------------------------
# Swin glue (plain JAX / numpy; permutations + static tables only)
# ----------------------------------------------------------------------------
def relative_position_index(ws):
    coords = np.stack(np.meshgrid(np.arange(ws), np.arange(ws), indexing="ij"))
    flat = coords.reshape(2, -1)
    rel = (flat[:, :, None] - flat[:, None, :]).transpose(1, 2, 0)
    rel[:, :, 0] += ws - 1
    rel[:, :, 1] += ws - 1
    rel[:, :, 0] *= 2 * ws - 1
    return rel.sum(-1)  # (Nw, Nw), int


def compute_attn_mask(H, W, ws, shift):
    img_mask = np.zeros((1, H, W, 1), np.float32)
    cnt = 0
    for hs in (slice(0, -ws), slice(-ws, -shift), slice(-shift, None)):
        for wsl in (slice(0, -ws), slice(-ws, -shift), slice(-shift, None)):
            img_mask[:, hs, wsl, :] = cnt
            cnt += 1
    mw = img_mask.reshape(1, H // ws, ws, W // ws, ws, 1)
    mw = mw.transpose(0, 1, 3, 2, 4, 5).reshape(-1, ws * ws)
    am = mw[:, None, :] - mw[:, :, None]
    return np.where(am != 0, -100.0, 0.0).astype(np.float32)  # (nW, Nw, Nw)


def swin_block(x, p, H, W, ws, shift, nH):
    B, L, C = x.shape
    hd = C // nH
    Nw = ws * ws
    shortcut = x.reshape(B * L, C)

    # --- attention branch ----------------------------------------------------
    # LN1 + qkv are per-token -> fused and applied before the (pure permutation)
    # cyclic shift; the window partition itself happens in the BlockSpec.
    qkv = ln_linear(shortcut, p["norm1_g"], p["norm1_b"],
                    p["qkv_w"], p["qkv_b"])                      # (B*L, 3C)
    qkv = qkv.reshape(B, H, W, 3 * C)                            # contiguous, free
    if shift > 0:
        qkv = jnp.roll(qkv, (-shift, -shift), axis=(1, 2))

    # rel-pos bias (+ shift mask): kept at (nW|1, nH, Nw, Nw); indexed per window
    rel_idx = relative_position_index(ws)
    rel_bias = p["rel_table"][rel_idx.reshape(-1)].reshape(Nw, Nw, nH).transpose(2, 0, 1)
    if shift > 0:
        mask = jnp.asarray(compute_attn_mask(H, W, ws, shift))   # (nW, Nw, Nw)
        bias = rel_bias[None] + mask[:, None]                    # (nW, nH, Nw, Nw)
    else:
        bias = rel_bias[None]                                    # (1, nH, Nw, Nw)

    o = window_attention(qkv, bias, nH, hd ** -0.5, ws, shift > 0)  # (B, H, W, C)
    if shift > 0:
        o = jnp.roll(o, (shift, shift), axis=(1, 2))

    # --- proj + residual + LN2 + MLP + residual, one fused kernel ------------
    x = proj_mlp(o.reshape(B * L, C), shortcut, p)
    return x.reshape(B, L, C)


def patch_merging(x, p, H, W):
    B, L, C = x.shape
    xh = x.reshape(B, H, W, C)
    x0 = xh[:, 0::2, 0::2, :]
    x1 = xh[:, 1::2, 0::2, :]
    x2 = xh[:, 0::2, 1::2, :]
    x3 = xh[:, 1::2, 1::2, :]
    xm = jnp.concatenate([x0, x1, x2, x3], axis=-1)
    xm = xm.reshape(B * (H // 2) * (W // 2), 4 * C)
    out = ln_linear(xm, p["norm_g"], p["norm_b"], p["red_w"], None)  # LN + bias-less reduction
    return out.reshape(B, (H // 2) * (W // 2), -1)


def down_block_forward(x, params, *, resolution, window_size, num_heads, block_num):
    H = W = resolution
    ws = min(window_size, H, W)
    for i, p in enumerate(params["blocks"]):
        shift = 0 if (i % 2 == 0 or min(H, W) <= window_size) else ws // 2
        x = swin_block(x, p, H, W, ws, shift, num_heads)
    return patch_merging(x, params["merge"], H, W)


# ----------------------------------------------------------------------------
# Deterministic parameter init (synthetic; shapes follow the module __init__,
# mlp_ratio=1 -> hidden == C, num_heads = in_channels // 32, qkv_bias=True)
# ----------------------------------------------------------------------------
def init_down_block_params(key, C, C_out, ws, nH, block_num):
    num_rel = (2 * ws - 1) ** 2
    blocks = []
    for _ in range(block_num):
        key, k0, k1, k2, k3, k4 = jax.random.split(key, 6)
        blocks.append(dict(
            norm1_g=jnp.ones((1, C), jnp.float32),
            norm1_b=jnp.zeros((1, C), jnp.float32),
            qkv_w=0.02 * jax.random.normal(k0, (C, 3 * C), jnp.float32),
            qkv_b=jnp.zeros((3 * C,), jnp.float32),
            rel_table=0.02 * jax.random.normal(k1, (num_rel, nH), jnp.float32),
            proj_w=0.02 * jax.random.normal(k2, (C, C), jnp.float32),
            proj_b=jnp.zeros((C,), jnp.float32),
            norm2_g=jnp.ones((1, C), jnp.float32),
            norm2_b=jnp.zeros((1, C), jnp.float32),
            fc1_w=0.02 * jax.random.normal(k3, (C, C), jnp.float32),
            fc1_b=jnp.zeros((C,), jnp.float32),
            fc2_w=0.02 * jax.random.normal(k4, (C, C), jnp.float32),
            fc2_b=jnp.zeros((C,), jnp.float32),
        ))
    key, km = jax.random.split(key)
    merge = dict(
        norm_g=jnp.ones((1, 4 * C), jnp.float32),
        norm_b=jnp.zeros((1, 4 * C), jnp.float32),
        red_w=0.02 * jax.random.normal(km, (4 * C, C_out), jnp.float32),
    )
    return dict(blocks=blocks, merge=merge)


# ----------------------------------------------------------------------------
if __name__ == "__main__":
    B = 2
    IN_CH = 32          # num_heads = in_channels // 32 = 1, head_dim = 32
    OUT_CH = 64
    RES = 16            # input_resolution = (16, 16), window_size = 8 -> 2x2 windows
    BLOCK_NUM = 2       # block 0: no shift, block 1: shifted window (shift = 4)
    WS = 8
    NH = IN_CH // 32

    key = jax.random.PRNGKey(0)
    kx, kp = jax.random.split(key)
    x = jax.random.normal(kx, (B, RES * RES, IN_CH), jnp.float32)
    params = init_down_block_params(kp, IN_CH, OUT_CH, WS, NH, BLOCK_NUM)

    fwd = jax.jit(functools.partial(
        down_block_forward, resolution=RES, window_size=WS,
        num_heads=NH, block_num=BLOCK_NUM))
    out = jax.block_until_ready(fwd(x, params))

    assert out.shape == (B, (RES // 2) * (RES // 2), OUT_CH), out.shape
    assert jnp.all(jnp.isfinite(out))
    print("KERNEL_OK")
</pallas_src>

<mosaic_0001>
module attributes {stable_mosaic.version = 11 : i64} {
  func.func @_ln_linear_kernel(%arg0: i32, %arg1: memref<512x32xf32, #tpu.memory_space<vmem>>, %arg2: memref<1x32xf32, #tpu.memory_space<vmem>>, %arg3: memref<1x32xf32, #tpu.memory_space<vmem>>, %arg4: memref<32x96xf32, #tpu.memory_space<vmem>>, %arg5: memref<1x96xf32, #tpu.memory_space<vmem>>, %arg6: memref<512x96xf32, #tpu.memory_space<vmem>>) attributes {dimension_semantics = [#tpu.dimension_semantics<parallel>], iteration_bounds = array<i64: 1>, scalar_prefetch = 0 : i64, scratch_operands = 0 : i64, tpu.core_type = #tpu.core_type<tc>, window_params = [{transform_indices = @transform_0, window_bounds = array<i64: 512, 32>}, {pipeline_mode = #tpu.pipeline_mode<synchronous>, transform_indices = @transform_1, window_bounds = array<i64: 1, 32>}, {pipeline_mode = #tpu.pipeline_mode<synchronous>, transform_indices = @transform_2, window_bounds = array<i64: 1, 32>}, {pipeline_mode = #tpu.pipeline_mode<synchronous>, transform_indices = @transform_3, window_bounds = array<i64: 32, 96>}, {pipeline_mode = #tpu.pipeline_mode<synchronous>, transform_indices = @transform_4, window_bounds = array<i64: 1, 96>}, {transform_indices = @transform_5, window_bounds = array<i64: 512, 96>}]} {
    %c0 = arith.constant 0 : index
    %c0_0 = arith.constant 0 : index
    %0 = vector.load %arg1[%c0, %c0_0] : memref<512x32xf32, #tpu.memory_space<vmem>>, vector<512x32xf32>
    %c0_1 = arith.constant 0 : index
    %c0_2 = arith.constant 0 : index
    %1 = vector.load %arg2[%c0_1, %c0_2] : memref<1x32xf32, #tpu.memory_space<vmem>>, vector<1x32xf32>
    %c0_3 = arith.constant 0 : index
    %c0_4 = arith.constant 0 : index
    %2 = vector.load %arg3[%c0_3, %c0_4] : memref<1x32xf32, #tpu.memory_space<vmem>>, vector<1x32xf32>
    %cst = arith.constant dense<0.000000e+00> : vector<512xf32>
    %3 = vector.multi_reduction <add>, %0, %cst [1] : vector<512x32xf32> to vector<512xf32>
    %4 = vector.shape_cast %3 : vector<512xf32> to vector<512x1xf32>
    %cst_5 = arith.constant 3.200000e+01 : f32
    %5 = vector.broadcast %cst_5 : f32 to vector<512x1xf32>
    %6 = arith.divf %4, %5 : vector<512x1xf32>
    %7 = vector.broadcast %6 : vector<512x1xf32> to vector<512x32xf32>
    %8 = arith.subf %0, %7 : vector<512x32xf32>
    %9 = arith.mulf %8, %8 : vector<512x32xf32>
    %cst_6 = arith.constant dense<0.000000e+00> : vector<512xf32>
    %10 = vector.multi_reduction <add>, %9, %cst_6 [1] : vector<512x32xf32> to vector<512xf32>
    %11 = vector.shape_cast %10 : vector<512xf32> to vector<512x1xf32>
    %cst_7 = arith.constant 3.200000e+01 : f32
    %12 = vector.broadcast %cst_7 : f32 to vector<512x1xf32>
    %13 = arith.divf %11, %12 : vector<512x1xf32>
    %cst_8 = arith.constant 9.99999974E-6 : f32
    %14 = vector.broadcast %cst_8 : f32 to vector<512x1xf32>
    %15 = arith.addf %13, %14 : vector<512x1xf32>
    %16 = math.rsqrt %15 : vector<512x1xf32>
    %17 = vector.broadcast %16 : vector<512x1xf32> to vector<512x32xf32>
    %18 = arith.mulf %8, %17 : vector<512x32xf32>
    %19 = vector.broadcast %1 : vector<1x32xf32> to vector<512x32xf32>
    %20 = arith.mulf %18, %19 : vector<512x32xf32>
    %21 = vector.broadcast %2 : vector<1x32xf32> to vector<512x32xf32>
    %22 = arith.addf %20, %21 : vector<512x32xf32>
    %c0_9 = arith.constant 0 : index
    %c0_10 = arith.constant 0 : index
    %23 = vector.load %arg4[%c0_9, %c0_10] : memref<32x96xf32, #tpu.memory_space<vmem>>, vector<32x96xf32>
    %cst_11 = arith.constant dense<0.000000e+00> : vector<512x96xf32>
    %24 = tpu.matmul %22, %23, %cst_11 {dimension_numbers = #tpu.dot_dimension_numbers<[1], [0], [0], [1], [0, 0, 1, 1], [], []>} : vector<512x32xf32>, vector<32x96xf32>, vector<512x96xf32> -> vector<512x96xf32>
    %c0_12 = arith.constant 0 : index
    %c0_13 = arith.constant 0 : index
    %25 = vector.load %arg5[%c0_12, %c0_13] : memref<1x96xf32, #tpu.memory_space<vmem>>, vector<1x96xf32>
    %26 = vector.broadcast %25 : vector<1x96xf32> to vector<512x96xf32>
    %27 = arith.addf %24, %26 : vector<512x96xf32>
    %c0_14 = arith.constant 0 : index
    %c0_15 = arith.constant 0 : index
    %28 = vector.load %arg6[%c0_14, %c0_15] : memref<512x96xf32, #tpu.memory_space<vmem>>, vector<512x96xf32>
    tpu.vector_store %arg6[%c0_14, %c0_15], %27 {strides = array<i32>} : memref<512x96xf32, #tpu.memory_space<vmem>>, vector<512x96xf32>,
    return
  }
  func.func @transform_0(%arg0: i32) -> (i32, i32) {
    %c0_i32 = arith.constant 0 : i32
    %c0_i32_0 = arith.constant 0 : i32
    return %arg0, %c0_i32 : i32, i32
  }
  func.func @transform_1(%arg0: i32) -> (i32, i32) {
    %c0_i32 = arith.constant 0 : i32
    %c0_i32_0 = arith.constant 0 : i32
    %c0_i32_1 = arith.constant 0 : i32
    return %c0_i32, %c0_i32_0 : i32, i32
  }
  func.func @transform_2(%arg0: i32) -> (i32, i32) {
    %c0_i32 = arith.constant 0 : i32
    %c0_i32_0 = arith.constant 0 : i32
    %c0_i32_1 = arith.constant 0 : i32
    return %c0_i32, %c0_i32_0 : i32, i32
  }
  func.func @transform_3(%arg0: i32) -> (i32, i32) {
    %c0_i32 = arith.constant 0 : i32
    %c0_i32_0 = arith.constant 0 : i32
    %c0_i32_1 = arith.constant 0 : i32
    return %c0_i32, %c0_i32_0 : i32, i32
  }
  func.func @transform_4(%arg0: i32) -> (i32, i32) {
    %c0_i32 = arith.constant 0 : i32
    %c0_i32_0 = arith.constant 0 : i32
    %c0_i32_1 = arith.constant 0 : i32
    return %c0_i32, %c0_i32_0 : i32, i32
  }
  func.func @transform_5(%arg0: i32) -> (i32, i32) {
    %c0_i32 = arith.constant 0 : i32
    %c0_i32_0 = arith.constant 0 : i32
    return %arg0, %c0_i32 : i32, i32
  }
}

module attributes {stable_mosaic.version = 11 : i64} {
  func.func @_window_attn_kernel(%arg0: i32, %arg1: i32, %arg2: i32, %arg3: memref<1x8x8x96xf32, #tpu.memory_space<vmem>>, %arg4: memref<1x1x64x64xf32, #tpu.memory_space<vmem>>, %arg5: memref<1x8x8x32xf32, #tpu.memory_space<vmem>>) attributes {dimension_semantics = [#tpu.dimension_semantics<parallel>, #tpu.dimension_semantics<parallel>, #tpu.dimension_semantics<parallel>], iteration_bounds = array<i64: 2, 2, 2>, scalar_prefetch = 0 : i64, scratch_operands = 0 : i64, tpu.core_type = #tpu.core_type<tc>, window_params = [{transform_indices = @transform_0, window_bounds = array<i64: 1, 8, 8, 96>}, {pipeline_mode = #tpu.pipeline_mode<synchronous>, transform_indices = @transform_1, window_bounds = array<i64: 1, 1, 64, 64>}, {transform_indices = @transform_2, window_bounds = array<i64: 1, 8, 8, 32>}]} {
    %c0 = arith.constant 0 : index
    %c0_0 = arith.constant 0 : index
    %c0_1 = arith.constant 0 : index
    %c0_2 = arith.constant 0 : index
    %0 = vector.load %arg3[%c0, %c0_0, %c0_1, %c0_2] : memref<1x8x8x96xf32, #tpu.memory_space<vmem>>, vector<1x8x8x96xf32>
    %1 = vector.shape_cast %0 : vector<1x8x8x96xf32> to vector<8x8x96xf32>
    %2 = vector.shape_cast %1 : vector<8x8x96xf32> to vector<64x96xf32>
    %3 = vector.extract_strided_slice %2 {offsets = [0, 0], sizes = [64, 32], strides = [1, 1]} : vector<64x96xf32> to vector<64x32xf32>
    %cst = arith.constant 0.176776692 : f32
    %4 = vector.broadcast %cst : f32 to vector<64x32xf32>
    %5 = arith.mulf %3, %4 : vector<64x32xf32>
    %6 = vector.extract_strided_slice %2 {offsets = [0, 32], sizes = [64, 32], strides = [1, 1]} : vector<64x96xf32> to vector<64x32xf32>
    %7 = vector.extract_strided_slice %2 {offsets = [0, 64], sizes = [64, 32], strides = [1, 1]} : vector<64x96xf32> to vector<64x32xf32>
    %cst_3 = arith.constant dense<0.000000e+00> : vector<64x64xf32>
    %8 = tpu.matmul %5, %6, %cst_3 {dimension_numbers = #tpu.dot_dimension_numbers<[1], [1], [0], [0], [0, 0, 1, 0], [], []>} : vector<64x32xf32>, vector<64x32xf32>, vector<64x64xf32> -> vector<64x64xf32>
    %c0_4 = arith.constant 0 : index
    %c0_5 = arith.constant 0 : index
    %c0_6 = arith.constant 0 : index
    %c0_7 = arith.constant 0 : index
    %9 = vector.load %arg4[%c0_4, %c0_5, %c0_6, %c0_7] : memref<1x1x64x64xf32, #tpu.memory_space<vmem>>, vector<1x1x64x64xf32>
    %10 = vector.shape_cast %9 : vector<1x1x64x64xf32> to vector<64x64xf32>
    %11 = arith.addf %8, %10 : vector<64x64xf32>
    %cst_8 = arith.constant dense<0xFF800000> : vector<64xf32>
    %12 = vector.multi_reduction <maximumf>, %11, %cst_8 [1] : vector<64x64xf32> to vector<64xf32>
    %13 = vector.shape_cast %12 : vector<64xf32> to vector<64x1xf32>
    %14 = vector.broadcast %13 : vector<64x1xf32> to vector<64x64xf32>
    %15 = arith.subf %11, %14 : vector<64x64xf32>
    %16 = math.exp %15 : vector<64x64xf32>
    %cst_9 = arith.constant dense<0.000000e+00> : vector<64xf32>
    %17 = vector.multi_reduction <add>, %16, %cst_9 [1] : vector<64x64xf32> to vector<64xf32>
    %18 = vector.shape_cast %17 : vector<64xf32> to vector<64x1xf32>
    %19 = tpu.reciprocal %18 {approx = true} : vector<64x1xf32> -> vector<64x1xf32>
    %20 = vector.broadcast %19 : vector<64x1xf32> to vector<64x64xf32>
    %21 = arith.mulf %16, %20 : vector<64x64xf32>
    %cst_10 = arith.constant dense<0.000000e+00> : vector<64x32xf32>
    %22 = tpu.matmul %21, %7, %cst_10 {dimension_numbers = #tpu.dot_dimension_numbers<[1], [0], [0], [1], [0, 0, 1, 1], [], []>} : vector<64x64xf32>, vector<64x32xf32>, vector<64x32xf32> -> vector<64x32xf32>
    %23 = vector.shape_cast %22 : vector<64x32xf32> to vector<1x8x8x32xf32>
    %c0_11 = arith.constant 0 : index
    %c0_12 = arith.constant 0 : index
    %c0_13 = arith.constant 0 : index
    %c0_14 = arith.constant 0 : index
    %24 = vector.load %arg5[%c0_11, %c0_12, %c0_13, %c0_14] : memref<1x8x8x32xf32, #tpu.memory_space<vmem>>, vector<1x8x8x32xf32>
    tpu.vector_store %arg5[%c0_11, %c0_12, %c0_13, %c0_14], %23 {strides = array<i32>} : memref<1x8x8x32xf32, #tpu.memory_space<vmem>>, vector<1x8x8x32xf32>,
    return
  }
  func.func @transform_0(%arg0: i32, %arg1: i32, %arg2: i32) -> (i32, i32, i32, i32) {
    %c0_i32 = arith.constant 0 : i32
    %c0_i32_0 = arith.constant 0 : i32
    return %arg0, %arg1, %arg2, %c0_i32 : i32, i32, i32, i32
  }
  func.func @transform_1(%arg0: i32, %arg1: i32, %arg2: i32) -> (i32, i32, i32, i32) {
    %c0_i32 = arith.constant 0 : i32
    %c0_i32_0 = arith.constant 0 : i32
    %c0_i32_1 = arith.constant 0 : i32
    %c0_i32_2 = arith.constant 0 : i32
    %c0_i32_3 = arith.constant 0 : i32
    return %c0_i32, %c0_i32_0, %c0_i32_1, %c0_i32_2 : i32, i32, i32, i32
  }
  func.func @transform_2(%arg0: i32, %arg1: i32, %arg2: i32) -> (i32, i32, i32, i32) {
    %c0_i32 = arith.constant 0 : i32
    %c0_i32_0 = arith.constant 0 : i32
    return %arg0, %arg1, %arg2, %c0_i32 : i32, i32, i32, i32
  }
}

module attributes {stable_mosaic.version = 11 : i64} {
  func.func @_proj_mlp_kernel(%arg0: i32, %arg1: memref<512x32xf32, #tpu.memory_space<vmem>>, %arg2: memref<512x32xf32, #tpu.memory_space<vmem>>, %arg3: memref<32x32xf32, #tpu.memory_space<vmem>>, %arg4: memref<1x32xf32, #tpu.memory_space<vmem>>, %arg5: memref<1x32xf32, #tpu.memory_space<vmem>>, %arg6: memref<1x32xf32, #tpu.memory_space<vmem>>, %arg7: memref<32x32xf32, #tpu.memory_space<vmem>>, %arg8: memref<1x32xf32, #tpu.memory_space<vmem>>, %arg9: memref<32x32xf32, #tpu.memory_space<vmem>>, %arg10: memref<1x32xf32, #tpu.memory_space<vmem>>, %arg11: memref<512x32xf32, #tpu.memory_space<vmem>>) attributes {dimension_semantics = [#tpu.dimension_semantics<parallel>], iteration_bounds = array<i64: 1>, scalar_prefetch = 0 : i64, scratch_operands = 0 : i64, tpu.core_type = #tpu.core_type<tc>, window_params = [{transform_indices = @transform_0, window_bounds = array<i64: 512, 32>}, {transform_indices = @transform_1, window_bounds = array<i64: 512, 32>}, {pipeline_mode = #tpu.pipeline_mode<synchronous>, transform_indices = @transform_2, window_bounds = array<i64: 32, 32>}, {pipeline_mode = #tpu.pipeline_mode<synchronous>, transform_indices = @transform_3, window_bounds = array<i64: 1, 32>}, {pipeline_mode = #tpu.pipeline_mode<synchronous>, transform_indices = @transform_4, window_bounds = array<i64: 1, 32>}, {pipeline_mode = #tpu.pipeline_mode<synchronous>, transform_indices = @transform_5, window_bounds = array<i64: 1, 32>}, {pipeline_mode = #tpu.pipeline_mode<synchronous>, transform_indices = @transform_6, window_bounds = array<i64: 32, 32>}, {pipeline_mode = #tpu.pipeline_mode<synchronous>, transform_indices = @transform_7, window_bounds = array<i64: 1, 32>}, {pipeline_mode = #tpu.pipeline_mode<synchronous>, transform_indices = @transform_8, window_bounds = array<i64: 32, 32>}, {pipeline_mode = #tpu.pipeline_mode<synchronous>, transform_indices = @transform_9, window_bounds = array<i64: 1, 32>}, {transform_indices = @transform_10, window_bounds = array<i64: 512, 32>}]} {
    %c0 = arith.constant 0 : index
    %c0_0 = arith.constant 0 : index
    %0 = vector.load %arg1[%c0, %c0_0] : memref<512x32xf32, #tpu.memory_space<vmem>>, vector<512x32xf32>
    %c0_1 = arith.constant 0 : index
    %c0_2 = arith.constant 0 : index
    %1 = vector.load %arg3[%c0_1, %c0_2] : memref<32x32xf32, #tpu.memory_space<vmem>>, vector<32x32xf32>
    %cst = arith.constant dense<0.000000e+00> : vector<512x32xf32>
    %2 = tpu.matmul %0, %1, %cst {dimension_numbers = #tpu.dot_dimension_numbers<[1], [0], [0], [1], [0, 0, 1, 1], [], []>} : vector<512x32xf32>, vector<32x32xf32>, vector<512x32xf32> -> vector<512x32xf32>
    %c0_3 = arith.constant 0 : index
    %c0_4 = arith.constant 0 : index
    %3 = vector.load %arg4[%c0_3, %c0_4] : memref<1x32xf32, #tpu.memory_space<vmem>>, vector<1x32xf32>
    %4 = vector.broadcast %3 : vector<1x32xf32> to vector<512x32xf32>
    %5 = arith.addf %2, %4 : vector<512x32xf32>
    %c0_5 = arith.constant 0 : index
    %c0_6 = arith.constant 0 : index
    %6 = vector.load %arg2[%c0_5, %c0_6] : memref<512x32xf32, #tpu.memory_space<vmem>>, vector<512x32xf32>
    %7 = arith.addf %6, %5 : vector<512x32xf32>
    %c0_7 = arith.constant 0 : index
    %c0_8 = arith.constant 0 : index
    %8 = vector.load %arg5[%c0_7, %c0_8] : memref<1x32xf32, #tpu.memory_space<vmem>>, vector<1x32xf32>
    %c0_9 = arith.constant 0 : index
    %c0_10 = arith.constant 0 : index
    %9 = vector.load %arg6[%c0_9, %c0_10] : memref<1x32xf32, #tpu.memory_space<vmem>>, vector<1x32xf32>
    %cst_11 = arith.constant dense<0.000000e+00> : vector<512xf32>
    %10 = vector.multi_reduction <add>, %7, %cst_11 [1] : vector<512x32xf32> to vector<512xf32>
    %11 = vector.shape_cast %10 : vector<512xf32> to vector<512x1xf32>
    %cst_12 = arith.constant 3.200000e+01 : f32
    %12 = vector.broadcast %cst_12 : f32 to vector<512x1xf32>
    %13 = arith.divf %11, %12 : vector<512x1xf32>
    %14 = vector.broadcast %13 : vector<512x1xf32> to vector<512x32xf32>
    %15 = arith.subf %7, %14 : vector<512x32xf32>
    %16 = arith.mulf %15, %15 : vector<512x32xf32>
    %cst_13 = arith.constant dense<0.000000e+00> : vector<512xf32>
    %17 = vector.multi_reduction <add>, %16, %cst_13 [1] : vector<512x32xf32> to vector<512xf32>
    %18 = vector.shape_cast %17 : vector<512xf32> to vector<512x1xf32>
    %cst_14 = arith.constant 3.200000e+01 : f32
    %19 = vector.broadcast %cst_14 : f32 to vector<512x1xf32>
    %20 = arith.divf %18, %19 : vector<512x1xf32>
    %cst_15 = arith.constant 9.99999974E-6 : f32
    %21 = vector.broadcast %cst_15 : f32 to vector<512x1xf32>
    %22 = arith.addf %20, %21 : vector<512x1xf32>
    %23 = math.rsqrt %22 : vector<512x1xf32>
    %24 = vector.broadcast %23 : vector<512x1xf32> to vector<512x32xf32>
    %25 = arith.mulf %15, %24 : vector<512x32xf32>
    %26 = vector.broadcast %8 : vector<1x32xf32> to vector<512x32xf32>
    %27 = arith.mulf %25, %26 : vector<512x32xf32>
    %28 = vector.broadcast %9 : vector<1x32xf32> to vector<512x32xf32>
    %29 = arith.addf %27, %28 : vector<512x32xf32>
    %c0_16 = arith.constant 0 : index
    %c0_17 = arith.constant 0 : index
    %30 = vector.load %arg7[%c0_16, %c0_17] : memref<32x32xf32, #tpu.memory_space<vmem>>, vector<32x32xf32>
    %cst_18 = arith.constant dense<0.000000e+00> : vector<512x32xf32>
    %31 = tpu.matmul %29, %30, %cst_18 {dimension_numbers = #tpu.dot_dimension_numbers<[1], [0], [0], [1], [0, 0, 1, 1], [], []>} : vector<512x32xf32>, vector<32x32xf32>, vector<512x32xf32> -> vector<512x32xf32>
    %c0_19 = arith.constant 0 : index
    %c0_20 = arith.constant 0 : index
    %32 = vector.load %arg8[%c0_19, %c0_20] : memref<1x32xf32, #tpu.memory_space<vmem>>, vector<1x32xf32>
    %33 = vector.broadcast %32 : vector<1x32xf32> to vector<512x32xf32>
    %34 = arith.addf %31, %33 : vector<512x32xf32>
    %cst_21 = arith.constant 5.000000e-01 : f32
    %35 = vector.broadcast %cst_21 : f32 to vector<512x32xf32>
    %36 = arith.mulf %35, %34 : vector<512x32xf32>
    %cst_22 = arith.constant 4.471500e-02 : f32
    %37 = vector.broadcast %cst_22 : f32 to vector<512x32xf32>
    %38 = arith.mulf %37, %34 : vector<512x32xf32>
    %39 = arith.mulf %38, %34 : vector<512x32xf32>
    %40 = arith.mulf %39, %34 : vector<512x32xf32>
    %41 = arith.addf %34, %40 : vector<512x32xf32>
    %cst_23 = arith.constant 0.797884583 : f32
    %42 = vector.broadcast %cst_23 : f32 to vector<512x32xf32>
    %43 = arith.mulf %42, %41 : vector<512x32xf32>
    %44 = math.tanh %43 : vector<512x32xf32>
    %cst_24 = arith.constant 1.000000e+00 : f32
    %45 = vector.broadcast %cst_24 : f32 to vector<512x32xf32>
    %46 = arith.addf %45, %44 : vector<512x32xf32>
    %47 = arith.mulf %36, %46 : vector<512x32xf32>
    %c0_25 = arith.constant 0 : index
    %c0_26 = arith.constant 0 : index
    %48 = vector.load %arg9[%c0_25, %c0_26] : memref<32x32xf32, #tpu.memory_space<vmem>>, vector<32x32xf32>
    %cst_27 = arith.constant dense<0.000000e+00> : vector<512x32xf32>
    %49 = tpu.matmul %47, %48, %cst_27 {dimension_numbers = #tpu.dot_dimension_numbers<[1], [0], [0], [1], [0, 0, 1, 1], [], []>} : vector<512x32xf32>, vector<32x32xf32>, vector<512x32xf32> -> vector<512x32xf32>
    %c0_28 = arith.constant 0 : index
    %c0_29 = arith.constant 0 : index
    %50 = vector.load %arg10[%c0_28, %c0_29] : memref<1x32xf32, #tpu.memory_space<vmem>>, vector<1x32xf32>
    %51 = vector.broadcast %50 : vector<1x32xf32> to vector<512x32xf32>
    %52 = arith.addf %49, %51 : vector<512x32xf32>
    %53 = arith.addf %7, %52 : vector<512x32xf32>
    %c0_30 = arith.constant 0 : index
    %c0_31 = arith.constant 0 : index
    %54 = vector.load %arg11[%c0_30, %c0_31] : memref<512x32xf32, #tpu.memory_space<vmem>>, vector<512x32xf32>
    tpu.vector_store %arg11[%c0_30, %c0_31], %53 {strides = array<i32>} : memref<512x32xf32, #tpu.memory_space<vmem>>, vector<512x32xf32>,
    return
  }
  func.func @transform_0(%arg0: i32) -> (i32, i32) {
    %c0_i32 = arith.constant 0 : i32
    %c0_i32_0 = arith.constant 0 : i32
    return %arg0, %c0_i32 : i32, i32
  }
  func.func @transform_1(%arg0: i32) -> (i32, i32) {
    %c0_i32 = arith.constant 0 : i32
    %c0_i32_0 = arith.constant 0 : i32
    return %arg0, %c0_i32 : i32, i32
  }
  func.func @transform_2(%arg0: i32) -> (i32, i32) {
    %c0_i32 = arith.constant 0 : i32
    %c0_i32_0 = arith.constant 0 : i32
    %c0_i32_1 = arith.constant 0 : i32
    return %c0_i32, %c0_i32_0 : i32, i32
  }
  func.func @transform_3(%arg0: i32) -> (i32, i32) {
    %c0_i32 = arith.constant 0 : i32
    %c0_i32_0 = arith.constant 0 : i32
    %c0_i32_1 = arith.constant 0 : i32
    return %c0_i32, %c0_i32_0 : i32, i32
  }
  func.func @transform_4(%arg0: i32) -> (i32, i32) {
    %c0_i32 = arith.constant 0 : i32
    %c0_i32_0 = arith.constant 0 : i32
    %c0_i32_1 = arith.constant 0 : i32
    return %c0_i32, %c0_i32_0 : i32, i32
  }
  func.func @transform_5(%arg0: i32) -> (i32, i32) {
    %c0_i32 = arith.constant 0 : i32
    %c0_i32_0 = arith.constant 0 : i32
    %c0_i32_1 = arith.constant 0 : i32
    return %c0_i32, %c0_i32_0 : i32, i32
  }
  func.func @transform_6(%arg0: i32) -> (i32, i32) {
    %c0_i32 = arith.constant 0 : i32
    %c0_i32_0 = arith.constant 0 : i32
    %c0_i32_1 = arith.constant 0 : i32
    return %c0_i32, %c0_i32_0 : i32, i32
  }
  func.func @transform_7(%arg0: i32) -> (i32, i32) {
    %c0_i32 = arith.constant 0 : i32
    %c0_i32_0 = arith.constant 0 : i32
    %c0_i32_1 = arith.constant 0 : i32
    return %c0_i32, %c0_i32_0 : i32, i32
  }
  func.func @transform_8(%arg0: i32) -> (i32, i32) {
    %c0_i32 = arith.constant 0 : i32
    %c0_i32_0 = arith.constant 0 : i32
    %c0_i32_1 = arith.constant 0 : i32
    return %c0_i32, %c0_i32_0 : i32, i32
  }
  func.func @transform_9(%arg0: i32) -> (i32, i32) {
    %c0_i32 = arith.constant 0 : i32
    %c0_i32_0 = arith.constant 0 : i32
    %c0_i32_1 = arith.constant 0 : i32
    return %c0_i32, %c0_i32_0 : i32, i32
  }
  func.func @transform_10(%arg0: i32) -> (i32, i32) {
    %c0_i32 = arith.constant 0 : i32
    %c0_i32_0 = arith.constant 0 : i32
    return %arg0, %c0_i32 : i32, i32
  }
}

module attributes {stable_mosaic.version = 11 : i64} {
  func.func @_window_attn_kernel(%arg0: i32, %arg1: i32, %arg2: i32, %arg3: memref<1x8x8x96xf32, #tpu.memory_space<vmem>>, %arg4: memref<1x1x64x64xf32, #tpu.memory_space<vmem>>, %arg5: memref<1x8x8x32xf32, #tpu.memory_space<vmem>>) attributes {dimension_semantics = [#tpu.dimension_semantics<parallel>, #tpu.dimension_semantics<parallel>, #tpu.dimension_semantics<parallel>], iteration_bounds = array<i64: 2, 2, 2>, scalar_prefetch = 0 : i64, scratch_operands = 0 : i64, tpu.core_type = #tpu.core_type<tc>, window_params = [{transform_indices = @transform_0, window_bounds = array<i64: 1, 8, 8, 96>}, {transform_indices = @transform_1, window_bounds = array<i64: 1, 1, 64, 64>}, {transform_indices = @transform_2, window_bounds = array<i64: 1, 8, 8, 32>}]} {
    %c0 = arith.constant 0 : index
    %c0_0 = arith.constant 0 : index
    %c0_1 = arith.constant 0 : index
    %c0_2 = arith.constant 0 : index
    %0 = vector.load %arg3[%c0, %c0_0, %c0_1, %c0_2] : memref<1x8x8x96xf32, #tpu.memory_space<vmem>>, vector<1x8x8x96xf32>
    %1 = vector.shape_cast %0 : vector<1x8x8x96xf32> to vector<8x8x96xf32>
    %2 = vector.shape_cast %1 : vector<8x8x96xf32> to vector<64x96xf32>
    %3 = vector.extract_strided_slice %2 {offsets = [0, 0], sizes = [64, 32], strides = [1, 1]} : vector<64x96xf32> to vector<64x32xf32>
    %cst = arith.constant 0.176776692 : f32
    %4 = vector.broadcast %cst : f32 to vector<64x32xf32>
    %5 = arith.mulf %3, %4 : vector<64x32xf32>
    %6 = vector.extract_strided_slice %2 {offsets = [0, 32], sizes = [64, 32], strides = [1, 1]} : vector<64x96xf32> to vector<64x32xf32>
    %7 = vector.extract_strided_slice %2 {offsets = [0, 64], sizes = [64, 32], strides = [1, 1]} : vector<64x96xf32> to vector<64x32xf32>
    %cst_3 = arith.constant dense<0.000000e+00> : vector<64x64xf32>
    %8 = tpu.matmul %5, %6, %cst_3 {dimension_numbers = #tpu.dot_dimension_numbers<[1], [1], [0], [0], [0, 0, 1, 0], [], []>} : vector<64x32xf32>, vector<64x32xf32>, vector<64x64xf32> -> vector<64x64xf32>
    %c0_4 = arith.constant 0 : index
    %c0_5 = arith.constant 0 : index
    %c0_6 = arith.constant 0 : index
    %c0_7 = arith.constant 0 : index
    %9 = vector.load %arg4[%c0_4, %c0_5, %c0_6, %c0_7] : memref<1x1x64x64xf32, #tpu.memory_space<vmem>>, vector<1x1x64x64xf32>
    %10 = vector.shape_cast %9 : vector<1x1x64x64xf32> to vector<64x64xf32>
    %11 = arith.addf %8, %10 : vector<64x64xf32>
    %cst_8 = arith.constant dense<0xFF800000> : vector<64xf32>
    %12 = vector.multi_reduction <maximumf>, %11, %cst_8 [1] : vector<64x64xf32> to vector<64xf32>
    %13 = vector.shape_cast %12 : vector<64xf32> to vector<64x1xf32>
    %14 = vector.broadcast %13 : vector<64x1xf32> to vector<64x64xf32>
    %15 = arith.subf %11, %14 : vector<64x64xf32>
    %16 = math.exp %15 : vector<64x64xf32>
    %cst_9 = arith.constant dense<0.000000e+00> : vector<64xf32>
    %17 = vector.multi_reduction <add>, %16, %cst_9 [1] : vector<64x64xf32> to vector<64xf32>
    %18 = vector.shape_cast %17 : vector<64xf32> to vector<64x1xf32>
    %19 = tpu.reciprocal %18 {approx = true} : vector<64x1xf32> -> vector<64x1xf32>
    %20 = vector.broadcast %19 : vector<64x1xf32> to vector<64x64xf32>
    %21 = arith.mulf %16, %20 : vector<64x64xf32>
    %cst_10 = arith.constant dense<0.000000e+00> : vector<64x32xf32>
    %22 = tpu.matmul %21, %7, %cst_10 {dimension_numbers = #tpu.dot_dimension_numbers<[1], [0], [0], [1], [0, 0, 1, 1], [], []>} : vector<64x64xf32>, vector<64x32xf32>, vector<64x32xf32> -> vector<64x32xf32>
    %23 = vector.shape_cast %22 : vector<64x32xf32> to vector<1x8x8x32xf32>
    %c0_11 = arith.constant 0 : index
    %c0_12 = arith.constant 0 : index
    %c0_13 = arith.constant 0 : index
    %c0_14 = arith.constant 0 : index
    %24 = vector.load %arg5[%c0_11, %c0_12, %c0_13, %c0_14] : memref<1x8x8x32xf32, #tpu.memory_space<vmem>>, vector<1x8x8x32xf32>
    tpu.vector_store %arg5[%c0_11, %c0_12, %c0_13, %c0_14], %23 {strides = array<i32>} : memref<1x8x8x32xf32, #tpu.memory_space<vmem>>, vector<1x8x8x32xf32>,
    return
  }
  func.func @transform_0(%arg0: i32, %arg1: i32, %arg2: i32) -> (i32, i32, i32, i32) {
    %c0_i32 = arith.constant 0 : i32
    %c0_i32_0 = arith.constant 0 : i32
    return %arg0, %arg1, %arg2, %c0_i32 : i32, i32, i32, i32
  }
  func.func @transform_1(%arg0: i32, %arg1: i32, %arg2: i32) -> (i32, i32, i32, i32) {
    %c2_i32 = arith.constant 2 : i32
    %0 = arith.muli %arg1, %c2_i32 : i32
    %1 = arith.addi %0, %arg2 : i32
    %c0_i32 = arith.constant 0 : i32
    %c0_i32_0 = arith.constant 0 : i32
    %c0_i32_1 = arith.constant 0 : i32
    %c0_i32_2 = arith.constant 0 : i32
    return %1, %c0_i32, %c0_i32_0, %c0_i32_1 : i32, i32, i32, i32
  }
  func.func @transform_2(%arg0: i32, %arg1: i32, %arg2: i32) -> (i32, i32, i32, i32) {
    %c0_i32 = arith.constant 0 : i32
    %c0_i32_0 = arith.constant 0 : i32
    return %arg0, %arg1, %arg2, %c0_i32 : i32, i32, i32, i32
  }
}

module attributes {stable_mosaic.version = 11 : i64} {
  func.func @_ln_linear_kernel(%arg0: i32, %arg1: memref<128x128xf32, #tpu.memory_space<vmem>>, %arg2: memref<1x128xf32, #tpu.memory_space<vmem>>, %arg3: memref<1x128xf32, #tpu.memory_space<vmem>>, %arg4: memref<128x64xf32, #tpu.memory_space<vmem>>, %arg5: memref<1x64xf32, #tpu.memory_space<vmem>>, %arg6: memref<128x64xf32, #tpu.memory_space<vmem>>) attributes {dimension_semantics = [#tpu.dimension_semantics<parallel>], iteration_bounds = array<i64: 1>, scalar_prefetch = 0 : i64, scratch_operands = 0 : i64, tpu.core_type = #tpu.core_type<tc>, window_params = [{transform_indices = @transform_0, window_bounds = array<i64: 128, 128>}, {pipeline_mode = #tpu.pipeline_mode<synchronous>, transform_indices = @transform_1, window_bounds = array<i64: 1, 128>}, {pipeline_mode = #tpu.pipeline_mode<synchronous>, transform_indices = @transform_2, window_bounds = array<i64: 1, 128>}, {pipeline_mode = #tpu.pipeline_mode<synchronous>, transform_indices = @transform_3, window_bounds = array<i64: 128, 64>}, {pipeline_mode = #tpu.pipeline_mode<synchronous>, transform_indices = @transform_4, window_bounds = array<i64: 1, 64>}, {transform_indices = @transform_5, window_bounds = array<i64: 128, 64>}]} {
    %c0 = arith.constant 0 : index
    %c0_0 = arith.constant 0 : index
    %0 = vector.load %arg1[%c0, %c0_0] : memref<128x128xf32, #tpu.memory_space<vmem>>, vector<128x128xf32>
    %c0_1 = arith.constant 0 : index
    %c0_2 = arith.constant 0 : index
    %1 = vector.load %arg2[%c0_1, %c0_2] : memref<1x128xf32, #tpu.memory_space<vmem>>, vector<1x128xf32>
    %c0_3 = arith.constant 0 : index
    %c0_4 = arith.constant 0 : index
    %2 = vector.load %arg3[%c0_3, %c0_4] : memref<1x128xf32, #tpu.memory_space<vmem>>, vector<1x128xf32>
    %cst = arith.constant dense<0.000000e+00> : vector<128xf32>
    %3 = vector.multi_reduction <add>, %0, %cst [1] : vector<128x128xf32> to vector<128xf32>
    %4 = vector.shape_cast %3 : vector<128xf32> to vector<128x1xf32>
    %cst_5 = arith.constant 1.280000e+02 : f32
    %5 = vector.broadcast %cst_5 : f32 to vector<128x1xf32>
    %6 = arith.divf %4, %5 : vector<128x1xf32>
    %7 = vector.broadcast %6 : vector<128x1xf32> to vector<128x128xf32>
    %8 = arith.subf %0, %7 : vector<128x128xf32>
    %9 = arith.mulf %8, %8 : vector<128x128xf32>
    %cst_6 = arith.constant dense<0.000000e+00> : vector<128xf32>
    %10 = vector.multi_reduction <add>, %9, %cst_6 [1] : vector<128x128xf32> to vector<128xf32>
    %11 = vector.shape_cast %10 : vector<128xf32> to vector<128x1xf32>
    %cst_7 = arith.constant 1.280000e+02 : f32
    %12 = vector.broadcast %cst_7 : f32 to vector<128x1xf32>
    %13 = arith.divf %11, %12 : vector<128x1xf32>
    %cst_8 = arith.constant 9.99999974E-6 : f32
    %14 = vector.broadcast %cst_8 : f32 to vector<128x1xf32>
    %15 = arith.addf %13, %14 : vector<128x1xf32>
    %16 = math.rsqrt %15 : vector<128x1xf32>
    %17 = vector.broadcast %16 : vector<128x1xf32> to vector<128x128xf32>
    %18 = arith.mulf %8, %17 : vector<128x128xf32>
    %19 = vector.broadcast %1 : vector<1x128xf32> to vector<128x128xf32>
    %20 = arith.mulf %18, %19 : vector<128x128xf32>
    %21 = vector.broadcast %2 : vector<1x128xf32> to vector<128x128xf32>
    %22 = arith.addf %20, %21 : vector<128x128xf32>
    %c0_9 = arith.constant 0 : index
    %c0_10 = arith.constant 0 : index
    %23 = vector.load %arg4[%c0_9, %c0_10] : memref<128x64xf32, #tpu.memory_space<vmem>>, vector<128x64xf32>
    %cst_11 = arith.constant dense<0.000000e+00> : vector<128x64xf32>
    %24 = tpu.matmul %22, %23, %cst_11 {dimension_numbers = #tpu.dot_dimension_numbers<[1], [0], [0], [1], [0, 0, 1, 1], [], []>} : vector<128x128xf32>, vector<128x64xf32>, vector<128x64xf32> -> vector<128x64xf32>
    %c0_12 = arith.constant 0 : index
    %c0_13 = arith.constant 0 : index
    %25 = vector.load %arg5[%c0_12, %c0_13] : memref<1x64xf32, #tpu.memory_space<vmem>>, vector<1x64xf32>
    %26 = vector.broadcast %25 : vector<1x64xf32> to vector<128x64xf32>
    %27 = arith.addf %24, %26 : vector<128x64xf32>
    %c0_14 = arith.constant 0 : index
    %c0_15 = arith.constant 0 : index
    %28 = vector.load %arg6[%c0_14, %c0_15] : memref<128x64xf32, #tpu.memory_space<vmem>>, vector<128x64xf32>
    tpu.vector_store %arg6[%c0_14, %c0_15], %27 {strides = array<i32>} : memref<128x64xf32, #tpu.memory_space<vmem>>, vector<128x64xf32>,
    return
  }
  func.func @transform_0(%arg0: i32) -> (i32, i32) {
    %c0_i32 = arith.constant 0 : i32
    %c0_i32_0 = arith.constant 0 : i32
    return %arg0, %c0_i32 : i32, i32
  }
  func.func @transform_1(%arg0: i32) -> (i32, i32) {
    %c0_i32 = arith.constant 0 : i32
    %c0_i32_0 = arith.constant 0 : i32
    %c0_i32_1 = arith.constant 0 : i32
    return %c0_i32, %c0_i32_0 : i32, i32
  }
  func.func @transform_2(%arg0: i32) -> (i32, i32) {
    %c0_i32 = arith.constant 0 : i32
    %c0_i32_0 = arith.constant 0 : i32
    %c0_i32_1 = arith.constant 0 : i32
    return %c0_i32, %c0_i32_0 : i32, i32
  }
  func.func @transform_3(%arg0: i32) -> (i32, i32) {
    %c0_i32 = arith.constant 0 : i32
    %c0_i32_0 = arith.constant 0 : i32
    %c0_i32_1 = arith.constant 0 : i32
    return %c0_i32, %c0_i32_0 : i32, i32
  }
  func.func @transform_4(%arg0: i32) -> (i32, i32) {
    %c0_i32 = arith.constant 0 : i32
    %c0_i32_0 = arith.constant 0 : i32
    %c0_i32_1 = arith.constant 0 : i32
    return %c0_i32, %c0_i32_0 : i32, i32
  }
  func.func @transform_5(%arg0: i32) -> (i32, i32) {
    %c0_i32 = arith.constant 0 : i32
    %c0_i32_0 = arith.constant 0 : i32
    return %arg0, %c0_i32 : i32, i32
  }
}

</mosaic_0001>

<llo_original>
// kernel: down_block_forward.8
$region0: #{down_block_forward.8}
  #allocation0 [shape = 'u32[]', space=smem, size = 0x4, offset = 0x4, fixed_abs, tag = 'smem constant byte address 0x4 - core index']
  #allocation1 [shape = 'u32[72,128]{1,0:T(1,128)}', space=vmem, size = 0x9000, scoped, tag = 'internal scratch']
  %s0 = inlined_call_operand.vmem [shape: f32[2,16,16,96], index: 0, kind: input, shape index: {}]
  %s1 = inlined_call_operand.vmem [shape: f32[1,1,64,64], index: 1, kind: input, shape index: {}]
  %s2 = inlined_call_operand.vmem [shape: f32[2,16,16,32], index: 2, kind: output, shape index: {}]
  %s3 = sld [smem:[#allocation0]]
  $region113: #{down_block_forward.8} parent=0
    _
  %s5 = ssub.s32 1, %s3
  %s6 = scalar_select 0, %s5, %s3
  $region1: #{down_block_forward.8} parent=0
    #allocation2 [shape = 'u8[65536]{0}', space=vmem, size = 0x10000, scoped, tag = 'input window, operand 0']
    #allocation3 [shape = 'u8[65536]{0}', space=vmem, size = 0x10000, scoped, tag = 'output window, operand 0']
    loop: start=0, step=1, limit=10
    $region2: #{down_block_forward.8} parent=1 // loop_pre_header
      _
    $region3: #{down_block_forward.8} parent=1 // loop_header
      %s8 = sphi 0, %s12
      %p9 = scmp.ge.s32.totalorder %s8, 10
      %s15 = sphi 0, %s34
      %s16 = sphi 0, %s30
      %s17 = sphi 0, %s26
      %s18 = sphi 0, %s15
      %s19 = sphi 0, %s16
      %s20 = sphi 0, %s17
      %s21 = sphi 0, %s18
      %s22 = sphi 0, %s19
      %s23 = sphi 0, %s20
      %s41 = sphi 0, %s43
      %s44 = sphi 0, %s41
      %s45 = sphi 0, %s44
      %s61 = sphi 0, %s45
      %s65 = sphi 0, %s65
      %s67 = sphi 0, %s65
      %s68 = sphi 0, %s67
      %s82 = sphi 0, %s68
      %s92 = sphi 0, %s94
      %s95 = sphi 0, %s92
      %s96 = sphi 0, %s95
      %s112 = sphi 0, %s96
    $region4: #{down_block_forward.8} parent=1 // loop_header_branch
      %11 = sbr.rel (%p9) target = $region8
    $region5: #{down_block_forward.8} parent=1 // loop_body
      %s13 = ssub.s32 %s8, 1
      %s14 = ssub.s32 %s8, 2
      %s24 = sadd.s32 1, %s17
      %p25 = scmp.ge.s32.totalorder %s24, 2
      %s26 = scalar_select %p25, 0, %s24
      %s27 = sadd.s32 1, %s16
      %s28 = scalar_select %p25, %s27, %s16
      %p29 = scmp.ge.s32.totalorder %s28, 2
      %s30 = scalar_select %p29, 0, %s28
      %s31 = sadd.s32 1, %s15
      %s32 = scalar_select %p29, %s31, %s15
      %p33 = scmp.ge.s32.totalorder %s32, 2
      %s34 = scalar_select %p33, 0, %s32
      %s35 = ssub.s32 %s15, %s34
      %s36 = ssub.s32 %s16, %s30
      %s37 = sor.u32 %s35, %s36
      %s38 = ssub.s32 %s17, %s26
      %s39 = sor.u32 %s37, %s38
      %p40 = scmp.eq.s32.totalorder %s39, 0
      %s42 = sadd.s32 %s41, 1
      %s43 = scalar_select %p40, %s41, %s42
      %p46 = pneg %p40
      %p47 = scmp.eq.s32.totalorder %s8, 7
      %p48 = por %p46, %p47
      %p49 = scmp.ne.s32.totalorder %s41, %s44
      %p50 = scmp.eq.s32.totalorder %s8, 0
      %p51 = por %p49, %p50
      %p52 = scmp.ne.s32.totalorder %s41, %s44
      %p53 = scmp.eq.s32.totalorder %s13, 7
      %p54 = por %p52, %p53
      %p55 = scmp.ne.s32.totalorder %s44, %s45
      %p56 = scmp.eq.s32.totalorder %s13, 0
      %p57 = por %p55, %p56
      %p58 = scmp.ne.s32.totalorder %s44, %s45
      %p59 = scmp.eq.s32.totalorder %s14, 7
      %p60 = por %p58, %p59
      %p62 = scmp.ne.s32.totalorder %s45, %s61
      %p63 = scmp.eq.s32.totalorder %s14, 0
      %p64 = por %p62, %p63
      %s66 = sadd.s32 %s65, 1
      %p69 = scmp.eq.s32.totalorder %s8, 7
      %p70 = scmp.ne.s32.totalorder %s65, %s67
      %p71 = scmp.eq.s32.totalorder %s8, 0
      %p72 = por %p70, %p71
      %p73 = scmp.ne.s32.totalorder %s65, %s67
      %p74 = scmp.eq.s32.totalorder %s13, 7
      %p75 = por %p73, %p74
      %p76 = scmp.ne.s32.totalorder %s67, %s68
      %p77 = scmp.eq.s32.totalorder %s13, 0
      %p78 = por %p76, %p77
      %p79 = scmp.ne.s32.totalorder %s67, %s68
      %p80 = scmp.eq.s32.totalorder %s14, 7
      %p81 = por %p79, %p80
      %p83 = scmp.ne.s32.totalorder %s68, %s82
      %p84 = scmp.eq.s32.totalorder %s14, 0
      %p85 = por %p83, %p84
      %s86 = ssub.s32 %s15, %s34
      %s87 = ssub.s32 %s16, %s30
      %s88 = sor.u32 %s86, %s87
      %s89 = ssub.s32 %s17, %s26
      %s90 = sor.u32 %s88, %s89
      %p91 = scmp.eq.s32.totalorder %s90, 0
      %s93 = sadd.s32 %s92, 1
      %s94 = scalar_select %p91, %s92, %s93
      %p97 = pneg %p91
      %p98 = scmp.eq.s32.totalorder %s8, 7
      %p99 = por %p97, %p98
      %p100 = scmp.ne.s32.totalorder %s92, %s95
      %p101 = scmp.eq.s32.totalorder %s8, 0
      %p102 = por %p100, %p101
      %p103 = scmp.ne.s32.totalorder %s92, %s95
      %p104 = scmp.eq.s32.totalorder %s13, 7
      %p105 = por %p103, %p104
      %p106 = scmp.ne.s32.totalorder %s95, %s96
      %p107 = scmp.eq.s32.totalorder %s13, 0
      %p108 = por %p106, %p107
      %p109 = scmp.ne.s32.totalorder %s95, %s96
      %p110 = scmp.eq.s32.totalorder %s14, 7
      %p111 = por %p109, %p110
      %p113 = scmp.ne.s32.totalorder %s96, %s112
      %p114 = scmp.eq.s32.totalorder %s14, 0
      %p115 = por %p113, %p114
      %p116 = scmp.le.s32.totalorder 1, %s8
      %p117 = scmp.lt.s32.totalorder %s8, 9
      %p118 = pnand %p116, %p117
      %p119 = pneg %p118
      // Predicated region
      $region9: #{down_block_forward.8} parent=5 // pred_check
        _
      $region10: #{down_block_forward.8} parent=5 // pred_check_branch
        %121 = sbr.rel (%p118) target = $region12
      $region11: #{down_block_forward.8} parent=5 // pred_region
        %s122 = ssub.s32 %s8, 1
        // Predicated region
        $region13: #{down_block_forward.8} parent=11 // pred_check
          %p123 = pneg %p78
        $region14: #{down_block_forward.8} parent=11 // pred_check_branch
          %125 = sbr.rel (%p123) target = $region16
        $region15: #{down_block_forward.8} parent=11 // pred_region
          _
        $region16: #{down_block_forward.8} parent=11 // pred_fallthru
          _
      $region12: #{down_block_forward.8} parent=5 // pred_fallthru
        _
      %p126 = scmp.lt.s32.totalorder %s8, 8
      // Predicated region
      $region17: #{down_block_forward.8} parent=5 // pred_check
        %p127 = pneg %p126
      $region18: #{down_block_forward.8} parent=5 // pred_check_branch
        %129 = sbr.rel (%p127) target = $region20
      $region19: #{down_block_forward.8} parent=5 // pred_region
        // Predicated region
        $region21: #{down_block_forward.8} parent=19 // pred_check
          %p130 = pneg %p51
        $region22: #{down_block_forward.8} parent=19 // pred_check_branch
          %132 = sbr.rel (%p130) target = $region24
        $region23: #{down_block_forward.8} parent=19 // pred_region
          %s133 = sand.u32 %s41, 1
          %s134 = sand.u32 %s41, 1
          %s135 = smul.addr %s134, 64
          %s136 = scalar_lea.vmem [#allocation2], %s135
          %s137 = smul.u32 8, %s16
          %s138 = smul.addr %s137, 2
          %s139 = sadd.s32 %s17, %s138
          %s140 = smul.addr %s15, 32
          %s141 = sadd.s32 %s139, %s140
          %s142 = smul.addr %s141, 8
          %s143 = scalar_lea.vmem %s0, %s142
          // Predicated region
          $region25: #{down_block_forward.8} parent=23 // pred_check
            _
          $region26: #{down_block_forward.8} parent=23 // pred_check_branch
            %145 = sbr.rel (0) target = $region28
          $region27: #{down_block_forward.8} parent=23 // pred_region
            // Predicated region
            $region29: #{down_block_forward.8} parent=27 // pred_check
              _
            $region30: #{down_block_forward.8} parent=27 // pred_check_branch
              %147 = sbr.rel (0) target = $region32
            $region31: #{down_block_forward.8} parent=27 // pred_region
              // Predicated region
              $region44: #{down_block_forward.8} parent=31 // pred_check
                _
              $region45: #{down_block_forward.8} parent=31 // pred_check_branch
                %177 = sbr.rel (0) target = $region47
              $region46: #{down_block_forward.8} parent=31 // pred_region
                loop: start=0, step=1, limit=1
                $region48: #{down_block_forward.8} parent=46 // loop_pre_header
                  _
                $region49: #{down_block_forward.8} parent=46 // loop_header
                  %s179 = sphi 0, %s183
                  %p180 = scmp.ge.s32.totalorder %s179, 1
                  %s184 = sphi %s143, %s143
                  %s185 = sphi %s136, %s136
                $region50: #{down_block_forward.8} parent=46 // loop_header_branch
                  %182 = sbr.rel (%p180) target = $region54
                $region51: #{down_block_forward.8} parent=46 // loop_body
                  %v186 = vld [vmem:[%s184] sm:$0xff]
                  %187 = vst [vmem:[%s185] sm:$0xff] %v186
                  %v188 = vld [vmem:[%s184 + $0x10] sm:$0xff]
                  %189 = vst [vmem:[%s185 + $0x8] sm:$0xff] %v188
                  %v190 = vld [vmem:[%s184 + $0x20] sm:$0xff]
                  %191 = vst [vmem:[%s185 + $0x10] sm:$0xff] %v190
                  %v192 = vld [vmem:[%s184 + $0x30] sm:$0xff]
                  %193 = vst [vmem:[%s185 + $0x18] sm:$0xff] %v192
                  %v194 = vld [vmem:[%s184 + $0x40] sm:$0xff]
                  %195 = vst [vmem:[%s185 + $0x20] sm:$0xff] %v194
                  %v196 = vld [vmem:[%s184 + $0x50] sm:$0xff]
                  %197 = vst [vmem:[%s185 + $0x28] sm:$0xff] %v196
                  %v198 = vld [vmem:[%s184 + $0x60] sm:$0xff]
                  %199 = vst [vmem:[%s185 + $0x30] sm:$0xff] %v198
                  %v200 = vld [vmem:[%s184 + $0x70] sm:$0xff]
                  %201 = vst [vmem:[%s185 + $0x38] sm:$0xff] %v200
                $region52: #{down_block_forward.8} parent=46 // loop_footer
                  %s183 = sadd.s32 1, %s179
                $region53: #{down_block_forward.8} parent=46 // loop_footer_branch
                  %178 = sbr.rel target = $region49
                $region54: #{down_block_forward.8} parent=46 // loop_exit
                  _
              $region47: #{down_block_forward.8} parent=31 // pred_fallthru
                _
              // Predicated region
              $region55: #{down_block_forward.8} parent=31 // pred_check
                _
              $region56: #{down_block_forward.8} parent=31 // pred_check_branch
                %203 = sbr.rel target = $region58
              $region57: #{down_block_forward.8} parent=31 // pred_region
                _
              $region58: #{down_block_forward.8} parent=31 // pred_fallthru
                _
            $region32: #{down_block_forward.8} parent=27 // pred_fallthru
              _
            // Predicated region
            $region33: #{down_block_forward.8} parent=27 // pred_check
              _
            $region34: #{down_block_forward.8} parent=27 // pred_check_branch
              %149 = sbr.rel target = $region36
            $region35: #{down_block_forward.8} parent=27 // pred_region
              %s151 = ssub.s32 256, 1
              loop: start=0, step=1, limit=1
              $region37: #{down_block_forward.8} parent=35 // loop_pre_header
                _
              $region38: #{down_block_forward.8} parent=35 // loop_header
                %s153 = sphi 0, %s157
                %p154 = scmp.ge.s32.totalorder %s153, 1
                %s158 = sphi %s143, %s143
                %s159 = sphi %s136, %s136
              $region39: #{down_block_forward.8} parent=35 // loop_header_branch
                %156 = sbr.rel (%p154) target = $region43
              $region40: #{down_block_forward.8} parent=35 // loop_body
                %v160 = vld [vmem:[%s158] sm:%s151]
                %161 = vst [vmem:[%s159] sm:%s151] %v160
                %v162 = vld [vmem:[%s158 + $0x10] sm:%s151]
                %163 = vst [vmem:[%s159 + $0x8] sm:%s151] %v162
                %v164 = vld [vmem:[%s158 + $0x20] sm:%s151]
                %165 = vst [vmem:[%s159 + $0x10] sm:%s151] %v164
                %v166 = vld [vmem:[%s158 + $0x30] sm:%s151]
                %167 = vst [vmem:[%s159 + $0x18] sm:%s151] %v166
                %v168 = vld [vmem:[%s158 + $0x40] sm:%s151]
                %169 = vst [vmem:[%s159 + $0x20] sm:%s151] %v168
                %v170 = vld [vmem:[%s158 + $0x50] sm:%s151]
                %171 = vst [vmem:[%s159 + $0x28] sm:%s151] %v170
                %v172 = vld [vmem:[%s158 + $0x60] sm:%s151]
                %173 = vst [vmem:[%s159 + $0x30] sm:%s151] %v172
                %v174 = vld [vmem:[%s158 + $0x70] sm:%s151]
                %175 = vst [vmem:[%s159 + $0x38] sm:%s151] %v174
              $region41: #{down_block_forward.8} parent=35 // loop_footer
                %s157 = sadd.s32 1, %s153
              $region42: #{down_block_forward.8} parent=35 // loop_footer_branch
                %152 = sbr.rel target = $region38
              $region43: #{down_block_forward.8} parent=35 // loop_exit
                _
            $region36: #{down_block_forward.8} parent=27 // pred_fallthru
              _
          $region28: #{down_block_forward.8} parent=23 // pred_fallthru
            _
          %204 = vnop
        $region24: #{down_block_forward.8} parent=19 // pred_fallthru
          _
      $region20: #{down_block_forward.8} parent=5 // pred_fallthru
        _
      %p205 = scmp.le.s32.totalorder 1, %s8
      %p206 = scmp.lt.s32.totalorder %s8, 9
      %p207 = pnand %p205, %p206
      %p208 = pneg %p207
      // Predicated region
      $region59: #{down_block_forward.8} parent=5 // pred_check
        _
      $region60: #{down_block_forward.8} parent=5 // pred_check_branch
        %210 = sbr.rel (%p207) target = $region62
      $region61: #{down_block_forward.8} parent=5 // pred_region
        %s211 = ssub.s32 %s8, 1
        %s212 = sand.u32 %s44, 1
        %s213 = sand.u32 %s44, 1
        %s214 = smul.addr %s213, 64
        %s215 = scalar_lea.vmem [#allocation2], %s214
        // Predicated region
        $region63: #{down_block_forward.8} parent=61 // pred_check
          %p216 = pneg %p57
        $region64: #{down_block_forward.8} parent=61 // pred_check_branch
          %218 = sbr.rel (%p216) target = $region66
        $region65: #{down_block_forward.8} parent=61 // pred_region
          _
        $region66: #{down_block_forward.8} parent=61 // pred_fallthru
          _
        %s219 = sand.u32 %s44, 1
        %s220 = sand.u32 %s44, 1
        %s221 = smul.addr %s220, 64
        %s222 = scalar_lea.vmem [#allocation2], %s221
        %p223 = pneg %p57
        %p224 = pneg %p54
        %p225 = pneg %p78
        %p226 = pneg %p75
        %p227 = pneg %p108
        %p228 = pneg %p105
        %s229 = sand.u32 %s95, 1
        %s230 = sand.u32 %s95, 1
        %s231 = smul.addr %s230, 64
        %s232 = scalar_lea.vmem [#allocation3], %s231
        %s233 = smul.u32 8, %s19
        %s234 = smul.u32 8, %s19
        %v235 = vld [vmem:[%s215] sm:$0xff]
        %v236 = vld [vmem:[%s215 + $0x8] sm:$0xff]
        %v237 = vld [vmem:[%s215 + $0x10] sm:$0xff]
        %v238 = vld [vmem:[%s215 + $0x18] sm:$0xff]
        %v239 = vld [vmem:[%s215 + $0x20] sm:$0xff]
        %v240 = vld [vmem:[%s215 + $0x28] sm:$0xff]
        %v241 = vld [vmem:[%s215 + $0x30] sm:$0xff]
        %v242 = vld [vmem:[%s215 + $0x38] sm:$0xff]
        %v243 = vmul.f32 %v235, 0.17677669
        %v244 = vmul.f32 %v236, 0.17677669
        %v245 = vmul.f32 %v237, 0.17677669
        %v246 = vmul.f32 %v238, 0.17677669
        %v247 = vmul.f32 %v239, 0.17677669
        %v248 = vmul.f32 %v240, 0.17677669
        %v249 = vmul.f32 %v241, 0.17677669
        %v250 = vmul.f32 %v242, 0.17677669
        %v251 = vld [vmem:[%s1] sm:$0xff]
        %v252 = vld [vmem:[%s1 + $0x8] sm:$0xff]
        %v253 = vld [vmem:[%s1 + $0x10] sm:$0xff]
        %v254 = vld [vmem:[%s1 + $0x18] sm:$0xff]
        %v255 = vld [vmem:[%s1 + $0x20] sm:$0xff]
        %v256 = vld [vmem:[%s1 + $0x28] sm:$0xff]
        %v257 = vld [vmem:[%s1 + $0x30] sm:$0xff]
        %v258 = vld [vmem:[%s1 + $0x38] sm:$0xff]
        %267 = vrot.lane.b32.xlu0 %v235, 96
        %v268 = vpop.permute.xlu0 %267
        %269 = vrot.lane.b32.xlu0 %v236, 96
        %v270 = vpop.permute.xlu0 %269
        %271 = vrot.lane.b32.xlu0 %v237, 96
        %v272 = vpop.permute.xlu0 %271
        %273 = vrot.lane.b32.xlu0 %v238, 96
        %v274 = vpop.permute.xlu0 %273
        %275 = vrot.lane.b32.xlu0 %v239, 96
        %v276 = vpop.permute.xlu0 %275
        %277 = vrot.lane.b32.xlu0 %v240, 96
        %v278 = vpop.permute.xlu0 %277
        %279 = vrot.lane.b32.xlu0 %v241, 96
        %v280 = vpop.permute.xlu0 %279
        %281 = vrot.lane.b32.xlu0 %v242, 96
        %v282 = vpop.permute.xlu0 %281
        %vm283 = vcmask 261120
        %v285 = vsel %vm283, %v243, 0
        %v288 = vsel %vm283, %v244, 0
        %v291 = vsel %vm283, %v245, 0
        %v294 = vsel %vm283, %v246, 0
        %v297 = vsel %vm283, %v247, 0
        %v300 = vsel %vm283, %v248, 0
        %v303 = vsel %vm283, %v249, 0
        %v306 = vsel %vm283, %v250, 0
        %v308 = vsel %vm283, %v268, 0
        %v310 = vsel %vm283, %v270, 0
        %v312 = vsel %vm283, %v272, 0
        %v314 = vsel %vm283, %v274, 0
        %v316 = vsel %vm283, %v276, 0
        %v318 = vsel %vm283, %v278, 0
        %v320 = vsel %vm283, %v280, 0
        %v322 = vsel %vm283, %v282, 0
        %324 = vmatpush.xpose.msra.mxu0 0.0
        %325 = vmatpush.xpose.msra.mxu0 0.0
        %326 = vmatpush.xpose.msra.mxu0 0.0
        %327 = vmatpush.xpose.msra.mxu0 0.0
        %328 = vmatpush.xpose.msra.mxu0 0.0
        %329 = vmatpush.xpose.msra.mxu0 0.0
        %330 = vmatpush.xpose.msra.mxu0 0.0
        %331 = vmatpush.xpose.msra.mxu0 0.0
        %332 = vmatpush.xpose.msra.mxu0 %v322
        %333 = vmatpush.xpose.msra.mxu0 %v320
        %334 = vmatpush.xpose.msra.mxu0 %v318
        %335 = vmatpush.xpose.msra.mxu0 %v316
        %336 = vmatpush.xpose.msra.mxu0 %v314
        %337 = vmatpush.xpose.msra.mxu0 %v312
        %338 = vmatpush.xpose.msra.mxu0 %v310
        %339 = vmatpush.xpose.msra.mxu0 %v308
        %340 = vmatmul.f32.gmra.mxu0 %v285
        %v341 = vpop.f32.mrf.mxu0
        %v342 = vadd.f32 %v251, %v341
        %343 = vmatmul.f32.gmra.mxu0 %v288
        %v344 = vpop.f32.mrf.mxu0
        %v345 = vadd.f32 %v252, %v344
        %346 = vmatmul.f32.gmra.mxu0 %v291
        %v347 = vpop.f32.mrf.mxu0
        %v348 = vadd.f32 %v253, %v347
        %349 = vmatmul.f32.gmra.mxu0 %v294
        %v350 = vpop.f32.mrf.mxu0
        %v351 = vadd.f32 %v254, %v350
        %352 = vmatmul.f32.gmra.mxu0 %v297
        %v353 = vpop.f32.mrf.mxu0
        %v354 = vadd.f32 %v255, %v353
        %355 = vmatmul.f32.gmra.mxu0 %v300
        %v356 = vpop.f32.mrf.mxu0
        %v357 = vadd.f32 %v256, %v356
        %358 = vmatmul.f32.gmra.mxu0 %v303
        %v359 = vpop.f32.mrf.mxu0
        %v360 = vadd.f32 %v257, %v359
        %361 = vmatmul.f32.gmra.mxu0 %v306
        %v362 = vpop.f32.mrf.mxu0
        %v363 = vadd.f32 %v258, %v362
        %364 = vdwg.mxu0
        %vm365 = vcmask 523264
        %v366 = vsel %vm365, %v342, -inf
        %367 = vmax.xlane.f32.xlu0 %v366
        %v368 = vpop.xlane.xlu0 %367
        %v369 = vsel %vm365, %v345, -inf
        %370 = vmax.xlane.f32.xlu0 %v369
        %v371 = vpop.xlane.xlu0 %370
        %v372 = vsel %vm365, %v348, -inf
        %373 = vmax.xlane.f32.xlu0 %v372
        %v374 = vpop.xlane.xlu0 %373
        %v375 = vsel %vm365, %v351, -inf
        %376 = vmax.xlane.f32.xlu0 %v375
        %v377 = vpop.xlane.xlu0 %376
        %v378 = vsel %vm365, %v354, -inf
        %379 = vmax.xlane.f32.xlu0 %v378
        %v380 = vpop.xlane.xlu0 %379
        %v381 = vsel %vm365, %v357, -inf
        %382 = vmax.xlane.f32.xlu0 %v381
        %v383 = vpop.xlane.xlu0 %382
        %v384 = vsel %vm365, %v360, -inf
        %385 = vmax.xlane.f32.xlu0 %v384
        %v386 = vpop.xlane.xlu0 %385
        %v387 = vsel %vm365, %v363, -inf
        %388 = vmax.xlane.f32.xlu0 %v387
        %v389 = vpop.xlane.xlu0 %388
        %v390 = vsub.f32 %v342, %v368
        %v391 = vsub.f32 %v345, %v371
        %v392 = vsub.f32 %v348, %v374
        %v393 = vsub.f32 %v351, %v377
        %v394 = vsub.f32 %v354, %v380
        %v395 = vsub.f32 %v357, %v383
        %v396 = vsub.f32 %v360, %v386
        %v397 = vsub.f32 %v363, %v389
        %v398 = vmul.f32 %v390, 1.442695
        %v399 = vpow.pop %v398
        %v400 = vmul.f32 %v391, 1.442695
        %v401 = vpow.pop %v400
        %v402 = vmul.f32 %v392, 1.442695
        %v403 = vpow.pop %v402
        %v404 = vmul.f32 %v393, 1.442695
        %v405 = vpow.pop %v404
        %v406 = vmul.f32 %v394, 1.442695
        %v407 = vpow.pop %v406
        %v408 = vmul.f32 %v395, 1.442695
        %v409 = vpow.pop %v408
        %v410 = vmul.f32 %v396, 1.442695
        %v411 = vpow.pop %v410
        %v412 = vmul.f32 %v397, 1.442695
        %v413 = vpow.pop %v412
        %v414 = vsel %vm365, %v399, 0.0
        %415 = vadd.xlane.f32.xlu0 %v414
        %v416 = vpop.xlane.xlu0 %415
        %v417 = vsel %vm365, %v401, 0.0
        %418 = vadd.xlane.f32.xlu0 %v417
        %v419 = vpop.xlane.xlu0 %418
        %v420 = vsel %vm365, %v403, 0.0
        %421 = vadd.xlane.f32.xlu0 %v420
        %v422 = vpop.xlane.xlu0 %421
        %v423 = vsel %vm365, %v405, 0.0
        %424 = vadd.xlane.f32.xlu0 %v423
        %v425 = vpop.xlane.xlu0 %424
        %v426 = vsel %vm365, %v407, 0.0
        %427 = vadd.xlane.f32.xlu0 %v426
        %v428 = vpop.xlane.xlu0 %427
        %v429 = vsel %vm365, %v409, 0.0
        %430 = vadd.xlane.f32.xlu0 %v429
        %v431 = vpop.xlane.xlu0 %430
        %v432 = vsel %vm365, %v411, 0.0
        %433 = vadd.xlane.f32.xlu0 %v432
        %v434 = vpop.xlane.xlu0 %433
        %v435 = vsel %vm365, %v413, 0.0
        %436 = vadd.xlane.f32.xlu0 %v435
        %v437 = vpop.xlane.xlu0 %436
        %v438 = vrcp.pop %v416
        %v439 = vrcp.pop %v419
        %v440 = vrcp.pop %v422
        %v441 = vrcp.pop %v425
        %v442 = vrcp.pop %v428
        %v443 = vrcp.pop %v431
        %v444 = vrcp.pop %v434
        %v445 = vrcp.pop %v437
        %v446 = vmul.f32 %v399, %v438
        %v447 = vmul.f32 %v401, %v439
        %v448 = vmul.f32 %v403, %v440
        %v449 = vmul.f32 %v405, %v441
        %v450 = vmul.f32 %v407, %v442
        %v451 = vmul.f32 %v409, %v443
        %v452 = vmul.f32 %v411, %v444
        %v453 = vmul.f32 %v413, %v445
        %454 = vrot.lane.b32.xlu0 %v235, 64
        %v455 = vpop.permute.xlu0 %454
        %456 = vrot.lane.b32.xlu0 %v236, 64
        %v457 = vpop.permute.xlu0 %456
        %458 = vrot.lane.b32.xlu0 %v237, 64
        %v459 = vpop.permute.xlu0 %458
        %460 = vrot.lane.b32.xlu0 %v238, 64
        %v461 = vpop.permute.xlu0 %460
        %462 = vrot.lane.b32.xlu0 %v239, 64
        %v463 = vpop.permute.xlu0 %462
        %464 = vrot.lane.b32.xlu0 %v240, 64
        %v465 = vpop.permute.xlu0 %464
        %466 = vrot.lane.b32.xlu0 %v241, 64
        %v467 = vpop.permute.xlu0 %466
        %468 = vrot.lane.b32.xlu0 %v242, 64
        %v469 = vpop.permute.xlu0 %468
        %v479 = vsel %vm365, %v446, 0
        %v482 = vsel %vm365, %v447, 0
        %v485 = vsel %vm365, %v448, 0
        %v488 = vsel %vm365, %v449, 0
        %v491 = vsel %vm365, %v450, 0
        %v494 = vsel %vm365, %v451, 0
        %v497 = vsel %vm365, %v452, 0
        %v500 = vsel %vm365, %v453, 0
        %502 = vmatpush.msra.mxu0 0.0
        %503 = vmatpush.msra.mxu0 0.0
        %504 = vmatpush.msra.mxu0 0.0
        %505 = vmatpush.msra.mxu0 0.0
        %506 = vmatpush.msra.mxu0 0.0
        %507 = vmatpush.msra.mxu0 0.0
        %508 = vmatpush.msra.mxu0 0.0
        %509 = vmatpush.msra.mxu0 0.0
        %510 = vmatpush.msra.mxu0 %v469
        %511 = vmatpush.msra.mxu0 %v467
        %512 = vmatpush.msra.mxu0 %v465
        %513 = vmatpush.msra.mxu0 %v463
        %514 = vmatpush.msra.mxu0 %v461
        %515 = vmatpush.msra.mxu0 %v459
        %516 = vmatpush.msra.mxu0 %v457
        %517 = vmatpush.msra.mxu0 %v455
        %518 = vmatmul.f32.gmra.mxu0 %v479
        %v519 = vpop.f32.mrf.mxu0
        %v520 = vadd.f32 0.0, %v519
        %521 = vmatmul.f32.gmra.mxu0 %v482
        %v522 = vpop.f32.mrf.mxu0
        %v523 = vadd.f32 0.0, %v522
        %524 = vmatmul.f32.gmra.mxu0 %v485
        %v525 = vpop.f32.mrf.mxu0
        %v526 = vadd.f32 0.0, %v525
        %527 = vmatmul.f32.gmra.mxu0 %v488
        %v528 = vpop.f32.mrf.mxu0
        %v529 = vadd.f32 0.0, %v528
        %530 = vmatmul.f32.gmra.mxu0 %v491
        %v531 = vpop.f32.mrf.mxu0
        %v532 = vadd.f32 0.0, %v531
        %533 = vmatmul.f32.gmra.mxu0 %v494
        %v534 = vpop.f32.mrf.mxu0
        %v535 = vadd.f32 0.0, %v534
        %536 = vmatmul.f32.gmra.mxu0 %v497
        %v537 = vpop.f32.mrf.mxu0
        %v538 = vadd.f32 0.0, %v537
        %539 = vmatmul.f32.gmra.mxu0 %v500
        %v540 = vpop.f32.mrf.mxu0
        %v541 = vadd.f32 0.0, %v540
        %542 = vdwg.mxu0
        %543 = vst.msk [vmem:[%s232] sm:$0xff] %vm283, %v520
        %544 = vst.msk [vmem:[%s232 + $0x8] sm:$0xff] %vm283, %v523
        %545 = vst.msk [vmem:[%s232 + $0x10] sm:$0xff] %vm283, %v526
        %546 = vst.msk [vmem:[%s232 + $0x18] sm:$0xff] %vm283, %v529
        %547 = vst.msk [vmem:[%s232 + $0x20] sm:$0xff] %vm283, %v532
        %548 = vst.msk [vmem:[%s232 + $0x28] sm:$0xff] %vm283, %v535
        %549 = vst.msk [vmem:[%s232 + $0x30] sm:$0xff] %vm283, %v538
        %550 = vst.msk [vmem:[%s232 + $0x38] sm:$0xff] %vm283, %v541
        %s551 = sand.u32 %s95, 1
        %s552 = sand.u32 %s95, 1
        %s553 = smul.addr %s552, 64
        %s554 = scalar_lea.vmem [#allocation3], %s553
        // Predicated region
        $region67: #{down_block_forward.8} parent=61 // pred_check
          %p555 = pneg %p105
        $region68: #{down_block_forward.8} parent=61 // pred_check_branch
          %557 = sbr.rel (%p555) target = $region70
        $region69: #{down_block_forward.8} parent=61 // pred_region
          %s558 = smul.u32 8, %s19
          %s559 = smul.addr %s558, 2
          %s560 = sadd.s32 %s20, %s559
          %s561 = smul.addr %s18, 32
          %s562 = sadd.s32 %s560, %s561
          %s563 = smul.addr %s562, 8
          %s564 = scalar_lea.vmem %s2, %s563
          // Predicated region
          $region71: #{down_block_forward.8} parent=69 // pred_check
            _
          $region72: #{down_block_forward.8} parent=69 // pred_check_branch
            %566 = sbr.rel (0) target = $region74
          $region73: #{down_block_forward.8} parent=69 // pred_region
            // Predicated region
            $region75: #{down_block_forward.8} parent=73 // pred_check
              _
            $region76: #{down_block_forward.8} parent=73 // pred_check_branch
              %568 = sbr.rel (0) target = $region78
            $region77: #{down_block_forward.8} parent=73 // pred_region
              // Predicated region
              $region90: #{down_block_forward.8} parent=77 // pred_check
                _
              $region91: #{down_block_forward.8} parent=77 // pred_check_branch
                %598 = sbr.rel (0) target = $region93
              $region92: #{down_block_forward.8} parent=77 // pred_region
                loop: start=0, step=1, limit=1
                $region94: #{down_block_forward.8} parent=92 // loop_pre_header
                  _
                $region95: #{down_block_forward.8} parent=92 // loop_header
                  %s600 = sphi 0, %s604
                  %p601 = scmp.ge.s32.totalorder %s600, 1
                  %s605 = sphi %s554, %s554
                  %s606 = sphi %s564, %s564
                $region96: #{down_block_forward.8} parent=92 // loop_header_branch
                  %603 = sbr.rel (%p601) target = $region100
                $region97: #{down_block_forward.8} parent=92 // loop_body
                  %v607 = vld [vmem:[%s605] sm:$0xff]
                  %608 = vst [vmem:[%s606] sm:$0xff] %v607
                  %v609 = vld [vmem:[%s605 + $0x8] sm:$0xff]
                  %610 = vst [vmem:[%s606 + $0x10] sm:$0xff] %v609
                  %v611 = vld [vmem:[%s605 + $0x10] sm:$0xff]
                  %612 = vst [vmem:[%s606 + $0x20] sm:$0xff] %v611
                  %v613 = vld [vmem:[%s605 + $0x18] sm:$0xff]
                  %614 = vst [vmem:[%s606 + $0x30] sm:$0xff] %v613
                  %v615 = vld [vmem:[%s605 + $0x20] sm:$0xff]
                  %616 = vst [vmem:[%s606 + $0x40] sm:$0xff] %v615
                  %v617 = vld [vmem:[%s605 + $0x28] sm:$0xff]
                  %618 = vst [vmem:[%s606 + $0x50] sm:$0xff] %v617
                  %v619 = vld [vmem:[%s605 + $0x30] sm:$0xff]
                  %620 = vst [vmem:[%s606 + $0x60] sm:$0xff] %v619
                  %v621 = vld [vmem:[%s605 + $0x38] sm:$0xff]
                  %622 = vst [vmem:[%s606 + $0x70] sm:$0xff] %v621
                $region98: #{down_block_forward.8} parent=92 // loop_footer
                  %s604 = sadd.s32 1, %s600
                $region99: #{down_block_forward.8} parent=92 // loop_footer_branch
                  %599 = sbr.rel target = $region95
                $region100: #{down_block_forward.8} parent=92 // loop_exit
                  _
              $region93: #{down_block_forward.8} parent=77 // pred_fallthru
                _
              // Predicated region
              $region101: #{down_block_forward.8} parent=77 // pred_check
                _
              $region102: #{down_block_forward.8} parent=77 // pred_check_branch
                %624 = sbr.rel target = $region104
              $region103: #{down_block_forward.8} parent=77 // pred_region
                _
              $region104: #{down_block_forward.8} parent=77 // pred_fallthru
                _
            $region78: #{down_block_forward.8} parent=73 // pred_fallthru
              _
            // Predicated region
            $region79: #{down_block_forward.8} parent=73 // pred_check
              _
            $region80: #{down_block_forward.8} parent=73 // pred_check_branch
              %570 = sbr.rel target = $region82
            $region81: #{down_block_forward.8} parent=73 // pred_region
              %s572 = ssub.s32 256, 1
              loop: start=0, step=1, limit=1
              $region83: #{down_block_forward.8} parent=81 // loop_pre_header
                _
              $region84: #{down_block_forward.8} parent=81 // loop_header
                %s574 = sphi 0, %s578
                %p575 = scmp.ge.s32.totalorder %s574, 1
                %s579 = sphi %s554, %s554
                %s580 = sphi %s564, %s564
              $region85: #{down_block_forward.8} parent=81 // loop_header_branch
                %577 = sbr.rel (%p575) target = $region89
              $region86: #{down_block_forward.8} parent=81 // loop_body
                %v581 = vld [vmem:[%s579] sm:%s572]
                %582 = vst [vmem:[%s580] sm:%s572] %v581
                %v583 = vld [vmem:[%s579 + $0x8] sm:%s572]
                %584 = vst [vmem:[%s580 + $0x10] sm:%s572] %v583
                %v585 = vld [vmem:[%s579 + $0x10] sm:%s572]
                %586 = vst [vmem:[%s580 + $0x20] sm:%s572] %v585
                %v587 = vld [vmem:[%s579 + $0x18] sm:%s572]
                %588 = vst [vmem:[%s580 + $0x30] sm:%s572] %v587
                %v589 = vld [vmem:[%s579 + $0x20] sm:%s572]
                %590 = vst [vmem:[%s580 + $0x40] sm:%s572] %v589
                %v591 = vld [vmem:[%s579 + $0x28] sm:%s572]
                %592 = vst [vmem:[%s580 + $0x50] sm:%s572] %v591
                %v593 = vld [vmem:[%s579 + $0x30] sm:%s572]
                %594 = vst [vmem:[%s580 + $0x60] sm:%s572] %v593
                %v595 = vld [vmem:[%s579 + $0x38] sm:%s572]
                %596 = vst [vmem:[%s580 + $0x70] sm:%s572] %v595
              $region87: #{down_block_forward.8} parent=81 // loop_footer
                %s578 = sadd.s32 1, %s574
              $region88: #{down_block_forward.8} parent=81 // loop_footer_branch
                %573 = sbr.rel target = $region84
              $region89: #{down_block_forward.8} parent=81 // loop_exit
                _
            $region82: #{down_block_forward.8} parent=73 // pred_fallthru
              _
          $region74: #{down_block_forward.8} parent=69 // pred_fallthru
            _
          %625 = vnop
        $region70: #{down_block_forward.8} parent=61 // pred_fallthru
          _
      $region62: #{down_block_forward.8} parent=5 // pred_fallthru
        _
      %p626 = scmp.le.s32.totalorder 2, %s8
      // Predicated region
      $region105: #{down_block_forward.8} parent=5 // pred_check
        %p627 = pneg %p626
      $region106: #{down_block_forward.8} parent=5 // pred_check_branch
        %629 = sbr.rel (%p627) target = $region108
      $region107: #{down_block_forward.8} parent=5 // pred_region
        %s630 = ssub.s32 %s8, 2
        // Predicated region
        $region109: #{down_block_forward.8} parent=107 // pred_check
          %p631 = pneg %p111
        $region110: #{down_block_forward.8} parent=107 // pred_check_branch
          %633 = sbr.rel (%p631) target = $region112
        $region111: #{down_block_forward.8} parent=107 // pred_region
          %s634 = sand.u32 %s96, 1
          %s635 = sand.u32 %s96, 1
          %s636 = smul.addr %s635, 64
          %s637 = scalar_lea.vmem [#allocation3], %s636
        $region112: #{down_block_forward.8} parent=107 // pred_fallthru
          _
      $region108: #{down_block_forward.8} parent=5 // pred_fallthru
        _
    $region6: #{down_block_forward.8} parent=1 // loop_footer
      %s12 = sadd.s32 1, %s8
    $region7: #{down_block_forward.8} parent=1 // loop_footer_branch
      %7 = sbr.rel target = $region3
    $region8: #{down_block_forward.8} parent=1 // loop_exit
      _

// kernel: down_block_forward.7
$region0: #{down_block_forward.7}
  #allocation0 [shape = 'u32[]', space=smem, size = 0x4, offset = 0x4, fixed_abs, tag = 'smem constant byte address 0x4 - core index']
  #allocation1 [shape = 'u32[72,128]{1,0:T(1,128)}', space=vmem, size = 0x9000, scoped, tag = 'internal scratch']
  %s0 = inlined_call_operand.vmem [shape: f32[512,32], index: 0, kind: input, shape index: {}]
  %s1 = inlined_call_operand.vmem [shape: f32[1,32], index: 1, kind: input, shape index: {}]
  %s2 = inlined_call_operand.vmem [shape: f32[1,32], index: 2, kind: input, shape index: {}]
  %s3 = inlined_call_operand.vmem [shape: f32[32,96], index: 3, kind: input, shape index: {}]
  %s4 = inlined_call_operand.vmem [shape: f32[1,96], index: 4, kind: input, shape index: {}]
  %s5 = inlined_call_operand.vmem [shape: f32[512,96], index: 5, kind: output, shape index: {}]
  %s6 = sld [smem:[#allocation0]]
  $region30: #{down_block_forward.7} parent=0
    _
  %s8 = ssub.s32 1, %s6
  %s9 = scalar_select 0, %s8, %s6
  // Predicated region
  $region2: #{down_block_forward.7} parent=0 // pred_check
    _
  $region3: #{down_block_forward.7} parent=0 // pred_check_branch
    %11 = sbr.rel (0) target = $region5
  $region4: #{down_block_forward.7} parent=0 // pred_region
    _
  $region5: #{down_block_forward.7} parent=0 // pred_fallthru
    _
  // Predicated region
  $region6: #{down_block_forward.7} parent=0 // pred_check
    _
  $region7: #{down_block_forward.7} parent=0 // pred_check_branch
    %13 = sbr.rel (0) target = $region9
  $region8: #{down_block_forward.7} parent=0 // pred_region
    _
  $region9: #{down_block_forward.7} parent=0 // pred_fallthru
    _
  // Predicated region
  $region10: #{down_block_forward.7} parent=0 // pred_check
    _
  $region11: #{down_block_forward.7} parent=0 // pred_check_branch
    %15 = sbr.rel (0) target = $region13
  $region12: #{down_block_forward.7} parent=0 // pred_region
    _
  $region13: #{down_block_forward.7} parent=0 // pred_fallthru
    _
  // Predicated region
  $region14: #{down_block_forward.7} parent=0 // pred_check
    _
  $region15: #{down_block_forward.7} parent=0 // pred_check_branch
    %17 = sbr.rel (0) target = $region17
  $region16: #{down_block_forward.7} parent=0 // pred_region
    _
  $region17: #{down_block_forward.7} parent=0 // pred_fallthru
    _
  // Predicated region
  $region18: #{down_block_forward.7} parent=0 // pred_check
    _
  $region19: #{down_block_forward.7} parent=0 // pred_check_branch
    %19 = sbr.rel (0) target = $region21
  $region20: #{down_block_forward.7} parent=0 // pred_region
    _
  $region21: #{down_block_forward.7} parent=0 // pred_fallthru
    _
  %v20 = vld [vmem:[%s0] sm:$0xff]
  %v21 = vld [vmem:[%s0 + $0x8] sm:$0xff]
  %v22 = vld [vmem:[%s0 + $0x10] sm:$0xff]
  %v23 = vld [vmem:[%s0 + $0x18] sm:$0xff]
  %v24 = vld [vmem:[%s0 + $0x20] sm:$0xff]
  %v25 = vld [vmem:[%s0 + $0x28] sm:$0xff]
  %v26 = vld [vmem:[%s0 + $0x30] sm:$0xff]
  %v27 = vld [vmem:[%s0 + $0x38] sm:$0xff]
  %v28 = vld [vmem:[%s0 + $0x40] sm:$0xff]
  %v29 = vld [vmem:[%s0 + $0x48] sm:$0xff]
  %v30 = vld [vmem:[%s0 + $0x50] sm:$0xff]
  %v31 = vld [vmem:[%s0 + $0x58] sm:$0xff]
  %v32 = vld [vmem:[%s0 + $0x60] sm:$0xff]
  %v33 = vld [vmem:[%s0 + $0x68] sm:$0xff]
  %v34 = vld [vmem:[%s0 + $0x70] sm:$0xff]
  %v35 = vld [vmem:[%s0 + $0x78] sm:$0xff]
  %v36 = vld [vmem:[%s0 + $0x80] sm:$0xff]
  %v37 = vld [vmem:[%s0 + $0x88] sm:$0xff]
  %v38 = vld [vmem:[%s0 + $0x90] sm:$0xff]
  %v39 = vld [vmem:[%s0 + $0x98] sm:$0xff]
  %v40 = vld [vmem:[%s0 + $0xa0] sm:$0xff]
  %v41 = vld [vmem:[%s0 + $0xa8] sm:$0xff]
  %v42 = vld [vmem:[%s0 + $0xb0] sm:$0xff]
  %v43 = vld [vmem:[%s0 + $0xb8] sm:$0xff]
  %v44 = vld [vmem:[%s0 + $0xc0] sm:$0xff]
  %v45 = vld [vmem:[%s0 + $0xc8] sm:$0xff]
  %v46 = vld [vmem:[%s0 + $0xd0] sm:$0xff]
  %v47 = vld [vmem:[%s0 + $0xd8] sm:$0xff]
  %v48 = vld [vmem:[%s0 + $0xe0] sm:$0xff]
  %v49 = vld [vmem:[%s0 + $0xe8] sm:$0xff]
  %v50 = vld [vmem:[%s0 + $0xf0] sm:$0xff]
  %v51 = vld [vmem:[%s0 + $0xf8] sm:$0xff]
  %v52 = vld [vmem:[%s0 + $0x100] sm:$0xff]
  %v53 = vld [vmem:[%s0 + $0x108] sm:$0xff]
  %v54 = vld [vmem:[%s0 + $0x110] sm:$0xff]
  %v55 = vld [vmem:[%s0 + $0x118] sm:$0xff]
  %v56 = vld [vmem:[%s0 + $0x120] sm:$0xff]
  %v57 = vld [vmem:[%s0 + $0x128] sm:$0xff]
  %v58 = vld [vmem:[%s0 + $0x130] sm:$0xff]
  %v59 = vld [vmem:[%s0 + $0x138] sm:$0xff]
  %v60 = vld [vmem:[%s0 + $0x140] sm:$0xff]
  %v61 = vld [vmem:[%s0 + $0x148] sm:$0xff]
  %v62 = vld [vmem:[%s0 + $0x150] sm:$0xff]
  %v63 = vld [vmem:[%s0 + $0x158] sm:$0xff]
  %v64 = vld [vmem:[%s0 + $0x160] sm:$0xff]
  %v65 = vld [vmem:[%s0 + $0x168] sm:$0xff]
  %v66 = vld [vmem:[%s0 + $0x170] sm:$0xff]
  %v67 = vld [vmem:[%s0 + $0x178] sm:$0xff]
  %v68 = vld [vmem:[%s0 + $0x180] sm:$0xff]
  %v69 = vld [vmem:[%s0 + $0x188] sm:$0xff]
  %v70 = vld [vmem:[%s0 + $0x190] sm:$0xff]
  %v71 = vld [vmem:[%s0 + $0x198] sm:$0xff]
  %v72 = vld [vmem:[%s0 + $0x1a0] sm:$0xff]
  %v73 = vld [vmem:[%s0 + $0x1a8] sm:$0xff]
  %v74 = vld [vmem:[%s0 + $0x1b0] sm:$0xff]
  %v75 = vld [vmem:[%s0 + $0x1b8] sm:$0xff]
  %v76 = vld [vmem:[%s0 + $0x1c0] sm:$0xff]
  %v77 = vld [vmem:[%s0 + $0x1c8] sm:$0xff]
  %v78 = vld [vmem:[%s0 + $0x1d0] sm:$0xff]
  %v79 = vld [vmem:[%s0 + $0x1d8] sm:$0xff]
  %v80 = vld [vmem:[%s0 + $0x1e0] sm:$0xff]
  %v81 = vld [vmem:[%s0 + $0x1e8] sm:$0xff]
  %v82 = vld [vmem:[%s0 + $0x1f0] sm:$0xff]
  %v83 = vld [vmem:[%s0 + $0x1f8] sm:$0xff]
  %v84 = vld [vmem:[%s1] sm:$0x1]
  %v85 = vld [vmem:[%s2] sm:$0x1]
  %vm86 = vcmask 261120
  %v87 = vsel %vm86, %v20, 0.0
  %88 = vadd.xlane.f32.xlu0 %v87
  %v89 = vpop.xlane.xlu0 %88
  %v90 = vsel %vm86, %v21, 0.0
  %91 = vadd.xlane.f32.xlu0 %v90
  %v92 = vpop.xlane.xlu0 %91
  %v93 = vsel %vm86, %v22, 0.0
  %94 = vadd.xlane.f32.xlu0 %v93
  %v95 = vpop.xlane.xlu0 %94
  %v96 = vsel %vm86, %v23, 0.0
  %97 = vadd.xlane.f32.xlu0 %v96
  %v98 = vpop.xlane.xlu0 %97
  %v99 = vsel %vm86, %v24, 0.0
  %100 = vadd.xlane.f32.xlu0 %v99
  %v101 = vpop.xlane.xlu0 %100
  %v102 = vsel %vm86, %v25, 0.0
  %103 = vadd.xlane.f32.xlu0 %v102
  %v104 = vpop.xlane.xlu0 %103
  %v105 = vsel %vm86, %v26, 0.0
  %106 = vadd.xlane.f32.xlu0 %v105
  %v107 = vpop.xlane.xlu0 %106
  %v108 = vsel %vm86, %v27, 0.0
  %109 = vadd.xlane.f32.xlu0 %v108
  %v110 = vpop.xlane.xlu0 %109
  %v111 = vsel %vm86, %v28, 0.0
  %112 = vadd.xlane.f32.xlu0 %v111
  %v113 = vpop.xlane.xlu0 %112
  %v114 = vsel %vm86, %v29, 0.0
  %115 = vadd.xlane.f32.xlu0 %v114
  %v116 = vpop.xlane.xlu0 %115
  %v117 = vsel %vm86, %v30, 0.0
  %118 = vadd.xlane.f32.xlu0 %v117
  %v119 = vpop.xlane.xlu0 %118
  %v120 = vsel %vm86, %v31, 0.0
  %121 = vadd.xlane.f32.xlu0 %v120
  %v122 = vpop.xlane.xlu0 %121
  %v123 = vsel %vm86, %v32, 0.0
  %124 = vadd.xlane.f32.xlu0 %v123
  %v125 = vpop.xlane.xlu0 %124
  %v126 = vsel %vm86, %v33, 0.0
  %127 = vadd.xlane.f32.xlu0 %v126
  %v128 = vpop.xlane.xlu0 %127
  %v129 = vsel %vm86, %v34, 0.0
  %130 = vadd.xlane.f32.xlu0 %v129
  %v131 = vpop.xlane.xlu0 %130
  %v132 = vsel %vm86, %v35, 0.0
  %133 = vadd.xlane.f32.xlu0 %v132
  %v134 = vpop.xlane.xlu0 %133
  %v135 = vsel %vm86, %v36, 0.0
  %136 = vadd.xlane.f32.xlu0 %v135
  %v137 = vpop.xlane.xlu0 %136
  %v138 = vsel %vm86, %v37, 0.0
  %139 = vadd.xlane.f32.xlu0 %v138
  %v140 = vpop.xlane.xlu0 %139
  %v141 = vsel %vm86, %v38, 0.0
  %142 = vadd.xlane.f32.xlu0 %v141
  %v143 = vpop.xlane.xlu0 %142
  %v144 = vsel %vm86, %v39, 0.0
  %145 = vadd.xlane.f32.xlu0 %v144
  %v146 = vpop.xlane.xlu0 %145
  %v147 = vsel %vm86, %v40, 0.0
  %148 = vadd.xlane.f32.xlu0 %v147
  %v149 = vpop.xlane.xlu0 %148
  %v150 = vsel %vm86, %v41, 0.0
  %151 = vadd.xlane.f32.xlu0 %v150
  %v152 = vpop.xlane.xlu0 %151
  %v153 = vsel %vm86, %v42, 0.0
  %154 = vadd.xlane.f32.xlu0 %v153
  %v155 = vpop.xlane.xlu0 %154
  %v156 = vsel %vm86, %v43, 0.0
  %157 = vadd.xlane.f32.xlu0 %v156
  %v158 = vpop.xlane.xlu0 %157
  %v159 = vsel %vm86, %v44, 0.0
  %160 = vadd.xlane.f32.xlu0 %v159
  %v161 = vpop.xlane.xlu0 %160
  %v162 = vsel %vm86, %v45, 0.0
  %163 = vadd.xlane.f32.xlu0 %v162
  %v164 = vpop.xlane.xlu0 %163
  %v165 = vsel %vm86, %v46, 0.0
  %166 = vadd.xlane.f32.xlu0 %v165
  %v167 = vpop.xlane.xlu0 %166
  %v168 = vsel %vm86, %v47, 0.0
  %169 = vadd.xlane.f32.xlu0 %v168
  %v170 = vpop.xlane.xlu0 %169
  %v171 = vsel %vm86, %v48, 0.0
  %172 = vadd.xlane.f32.xlu0 %v171
  %v173 = vpop.xlane.xlu0 %172
  %v174 = vsel %vm86, %v49, 0.0
  %175 = vadd.xlane.f32.xlu0 %v174
  %v176 = vpop.xlane.xlu0 %175
  %v177 = vsel %vm86, %v50, 0.0
  %178 = vadd.xlane.f32.xlu0 %v177
  %v179 = vpop.xlane.xlu0 %178
  %v180 = vsel %vm86, %v51, 0.0
  %181 = vadd.xlane.f32.xlu0 %v180
  %v182 = vpop.xlane.xlu0 %181
  %v183 = vsel %vm86, %v52, 0.0
  %184 = vadd.xlane.f32.xlu0 %v183
  %v185 = vpop.xlane.xlu0 %184
  %v186 = vsel %vm86, %v53, 0.0
  %187 = vadd.xlane.f32.xlu0 %v186
  %v188 = vpop.xlane.xlu0 %187
  %v189 = vsel %vm86, %v54, 0.0
  %190 = vadd.xlane.f32.xlu0 %v189
  %v191 = vpop.xlane.xlu0 %190
  %v192 = vsel %vm86, %v55, 0.0
  %193 = vadd.xlane.f32.xlu0 %v192
  %v194 = vpop.xlane.xlu0 %193
  %v195 = vsel %vm86, %v56, 0.0
  %196 = vadd.xlane.f32.xlu0 %v195
  %v197 = vpop.xlane.xlu0 %196
  %v198 = vsel %vm86, %v57, 0.0
  %199 = vadd.xlane.f32.xlu0 %v198
  %v200 = vpop.xlane.xlu0 %199
  %v201 = vsel %vm86, %v58, 0.0
  %202 = vadd.xlane.f32.xlu0 %v201
  %v203 = vpop.xlane.xlu0 %202
  %v204 = vsel %vm86, %v59, 0.0
  %205 = vadd.xlane.f32.xlu0 %v204
  %v206 = vpop.xlane.xlu0 %205
  %v207 = vsel %vm86, %v60, 0.0
  %208 = vadd.xlane.f32.xlu0 %v207
  %v209 = vpop.xlane.xlu0 %208
  %v210 = vsel %vm86, %v61, 0.0
  %211 = vadd.xlane.f32.xlu0 %v210
  %v212 = vpop.xlane.xlu0 %211
  %v213 = vsel %vm86, %v62, 0.0
  %214 = vadd.xlane.f32.xlu0 %v213
  %v215 = vpop.xlane.xlu0 %214
  %v216 = vsel %vm86, %v63, 0.0
  %217 = vadd.xlane.f32.xlu0 %v216
  %v218 = vpop.xlane.xlu0 %217
  %v219 = vsel %vm86, %v64, 0.0
  %220 = vadd.xlane.f32.xlu0 %v219
  %v221 = vpop.xlane.xlu0 %220
  %v222 = vsel %vm86, %v65, 0.0
  %223 = vadd.xlane.f32.xlu0 %v222
  %v224 = vpop.xlane.xlu0 %223
  %v225 = vsel %vm86, %v66, 0.0
  %226 = vadd.xlane.f32.xlu0 %v225
  %v227 = vpop.xlane.xlu0 %226
  %v228 = vsel %vm86, %v67, 0.0
  %229 = vadd.xlane.f32.xlu0 %v228
  %v230 = vpop.xlane.xlu0 %229
  %v231 = vsel %vm86, %v68, 0.0
  %232 = vadd.xlane.f32.xlu0 %v231
  %v233 = vpop.xlane.xlu0 %232
  %v234 = vsel %vm86, %v69, 0.0
  %235 = vadd.xlane.f32.xlu0 %v234
  %v236 = vpop.xlane.xlu0 %235
  %v237 = vsel %vm86, %v70, 0.0
  %238 = vadd.xlane.f32.xlu0 %v237
  %v239 = vpop.xlane.xlu0 %238
  %v240 = vsel %vm86, %v71, 0.0
  %241 = vadd.xlane.f32.xlu0 %v240
  %v242 = vpop.xlane.xlu0 %241
  %v243 = vsel %vm86, %v72, 0.0
  %244 = vadd.xlane.f32.xlu0 %v243
  %v245 = vpop.xlane.xlu0 %244
  %v246 = vsel %vm86, %v73, 0.0
  %247 = vadd.xlane.f32.xlu0 %v246
  %v248 = vpop.xlane.xlu0 %247
  %v249 = vsel %vm86, %v74, 0.0
  %250 = vadd.xlane.f32.xlu0 %v249
  %v251 = vpop.xlane.xlu0 %250
  %v252 = vsel %vm86, %v75, 0.0
  %253 = vadd.xlane.f32.xlu0 %v252
  %v254 = vpop.xlane.xlu0 %253
  %v255 = vsel %vm86, %v76, 0.0
  %256 = vadd.xlane.f32.xlu0 %v255
  %v257 = vpop.xlane.xlu0 %256
  %v258 = vsel %vm86, %v77, 0.0
  %259 = vadd.xlane.f32.xlu0 %v258
  %v260 = vpop.xlane.xlu0 %259
  %v261 = vsel %vm86, %v78, 0.0
  %262 = vadd.xlane.f32.xlu0 %v261
  %v263 = vpop.xlane.xlu0 %262
  %v264 = vsel %vm86, %v79, 0.0
  %265 = vadd.xlane.f32.xlu0 %v264
  %v266 = vpop.xlane.xlu0 %265
  %v267 = vsel %vm86, %v80, 0.0
  %268 = vadd.xlane.f32.xlu0 %v267
  %v269 = vpop.xlane.xlu0 %268
  %v270 = vsel %vm86, %v81, 0.0
  %271 = vadd.xlane.f32.xlu0 %v270
  %v272 = vpop.xlane.xlu0 %271
  %v273 = vsel %vm86, %v82, 0.0
  %274 = vadd.xlane.f32.xlu0 %v273
  %v275 = vpop.xlane.xlu0 %274
  %v276 = vsel %vm86, %v83, 0.0
  %277 = vadd.xlane.f32.xlu0 %v276
  %v278 = vpop.xlane.xlu0 %277
  %v279 = vrcp.pop 32.0
  %v280 = vmul.f32 32.0, %v279
  %v281 = vsub.f32 1.0, %v280
  %v282 = vmul.f32 %v279, %v281
  %v283 = vadd.f32 %v279, %v282
  %vm284 = vweird.f32 %v279
  %v285 = vsel %vm284, %v279, %v283
  %v286 = vmul.f32 %v89, %v285
  %v287 = vmul.f32 %v92, %v285
  %v288 = vmul.f32 %v95, %v285
  %v289 = vmul.f32 %v98, %v285
  %v290 = vmul.f32 %v101, %v285
  %v291 = vmul.f32 %v104, %v285
  %v292 = vmul.f32 %v107, %v285
  %v293 = vmul.f32 %v110, %v285
  %v294 = vmul.f32 %v113, %v285
  %v295 = vmul.f32 %v116, %v285
  %v296 = vmul.f32 %v119, %v285
  %v297 = vmul.f32 %v122, %v285
  %v298 = vmul.f32 %v125, %v285
  %v299 = vmul.f32 %v128, %v285
  %v300 = vmul.f32 %v131, %v285
  %v301 = vmul.f32 %v134, %v285
  %v302 = vmul.f32 %v137, %v285
  %v303 = vmul.f32 %v140, %v285
  %v304 = vmul.f32 %v143, %v285
  %v305 = vmul.f32 %v146, %v285
  %v306 = vmul.f32 %v149, %v285
  %v307 = vmul.f32 %v152, %v285
  %v308 = vmul.f32 %v155, %v285
  %v309 = vmul.f32 %v158, %v285
  %v310 = vmul.f32 %v161, %v285
  %v311 = vmul.f32 %v164, %v285
  %v312 = vmul.f32 %v167, %v285
  %v313 = vmul.f32 %v170, %v285
  %v314 = vmul.f32 %v173, %v285
  %v315 = vmul.f32 %v176, %v285
  %v316 = vmul.f32 %v179, %v285
  %v317 = vmul.f32 %v182, %v285
  %v318 = vmul.f32 %v185, %v285
  %v319 = vmul.f32 %v188, %v285
  %v320 = vmul.f32 %v191, %v285
  %v321 = vmul.f32 %v194, %v285
  %v322 = vmul.f32 %v197, %v285
  %v323 = vmul.f32 %v200, %v285
  %v324 = vmul.f32 %v203, %v285
  %v325 = vmul.f32 %v206, %v285
  %v326 = vmul.f32 %v209, %v285
  %v327 = vmul.f32 %v212, %v285
  %v328 = vmul.f32 %v215, %v285
  %v329 = vmul.f32 %v218, %v285
  %v330 = vmul.f32 %v221, %v285
  %v331 = vmul.f32 %v224, %v285
  %v332 = vmul.f32 %v227, %v285
  %v333 = vmul.f32 %v230, %v285
  %v334 = vmul.f32 %v233, %v285
  %v335 = vmul.f32 %v236, %v285
  %v336 = vmul.f32 %v239, %v285
  %v337 = vmul.f32 %v242, %v285
  %v338 = vmul.f32 %v245, %v285
  %v339 = vmul.f32 %v248, %v285
  %v340 = vmul.f32 %v251, %v285
  %v341 = vmul.f32 %v254, %v285
  %v342 = vmul.f32 %v257, %v285
  %v343 = vmul.f32 %v260, %v285
  %v344 = vmul.f32 %v263, %v285
  %v345 = vmul.f32 %v266, %v285
  %v346 = vmul.f32 %v269, %v285
  %v347 = vmul.f32 %v272, %v285
  %v348 = vmul.f32 %v275, %v285
  %v349 = vmul.f32 %v278, %v285
  %v350 = vsub.f32 %v20, %v286
  %v351 = vsub.f32 %v21, %v287
  %v352 = vsub.f32 %v22, %v288
  %v353 = vsub.f32 %v23, %v289
  %v354 = vsub.f32 %v24, %v290
  %v355 = vsub.f32 %v25, %v291
  %v356 = vsub.f32 %v26, %v292
  %v357 = vsub.f32 %v27, %v293
  %v358 = vsub.f32 %v28, %v294
  %v359 = vsub.f32 %v29, %v295
  %v360 = vsub.f32 %v30, %v296
  %v361 = vsub.f32 %v31, %v297
  %v362 = vsub.f32 %v32, %v298
  %v363 = vsub.f32 %v33, %v299
  %v364 = vsub.f32 %v34, %v300
  %v365 = vsub.f32 %v35, %v301
  %v366 = vsub.f32 %v36, %v302
  %v367 = vsub.f32 %v37, %v303
  %v368 = vsub.f32 %v38, %v304
  %v369 = vsub.f32 %v39, %v305
  %v370 = vsub.f32 %v40, %v306
  %v371 = vsub.f32 %v41, %v307
  %v372 = vsub.f32 %v42, %v308
  %v373 = vsub.f32 %v43, %v309
  %v374 = vsub.f32 %v44, %v310
  %v375 = vsub.f32 %v45, %v311
  %v376 = vsub.f32 %v46, %v312
  %v377 = vsub.f32 %v47, %v313
  %v378 = vsub.f32 %v48, %v314
  %v379 = vsub.f32 %v49, %v315
  %v380 = vsub.f32 %v50, %v316
  %v381 = vsub.f32 %v51, %v317
  %v382 = vsub.f32 %v52, %v318
  %v383 = vsub.f32 %v53, %v319
  %v384 = vsub.f32 %v54, %v320
  %v385 = vsub.f32 %v55, %v321
  %v386 = vsub.f32 %v56, %v322
  %v387 = vsub.f32 %v57, %v323
  %v388 = vsub.f32 %v58, %v324
  %v389 = vsub.f32 %v59, %v325
  %v390 = vsub.f32 %v60, %v326
  %v391 = vsub.f32 %v61, %v327
  %v392 = vsub.f32 %v62, %v328
  %v393 = vsub.f32 %v63, %v329
  %v394 = vsub.f32 %v64, %v330
  %v395 = vsub.f32 %v65, %v331
  %v396 = vsub.f32 %v66, %v332
  %v397 = vsub.f32 %v67, %v333
  %v398 = vsub.f32 %v68, %v334
  %v399 = vsub.f32 %v69, %v335
  %v400 = vsub.f32 %v70, %v336
  %v401 = vsub.f32 %v71, %v337
  %v402 = vsub.f32 %v72, %v338
  %v403 = vsub.f32 %v73, %v339
  %v404 = vsub.f32 %v74, %v340
  %v405 = vsub.f32 %v75, %v341
  %v406 = vsub.f32 %v76, %v342
  %v407 = vsub.f32 %v77, %v343
  %v408 = vsub.f32 %v78, %v344
  %v409 = vsub.f32 %v79, %v345
  %v410 = vsub.f32 %v80, %v346
  %v411 = vsub.f32 %v81, %v347
  %v412 = vsub.f32 %v82, %v348
  %v413 = vsub.f32 %v83, %v349
  %v414 = vmul.f32 %v350, %v350
  %v415 = vmul.f32 %v351, %v351
  %v416 = vmul.f32 %v352, %v352
  %v417 = vmul.f32 %v353, %v353
  %v418 = vmul.f32 %v354, %v354
  %v419 = vmul.f32 %v355, %v355
  %v420 = vmul.f32 %v356, %v356
  %v421 = vmul.f32 %v357, %v357
  %v422 = vmul.f32 %v358, %v358
  %v423 = vmul.f32 %v359, %v359
  %v424 = vmul.f32 %v360, %v360
  %v425 = vmul.f32 %v361, %v361
  %v426 = vmul.f32 %v362, %v362
  %v427 = vmul.f32 %v363, %v363
  %v428 = vmul.f32 %v364, %v364
  %v429 = vmul.f32 %v365, %v365
  %v430 = vmul.f32 %v366, %v366
  %v431 = vmul.f32 %v367, %v367
  %v432 = vmul.f32 %v368, %v368
  %v433 = vmul.f32 %v369, %v369
  %v434 = vmul.f32 %v370, %v370
  %v435 = vmul.f32 %v371, %v371
  %v436 = vmul.f32 %v372, %v372
  %v437 = vmul.f32 %v373, %v373
  %v438 = vmul.f32 %v374, %v374
  %v439 = vmul.f32 %v375, %v375
  %v440 = vmul.f32 %v376, %v376
  %v441 = vmul.f32 %v377, %v377
  %v442 = vmul.f32 %v378, %v378
  %v443 = vmul.f32 %v379, %v379
  %v444 = vmul.f32 %v380, %v380
  %v445 = vmul.f32 %v381, %v381
  %v446 = vmul.f32 %v382, %v382
  %v447 = vmul.f32 %v383, %v383
  %v448 = vmul.f32 %v384, %v384
  %v449 = vmul.f32 %v385, %v385
  %v450 = vmul.f32 %v386, %v386
  %v451 = vmul.f32 %v387, %v387
  %v452 = vmul.f32 %v388, %v388
  %v453 = vmul.f32 %v389, %v389
  %v454 = vmul.f32 %v390, %v390
  %v455 = vmul.f32 %v391, %v391
  %v456 = vmul.f32 %v392, %v392
  %v457 = vmul.f32 %v393, %v393
  %v458 = vmul.f32 %v394, %v394
  %v459 = vmul.f32 %v395, %v395
  %v460 = vmul.f32 %v396, %v396
  %v461 = vmul.f32 %v397, %v397
  %v462 = vmul.f32 %v398, %v398
  %v463 = vmul.f32 %v399, %v399
  %v464 = vmul.f32 %v400, %v400
  %v465 = vmul.f32 %v401, %v401
  %v466 = vmul.f32 %v402, %v402
  %v467 = vmul.f32 %v403, %v403
  %v468 = vmul.f32 %v404, %v404
  %v469 = vmul.f32 %v405, %v405
  %v470 = vmul.f32 %v406, %v406
  %v471 = vmul.f32 %v407, %v407
  %v472 = vmul.f32 %v408, %v408
  %v473 = vmul.f32 %v409, %v409
  %v474 = vmul.f32 %v410, %v410
  %v475 = vmul.f32 %v411, %v411
  %v476 = vmul.f32 %v412, %v412
  %v477 = vmul.f32 %v413, %v413
  %v478 = vsel %vm86, %v414, 0.0
  %479 = vadd.xlane.f32.xlu0 %v478
  %v480 = vpop.xlane.xlu0 %479
  %v481 = vsel %vm86, %v415, 0.0
  %482 = vadd.xlane.f32.xlu0 %v481
  %v483 = vpop.xlane.xlu0 %482
  %v484 = vsel %vm86, %v416, 0.0
  %485 = vadd.xlane.f32.xlu0 %v484
  %v486 = vpop.xlane.xlu0 %485
  %v487 = vsel %vm86, %v417, 0.0
  %488 = vadd.xlane.f32.xlu0 %v487
  %v489 = vpop.xlane.xlu0 %488
  %v490 = vsel %vm86, %v418, 0.0
  %491 = vadd.xlane.f32.xlu0 %v490
  %v492 = vpop.xlane.xlu0 %491
  %v493 = vsel %vm86, %v419, 0.0
  %494 = vadd.xlane.f32.xlu0 %v493
  %v495 = vpop.xlane.xlu0 %494
  %v496 = vsel %vm86, %v420, 0.0
  %497 = vadd.xlane.f32.xlu0 %v496
  %v498 = vpop.xlane.xlu0 %497
  %v499 = vsel %vm86, %v421, 0.0
  %500 = vadd.xlane.f32.xlu0 %v499
  %v501 = vpop.xlane.xlu0 %500
  %v502 = vsel %vm86, %v422, 0.0
  %503 = vadd.xlane.f32.xlu0 %v502
  %v504 = vpop.xlane.xlu0 %503
  %v505 = vsel %vm86, %v423, 0.0
  %506 = vadd.xlane.f32.xlu0 %v505
  %v507 = vpop.xlane.xlu0 %506
  %v508 = vsel %vm86, %v424, 0.0
  %509 = vadd.xlane.f32.xlu0 %v508
  %v510 = vpop.xlane.xlu0 %509
  %v511 = vsel %vm86, %v425, 0.0
  %512 = vadd.xlane.f32.xlu0 %v511
  %v513 = vpop.xlane.xlu0 %512
  %v514 = vsel %vm86, %v426, 0.0
  %515 = vadd.xlane.f32.xlu0 %v514
  %v516 = vpop.xlane.xlu0 %515
  %v517 = vsel %vm86, %v427, 0.0
  %518 = vadd.xlane.f32.xlu0 %v517
  %v519 = vpop.xlane.xlu0 %518
  %v520 = vsel %vm86, %v428, 0.0
  %521 = vadd.xlane.f32.xlu0 %v520
  %v522 = vpop.xlane.xlu0 %521
  %v523 = vsel %vm86, %v429, 0.0
  %524 = vadd.xlane.f32.xlu0 %v523
  %v525 = vpop.xlane.xlu0 %524
  %v526 = vsel %vm86, %v430, 0.0
  %527 = vadd.xlane.f32.xlu0 %v526
  %v528 = vpop.xlane.xlu0 %527
  %v529 = vsel %vm86, %v431, 0.0
  %530 = vadd.xlane.f32.xlu0 %v529
  %v531 = vpop.xlane.xlu0 %530
  %v532 = vsel %vm86, %v432, 0.0
  %533 = vadd.xlane.f32.xlu0 %v532
  %v534 = vpop.xlane.xlu0 %533
  %v535 = vsel %vm86, %v433, 0.0
  %536 = vadd.xlane.f32.xlu0 %v535
  %v537 = vpop.xlane.xlu0 %536
  %v538 = vsel %vm86, %v434, 0.0
  %539 = vadd.xlane.f32.xlu0 %v538
  %v540 = vpop.xlane.xlu0 %539
  %v541 = vsel %vm86, %v435, 0.0
  %542 = vadd.xlane.f32.xlu0 %v541
  %v543 = vpop.xlane.xlu0 %542
  %v544 = vsel %vm86, %v436, 0.0
  %545 = vadd.xlane.f32.xlu0 %v544
  %v546 = vpop.xlane.xlu0 %545
  %v547 = vsel %vm86, %v437, 0.0
  %548 = vadd.xlane.f32.xlu0 %v547
  %v549 = vpop.xlane.xlu0 %548
  %v550 = vsel %vm86, %v438, 0.0
  %551 = vadd.xlane.f32.xlu0 %v550
  %v552 = vpop.xlane.xlu0 %551
  %v553 = vsel %vm86, %v439, 0.0
  %554 = vadd.xlane.f32.xlu0 %v553
  %v555 = vpop.xlane.xlu0 %554
  %v556 = vsel %vm86, %v440, 0.0
  %557 = vadd.xlane.f32.xlu0 %v556
  %v558 = vpop.xlane.xlu0 %557
  %v559 = vsel %vm86, %v441, 0.0
  %560 = vadd.xlane.f32.xlu0 %v559
  %v561 = vpop.xlane.xlu0 %560
  %v562 = vsel %vm86, %v442, 0.0
  %563 = vadd.xlane.f32.xlu0 %v562
  %v564 = vpop.xlane.xlu0 %563
  %v565 = vsel %vm86, %v443, 0.0
  %566 = vadd.xlane.f32.xlu0 %v565
  %v567 = vpop.xlane.xlu0 %566
  %v568 = vsel %vm86, %v444, 0.0
  %569 = vadd.xlane.f32.xlu0 %v568
  %v570 = vpop.xlane.xlu0 %569
  %v571 = vsel %vm86, %v445, 0.0
  %572 = vadd.xlane.f32.xlu0 %v571
  %v573 = vpop.xlane.xlu0 %572
  %v574 = vsel %vm86, %v446, 0.0
  %575 = vadd.xlane.f32.xlu0 %v574
  %v576 = vpop.xlane.xlu0 %575
  %v577 = vsel %vm86, %v447, 0.0
  %578 = vadd.xlane.f32.xlu0 %v577
  %v579 = vpop.xlane.xlu0 %578
  %v580 = vsel %vm86, %v448, 0.0
  %581 = vadd.xlane.f32.xlu0 %v580
  %v582 = vpop.xlane.xlu0 %581
  %v583 = vsel %vm86, %v449, 0.0
  %584 = vadd.xlane.f32.xlu0 %v583
  %v585 = vpop.xlane.xlu0 %584
  %v586 = vsel %vm86, %v450, 0.0
  %587 = vadd.xlane.f32.xlu0 %v586
  %v588 = vpop.xlane.xlu0 %587
  %v589 = vsel %vm86, %v451, 0.0
  %590 = vadd.xlane.f32.xlu0 %v589
  %v591 = vpop.xlane.xlu0 %590
  %v592 = vsel %vm86, %v452, 0.0
  %593 = vadd.xlane.f32.xlu0 %v592
  %v594 = vpop.xlane.xlu0 %593
  %v595 = vsel %vm86, %v453, 0.0
  %596 = vadd.xlane.f32.xlu0 %v595
  %v597 = vpop.xlane.xlu0 %596
  %v598 = vsel %vm86, %v454, 0.0
  %599 = vadd.xlane.f32.xlu0 %v598
  %v600 = vpop.xlane.xlu0 %599
  %v601 = vsel %vm86, %v455, 0.0
  %602 = vadd.xlane.f32.xlu0 %v601
  %v603 = vpop.xlane.xlu0 %602
  %v604 = vsel %vm86, %v456, 0.0
  %605 = vadd.xlane.f32.xlu0 %v604
  %v606 = vpop.xlane.xlu0 %605
  %v607 = vsel %vm86, %v457, 0.0
  %608 = vadd.xlane.f32.xlu0 %v607
  %v609 = vpop.xlane.xlu0 %608
  %v610 = vsel %vm86, %v458, 0.0
  %611 = vadd.xlane.f32.xlu0 %v610
  %v612 = vpop.xlane.xlu0 %611
  %v613 = vsel %vm86, %v459, 0.0
  %614 = vadd.xlane.f32.xlu0 %v613
  %v615 = vpop.xlane.xlu0 %614
  %v616 = vsel %vm86, %v460, 0.0
  %617 = vadd.xlane.f32.xlu0 %v616
  %v618 = vpop.xlane.xlu0 %617
  %v619 = vsel %vm86, %v461, 0.0
  %620 = vadd.xlane.f32.xlu0 %v619
  %v621 = vpop.xlane.xlu0 %620
  %v622 = vsel %vm86, %v462, 0.0
  %623 = vadd.xlane.f32.xlu0 %v622
  %v624 = vpop.xlane.xlu0 %623
  %v625 = vsel %vm86, %v463, 0.0
  %626 = vadd.xlane.f32.xlu0 %v625
  %v627 = vpop.xlane.xlu0 %626
  %v628 = vsel %vm86, %v464, 0.0
  %629 = vadd.xlane.f32.xlu0 %v628
  %v630 = vpop.xlane.xlu0 %629
  %v631 = vsel %vm86, %v465, 0.0
  %632 = vadd.xlane.f32.xlu0 %v631
  %v633 = vpop.xlane.xlu0 %632
  %v634 = vsel %vm86, %v466, 0.0
  %635 = vadd.xlane.f32.xlu0 %v634
  %v636 = vpop.xlane.xlu0 %635
  %v637 = vsel %vm86, %v467, 0.0
  %638 = vadd.xlane.f32.xlu0 %v637
  %v639 = vpop.xlane.xlu0 %638
  %v640 = vsel %vm86, %v468, 0.0
  %641 = vadd.xlane.f32.xlu0 %v640
  %v642 = vpop.xlane.xlu0 %641
  %v643 = vsel %vm86, %v469, 0.0
  %644 = vadd.xlane.f32.xlu0 %v643
  %v645 = vpop.xlane.xlu0 %644
  %v646 = vsel %vm86, %v470, 0.0
  %647 = vadd.xlane.f32.xlu0 %v646
  %v648 = vpop.xlane.xlu0 %647
  %v649 = vsel %vm86, %v471, 0.0
  %650 = vadd.xlane.f32.xlu0 %v649
  %v651 = vpop.xlane.xlu0 %650
  %v652 = vsel %vm86, %v472, 0.0
  %653 = vadd.xlane.f32.xlu0 %v652
  %v654 = vpop.xlane.xlu0 %653
  %v655 = vsel %vm86, %v473, 0.0
  %656 = vadd.xlane.f32.xlu0 %v655
  %v657 = vpop.xlane.xlu0 %656
  %v658 = vsel %vm86, %v474, 0.0
  %659 = vadd.xlane.f32.xlu0 %v658
  %v660 = vpop.xlane.xlu0 %659
  %v661 = vsel %vm86, %v475, 0.0
  %662 = vadd.xlane.f32.xlu0 %v661
  %v663 = vpop.xlane.xlu0 %662
  %v664 = vsel %vm86, %v476, 0.0
  %665 = vadd.xlane.f32.xlu0 %v664
  %v666 = vpop.xlane.xlu0 %665
  %v667 = vsel %vm86, %v477, 0.0
  %668 = vadd.xlane.f32.xlu0 %v667
  %v669 = vpop.xlane.xlu0 %668
  %v670 = vmul.f32 %v480, %v285
  %v671 = vmul.f32 %v483, %v285
  %v672 = vmul.f32 %v486, %v285
  %v673 = vmul.f32 %v489, %v285
  %v674 = vmul.f32 %v492, %v285
  %v675 = vmul.f32 %v495, %v285
  %v676 = vmul.f32 %v498, %v285
  %v677 = vmul.f32 %v501, %v285
  %v678 = vmul.f32 %v504, %v285
  %v679 = vmul.f32 %v507, %v285
  %v680 = vmul.f32 %v510, %v285
  %v681 = vmul.f32 %v513, %v285
  %v682 = vmul.f32 %v516, %v285
  %v683 = vmul.f32 %v519, %v285
  %v684 = vmul.f32 %v522, %v285
  %v685 = vmul.f32 %v525, %v285
  %v686 = vmul.f32 %v528, %v285
  %v687 = vmul.f32 %v531, %v285
  %v688 = vmul.f32 %v534, %v285
  %v689 = vmul.f32 %v537, %v285
  %v690 = vmul.f32 %v540, %v285
  %v691 = vmul.f32 %v543, %v285
  %v692 = vmul.f32 %v546, %v285
  %v693 = vmul.f32 %v549, %v285
  %v694 = vmul.f32 %v552, %v285
  %v695 = vmul.f32 %v555, %v285
  %v696 = vmul.f32 %v558, %v285
  %v697 = vmul.f32 %v561, %v285
  %v698 = vmul.f32 %v564, %v285
  %v699 = vmul.f32 %v567, %v285
  %v700 = vmul.f32 %v570, %v285
  %v701 = vmul.f32 %v573, %v285
  %v702 = vmul.f32 %v576, %v285
  %v703 = vmul.f32 %v579, %v285
  %v704 = vmul.f32 %v582, %v285
  %v705 = vmul.f32 %v585, %v285
  %v706 = vmul.f32 %v588, %v285
  %v707 = vmul.f32 %v591, %v285
  %v708 = vmul.f32 %v594, %v285
  %v709 = vmul.f32 %v597, %v285
  %v710 = vmul.f32 %v600, %v285
  %v711 = vmul.f32 %v603, %v285
  %v712 = vmul.f32 %v606, %v285
  %v713 = vmul.f32 %v609, %v285
  %v714 = vmul.f32 %v612, %v285
  %v715 = vmul.f32 %v615, %v285
  %v716 = vmul.f32 %v618, %v285
  %v717 = vmul.f32 %v621, %v285
  %v718 = vmul.f32 %v624, %v285
  %v719 = vmul.f32 %v627, %v285
  %v720 = vmul.f32 %v630, %v285
  %v721 = vmul.f32 %v633, %v285
  %v722 = vmul.f32 %v636, %v285
  %v723 = vmul.f32 %v639, %v285
  %v724 = vmul.f32 %v642, %v285
  %v725 = vmul.f32 %v645, %v285
  %v726 = vmul.f32 %v648, %v285
  %v727 = vmul.f32 %v651, %v285
  %v728 = vmul.f32 %v654, %v285
  %v729 = vmul.f32 %v657, %v285
  %v730 = vmul.f32 %v660, %v285
  %v731 = vmul.f32 %v663, %v285
  %v732 = vmul.f32 %v666, %v285
  %v733 = vmul.f32 %v669, %v285
  %v734 = vadd.f32 %v670, 1e-05
  %v735 = vadd.f32 %v671, 1e-05
  %v736 = vadd.f32 %v672, 1e-05
  %v737 = vadd.f32 %v673, 1e-05
  %v738 = vadd.f32 %v674, 1e-05
  %v739 = vadd.f32 %v675, 1e-05
  %v740 = vadd.f32 %v676, 1e-05
  %v741 = vadd.f32 %v677, 1e-05
  %v742 = vadd.f32 %v678, 1e-05
  %v743 = vadd.f32 %v679, 1e-05
  %v744 = vadd.f32 %v680, 1e-05
  %v745 = vadd.f32 %v681, 1e-05
  %v746 = vadd.f32 %v682, 1e-05
  %v747 = vadd.f32 %v683, 1e-05
  %v748 = vadd.f32 %v684, 1e-05
  %v749 = vadd.f32 %v685, 1e-05
  %v750 = vadd.f32 %v686, 1e-05
  %v751 = vadd.f32 %v687, 1e-05
  %v752 = vadd.f32 %v688, 1e-05
  %v753 = vadd.f32 %v689, 1e-05
  %v754 = vadd.f32 %v690, 1e-05
  %v755 = vadd.f32 %v691, 1e-05
  %v756 = vadd.f32 %v692, 1e-05
  %v757 = vadd.f32 %v693, 1e-05
  %v758 = vadd.f32 %v694, 1e-05
  %v759 = vadd.f32 %v695, 1e-05
  %v760 = vadd.f32 %v696, 1e-05
  %v761 = vadd.f32 %v697, 1e-05
  %v762 = vadd.f32 %v698, 1e-05
  %v763 = vadd.f32 %v699, 1e-05
  %v764 = vadd.f32 %v700, 1e-05
  %v765 = vadd.f32 %v701, 1e-05
  %v766 = vadd.f32 %v702, 1e-05
  %v767 = vadd.f32 %v703, 1e-05
  %v768 = vadd.f32 %v704, 1e-05
  %v769 = vadd.f32 %v705, 1e-05
  %v770 = vadd.f32 %v706, 1e-05
  %v771 = vadd.f32 %v707, 1e-05
  %v772 = vadd.f32 %v708, 1e-05
  %v773 = vadd.f32 %v709, 1e-05
  %v774 = vadd.f32 %v710, 1e-05
  %v775 = vadd.f32 %v711, 1e-05
  %v776 = vadd.f32 %v712, 1e-05
  %v777 = vadd.f32 %v713, 1e-05
  %v778 = vadd.f32 %v714, 1e-05
  %v779 = vadd.f32 %v715, 1e-05
  %v780 = vadd.f32 %v716, 1e-05
  %v781 = vadd.f32 %v717, 1e-05
  %v782 = vadd.f32 %v718, 1e-05
  %v783 = vadd.f32 %v719, 1e-05
  %v784 = vadd.f32 %v720, 1e-05
  %v785 = vadd.f32 %v721, 1e-05
  %v786 = vadd.f32 %v722, 1e-05
  %v787 = vadd.f32 %v723, 1e-05
  %v788 = vadd.f32 %v724, 1e-05
  %v789 = vadd.f32 %v725, 1e-05
  %v790 = vadd.f32 %v726, 1e-05
  %v791 = vadd.f32 %v727, 1e-05
  %v792 = vadd.f32 %v728, 1e-05
  %v793 = vadd.f32 %v729, 1e-05
  %v794 = vadd.f32 %v730, 1e-05
  %v795 = vadd.f32 %v731, 1e-05
  %v796 = vadd.f32 %v732, 1e-05
  %v797 = vadd.f32 %v733, 1e-05
  %v798 = vrsqrt.pop %v734
  %v799 = vmul.f32 %v798, %v734
  %v800 = vmul.f32 %v799, %v798
  %v801 = vmul.f32 0.5, %v800
  %v802 = vsub.f32 1.5, %v801
  %v803 = vmul.f32 %v798, %v802
  %vm804 = vweird.f32 %v734
  %vm805 = vweird.f32 %v798
  %vm806 = vmor %vm804, %vm805
  %v807 = vsel %vm806, %v798, %v803
  %v808 = vrsqrt.pop %v735
  %v809 = vmul.f32 %v808, %v735
  %v810 = vmul.f32 %v809, %v808
  %v811 = vmul.f32 0.5, %v810
  %v812 = vsub.f32 1.5, %v811
  %v813 = vmul.f32 %v808, %v812
  %vm814 = vweird.f32 %v735
  %vm815 = vweird.f32 %v808
  %vm816 = vmor %vm814, %vm815
  %v817 = vsel %vm816, %v808, %v813
  %v818 = vrsqrt.pop %v736
  %v819 = vmul.f32 %v818, %v736
  %v820 = vmul.f32 %v819, %v818
  %v821 = vmul.f32 0.5, %v820
  %v822 = vsub.f32 1.5, %v821
  %v823 = vmul.f32 %v818, %v822
  %vm824 = vweird.f32 %v736
  %vm825 = vweird.f32 %v818
  %vm826 = vmor %vm824, %vm825
  %v827 = vsel %vm826, %v818, %v823
  %v828 = vrsqrt.pop %v737
  %v829 = vmul.f32 %v828, %v737
  %v830 = vmul.f32 %v829, %v828
  %v831 = vmul.f32 0.5, %v830
  %v832 = vsub.f32 1.5, %v831
  %v833 = vmul.f32 %v828, %v832
  %vm834 = vweird.f32 %v737
  %vm835 = vweird.f32 %v828
  %vm836 = vmor %vm834, %vm835
  %v837 = vsel %vm836, %v828, %v833
  %v838 = vrsqrt.pop %v738
  %v839 = vmul.f32 %v838, %v738
  %v840 = vmul.f32 %v839, %v838
  %v841 = vmul.f32 0.5, %v840
  %v842 = vsub.f32 1.5, %v841
  %v843 = vmul.f32 %v838, %v842
  %vm844 = vweird.f32 %v738
  %vm845 = vweird.f32 %v838
  %vm846 = vmor %vm844, %vm845
  %v847 = vsel %vm846, %v838, %v843
  %v848 = vrsqrt.pop %v739
  %v849 = vmul.f32 %v848, %v739
  %v850 = vmul.f32 %v849, %v848
  %v851 = vmul.f32 0.5, %v850
  %v852 = vsub.f32 1.5, %v851
  %v853 = vmul.f32 %v848, %v852
  %vm854 = vweird.f32 %v739
  %vm855 = vweird.f32 %v848
  %vm856 = vmor %vm854, %vm855
  %v857 = vsel %vm856, %v848, %v853
  %v858 = vrsqrt.pop %v740
  %v859 = vmul.f32 %v858, %v740
  %v860 = vmul.f32 %v859, %v858
  %v861 = vmul.f32 0.5, %v860
  %v862 = vsub.f32 1.5, %v861
  %v863 = vmul.f32 %v858, %v862
  %vm864 = vweird.f32 %v740
  %vm865 = vweird.f32 %v858
  %vm866 = vmor %vm864, %vm865
  %v867 = vsel %vm866, %v858, %v863
  %v868 = vrsqrt.pop %v741
  %v869 = vmul.f32 %v868, %v741
  %v870 = vmul.f32 %v869, %v868
  %v871 = vmul.f32 0.5, %v870
  %v872 = vsub.f32 1.5, %v871
  %v873 = vmul.f32 %v868, %v872
  %vm874 = vweird.f32 %v741
  %vm875 = vweird.f32 %v868
  %vm876 = vmor %vm874, %vm875
  %v877 = vsel %vm876, %v868, %v873
  %v878 = vrsqrt.pop %v742
  %v879 = vmul.f32 %v878, %v742
  %v880 = vmul.f32 %v879, %v878
  %v881 = vmul.f32 0.5, %v880
  %v882 = vsub.f32 1.5, %v881
  %v883 = vmul.f32 %v878, %v882
  %vm884 = vweird.f32 %v742
  %vm885 = vweird.f32 %v878
  %vm886 = vmor %vm884, %vm885
  %v887 = vsel %vm886, %v878, %v883
  %v888 = vrsqrt.pop %v743
  %v889 = vmul.f32 %v888, %v743
  %v890 = vmul.f32 %v889, %v888
  %v891 = vmul.f32 0.5, %v890
  %v892 = vsub.f32 1.5, %v891
  %v893 = vmul.f32 %v888, %v892
  %vm894 = vweird.f32 %v743
  %vm895 = vweird.f32 %v888
  %vm896 = vmor %vm894, %vm895
  %v897 = vsel %vm896, %v888, %v893
  %v898 = vrsqrt.pop %v744
  %v899 = vmul.f32 %v898, %v744
  %v900 = vmul.f32 %v899, %v898
  %v901 = vmul.f32 0.5, %v900
  %v902 = vsub.f32 1.5, %v901
  %v903 = vmul.f32 %v898, %v902
  %vm904 = vweird.f32 %v744
  %vm905 = vweird.f32 %v898
  %vm906 = vmor %vm904, %vm905
  %v907 = vsel %vm906, %v898, %v903
  %v908 = vrsqrt.pop %v745
  %v909 = vmul.f32 %v908, %v745
  %v910 = vmul.f32 %v909, %v908
  %v911 = vmul.f32 0.5, %v910
  %v912 = vsub.f32 1.5, %v911
  %v913 = vmul.f32 %v908, %v912
  %vm914 = vweird.f32 %v745
  %vm915 = vweird.f32 %v908
  %vm916 = vmor %vm914, %vm915
  %v917 = vsel %vm916, %v908, %v913
  %v918 = vrsqrt.pop %v746
  %v919 = vmul.f32 %v918, %v746
  %v920 = vmul.f32 %v919, %v918
  %v921 = vmul.f32 0.5, %v920
  %v922 = vsub.f32 1.5, %v921
  %v923 = vmul.f32 %v918, %v922
  %vm924 = vweird.f32 %v746
  %vm925 = vweird.f32 %v918
  %vm926 = vmor %vm924, %vm925
  %v927 = vsel %vm926, %v918, %v923
  %v928 = vrsqrt.pop %v747
  %v929 = vmul.f32 %v928, %v747
  %v930 = vmul.f32 %v929, %v928
  %v931 = vmul.f32 0.5, %v930
  %v932 = vsub.f32 1.5, %v931
  %v933 = vmul.f32 %v928, %v932
  %vm934 = vweird.f32 %v747
  %vm935 = vweird.f32 %v928
  %vm936 = vmor %vm934, %vm935
  %v937 = vsel %vm936, %v928, %v933
  %v938 = vrsqrt.pop %v748
  %v939 = vmul.f32 %v938, %v748
  %v940 = vmul.f32 %v939, %v938
  %v941 = vmul.f32 0.5, %v940
  %v942 = vsub.f32 1.5, %v941
  %v943 = vmul.f32 %v938, %v942
  %vm944 = vweird.f32 %v748
  %vm945 = vweird.f32 %v938
  %vm946 = vmor %vm944, %vm945
  %v947 = vsel %vm946, %v938, %v943
  %v948 = vrsqrt.pop %v749
  %v949 = vmul.f32 %v948, %v749
  %v950 = vmul.f32 %v949, %v948
  %v951 = vmul.f32 0.5, %v950
  %v952 = vsub.f32 1.5, %v951
  %v953 = vmul.f32 %v948, %v952
  %vm954 = vweird.f32 %v749
  %vm955 = vweird.f32 %v948
  %vm956 = vmor %vm954, %vm955
  %v957 = vsel %vm956, %v948, %v953
  %v958 = vrsqrt.pop %v750
  %v959 = vmul.f32 %v958, %v750
  %v960 = vmul.f32 %v959, %v958
  %v961 = vmul.f32 0.5, %v960
  %v962 = vsub.f32 1.5, %v961
  %v963 = vmul.f32 %v958, %v962
  %vm964 = vweird.f32 %v750
  %vm965 = vweird.f32 %v958
  %vm966 = vmor %vm964, %vm965
  %v967 = vsel %vm966, %v958, %v963
  %v968 = vrsqrt.pop %v751
  %v969 = vmul.f32 %v968, %v751
  %v970 = vmul.f32 %v969, %v968
  %v971 = vmul.f32 0.5, %v970
  %v972 = vsub.f32 1.5, %v971
  %v973 = vmul.f32 %v968, %v972
  %vm974 = vweird.f32 %v751
  %vm975 = vweird.f32 %v968
  %vm976 = vmor %vm974, %vm975
  %v977 = vsel %vm976, %v968, %v973
  %v978 = vrsqrt.pop %v752
  %v979 = vmul.f32 %v978, %v752
  %v980 = vmul.f32 %v979, %v978
  %v981 = vmul.f32 0.5, %v980
  %v982 = vsub.f32 1.5, %v981
  %v983 = vmul.f32 %v978, %v982
  %vm984 = vweird.f32 %v752
  %vm985 = vweird.f32 %v978
  %vm986 = vmor %vm984, %vm985
  %v987 = vsel %vm986, %v978, %v983
  %v988 = vrsqrt.pop %v753
  %v989 = vmul.f32 %v988, %v753
  %v990 = vmul.f32 %v989, %v988
  %v991 = vmul.f32 0.5, %v990
  %v992 = vsub.f32 1.5, %v991
  %v993 = vmul.f32 %v988, %v992
  %vm994 = vweird.f32 %v753
  %vm995 = vweird.f32 %v988
  %vm996 = vmor %vm994, %vm995
  %v997 = vsel %vm996, %v988, %v993
  %v998 = vrsqrt.pop %v754
  %v999 = vmul.f32 %v998, %v754
  %v1000 = vmul.f32 %v999, %v998
  %v1001 = vmul.f32 0.5, %v1000
  %v1002 = vsub.f32 1.5, %v1001
  %v1003 = vmul.f32 %v998, %v1002
  %vm1004 = vweird.f32 %v754
  %vm1005 = vweird.f32 %v998
  %vm1006 = vmor %vm1004, %vm1005
  %v1007 = vsel %vm1006, %v998, %v1003
  %v1008 = vrsqrt.pop %v755
  %v1009 = vmul.f32 %v1008, %v755
  %v1010 = vmul.f32 %v1009, %v1008
  %v1011 = vmul.f32 0.5, %v1010
  %v1012 = vsub.f32 1.5, %v1011
  %v1013 = vmul.f32 %v1008, %v1012
  %vm1014 = vweird.f32 %v755
  %vm1015 = vweird.f32 %v1008
  %vm1016 = vmor %vm1014, %vm1015
  %v1017 = vsel %vm1016, %v1008, %v1013
  %v1018 = vrsqrt.pop %v756
  %v1019 = vmul.f32 %v1018, %v756
  %v1020 = vmul.f32 %v1019, %v1018
  %v1021 = vmul.f32 0.5, %v1020
  %v1022 = vsub.f32 1.5, %v1021
  %v1023 = vmul.f32 %v1018, %v1022
  %vm1024 = vweird.f32 %v756
  %vm1025 = vweird.f32 %v1018
  %vm1026 = vmor %vm1024, %vm1025
  %v1027 = vsel %vm1026, %v1018, %v1023
  %v1028 = vrsqrt.pop %v757
  %v1029 = vmul.f32 %v1028, %v757
  %v1030 = vmul.f32 %v1029, %v1028
  %v1031 = vmul.f32 0.5, %v1030
  %v1032 = vsub.f32 1.5, %v1031
  %v1033 = vmul.f32 %v1028, %v1032
  %vm1034 = vweird.f32 %v757
  %vm1035 = vweird.f32 %v1028
  %vm1036 = vmor %vm1034, %vm1035
  %v1037 = vsel %vm1036, %v1028, %v1033
  %v1038 = vrsqrt.pop %v758
  %v1039 = vmul.f32 %v1038, %v758
  %v1040 = vmul.f32 %v1039, %v1038
  %v1041 = vmul.f32 0.5, %v1040
  %v1042 = vsub.f32 1.5, %v1041
  %v1043 = vmul.f32 %v1038, %v1042
  %vm1044 = vweird.f32 %v758
  %vm1045 = vweird.f32 %v1038
  %vm1046 = vmor %vm1044, %vm1045
  %v1047 = vsel %vm1046, %v1038, %v1043
  %v1048 = vrsqrt.pop %v759
  %v1049 = vmul.f32 %v1048, %v759
  %v1050 = vmul.f32 %v1049, %v1048
  %v1051 = vmul.f32 0.5, %v1050
  %v1052 = vsub.f32 1.5, %v1051
  %v1053 = vmul.f32 %v1048, %v1052
  %vm1054 = vweird.f32 %v759
  %vm1055 = vweird.f32 %v1048
  %vm1056 = vmor %vm1054, %vm1055
  %v1057 = vsel %vm1056, %v1048, %v1053
  %v1058 = vrsqrt.pop %v760
  %v1059 = vmul.f32 %v1058, %v760
  %v1060 = vmul.f32 %v1059, %v1058
  %v1061 = vmul.f32 0.5, %v1060
  %v1062 = vsub.f32 1.5, %v1061
  %v1063 = vmul.f32 %v1058, %v1062
  %vm1064 = vweird.f32 %v760
  %vm1065 = vweird.f32 %v1058
  %vm1066 = vmor %vm1064, %vm1065
  %v1067 = vsel %vm1066, %v1058, %v1063
  %v1068 = vrsqrt.pop %v761
  %v1069 = vmul.f32 %v1068, %v761
  %v1070 = vmul.f32 %v1069, %v1068
  %v1071 = vmul.f32 0.5, %v1070
  %v1072 = vsub.f32 1.5, %v1071
  %v1073 = vmul.f32 %v1068, %v1072
  %vm1074 = vweird.f32 %v761
  %vm1075 = vweird.f32 %v1068
  %vm1076 = vmor %vm1074, %vm1075
  %v1077 = vsel %vm1076, %v1068, %v1073
  %v1078 = vrsqrt.pop %v762
  %v1079 = vmul.f32 %v1078, %v762
  %v1080 = vmul.f32 %v1079, %v1078
  %v1081 = vmul.f32 0.5, %v1080
  %v1082 = vsub.f32 1.5, %v1081
  %v1083 = vmul.f32 %v1078, %v1082
  %vm1084 = vweird.f32 %v762
  %vm1085 = vweird.f32 %v1078
  %vm1086 = vmor %vm1084, %vm1085
  %v1087 = vsel %vm1086, %v1078, %v1083
  %v1088 = vrsqrt.pop %v763
  %v1089 = vmul.f32 %v1088, %v763
  %v1090 = vmul.f32 %v1089, %v1088
  %v1091 = vmul.f32 0.5, %v1090
  %v1092 = vsub.f32 1.5, %v1091
  %v1093 = vmul.f32 %v1088, %v1092
  %vm1094 = vweird.f32 %v763
  %vm1095 = vweird.f32 %v1088
  %vm1096 = vmor %vm1094, %vm1095
  %v1097 = vsel %vm1096, %v1088, %v1093
  %v1098 = vrsqrt.pop %v764
  %v1099 = vmul.f32 %v1098, %v764
  %v1100 = vmul.f32 %v1099, %v1098
  %v1101 = vmul.f32 0.5, %v1100
  %v1102 = vsub.f32 1.5, %v1101
  %v1103 = vmul.f32 %v1098, %v1102
  %vm1104 = vweird.f32 %v764
  %vm1105 = vweird.f32 %v1098
  %vm1106 = vmor %vm1104, %vm1105
  %v1107 = vsel %vm1106, %v1098, %v1103
  %v1108 = vrsqrt.pop %v765
  %v1109 = vmul.f32 %v1108, %v765
  %v1110 = vmul.f32 %v1109, %v1108
  %v1111 = vmul.f32 0.5, %v1110
  %v1112 = vsub.f32 1.5, %v1111
  %v1113 = vmul.f32 %v1108, %v1112
  %vm1114 = vweird.f32 %v765
  %vm1115 = vweird.f32 %v1108
  %vm1116 = vmor %vm1114, %vm1115
  %v1117 = vsel %vm1116, %v1108, %v1113
  %v1118 = vrsqrt.pop %v766
  %v1119 = vmul.f32 %v1118, %v766
  %v1120 = vmul.f32 %v1119, %v1118
  %v1121 = vmul.f32 0.5, %v1120
  %v1122 = vsub.f32 1.5, %v1121
  %v1123 = vmul.f32 %v1118, %v1122
  %vm1124 = vweird.f32 %v766
  %vm1125 = vweird.f32 %v1118
  %vm1126 = vmor %vm1124, %vm1125
  %v1127 = vsel %vm1126, %v1118, %v1123
  %v1128 = vrsqrt.pop %v767
  %v1129 = vmul.f32 %v1128, %v767
  %v1130 = vmul.f32 %v1129, %v1128
  %v1131 = vmul.f32 0.5, %v1130
  %v1132 = vsub.f32 1.5, %v1131
  %v1133 = vmul.f32 %v1128, %v1132
  %vm1134 = vweird.f32 %v767
  %vm1135 = vweird.f32 %v1128
  %vm1136 = vmor %vm1134, %vm1135
  %v1137 = vsel %vm1136, %v1128, %v1133
  %v1138 = vrsqrt.pop %v768
  %v1139 = vmul.f32 %v1138, %v768
  %v1140 = vmul.f32 %v1139, %v1138
  %v1141 = vmul.f32 0.5, %v1140
  %v1142 = vsub.f32 1.5, %v1141
  %v1143 = vmul.f32 %v1138, %v1142
  %vm1144 = vweird.f32 %v768
  %vm1145 = vweird.f32 %v1138
  %vm1146 = vmor %vm1144, %vm1145
  %v1147 = vsel %vm1146, %v1138, %v1143
  %v1148 = vrsqrt.pop %v769
  %v1149 = vmul.f32 %v1148, %v769
  %v1150 = vmul.f32 %v1149, %v1148
  %v1151 = vmul.f32 0.5, %v1150
  %v1152 = vsub.f32 1.5, %v1151
  %v1153 = vmul.f32 %v1148, %v1152
  %vm1154 = vweird.f32 %v769
  %vm1155 = vweird.f32 %v1148
  %vm1156 = vmor %vm1154, %vm1155
  %v1157 = vsel %vm1156, %v1148, %v1153
  %v1158 = vrsqrt.pop %v770
  %v1159 = vmul.f32 %v1158, %v770
  %v1160 = vmul.f32 %v1159, %v1158
  %v1161 = vmul.f32 0.5, %v1160
  %v1162 = vsub.f32 1.5, %v1161
  %v1163 = vmul.f32 %v1158, %v1162
  %vm1164 = vweird.f32 %v770
  %vm1165 = vweird.f32 %v1158
  %vm1166 = vmor %vm1164, %vm1165
  %v1167 = vsel %vm1166, %v1158, %v1163
  %v1168 = vrsqrt.pop %v771
  %v1169 = vmul.f32 %v1168, %v771
  %v1170 = vmul.f32 %v1169, %v1168
  %v1171 = vmul.f32 0.5, %v1170
  %v1172 = vsub.f32 1.5, %v1171
  %v1173 = vmul.f32 %v1168, %v1172
  %vm1174 = vweird.f32 %v771
  %vm1175 = vweird.f32 %v1168
  %vm1176 = vmor %vm1174, %vm1175
  %v1177 = vsel %vm1176, %v1168, %v1173
  %v1178 = vrsqrt.pop %v772
  %v1179 = vmul.f32 %v1178, %v772
  %v1180 = vmul.f32 %v1179, %v1178
  %v1181 = vmul.f32 0.5, %v1180
  %v1182 = vsub.f32 1.5, %v1181
  %v1183 = vmul.f32 %v1178, %v1182
  %vm1184 = vweird.f32 %v772
  %vm1185 = vweird.f32 %v1178
  %vm1186 = vmor %vm1184, %vm1185
  %v1187 = vsel %vm1186, %v1178, %v1183
  %v1188 = vrsqrt.pop %v773
  %v1189 = vmul.f32 %v1188, %v773
  %v1190 = vmul.f32 %v1189, %v1188
  %v1191 = vmul.f32 0.5, %v1190
  %v1192 = vsub.f32 1.5, %v1191
  %v1193 = vmul.f32 %v1188, %v1192
  %vm1194 = vweird.f32 %v773
  %vm1195 = vweird.f32 %v1188
  %vm1196 = vmor %vm1194, %vm1195
  %v1197 = vsel %vm1196, %v1188, %v1193
  %v1198 = vrsqrt.pop %v774
  %v1199 = vmul.f32 %v1198, %v774
  %v1200 = vmul.f32 %v1199, %v1198
  %v1201 = vmul.f32 0.5, %v1200
  %v1202 = vsub.f32 1.5, %v1201
  %v1203 = vmul.f32 %v1198, %v1202
  %vm1204 = vweird.f32 %v774
  %vm1205 = vweird.f32 %v1198
  %vm1206 = vmor %vm1204, %vm1205
  %v1207 = vsel %vm1206, %v1198, %v1203
  %v1208 = vrsqrt.pop %v775
  %v1209 = vmul.f32 %v1208, %v775
  %v1210 = vmul.f32 %v1209, %v1208
  %v1211 = vmul.f32 0.5, %v1210
  %v1212 = vsub.f32 1.5, %v1211
  %v1213 = vmul.f32 %v1208, %v1212
  %vm1214 = vweird.f32 %v775
  %vm1215 = vweird.f32 %v1208
  %vm1216 = vmor %vm1214, %vm1215
  %v1217 = vsel %vm1216, %v1208, %v1213
  %v1218 = vrsqrt.pop %v776
  %v1219 = vmul.f32 %v1218, %v776
  %v1220 = vmul.f32 %v1219, %v1218
  %v1221 = vmul.f32 0.5, %v1220
  %v1222 = vsub.f32 1.5, %v1221
  %v1223 = vmul.f32 %v1218, %v1222
  %vm1224 = vweird.f32 %v776
  %vm1225 = vweird.f32 %v1218
  %vm1226 = vmor %vm1224, %vm1225
  %v1227 = vsel %vm1226, %v1218, %v1223
  %v1228 = vrsqrt.pop %v777
  %v1229 = vmul.f32 %v1228, %v777
  %v1230 = vmul.f32 %v1229, %v1228
  %v1231 = vmul.f32 0.5, %v1230
  %v1232 = vsub.f32 1.5, %v1231
  %v1233 = vmul.f32 %v1228, %v1232
  %vm1234 = vweird.f32 %v777
  %vm1235 = vweird.f32 %v1228
  %vm1236 = vmor %vm1234, %vm1235
  %v1237 = vsel %vm1236, %v1228, %v1233
  %v1238 = vrsqrt.pop %v778
  %v1239 = vmul.f32 %v1238, %v778
  %v1240 = vmul.f32 %v1239, %v1238
  %v1241 = vmul.f32 0.5, %v1240
  %v1242 = vsub.f32 1.5, %v1241
  %v1243 = vmul.f32 %v1238, %v1242
  %vm1244 = vweird.f32 %v778
  %vm1245 = vweird.f32 %v1238
  %vm1246 = vmor %vm1244, %vm1245
  %v1247 = vsel %vm1246, %v1238, %v1243
  %v1248 = vrsqrt.pop %v779
  %v1249 = vmul.f32 %v1248, %v779
  %v1250 = vmul.f32 %v1249, %v1248
  %v1251 = vmul.f32 0.5, %v1250
  %v1252 = vsub.f32 1.5, %v1251
  %v1253 = vmul.f32 %v1248, %v1252
  %vm1254 = vweird.f32 %v779
  %vm1255 = vweird.f32 %v1248
  %vm1256 = vmor %vm1254, %vm1255
  %v1257 = vsel %vm1256, %v1248, %v1253
  %v1258 = vrsqrt.pop %v780
  %v1259 = vmul.f32 %v1258, %v780
  %v1260 = vmul.f32 %v1259, %v1258
  %v1261 = vmul.f32 0.5, %v1260
  %v1262 = vsub.f32 1.5, %v1261
  %v1263 = vmul.f32 %v1258, %v1262
  %vm1264 = vweird.f32 %v780
  %vm1265 = vweird.f32 %v1258
  %vm1266 = vmor %vm1264, %vm1265
  %v1267 = vsel %vm1266, %v1258, %v1263
  %v1268 = vrsqrt.pop %v781
  %v1269 = vmul.f32 %v1268, %v781
  %v1270 = vmul.f32 %v1269, %v1268
  %v1271 = vmul.f32 0.5, %v1270
  %v1272 = vsub.f32 1.5, %v1271
  %v1273 = vmul.f32 %v1268, %v1272
  %vm1274 = vweird.f32 %v781
  %vm1275 = vweird.f32 %v1268
  %vm1276 = vmor %vm1274, %vm1275
  %v1277 = vsel %vm1276, %v1268, %v1273
  %v1278 = vrsqrt.pop %v782
  %v1279 = vmul.f32 %v1278, %v782
  %v1280 = vmul.f32 %v1279, %v1278
  %v1281 = vmul.f32 0.5, %v1280
  %v1282 = vsub.f32 1.5, %v1281
  %v1283 = vmul.f32 %v1278, %v1282
  %vm1284 = vweird.f32 %v782
  %vm1285 = vweird.f32 %v1278
  %vm1286 = vmor %vm1284, %vm1285
  %v1287 = vsel %vm1286, %v1278, %v1283
  %v1288 = vrsqrt.pop %v783
  %v1289 = vmul.f32 %v1288, %v783
  %v1290 = vmul.f32 %v1289, %v1288
  %v1291 = vmul.f32 0.5, %v1290
  %v1292 = vsub.f32 1.5, %v1291
  %v1293 = vmul.f32 %v1288, %v1292
  %vm1294 = vweird.f32 %v783
  %vm1295 = vweird.f32 %v1288
  %vm1296 = vmor %vm1294, %vm1295
  %v1297 = vsel %vm1296, %v1288, %v1293
  %v1298 = vrsqrt.pop %v784
  %v1299 = vmul.f32 %v1298, %v784
  %v1300 = vmul.f32 %v1299, %v1298
  %v1301 = vmul.f32 0.5, %v1300
  %v1302 = vsub.f32 1.5, %v1301
  %v1303 = vmul.f32 %v1298, %v1302
  %vm1304 = vweird.f32 %v784
  %vm1305 = vweird.f32 %v1298
  %vm1306 = vmor %vm1304, %vm1305
  %v1307 = vsel %vm1306, %v1298, %v1303
  %v1308 = vrsqrt.pop %v785
  %v1309 = vmul.f32 %v1308, %v785
  %v1310 = vmul.f32 %v1309, %v1308
  %v1311 = vmul.f32 0.5, %v1310
  %v1312 = vsub.f32 1.5, %v1311
  %v1313 = vmul.f32 %v1308, %v1312
  %vm1314 = vweird.f32 %v785
  %vm1315 = vweird.f32 %v1308
  %vm1316 = vmor %vm1314, %vm1315
  %v1317 = vsel %vm1316, %v1308, %v1313
  %v1318 = vrsqrt.pop %v786
  %v1319 = vmul.f32 %v1318, %v786
  %v1320 = vmul.f32 %v1319, %v1318
  %v1321 = vmul.f32 0.5, %v1320
  %v1322 = vsub.f32 1.5, %v1321
  %v1323 = vmul.f32 %v1318, %v1322
  %vm1324 = vweird.f32 %v786
  %vm1325 = vweird.f32 %v1318
  %vm1326 = vmor %vm1324, %vm1325
  %v1327 = vsel %vm1326, %v1318, %v1323
  %v1328 = vrsqrt.pop %v787
  %v1329 = vmul.f32 %v1328, %v787
  %v1330 = vmul.f32 %v1329, %v1328
  %v1331 = vmul.f32 0.5, %v1330
  %v1332 = vsub.f32 1.5, %v1331
  %v1333 = vmul.f32 %v1328, %v1332
  %vm1334 = vweird.f32 %v787
  %vm1335 = vweird.f32 %v1328
  %vm1336 = vmor %vm1334, %vm1335
  %v1337 = vsel %vm1336, %v1328, %v1333
  %v1338 = vrsqrt.pop %v788
  %v1339 = vmul.f32 %v1338, %v788
  %v1340 = vmul.f32 %v1339, %v1338
  %v1341 = vmul.f32 0.5, %v1340
  %v1342 = vsub.f32 1.5, %v1341
  %v1343 = vmul.f32 %v1338, %v1342
  %vm1344 = vweird.f32 %v788
  %vm1345 = vweird.f32 %v1338
  %vm1346 = vmor %vm1344, %vm1345
  %v1347 = vsel %vm1346, %v1338, %v1343
  %v1348 = vrsqrt.pop %v789
  %v1349 = vmul.f32 %v1348, %v789
  %v1350 = vmul.f32 %v1349, %v1348
  %v1351 = vmul.f32 0.5, %v1350
  %v1352 = vsub.f32 1.5, %v1351
  %v1353 = vmul.f32 %v1348, %v1352
  %vm1354 = vweird.f32 %v789
  %vm1355 = vweird.f32 %v1348
  %vm1356 = vmor %vm1354, %vm1355
  %v1357 = vsel %vm1356, %v1348, %v1353
  %v1358 = vrsqrt.pop %v790
  %v1359 = vmul.f32 %v1358, %v790
  %v1360 = vmul.f32 %v1359, %v1358
  %v1361 = vmul.f32 0.5, %v1360
  %v1362 = vsub.f32 1.5, %v1361
  %v1363 = vmul.f32 %v1358, %v1362
  %vm1364 = vweird.f32 %v790
  %vm1365 = vweird.f32 %v1358
  %vm1366 = vmor %vm1364, %vm1365
  %v1367 = vsel %vm1366, %v1358, %v1363
  %v1368 = vrsqrt.pop %v791
  %v1369 = vmul.f32 %v1368, %v791
  %v1370 = vmul.f32 %v1369, %v1368
  %v1371 = vmul.f32 0.5, %v1370
  %v1372 = vsub.f32 1.5, %v1371
  %v1373 = vmul.f32 %v1368, %v1372
  %vm1374 = vweird.f32 %v791
  %vm1375 = vweird.f32 %v1368
  %vm1376 = vmor %vm1374, %vm1375
  %v1377 = vsel %vm1376, %v1368, %v1373
  %v1378 = vrsqrt.pop %v792
  %v1379 = vmul.f32 %v1378, %v792
  %v1380 = vmul.f32 %v1379, %v1378
  %v1381 = vmul.f32 0.5, %v1380
  %v1382 = vsub.f32 1.5, %v1381
  %v1383 = vmul.f32 %v1378, %v1382
  %vm1384 = vweird.f32 %v792
  %vm1385 = vweird.f32 %v1378
  %vm1386 = vmor %vm1384, %vm1385
  %v1387 = vsel %vm1386, %v1378, %v1383
  %v1388 = vrsqrt.pop %v793
  %v1389 = vmul.f32 %v1388, %v793
  %v1390 = vmul.f32 %v1389, %v1388
  %v1391 = vmul.f32 0.5, %v1390
  %v1392 = vsub.f32 1.5, %v1391
  %v1393 = vmul.f32 %v1388, %v1392
  %vm1394 = vweird.f32 %v793
  %vm1395 = vweird.f32 %v1388
  %vm1396 = vmor %vm1394, %vm1395
  %v1397 = vsel %vm1396, %v1388, %v1393
  %v1398 = vrsqrt.pop %v794
  %v1399 = vmul.f32 %v1398, %v794
  %v1400 = vmul.f32 %v1399, %v1398
  %v1401 = vmul.f32 0.5, %v1400
  %v1402 = vsub.f32 1.5, %v1401
  %v1403 = vmul.f32 %v1398, %v1402
  %vm1404 = vweird.f32 %v794
  %vm1405 = vweird.f32 %v1398
  %vm1406 = vmor %vm1404, %vm1405
  %v1407 = vsel %vm1406, %v1398, %v1403
  %v1408 = vrsqrt.pop %v795
  %v1409 = vmul.f32 %v1408, %v795
  %v1410 = vmul.f32 %v1409, %v1408
  %v1411 = vmul.f32 0.5, %v1410
  %v1412 = vsub.f32 1.5, %v1411
  %v1413 = vmul.f32 %v1408, %v1412
  %vm1414 = vweird.f32 %v795
  %vm1415 = vweird.f32 %v1408
  %vm1416 = vmor %vm1414, %vm1415
  %v1417 = vsel %vm1416, %v1408, %v1413
  %v1418 = vrsqrt.pop %v796
  %v1419 = vmul.f32 %v1418, %v796
  %v1420 = vmul.f32 %v1419, %v1418
  %v1421 = vmul.f32 0.5, %v1420
  %v1422 = vsub.f32 1.5, %v1421
  %v1423 = vmul.f32 %v1418, %v1422
  %vm1424 = vweird.f32 %v796
  %vm1425 = vweird.f32 %v1418
  %vm1426 = vmor %vm1424, %vm1425
  %v1427 = vsel %vm1426, %v1418, %v1423
  %v1428 = vrsqrt.pop %v797
  %v1429 = vmul.f32 %v1428, %v797
  %v1430 = vmul.f32 %v1429, %v1428
  %v1431 = vmul.f32 0.5, %v1430
  %v1432 = vsub.f32 1.5, %v1431
  %v1433 = vmul.f32 %v1428, %v1432
  %vm1434 = vweird.f32 %v797
  %vm1435 = vweird.f32 %v1428
  %vm1436 = vmor %vm1434, %vm1435
  %v1437 = vsel %vm1436, %v1428, %v1433
  %v1438 = vmul.f32 %v350, %v807
  %v1439 = vmul.f32 %v351, %v817
  %v1440 = vmul.f32 %v352, %v827
  %v1441 = vmul.f32 %v353, %v837
  %v1442 = vmul.f32 %v354, %v847
  %v1443 = vmul.f32 %v355, %v857
  %v1444 = vmul.f32 %v356, %v867
  %v1445 = vmul.f32 %v357, %v877
  %v1446 = vmul.f32 %v358, %v887
  %v1447 = vmul.f32 %v359, %v897
  %v1448 = vmul.f32 %v360, %v907
  %v1449 = vmul.f32 %v361, %v917
  %v1450 = vmul.f32 %v362, %v927
  %v1451 = vmul.f32 %v363, %v937
  %v1452 = vmul.f32 %v364, %v947
  %v1453 = vmul.f32 %v365, %v957
  %v1454 = vmul.f32 %v366, %v967
  %v1455 = vmul.f32 %v367, %v977
  %v1456 = vmul.f32 %v368, %v987
  %v1457 = vmul.f32 %v369, %v997
  %v1458 = vmul.f32 %v370, %v1007
  %v1459 = vmul.f32 %v371, %v1017
  %v1460 = vmul.f32 %v372, %v1027
  %v1461 = vmul.f32 %v373, %v1037
  %v1462 = vmul.f32 %v374, %v1047
  %v1463 = vmul.f32 %v375, %v1057
  %v1464 = vmul.f32 %v376, %v1067
  %v1465 = vmul.f32 %v377, %v1077
  %v1466 = vmul.f32 %v378, %v1087
  %v1467 = vmul.f32 %v379, %v1097
  %v1468 = vmul.f32 %v380, %v1107
  %v1469 = vmul.f32 %v381, %v1117
  %v1470 = vmul.f32 %v382, %v1127
  %v1471 = vmul.f32 %v383, %v1137
  %v1472 = vmul.f32 %v384, %v1147
  %v1473 = vmul.f32 %v385, %v1157
  %v1474 = vmul.f32 %v386, %v1167
  %v1475 = vmul.f32 %v387, %v1177
  %v1476 = vmul.f32 %v388, %v1187
  %v1477 = vmul.f32 %v389, %v1197
  %v1478 = vmul.f32 %v390, %v1207
  %v1479 = vmul.f32 %v391, %v1217
  %v1480 = vmul.f32 %v392, %v1227
  %v1481 = vmul.f32 %v393, %v1237
  %v1482 = vmul.f32 %v394, %v1247
  %v1483 = vmul.f32 %v395, %v1257
  %v1484 = vmul.f32 %v396, %v1267
  %v1485 = vmul.f32 %v397, %v1277
  %v1486 = vmul.f32 %v398, %v1287
  %v1487 = vmul.f32 %v399, %v1297
  %v1488 = vmul.f32 %v400, %v1307
  %v1489 = vmul.f32 %v401, %v1317
  %v1490 = vmul.f32 %v402, %v1327
  %v1491 = vmul.f32 %v403, %v1337
  %v1492 = vmul.f32 %v404, %v1347
  %v1493 = vmul.f32 %v405, %v1357
  %v1494 = vmul.f32 %v406, %v1367
  %v1495 = vmul.f32 %v407, %v1377
  %v1496 = vmul.f32 %v408, %v1387
  %v1497 = vmul.f32 %v409, %v1397
  %v1498 = vmul.f32 %v410, %v1407
  %v1499 = vmul.f32 %v411, %v1417
  %v1500 = vmul.f32 %v412, %v1427
  %v1501 = vmul.f32 %v413, %v1437
  %v1503 = vperm.slane %v84, 0
  %v1505 = vmul.f32 %v1438, %v1503
  %v1506 = vmul.f32 %v1439, %v1503
  %v1507 = vmul.f32 %v1440, %v1503
  %v1508 = vmul.f32 %v1441, %v1503
  %v1509 = vmul.f32 %v1442, %v1503
  %v1510 = vmul.f32 %v1443, %v1503
  %v1511 = vmul.f32 %v1444, %v1503
  %v1512 = vmul.f32 %v1445, %v1503
  %v1513 = vmul.f32 %v1446, %v1503
  %v1514 = vmul.f32 %v1447, %v1503
  %v1515 = vmul.f32 %v1448, %v1503
  %v1516 = vmul.f32 %v1449, %v1503
  %v1517 = vmul.f32 %v1450, %v1503
  %v1518 = vmul.f32 %v1451, %v1503
  %v1519 = vmul.f32 %v1452, %v1503
  %v1520 = vmul.f32 %v1453, %v1503
  %v1521 = vmul.f32 %v1454, %v1503
  %v1522 = vmul.f32 %v1455, %v1503
  %v1523 = vmul.f32 %v1456, %v1503
  %v1524 = vmul.f32 %v1457, %v1503
  %v1525 = vmul.f32 %v1458, %v1503
  %v1526 = vmul.f32 %v1459, %v1503
  %v1527 = vmul.f32 %v1460, %v1503
  %v1528 = vmul.f32 %v1461, %v1503
  %v1529 = vmul.f32 %v1462, %v1503
  %v1530 = vmul.f32 %v1463, %v1503
  %v1531 = vmul.f32 %v1464, %v1503
  %v1532 = vmul.f32 %v1465, %v1503
  %v1533 = vmul.f32 %v1466, %v1503
  %v1534 = vmul.f32 %v1467, %v1503
  %v1535 = vmul.f32 %v1468, %v1503
  %v1536 = vmul.f32 %v1469, %v1503
  %v1537 = vmul.f32 %v1470, %v1503
  %v1538 = vmul.f32 %v1471, %v1503
  %v1539 = vmul.f32 %v1472, %v1503
  %v1540 = vmul.f32 %v1473, %v1503
  %v1541 = vmul.f32 %v1474, %v1503
  %v1542 = vmul.f32 %v1475, %v1503
  %v1543 = vmul.f32 %v1476, %v1503
  %v1544 = vmul.f32 %v1477, %v1503
  %v1545 = vmul.f32 %v1478, %v1503
  %v1546 = vmul.f32 %v1479, %v1503
  %v1547 = vmul.f32 %v1480, %v1503
  %v1548 = vmul.f32 %v1481, %v1503
  %v1549 = vmul.f32 %v1482, %v1503
  %v1550 = vmul.f32 %v1483, %v1503
  %v1551 = vmul.f32 %v1484, %v1503
  %v1552 = vmul.f32 %v1485, %v1503
  %v1553 = vmul.f32 %v1486, %v1503
  %v1554 = vmul.f32 %v1487, %v1503
  %v1555 = vmul.f32 %v1488, %v1503
  %v1556 = vmul.f32 %v1489, %v1503
  %v1557 = vmul.f32 %v1490, %v1503
  %v1558 = vmul.f32 %v1491, %v1503
  %v1559 = vmul.f32 %v1492, %v1503
  %v1560 = vmul.f32 %v1493, %v1503
  %v1561 = vmul.f32 %v1494, %v1503
  %v1562 = vmul.f32 %v1495, %v1503
  %v1563 = vmul.f32 %v1496, %v1503
  %v1564 = vmul.f32 %v1497, %v1503
  %v1565 = vmul.f32 %v1498, %v1503
  %v1566 = vmul.f32 %v1499, %v1503
  %v1567 = vmul.f32 %v1500, %v1503
  %v1568 = vmul.f32 %v1501, %v1503
  %v1570 = vperm.slane %v85, 0
  %v1572 = vadd.f32 %v1505, %v1570
  %v1573 = vadd.f32 %v1506, %v1570
  %v1574 = vadd.f32 %v1507, %v1570
  %v1575 = vadd.f32 %v1508, %v1570
  %v1576 = vadd.f32 %v1509, %v1570
  %v1577 = vadd.f32 %v1510, %v1570
  %v1578 = vadd.f32 %v1511, %v1570
  %v1579 = vadd.f32 %v1512, %v1570
  %v1580 = vadd.f32 %v1513, %v1570
  %v1581 = vadd.f32 %v1514, %v1570
  %v1582 = vadd.f32 %v1515, %v1570
  %v1583 = vadd.f32 %v1516, %v1570
  %v1584 = vadd.f32 %v1517, %v1570
  %v1585 = vadd.f32 %v1518, %v1570
  %v1586 = vadd.f32 %v1519, %v1570
  %v1587 = vadd.f32 %v1520, %v1570
  %v1588 = vadd.f32 %v1521, %v1570
  %v1589 = vadd.f32 %v1522, %v1570
  %v1590 = vadd.f32 %v1523, %v1570
  %v1591 = vadd.f32 %v1524, %v1570
  %v1592 = vadd.f32 %v1525, %v1570
  %v1593 = vadd.f32 %v1526, %v1570
  %v1594 = vadd.f32 %v1527, %v1570
  %v1595 = vadd.f32 %v1528, %v1570
  %v1596 = vadd.f32 %v1529, %v1570
  %v1597 = vadd.f32 %v1530, %v1570
  %v1598 = vadd.f32 %v1531, %v1570
  %v1599 = vadd.f32 %v1532, %v1570
  %v1600 = vadd.f32 %v1533, %v1570
  %v1601 = vadd.f32 %v1534, %v1570
  %v1602 = vadd.f32 %v1535, %v1570
  %v1603 = vadd.f32 %v1536, %v1570
  %v1604 = vadd.f32 %v1537, %v1570
  %v1605 = vadd.f32 %v1538, %v1570
  %v1606 = vadd.f32 %v1539, %v1570
  %v1607 = vadd.f32 %v1540, %v1570
  %v1608 = vadd.f32 %v1541, %v1570
  %v1609 = vadd.f32 %v1542, %v1570
  %v1610 = vadd.f32 %v1543, %v1570
  %v1611 = vadd.f32 %v1544, %v1570
  %v1612 = vadd.f32 %v1545, %v1570
  %v1613 = vadd.f32 %v1546, %v1570
  %v1614 = vadd.f32 %v1547, %v1570
  %v1615 = vadd.f32 %v1548, %v1570
  %v1616 = vadd.f32 %v1549, %v1570
  %v1617 = vadd.f32 %v1550, %v1570
  %v1618 = vadd.f32 %v1551, %v1570
  %v1619 = vadd.f32 %v1552, %v1570
  %v1620 = vadd.f32 %v1553, %v1570
  %v1621 = vadd.f32 %v1554, %v1570
  %v1622 = vadd.f32 %v1555, %v1570
  %v1623 = vadd.f32 %v1556, %v1570
  %v1624 = vadd.f32 %v1557, %v1570
  %v1625 = vadd.f32 %v1558, %v1570
  %v1626 = vadd.f32 %v1559, %v1570
  %v1627 = vadd.f32 %v1560, %v1570
  %v1628 = vadd.f32 %v1561, %v1570
  %v1629 = vadd.f32 %v1562, %v1570
  %v1630 = vadd.f32 %v1563, %v1570
  %v1631 = vadd.f32 %v1564, %v1570
  %v1632 = vadd.f32 %v1565, %v1570
  %v1633 = vadd.f32 %v1566, %v1570
  %v1634 = vadd.f32 %v1567, %v1570
  %v1635 = vadd.f32 %v1568, %v1570
  %v1636 = vld [vmem:[%s3] sm:$0xff]
  %v1637 = vld [vmem:[%s3 + $0x8] sm:$0xff]
  %v1638 = vld [vmem:[%s3 + $0x10] sm:$0xff]
  %v1639 = vld [vmem:[%s3 + $0x18] sm:$0xff]
  %v1640 = vld [vmem:[%s4] sm:$0x1]
  %v1642 = vperm.slane %v1640, 0
  %v1645 = vsel %vm86, %v1572, 0
  %v1648 = vsel %vm86, %v1573, 0
  %v1651 = vsel %vm86, %v1574, 0
  %v1654 = vsel %vm86, %v1575, 0
  %v1657 = vsel %vm86, %v1576, 0
  %v1660 = vsel %vm86, %v1577, 0
  %v1663 = vsel %vm86, %v1578, 0
  %v1666 = vsel %vm86, %v1579, 0
  %v1669 = vsel %vm86, %v1580, 0
  %v1672 = vsel %vm86, %v1581, 0
  %v1675 = vsel %vm86, %v1582, 0
  %v1678 = vsel %vm86, %v1583, 0
  %v1681 = vsel %vm86, %v1584, 0
  %v1684 = vsel %vm86, %v1585, 0
  %v1687 = vsel %vm86, %v1586, 0
  %v1690 = vsel %vm86, %v1587, 0
  %v1693 = vsel %vm86, %v1588, 0
  %v1696 = vsel %vm86, %v1589, 0
  %v1699 = vsel %vm86, %v1590, 0
  %v1702 = vsel %vm86, %v1591, 0
  %v1705 = vsel %vm86, %v1592, 0
  %v1708 = vsel %vm86, %v1593, 0
  %v1711 = vsel %vm86, %v1594, 0
  %v1714 = vsel %vm86, %v1595, 0
  %v1717 = vsel %vm86, %v1596, 0
  %v1720 = vsel %vm86, %v1597, 0
  %v1723 = vsel %vm86, %v1598, 0
  %v1726 = vsel %vm86, %v1599, 0
  %v1729 = vsel %vm86, %v1600, 0
  %v1732 = vsel %vm86, %v1601, 0
  %v1735 = vsel %vm86, %v1602, 0
  %v1738 = vsel %vm86, %v1603, 0
  %v1741 = vsel %vm86, %v1604, 0
  %v1744 = vsel %vm86, %v1605, 0
  %v1747 = vsel %vm86, %v1606, 0
  %v1750 = vsel %vm86, %v1607, 0
  %v1753 = vsel %vm86, %v1608, 0
  %v1756 = vsel %vm86, %v1609, 0
  %v1759 = vsel %vm86, %v1610, 0
  %v1762 = vsel %vm86, %v1611, 0
  %v1765 = vsel %vm86, %v1612, 0
  %v1768 = vsel %vm86, %v1613, 0
  %v1771 = vsel %vm86, %v1614, 0
  %v1774 = vsel %vm86, %v1615, 0
  %v1777 = vsel %vm86, %v1616, 0
  %v1780 = vsel %vm86, %v1617, 0
  %v1783 = vsel %vm86, %v1618, 0
  %v1786 = vsel %vm86, %v1619, 0
  %v1789 = vsel %vm86, %v1620, 0
  %v1792 = vsel %vm86, %v1621, 0
  %v1795 = vsel %vm86, %v1622, 0
  %v1798 = vsel %vm86, %v1623, 0
  %v1801 = vsel %vm86, %v1624, 0
  %v1804 = vsel %vm86, %v1625, 0
  %v1807 = vsel %vm86, %v1626, 0
  %v1810 = vsel %vm86, %v1627, 0
  %v1813 = vsel %vm86, %v1628, 0
  %v1816 = vsel %vm86, %v1629, 0
  %v1819 = vsel %vm86, %v1630, 0
  %v1822 = vsel %vm86, %v1631, 0
  %v1825 = vsel %vm86, %v1632, 0
  %v1828 = vsel %vm86, %v1633, 0
  %v1831 = vsel %vm86, %v1634, 0
  %v1834 = vsel %vm86, %v1635, 0
  %1836 = vmatpush.msra.mxu0 0.0
  %1837 = vmatpush.msra.mxu0 0.0
  %1838 = vmatpush.msra.mxu0 0.0
  %1839 = vmatpush.msra.mxu0 0.0
  %1840 = vmatpush.msra.mxu0 0.0
  %1841 = vmatpush.msra.mxu0 0.0
  %1842 = vmatpush.msra.mxu0 0.0
  %1843 = vmatpush.msra.mxu0 0.0
  %1844 = vmatpush.msra.mxu0 0.0
  %1845 = vmatpush.msra.mxu0 0.0
  %1846 = vmatpush.msra.mxu0 0.0
  %1847 = vmatpush.msra.mxu0 0.0
  %1848 = vmatpush.msra.mxu0 %v1639
  %1849 = vmatpush.msra.mxu0 %v1638
  %1850 = vmatpush.msra.mxu0 %v1637
  %1851 = vmatpush.msra.mxu0 %v1636
  %1852 = vmatmul.f32.gmra.mxu0 %v1645
  %v1853 = vpop.f32.mrf.mxu0
  %v1854 = vadd.f32 %v1642, %v1853
  %1855 = vmatmul.f32.gmra.mxu0 %v1648
  %v1856 = vpop.f32.mrf.mxu0
  %v1857 = vadd.f32 %v1642, %v1856
  %1858 = vmatmul.f32.gmra.mxu0 %v1651
  %v1859 = vpop.f32.mrf.mxu0
  %v1860 = vadd.f32 %v1642, %v1859
  %1861 = vmatmul.f32.gmra.mxu0 %v1654
  %v1862 = vpop.f32.mrf.mxu0
  %v1863 = vadd.f32 %v1642, %v1862
  %1864 = vmatmul.f32.gmra.mxu0 %v1657
  %v1865 = vpop.f32.mrf.mxu0
  %v1866 = vadd.f32 %v1642, %v1865
  %1867 = vmatmul.f32.gmra.mxu0 %v1660
  %v1868 = vpop.f32.mrf.mxu0
  %v1869 = vadd.f32 %v1642, %v1868
  %1870 = vmatmul.f32.gmra.mxu0 %v1663
  %v1871 = vpop.f32.mrf.mxu0
  %v1872 = vadd.f32 %v1642, %v1871
  %1873 = vmatmul.f32.gmra.mxu0 %v1666
  %v1874 = vpop.f32.mrf.mxu0
  %v1875 = vadd.f32 %v1642, %v1874
  %1876 = vmatmul.f32.gmra.mxu0 %v1669
  %v1877 = vpop.f32.mrf.mxu0
  %v1878 = vadd.f32 %v1642, %v1877
  %1879 = vmatmul.f32.gmra.mxu0 %v1672
  %v1880 = vpop.f32.mrf.mxu0
  %v1881 = vadd.f32 %v1642, %v1880
  %1882 = vmatmul.f32.gmra.mxu0 %v1675
  %v1883 = vpop.f32.mrf.mxu0
  %v1884 = vadd.f32 %v1642, %v1883
  %1885 = vmatmul.f32.gmra.mxu0 %v1678
  %v1886 = vpop.f32.mrf.mxu0
  %v1887 = vadd.f32 %v1642, %v1886
  %1888 = vmatmul.f32.gmra.mxu0 %v1681
  %v1889 = vpop.f32.mrf.mxu0
  %v1890 = vadd.f32 %v1642, %v1889
  %1891 = vmatmul.f32.gmra.mxu0 %v1684
  %v1892 = vpop.f32.mrf.mxu0
  %v1893 = vadd.f32 %v1642, %v1892
  %1894 = vmatmul.f32.gmra.mxu0 %v1687
  %v1895 = vpop.f32.mrf.mxu0
  %v1896 = vadd.f32 %v1642, %v1895
  %1897 = vmatmul.f32.gmra.mxu0 %v1690
  %v1898 = vpop.f32.mrf.mxu0
  %v1899 = vadd.f32 %v1642, %v1898
  %1900 = vmatmul.f32.gmra.mxu0 %v1693
  %v1901 = vpop.f32.mrf.mxu0
  %v1902 = vadd.f32 %v1642, %v1901
  %1903 = vmatmul.f32.gmra.mxu0 %v1696
  %v1904 = vpop.f32.mrf.mxu0
  %v1905 = vadd.f32 %v1642, %v1904
  %1906 = vmatmul.f32.gmra.mxu0 %v1699
  %v1907 = vpop.f32.mrf.mxu0
  %v1908 = vadd.f32 %v1642, %v1907
  %1909 = vmatmul.f32.gmra.mxu0 %v1702
  %v1910 = vpop.f32.mrf.mxu0
  %v1911 = vadd.f32 %v1642, %v1910
  %1912 = vmatmul.f32.gmra.mxu0 %v1705
  %v1913 = vpop.f32.mrf.mxu0
  %v1914 = vadd.f32 %v1642, %v1913
  %1915 = vmatmul.f32.gmra.mxu0 %v1708
  %v1916 = vpop.f32.mrf.mxu0
  %v1917 = vadd.f32 %v1642, %v1916
  %1918 = vmatmul.f32.gmra.mxu0 %v1711
  %v1919 = vpop.f32.mrf.mxu0
  %v1920 = vadd.f32 %v1642, %v1919
  %1921 = vmatmul.f32.gmra.mxu0 %v1714
  %v1922 = vpop.f32.mrf.mxu0
  %v1923 = vadd.f32 %v1642, %v1922
  %1924 = vmatmul.f32.gmra.mxu0 %v1717
  %v1925 = vpop.f32.mrf.mxu0
  %v1926 = vadd.f32 %v1642, %v1925
  %1927 = vmatmul.f32.gmra.mxu0 %v1720
  %v1928 = vpop.f32.mrf.mxu0
  %v1929 = vadd.f32 %v1642, %v1928
  %1930 = vmatmul.f32.gmra.mxu0 %v1723
  %v1931 = vpop.f32.mrf.mxu0
  %v1932 = vadd.f32 %v1642, %v1931
  %1933 = vmatmul.f32.gmra.mxu0 %v1726
  %v1934 = vpop.f32.mrf.mxu0
  %v1935 = vadd.f32 %v1642, %v1934
  %1936 = vmatmul.f32.gmra.mxu0 %v1729
  %v1937 = vpop.f32.mrf.mxu0
  %v1938 = vadd.f32 %v1642, %v1937
  %1939 = vmatmul.f32.gmra.mxu0 %v1732
  %v1940 = vpop.f32.mrf.mxu0
  %v1941 = vadd.f32 %v1642, %v1940
  %1942 = vmatmul.f32.gmra.mxu0 %v1735
  %v1943 = vpop.f32.mrf.mxu0
  %v1944 = vadd.f32 %v1642, %v1943
  %1945 = vmatmul.f32.gmra.mxu0 %v1738
  %v1946 = vpop.f32.mrf.mxu0
  %v1947 = vadd.f32 %v1642, %v1946
  %1948 = vmatmul.f32.gmra.mxu0 %v1741
  %v1949 = vpop.f32.mrf.mxu0
  %v1950 = vadd.f32 %v1642, %v1949
  %1951 = vmatmul.f32.gmra.mxu0 %v1744
  %v1952 = vpop.f32.mrf.mxu0
  %v1953 = vadd.f32 %v1642, %v1952
  %1954 = vmatmul.f32.gmra.mxu0 %v1747
  %v1955 = vpop.f32.mrf.mxu0
  %v1956 = vadd.f32 %v1642, %v1955
  %1957 = vmatmul.f32.gmra.mxu0 %v1750
  %v1958 = vpop.f32.mrf.mxu0
  %v1959 = vadd.f32 %v1642, %v1958
  %1960 = vmatmul.f32.gmra.mxu0 %v1753
  %v1961 = vpop.f32.mrf.mxu0
  %v1962 = vadd.f32 %v1642, %v1961
  %1963 = vmatmul.f32.gmra.mxu0 %v1756
  %v1964 = vpop.f32.mrf.mxu0
  %v1965 = vadd.f32 %v1642, %v1964
  %1966 = vmatmul.f32.gmra.mxu0 %v1759
  %v1967 = vpop.f32.mrf.mxu0
  %v1968 = vadd.f32 %v1642, %v1967
  %1969 = vmatmul.f32.gmra.mxu0 %v1762
  %v1970 = vpop.f32.mrf.mxu0
  %v1971 = vadd.f32 %v1642, %v1970
  %1972 = vmatmul.f32.gmra.mxu0 %v1765
  %v1973 = vpop.f32.mrf.mxu0
  %v1974 = vadd.f32 %v1642, %v1973
  %1975 = vmatmul.f32.gmra.mxu0 %v1768
  %v1976 = vpop.f32.mrf.mxu0
  %v1977 = vadd.f32 %v1642, %v1976
  %1978 = vmatmul.f32.gmra.mxu0 %v1771
  %v1979 = vpop.f32.mrf.mxu0
  %v1980 = vadd.f32 %v1642, %v1979
  %1981 = vmatmul.f32.gmra.mxu0 %v1774
  %v1982 = vpop.f32.mrf.mxu0
  %v1983 = vadd.f32 %v1642, %v1982
  %1984 = vmatmul.f32.gmra.mxu0 %v1777
  %v1985 = vpop.f32.mrf.mxu0
  %v1986 = vadd.f32 %v1642, %v1985
  %1987 = vmatmul.f32.gmra.mxu0 %v1780
  %v1988 = vpop.f32.mrf.mxu0
  %v1989 = vadd.f32 %v1642, %v1988
  %1990 = vmatmul.f32.gmra.mxu0 %v1783
  %v1991 = vpop.f32.mrf.mxu0
  %v1992 = vadd.f32 %v1642, %v1991
  %1993 = vmatmul.f32.gmra.mxu0 %v1786
  %v1994 = vpop.f32.mrf.mxu0
  %v1995 = vadd.f32 %v1642, %v1994
  %1996 = vmatmul.f32.gmra.mxu0 %v1789
  %v1997 = vpop.f32.mrf.mxu0
  %v1998 = vadd.f32 %v1642, %v1997
  %1999 = vmatmul.f32.gmra.mxu0 %v1792
  %v2000 = vpop.f32.mrf.mxu0
  %v2001 = vadd.f32 %v1642, %v2000
  %2002 = vmatmul.f32.gmra.mxu0 %v1795
  %v2003 = vpop.f32.mrf.mxu0
  %v2004 = vadd.f32 %v1642, %v2003
  %2005 = vmatmul.f32.gmra.mxu0 %v1798
  %v2006 = vpop.f32.mrf.mxu0
  %v2007 = vadd.f32 %v1642, %v2006
  %2008 = vmatmul.f32.gmra.mxu0 %v1801
  %v2009 = vpop.f32.mrf.mxu0
  %v2010 = vadd.f32 %v1642, %v2009
  %2011 = vmatmul.f32.gmra.mxu0 %v1804
  %v2012 = vpop.f32.mrf.mxu0
  %v2013 = vadd.f32 %v1642, %v2012
  %2014 = vmatmul.f32.gmra.mxu0 %v1807
  %v2015 = vpop.f32.mrf.mxu0
  %v2016 = vadd.f32 %v1642, %v2015
  %2017 = vmatmul.f32.gmra.mxu0 %v1810
  %v2018 = vpop.f32.mrf.mxu0
  %v2019 = vadd.f32 %v1642, %v2018
  %2020 = vmatmul.f32.gmra.mxu0 %v1813
  %v2021 = vpop.f32.mrf.mxu0
  %v2022 = vadd.f32 %v1642, %v2021
  %2023 = vmatmul.f32.gmra.mxu0 %v1816
  %v2024 = vpop.f32.mrf.mxu0
  %v2025 = vadd.f32 %v1642, %v2024
  %2026 = vmatmul.f32.gmra.mxu0 %v1819
  %v2027 = vpop.f32.mrf.mxu0
  %v2028 = vadd.f32 %v1642, %v2027
  %2029 = vmatmul.f32.gmra.mxu0 %v1822
  %v2030 = vpop.f32.mrf.mxu0
  %v2031 = vadd.f32 %v1642, %v2030
  %2032 = vmatmul.f32.gmra.mxu0 %v1825
  %v2033 = vpop.f32.mrf.mxu0
  %v2034 = vadd.f32 %v1642, %v2033
  %2035 = vmatmul.f32.gmra.mxu0 %v1828
  %v2036 = vpop.f32.mrf.mxu0
  %v2037 = vadd.f32 %v1642, %v2036
  %2038 = vmatmul.f32.gmra.mxu0 %v1831
  %v2039 = vpop.f32.mrf.mxu0
  %v2040 = vadd.f32 %v1642, %v2039
  %2041 = vmatmul.f32.gmra.mxu0 %v1834
  %v2042 = vpop.f32.mrf.mxu0
  %v2043 = vadd.f32 %v1642, %v2042
  %2044 = vdwg.mxu0
  %vm2045 = vcmask 785408
  %2046 = vst.msk [vmem:[%s5] sm:$0xff] %vm2045, %v1854
  %2047 = vst.msk [vmem:[%s5 + $0x8] sm:$0xff] %vm2045, %v1857
  %2048 = vst.msk [vmem:[%s5 + $0x10] sm:$0xff] %vm2045, %v1860
  %2049 = vst.msk [vmem:[%s5 + $0x18] sm:$0xff] %vm2045, %v1863
  %2050 = vst.msk [vmem:[%s5 + $0x20] sm:$0xff] %vm2045, %v1866
  %2051 = vst.msk [vmem:[%s5 + $0x28] sm:$0xff] %vm2045, %v1869
  %2052 = vst.msk [vmem:[%s5 + $0x30] sm:$0xff] %vm2045, %v1872
  %2053 = vst.msk [vmem:[%s5 + $0x38] sm:$0xff] %vm2045, %v1875
  %2054 = vst.msk [vmem:[%s5 + $0x40] sm:$0xff] %vm2045, %v1878
  %2055 = vst.msk [vmem:[%s5 + $0x48] sm:$0xff] %vm2045, %v1881
  %2056 = vst.msk [vmem:[%s5 + $0x50] sm:$0xff] %vm2045, %v1884
  %2057 = vst.msk [vmem:[%s5 + $0x58] sm:$0xff] %vm2045, %v1887
  %2058 = vst.msk [vmem:[%s5 + $0x60] sm:$0xff] %vm2045, %v1890
  %2059 = vst.msk [vmem:[%s5 + $0x68] sm:$0xff] %vm2045, %v1893
  %2060 = vst.msk [vmem:[%s5 + $0x70] sm:$0xff] %vm2045, %v1896
  %2061 = vst.msk [vmem:[%s5 + $0x78] sm:$0xff] %vm2045, %v1899
  %2062 = vst.msk [vmem:[%s5 + $0x80] sm:$0xff] %vm2045, %v1902
  %2063 = vst.msk [vmem:[%s5 + $0x88] sm:$0xff] %vm2045, %v1905
  %2064 = vst.msk [vmem:[%s5 + $0x90] sm:$0xff] %vm2045, %v1908
  %2065 = vst.msk [vmem:[%s5 + $0x98] sm:$0xff] %vm2045, %v1911
  %2066 = vst.msk [vmem:[%s5 + $0xa0] sm:$0xff] %vm2045, %v1914
  %2067 = vst.msk [vmem:[%s5 + $0xa8] sm:$0xff] %vm2045, %v1917
  %2068 = vst.msk [vmem:[%s5 + $0xb0] sm:$0xff] %vm2045, %v1920
  %2069 = vst.msk [vmem:[%s5 + $0xb8] sm:$0xff] %vm2045, %v1923
  %2070 = vst.msk [vmem:[%s5 + $0xc0] sm:$0xff] %vm2045, %v1926
  %2071 = vst.msk [vmem:[%s5 + $0xc8] sm:$0xff] %vm2045, %v1929
  %2072 = vst.msk [vmem:[%s5 + $0xd0] sm:$0xff] %vm2045, %v1932
  %2073 = vst.msk [vmem:[%s5 + $0xd8] sm:$0xff] %vm2045, %v1935
  %2074 = vst.msk [vmem:[%s5 + $0xe0] sm:$0xff] %vm2045, %v1938
  %2075 = vst.msk [vmem:[%s5 + $0xe8] sm:$0xff] %vm2045, %v1941
  %2076 = vst.msk [vmem:[%s5 + $0xf0] sm:$0xff] %vm2045, %v1944
  %2077 = vst.msk [vmem:[%s5 + $0xf8] sm:$0xff] %vm2045, %v1947
  %2078 = vst.msk [vmem:[%s5 + $0x100] sm:$0xff] %vm2045, %v1950
  %2079 = vst.msk [vmem:[%s5 + $0x108] sm:$0xff] %vm2045, %v1953
  %2080 = vst.msk [vmem:[%s5 + $0x110] sm:$0xff] %vm2045, %v1956
  %2081 = vst.msk [vmem:[%s5 + $0x118] sm:$0xff] %vm2045, %v1959
  %2082 = vst.msk [vmem:[%s5 + $0x120] sm:$0xff] %vm2045, %v1962
  %2083 = vst.msk [vmem:[%s5 + $0x128] sm:$0xff] %vm2045, %v1965
  %2084 = vst.msk [vmem:[%s5 + $0x130] sm:$0xff] %vm2045, %v1968
  %2085 = vst.msk [vmem:[%s5 + $0x138] sm:$0xff] %vm2045, %v1971
  %2086 = vst.msk [vmem:[%s5 + $0x140] sm:$0xff] %vm2045, %v1974
  %2087 = vst.msk [vmem:[%s5 + $0x148] sm:$0xff] %vm2045, %v1977
  %2088 = vst.msk [vmem:[%s5 + $0x150] sm:$0xff] %vm2045, %v1980
  %2089 = vst.msk [vmem:[%s5 + $0x158] sm:$0xff] %vm2045, %v1983
  %2090 = vst.msk [vmem:[%s5 + $0x160] sm:$0xff] %vm2045, %v1986
  %2091 = vst.msk [vmem:[%s5 + $0x168] sm:$0xff] %vm2045, %v1989
  %2092 = vst.msk [vmem:[%s5 + $0x170] sm:$0xff] %vm2045, %v1992
  %2093 = vst.msk [vmem:[%s5 + $0x178] sm:$0xff] %vm2045, %v1995
  %2094 = vst.msk [vmem:[%s5 + $0x180] sm:$0xff] %vm2045, %v1998
  %2095 = vst.msk [vmem:[%s5 + $0x188] sm:$0xff] %vm2045, %v2001
  %2096 = vst.msk [vmem:[%s5 + $0x190] sm:$0xff] %vm2045, %v2004
  %2097 = vst.msk [vmem:[%s5 + $0x198] sm:$0xff] %vm2045, %v2007
  %2098 = vst.msk [vmem:[%s5 + $0x1a0] sm:$0xff] %vm2045, %v2010
  %2099 = vst.msk [vmem:[%s5 + $0x1a8] sm:$0xff] %vm2045, %v2013
  %2100 = vst.msk [vmem:[%s5 + $0x1b0] sm:$0xff] %vm2045, %v2016
  %2101 = vst.msk [vmem:[%s5 + $0x1b8] sm:$0xff] %vm2045, %v2019
  %2102 = vst.msk [vmem:[%s5 + $0x1c0] sm:$0xff] %vm2045, %v2022
  %2103 = vst.msk [vmem:[%s5 + $0x1c8] sm:$0xff] %vm2045, %v2025
  %2104 = vst.msk [vmem:[%s5 + $0x1d0] sm:$0xff] %vm2045, %v2028
  %2105 = vst.msk [vmem:[%s5 + $0x1d8] sm:$0xff] %vm2045, %v2031
  %2106 = vst.msk [vmem:[%s5 + $0x1e0] sm:$0xff] %vm2045, %v2034
  %2107 = vst.msk [vmem:[%s5 + $0x1e8] sm:$0xff] %vm2045, %v2037
  %2108 = vst.msk [vmem:[%s5 + $0x1f0] sm:$0xff] %vm2045, %v2040
  %2109 = vst.msk [vmem:[%s5 + $0x1f8] sm:$0xff] %vm2045, %v2043
  // Predicated region
  $region22: #{down_block_forward.7} parent=0 // pred_check
    _
  $region23: #{down_block_forward.7} parent=0 // pred_check_branch
    %2111 = sbr.rel (0) target = $region25
  $region24: #{down_block_forward.7} parent=0 // pred_region
    _
  $region25: #{down_block_forward.7} parent=0 // pred_fallthru
    _
  // Predicated region
  $region26: #{down_block_forward.7} parent=0 // pred_check
    _
  $region27: #{down_block_forward.7} parent=0 // pred_check_branch
    %2113 = sbr.rel (0) target = $region29
  $region28: #{down_block_forward.7} parent=0 // pred_region
    _
  $region29: #{down_block_forward.7} parent=0 // pred_fallthru
    _

// kernel: down_block_forward.9
$region0: #{down_block_forward.9}
  #allocation0 [shape = 'u32[]', space=smem, size = 0x4, offset = 0x4, fixed_abs, tag = 'smem constant byte address 0x4 - core index']
  #allocation1 [shape = 'u32[72,128]{1,0:T(1,128)}', space=vmem, size = 0x9000, scoped, tag = 'internal scratch']
  %s0 = inlined_call_operand.vmem [shape: f32[512,32], index: 0, kind: input, shape index: {}]
  %s1 = inlined_call_operand.vmem [shape: f32[512,32], index: 1, kind: input, shape index: {}]
  %s2 = inlined_call_operand.vmem [shape: f32[32,32], index: 2, kind: input, shape index: {}]
  %s3 = inlined_call_operand.vmem [shape: f32[1,32], index: 3, kind: input, shape index: {}]
  %s4 = inlined_call_operand.vmem [shape: f32[1,32], index: 4, kind: input, shape index: {}]
  %s5 = inlined_call_operand.vmem [shape: f32[1,32], index: 5, kind: input, shape index: {}]
  %s6 = inlined_call_operand.vmem [shape: f32[32,32], index: 6, kind: input, shape index: {}]
  %s7 = inlined_call_operand.vmem [shape: f32[1,32], index: 7, kind: input, shape index: {}]
  %s8 = inlined_call_operand.vmem [shape: f32[32,32], index: 8, kind: input, shape index: {}]
  %s9 = inlined_call_operand.vmem [shape: f32[1,32], index: 9, kind: input, shape index: {}]
  %s10 = inlined_call_operand.vmem [shape: f32[512,32], index: 10, kind: output, shape index: {}]
  %s11 = sld [smem:[#allocation0]]
  $region50: #{down_block_forward.9} parent=0
    _
  %s13 = ssub.s32 1, %s11
  %s14 = scalar_select 0, %s13, %s11
  // Predicated region
  $region2: #{down_block_forward.9} parent=0 // pred_check
    _
  $region3: #{down_block_forward.9} parent=0 // pred_check_branch
    %16 = sbr.rel (0) target = $region5
  $region4: #{down_block_forward.9} parent=0 // pred_region
    _
  $region5: #{down_block_forward.9} parent=0 // pred_fallthru
    _
  // Predicated region
  $region6: #{down_block_forward.9} parent=0 // pred_check
    _
  $region7: #{down_block_forward.9} parent=0 // pred_check_branch
    %18 = sbr.rel (0) target = $region9
  $region8: #{down_block_forward.9} parent=0 // pred_region
    _
  $region9: #{down_block_forward.9} parent=0 // pred_fallthru
    _
  // Predicated region
  $region10: #{down_block_forward.9} parent=0 // pred_check
    _
  $region11: #{down_block_forward.9} parent=0 // pred_check_branch
    %20 = sbr.rel (0) target = $region13
  $region12: #{down_block_forward.9} parent=0 // pred_region
    _
  $region13: #{down_block_forward.9} parent=0 // pred_fallthru
    _
  // Predicated region
  $region14: #{down_block_forward.9} parent=0 // pred_check
    _
  $region15: #{down_block_forward.9} parent=0 // pred_check_branch
    %22 = sbr.rel (0) target = $region17
  $region16: #{down_block_forward.9} parent=0 // pred_region
    _
  $region17: #{down_block_forward.9} parent=0 // pred_fallthru
    _
  // Predicated region
  $region18: #{down_block_forward.9} parent=0 // pred_check
    _
  $region19: #{down_block_forward.9} parent=0 // pred_check_branch
    %24 = sbr.rel (0) target = $region21
  $region20: #{down_block_forward.9} parent=0 // pred_region
    _
  $region21: #{down_block_forward.9} parent=0 // pred_fallthru
    _
  // Predicated region
  $region22: #{down_block_forward.9} parent=0 // pred_check
    _
  $region23: #{down_block_forward.9} parent=0 // pred_check_branch
    %26 = sbr.rel (0) target = $region25
  $region24: #{down_block_forward.9} parent=0 // pred_region
    _
  $region25: #{down_block_forward.9} parent=0 // pred_fallthru
    _
  // Predicated region
  $region26: #{down_block_forward.9} parent=0 // pred_check
    _
  $region27: #{down_block_forward.9} parent=0 // pred_check_branch
    %28 = sbr.rel (0) target = $region29
  $region28: #{down_block_forward.9} parent=0 // pred_region
    _
  $region29: #{down_block_forward.9} parent=0 // pred_fallthru
    _
  // Predicated region
  $region30: #{down_block_forward.9} parent=0 // pred_check
    _
  $region31: #{down_block_forward.9} parent=0 // pred_check_branch
    %30 = sbr.rel (0) target = $region33
  $region32: #{down_block_forward.9} parent=0 // pred_region
    _
  $region33: #{down_block_forward.9} parent=0 // pred_fallthru
    _
  // Predicated region
  $region34: #{down_block_forward.9} parent=0 // pred_check
    _
  $region35: #{down_block_forward.9} parent=0 // pred_check_branch
    %32 = sbr.rel (0) target = $region37
  $region36: #{down_block_forward.9} parent=0 // pred_region
    _
  $region37: #{down_block_forward.9} parent=0 // pred_fallthru
    _
  // Predicated region
  $region38: #{down_block_forward.9} parent=0 // pred_check
    _
  $region39: #{down_block_forward.9} parent=0 // pred_check_branch
    %34 = sbr.rel (0) target = $region41
  $region40: #{down_block_forward.9} parent=0 // pred_region
    _
  $region41: #{down_block_forward.9} parent=0 // pred_fallthru
    _
  %v35 = vld [vmem:[%s0] sm:$0xff]
  %v36 = vld [vmem:[%s0 + $0x8] sm:$0xff]
  %v37 = vld [vmem:[%s0 + $0x10] sm:$0xff]
  %v38 = vld [vmem:[%s0 + $0x18] sm:$0xff]
  %v39 = vld [vmem:[%s0 + $0x20] sm:$0xff]
  %v40 = vld [vmem:[%s0 + $0x28] sm:$0xff]
  %v41 = vld [vmem:[%s0 + $0x30] sm:$0xff]
  %v42 = vld [vmem:[%s0 + $0x38] sm:$0xff]
  %v43 = vld [vmem:[%s0 + $0x40] sm:$0xff]
  %v44 = vld [vmem:[%s0 + $0x48] sm:$0xff]
  %v45 = vld [vmem:[%s0 + $0x50] sm:$0xff]
  %v46 = vld [vmem:[%s0 + $0x58] sm:$0xff]
  %v47 = vld [vmem:[%s0 + $0x60] sm:$0xff]
  %v48 = vld [vmem:[%s0 + $0x68] sm:$0xff]
  %v49 = vld [vmem:[%s0 + $0x70] sm:$0xff]
  %v50 = vld [vmem:[%s0 + $0x78] sm:$0xff]
  %v51 = vld [vmem:[%s0 + $0x80] sm:$0xff]
  %v52 = vld [vmem:[%s0 + $0x88] sm:$0xff]
  %v53 = vld [vmem:[%s0 + $0x90] sm:$0xff]
  %v54 = vld [vmem:[%s0 + $0x98] sm:$0xff]
  %v55 = vld [vmem:[%s0 + $0xa0] sm:$0xff]
  %v56 = vld [vmem:[%s0 + $0xa8] sm:$0xff]
  %v57 = vld [vmem:[%s0 + $0xb0] sm:$0xff]
  %v58 = vld [vmem:[%s0 + $0xb8] sm:$0xff]
  %v59 = vld [vmem:[%s0 + $0xc0] sm:$0xff]
  %v60 = vld [vmem:[%s0 + $0xc8] sm:$0xff]
  %v61 = vld [vmem:[%s0 + $0xd0] sm:$0xff]
  %v62 = vld [vmem:[%s0 + $0xd8] sm:$0xff]
  %v63 = vld [vmem:[%s0 + $0xe0] sm:$0xff]
  %v64 = vld [vmem:[%s0 + $0xe8] sm:$0xff]
  %v65 = vld [vmem:[%s0 + $0xf0] sm:$0xff]
  %v66 = vld [vmem:[%s0 + $0xf8] sm:$0xff]
  %v67 = vld [vmem:[%s0 + $0x100] sm:$0xff]
  %v68 = vld [vmem:[%s0 + $0x108] sm:$0xff]
  %v69 = vld [vmem:[%s0 + $0x110] sm:$0xff]
  %v70 = vld [vmem:[%s0 + $0x118] sm:$0xff]
  %v71 = vld [vmem:[%s0 + $0x120] sm:$0xff]
  %v72 = vld [vmem:[%s0 + $0x128] sm:$0xff]
  %v73 = vld [vmem:[%s0 + $0x130] sm:$0xff]
  %v74 = vld [vmem:[%s0 + $0x138] sm:$0xff]
  %v75 = vld [vmem:[%s0 + $0x140] sm:$0xff]
  %v76 = vld [vmem:[%s0 + $0x148] sm:$0xff]
  %v77 = vld [vmem:[%s0 + $0x150] sm:$0xff]
  %v78 = vld [vmem:[%s0 + $0x158] sm:$0xff]
  %v79 = vld [vmem:[%s0 + $0x160] sm:$0xff]
  %v80 = vld [vmem:[%s0 + $0x168] sm:$0xff]
  %v81 = vld [vmem:[%s0 + $0x170] sm:$0xff]
  %v82 = vld [vmem:[%s0 + $0x178] sm:$0xff]
  %v83 = vld [vmem:[%s0 + $0x180] sm:$0xff]
  %v84 = vld [vmem:[%s0 + $0x188] sm:$0xff]
  %v85 = vld [vmem:[%s0 + $0x190] sm:$0xff]
  %v86 = vld [vmem:[%s0 + $0x198] sm:$0xff]
  %v87 = vld [vmem:[%s0 + $0x1a0] sm:$0xff]
  %v88 = vld [vmem:[%s0 + $0x1a8] sm:$0xff]
  %v89 = vld [vmem:[%s0 + $0x1b0] sm:$0xff]
  %v90 = vld [vmem:[%s0 + $0x1b8] sm:$0xff]
  %v91 = vld [vmem:[%s0 + $0x1c0] sm:$0xff]
  %v92 = vld [vmem:[%s0 + $0x1c8] sm:$0xff]
  %v93 = vld [vmem:[%s0 + $0x1d0] sm:$0xff]
  %v94 = vld [vmem:[%s0 + $0x1d8] sm:$0xff]
  %v95 = vld [vmem:[%s0 + $0x1e0] sm:$0xff]
  %v96 = vld [vmem:[%s0 + $0x1e8] sm:$0xff]
  %v97 = vld [vmem:[%s0 + $0x1f0] sm:$0xff]
  %v98 = vld [vmem:[%s0 + $0x1f8] sm:$0xff]
  %v99 = vld [vmem:[%s2] sm:$0xff]
  %v100 = vld [vmem:[%s2 + $0x8] sm:$0xff]
  %v101 = vld [vmem:[%s2 + $0x10] sm:$0xff]
  %v102 = vld [vmem:[%s2 + $0x18] sm:$0xff]
  %v103 = vld [vmem:[%s3] sm:$0x1]
  %v105 = vperm.slane %v103, 0
  %vm107 = vcmask 261120
  %v109 = vsel %vm107, %v35, 0
  %v112 = vsel %vm107, %v36, 0
  %v115 = vsel %vm107, %v37, 0
  %v118 = vsel %vm107, %v38, 0
  %v121 = vsel %vm107, %v39, 0
  %v124 = vsel %vm107, %v40, 0
  %v127 = vsel %vm107, %v41, 0
  %v130 = vsel %vm107, %v42, 0
  %v133 = vsel %vm107, %v43, 0
  %v136 = vsel %vm107, %v44, 0
  %v139 = vsel %vm107, %v45, 0
  %v142 = vsel %vm107, %v46, 0
  %v145 = vsel %vm107, %v47, 0
  %v148 = vsel %vm107, %v48, 0
  %v151 = vsel %vm107, %v49, 0
  %v154 = vsel %vm107, %v50, 0
  %v157 = vsel %vm107, %v51, 0
  %v160 = vsel %vm107, %v52, 0
  %v163 = vsel %vm107, %v53, 0
  %v166 = vsel %vm107, %v54, 0
  %v169 = vsel %vm107, %v55, 0
  %v172 = vsel %vm107, %v56, 0
  %v175 = vsel %vm107, %v57, 0
  %v178 = vsel %vm107, %v58, 0
  %v181 = vsel %vm107, %v59, 0
  %v184 = vsel %vm107, %v60, 0
  %v187 = vsel %vm107, %v61, 0
  %v190 = vsel %vm107, %v62, 0
  %v193 = vsel %vm107, %v63, 0
  %v196 = vsel %vm107, %v64, 0
  %v199 = vsel %vm107, %v65, 0
  %v202 = vsel %vm107, %v66, 0
  %v205 = vsel %vm107, %v67, 0
  %v208 = vsel %vm107, %v68, 0
  %v211 = vsel %vm107, %v69, 0
  %v214 = vsel %vm107, %v70, 0
  %v217 = vsel %vm107, %v71, 0
  %v220 = vsel %vm107, %v72, 0
  %v223 = vsel %vm107, %v73, 0
  %v226 = vsel %vm107, %v74, 0
  %v229 = vsel %vm107, %v75, 0
  %v232 = vsel %vm107, %v76, 0
  %v235 = vsel %vm107, %v77, 0
  %v238 = vsel %vm107, %v78, 0
  %v241 = vsel %vm107, %v79, 0
  %v244 = vsel %vm107, %v80, 0
  %v247 = vsel %vm107, %v81, 0
  %v250 = vsel %vm107, %v82, 0
  %v253 = vsel %vm107, %v83, 0
  %v256 = vsel %vm107, %v84, 0
  %v259 = vsel %vm107, %v85, 0
  %v262 = vsel %vm107, %v86, 0
  %v265 = vsel %vm107, %v87, 0
  %v268 = vsel %vm107, %v88, 0
  %v271 = vsel %vm107, %v89, 0
  %v274 = vsel %vm107, %v90, 0
  %v277 = vsel %vm107, %v91, 0
  %v280 = vsel %vm107, %v92, 0
  %v283 = vsel %vm107, %v93, 0
  %v286 = vsel %vm107, %v94, 0
  %v289 = vsel %vm107, %v95, 0
  %v292 = vsel %vm107, %v96, 0
  %v295 = vsel %vm107, %v97, 0
  %v298 = vsel %vm107, %v98, 0
  %300 = vmatpush.msra.mxu0 0.0
  %301 = vmatpush.msra.mxu0 0.0
  %302 = vmatpush.msra.mxu0 0.0
  %303 = vmatpush.msra.mxu0 0.0
  %304 = vmatpush.msra.mxu0 0.0
  %305 = vmatpush.msra.mxu0 0.0
  %306 = vmatpush.msra.mxu0 0.0
  %307 = vmatpush.msra.mxu0 0.0
  %308 = vmatpush.msra.mxu0 0.0
  %309 = vmatpush.msra.mxu0 0.0
  %310 = vmatpush.msra.mxu0 0.0
  %311 = vmatpush.msra.mxu0 0.0
  %312 = vmatpush.msra.mxu0 %v102
  %313 = vmatpush.msra.mxu0 %v101
  %314 = vmatpush.msra.mxu0 %v100
  %315 = vmatpush.msra.mxu0 %v99
  %316 = vmatmul.f32.gmra.mxu0 %v109
  %v317 = vpop.f32.mrf.mxu0
  %v318 = vadd.f32 %v105, %v317
  %319 = vmatmul.f32.gmra.mxu0 %v112
  %v320 = vpop.f32.mrf.mxu0
  %v321 = vadd.f32 %v105, %v320
  %322 = vmatmul.f32.gmra.mxu0 %v115
  %v323 = vpop.f32.mrf.mxu0
  %v324 = vadd.f32 %v105, %v323
  %325 = vmatmul.f32.gmra.mxu0 %v118
  %v326 = vpop.f32.mrf.mxu0
  %v327 = vadd.f32 %v105, %v326
  %328 = vmatmul.f32.gmra.mxu0 %v121
  %v329 = vpop.f32.mrf.mxu0
  %v330 = vadd.f32 %v105, %v329
  %331 = vmatmul.f32.gmra.mxu0 %v124
  %v332 = vpop.f32.mrf.mxu0
  %v333 = vadd.f32 %v105, %v332
  %334 = vmatmul.f32.gmra.mxu0 %v127
  %v335 = vpop.f32.mrf.mxu0
  %v336 = vadd.f32 %v105, %v335
  %337 = vmatmul.f32.gmra.mxu0 %v130
  %v338 = vpop.f32.mrf.mxu0
  %v339 = vadd.f32 %v105, %v338
  %340 = vmatmul.f32.gmra.mxu0 %v133
  %v341 = vpop.f32.mrf.mxu0
  %v342 = vadd.f32 %v105, %v341
  %343 = vmatmul.f32.gmra.mxu0 %v136
  %v344 = vpop.f32.mrf.mxu0
  %v345 = vadd.f32 %v105, %v344
  %346 = vmatmul.f32.gmra.mxu0 %v139
  %v347 = vpop.f32.mrf.mxu0
  %v348 = vadd.f32 %v105, %v347
  %349 = vmatmul.f32.gmra.mxu0 %v142
  %v350 = vpop.f32.mrf.mxu0
  %v351 = vadd.f32 %v105, %v350
  %352 = vmatmul.f32.gmra.mxu0 %v145
  %v353 = vpop.f32.mrf.mxu0
  %v354 = vadd.f32 %v105, %v353
  %355 = vmatmul.f32.gmra.mxu0 %v148
  %v356 = vpop.f32.mrf.mxu0
  %v357 = vadd.f32 %v105, %v356
  %358 = vmatmul.f32.gmra.mxu0 %v151
  %v359 = vpop.f32.mrf.mxu0
  %v360 = vadd.f32 %v105, %v359
  %361 = vmatmul.f32.gmra.mxu0 %v154
  %v362 = vpop.f32.mrf.mxu0
  %v363 = vadd.f32 %v105, %v362
  %364 = vmatmul.f32.gmra.mxu0 %v157
  %v365 = vpop.f32.mrf.mxu0
  %v366 = vadd.f32 %v105, %v365
  %367 = vmatmul.f32.gmra.mxu0 %v160
  %v368 = vpop.f32.mrf.mxu0
  %v369 = vadd.f32 %v105, %v368
  %370 = vmatmul.f32.gmra.mxu0 %v163
  %v371 = vpop.f32.mrf.mxu0
  %v372 = vadd.f32 %v105, %v371
  %373 = vmatmul.f32.gmra.mxu0 %v166
  %v374 = vpop.f32.mrf.mxu0
  %v375 = vadd.f32 %v105, %v374
  %376 = vmatmul.f32.gmra.mxu0 %v169
  %v377 = vpop.f32.mrf.mxu0
  %v378 = vadd.f32 %v105, %v377
  %379 = vmatmul.f32.gmra.mxu0 %v172
  %v380 = vpop.f32.mrf.mxu0
  %v381 = vadd.f32 %v105, %v380
  %382 = vmatmul.f32.gmra.mxu0 %v175
  %v383 = vpop.f32.mrf.mxu0
  %v384 = vadd.f32 %v105, %v383
  %385 = vmatmul.f32.gmra.mxu0 %v178
  %v386 = vpop.f32.mrf.mxu0
  %v387 = vadd.f32 %v105, %v386
  %388 = vmatmul.f32.gmra.mxu0 %v181
  %v389 = vpop.f32.mrf.mxu0
  %v390 = vadd.f32 %v105, %v389
  %391 = vmatmul.f32.gmra.mxu0 %v184
  %v392 = vpop.f32.mrf.mxu0
  %v393 = vadd.f32 %v105, %v392
  %394 = vmatmul.f32.gmra.mxu0 %v187
  %v395 = vpop.f32.mrf.mxu0
  %v396 = vadd.f32 %v105, %v395
  %397 = vmatmul.f32.gmra.mxu0 %v190
  %v398 = vpop.f32.mrf.mxu0
  %v399 = vadd.f32 %v105, %v398
  %400 = vmatmul.f32.gmra.mxu0 %v193
  %v401 = vpop.f32.mrf.mxu0
  %v402 = vadd.f32 %v105, %v401
  %403 = vmatmul.f32.gmra.mxu0 %v196
  %v404 = vpop.f32.mrf.mxu0
  %v405 = vadd.f32 %v105, %v404
  %406 = vmatmul.f32.gmra.mxu0 %v199
  %v407 = vpop.f32.mrf.mxu0
  %v408 = vadd.f32 %v105, %v407
  %409 = vmatmul.f32.gmra.mxu0 %v202
  %v410 = vpop.f32.mrf.mxu0
  %v411 = vadd.f32 %v105, %v410
  %412 = vmatmul.f32.gmra.mxu0 %v205
  %v413 = vpop.f32.mrf.mxu0
  %v414 = vadd.f32 %v105, %v413
  %415 = vmatmul.f32.gmra.mxu0 %v208
  %v416 = vpop.f32.mrf.mxu0
  %v417 = vadd.f32 %v105, %v416
  %418 = vmatmul.f32.gmra.mxu0 %v211
  %v419 = vpop.f32.mrf.mxu0
  %v420 = vadd.f32 %v105, %v419
  %421 = vmatmul.f32.gmra.mxu0 %v214
  %v422 = vpop.f32.mrf.mxu0
  %v423 = vadd.f32 %v105, %v422
  %424 = vmatmul.f32.gmra.mxu0 %v217
  %v425 = vpop.f32.mrf.mxu0
  %v426 = vadd.f32 %v105, %v425
  %427 = vmatmul.f32.gmra.mxu0 %v220
  %v428 = vpop.f32.mrf.mxu0
  %v429 = vadd.f32 %v105, %v428
  %430 = vmatmul.f32.gmra.mxu0 %v223
  %v431 = vpop.f32.mrf.mxu0
  %v432 = vadd.f32 %v105, %v431
  %433 = vmatmul.f32.gmra.mxu0 %v226
  %v434 = vpop.f32.mrf.mxu0
  %v435 = vadd.f32 %v105, %v434
  %436 = vmatmul.f32.gmra.mxu0 %v229
  %v437 = vpop.f32.mrf.mxu0
  %v438 = vadd.f32 %v105, %v437
  %439 = vmatmul.f32.gmra.mxu0 %v232
  %v440 = vpop.f32.mrf.mxu0
  %v441 = vadd.f32 %v105, %v440
  %442 = vmatmul.f32.gmra.mxu0 %v235
  %v443 = vpop.f32.mrf.mxu0
  %v444 = vadd.f32 %v105, %v443
  %445 = vmatmul.f32.gmra.mxu0 %v238
  %v446 = vpop.f32.mrf.mxu0
  %v447 = vadd.f32 %v105, %v446
  %448 = vmatmul.f32.gmra.mxu0 %v241
  %v449 = vpop.f32.mrf.mxu0
  %v450 = vadd.f32 %v105, %v449
  %451 = vmatmul.f32.gmra.mxu0 %v244
  %v452 = vpop.f32.mrf.mxu0
  %v453 = vadd.f32 %v105, %v452
  %454 = vmatmul.f32.gmra.mxu0 %v247
  %v455 = vpop.f32.mrf.mxu0
  %v456 = vadd.f32 %v105, %v455
  %457 = vmatmul.f32.gmra.mxu0 %v250
  %v458 = vpop.f32.mrf.mxu0
  %v459 = vadd.f32 %v105, %v458
  %460 = vmatmul.f32.gmra.mxu0 %v253
  %v461 = vpop.f32.mrf.mxu0
  %v462 = vadd.f32 %v105, %v461
  %463 = vmatmul.f32.gmra.mxu0 %v256
  %v464 = vpop.f32.mrf.mxu0
  %v465 = vadd.f32 %v105, %v464
  %466 = vmatmul.f32.gmra.mxu0 %v259
  %v467 = vpop.f32.mrf.mxu0
  %v468 = vadd.f32 %v105, %v467
  %469 = vmatmul.f32.gmra.mxu0 %v262
  %v470 = vpop.f32.mrf.mxu0
  %v471 = vadd.f32 %v105, %v470
  %472 = vmatmul.f32.gmra.mxu0 %v265
  %v473 = vpop.f32.mrf.mxu0
  %v474 = vadd.f32 %v105, %v473
  %475 = vmatmul.f32.gmra.mxu0 %v268
  %v476 = vpop.f32.mrf.mxu0
  %v477 = vadd.f32 %v105, %v476
  %478 = vmatmul.f32.gmra.mxu0 %v271
  %v479 = vpop.f32.mrf.mxu0
  %v480 = vadd.f32 %v105, %v479
  %481 = vmatmul.f32.gmra.mxu0 %v274
  %v482 = vpop.f32.mrf.mxu0
  %v483 = vadd.f32 %v105, %v482
  %484 = vmatmul.f32.gmra.mxu0 %v277
  %v485 = vpop.f32.mrf.mxu0
  %v486 = vadd.f32 %v105, %v485
  %487 = vmatmul.f32.gmra.mxu0 %v280
  %v488 = vpop.f32.mrf.mxu0
  %v489 = vadd.f32 %v105, %v488
  %490 = vmatmul.f32.gmra.mxu0 %v283
  %v491 = vpop.f32.mrf.mxu0
  %v492 = vadd.f32 %v105, %v491
  %493 = vmatmul.f32.gmra.mxu0 %v286
  %v494 = vpop.f32.mrf.mxu0
  %v495 = vadd.f32 %v105, %v494
  %496 = vmatmul.f32.gmra.mxu0 %v289
  %v497 = vpop.f32.mrf.mxu0
  %v498 = vadd.f32 %v105, %v497
  %499 = vmatmul.f32.gmra.mxu0 %v292
  %v500 = vpop.f32.mrf.mxu0
  %v501 = vadd.f32 %v105, %v500
  %502 = vmatmul.f32.gmra.mxu0 %v295
  %v503 = vpop.f32.mrf.mxu0
  %v504 = vadd.f32 %v105, %v503
  %505 = vmatmul.f32.gmra.mxu0 %v298
  %v506 = vpop.f32.mrf.mxu0
  %v507 = vadd.f32 %v105, %v506
  %508 = vdwg.mxu0
  %v509 = vld [vmem:[%s1] sm:$0xff]
  %v510 = vld [vmem:[%s1 + $0x8] sm:$0xff]
  %v511 = vld [vmem:[%s1 + $0x10] sm:$0xff]
  %v512 = vld [vmem:[%s1 + $0x18] sm:$0xff]
  %v513 = vld [vmem:[%s1 + $0x20] sm:$0xff]
  %v514 = vld [vmem:[%s1 + $0x28] sm:$0xff]
  %v515 = vld [vmem:[%s1 + $0x30] sm:$0xff]
  %v516 = vld [vmem:[%s1 + $0x38] sm:$0xff]
  %v517 = vld [vmem:[%s1 + $0x40] sm:$0xff]
  %v518 = vld [vmem:[%s1 + $0x48] sm:$0xff]
  %v519 = vld [vmem:[%s1 + $0x50] sm:$0xff]
  %v520 = vld [vmem:[%s1 + $0x58] sm:$0xff]
  %v521 = vld [vmem:[%s1 + $0x60] sm:$0xff]
  %v522 = vld [vmem:[%s1 + $0x68] sm:$0xff]
  %v523 = vld [vmem:[%s1 + $0x70] sm:$0xff]
  %v524 = vld [vmem:[%s1 + $0x78] sm:$0xff]
  %v525 = vld [vmem:[%s1 + $0x80] sm:$0xff]
  %v526 = vld [vmem:[%s1 + $0x88] sm:$0xff]
  %v527 = vld [vmem:[%s1 + $0x90] sm:$0xff]
  %v528 = vld [vmem:[%s1 + $0x98] sm:$0xff]
  %v529 = vld [vmem:[%s1 + $0xa0] sm:$0xff]
  %v530 = vld [vmem:[%s1 + $0xa8] sm:$0xff]
  %v531 = vld [vmem:[%s1 + $0xb0] sm:$0xff]
  %v532 = vld [vmem:[%s1 + $0xb8] sm:$0xff]
  %v533 = vld [vmem:[%s1 + $0xc0] sm:$0xff]
  %v534 = vld [vmem:[%s1 + $0xc8] sm:$0xff]
  %v535 = vld [vmem:[%s1 + $0xd0] sm:$0xff]
  %v536 = vld [vmem:[%s1 + $0xd8] sm:$0xff]
  %v537 = vld [vmem:[%s1 + $0xe0] sm:$0xff]
  %v538 = vld [vmem:[%s1 + $0xe8] sm:$0xff]
  %v539 = vld [vmem:[%s1 + $0xf0] sm:$0xff]
  %v540 = vld [vmem:[%s1 + $0xf8] sm:$0xff]
  %v541 = vld [vmem:[%s1 + $0x100] sm:$0xff]
  %v542 = vld [vmem:[%s1 + $0x108] sm:$0xff]
  %v543 = vld [vmem:[%s1 + $0x110] sm:$0xff]
  %v544 = vld [vmem:[%s1 + $0x118] sm:$0xff]
  %v545 = vld [vmem:[%s1 + $0x120] sm:$0xff]
  %v546 = vld [vmem:[%s1 + $0x128] sm:$0xff]
  %v547 = vld [vmem:[%s1 + $0x130] sm:$0xff]
  %v548 = vld [vmem:[%s1 + $0x138] sm:$0xff]
  %v549 = vld [vmem:[%s1 + $0x140] sm:$0xff]
  %v550 = vld [vmem:[%s1 + $0x148] sm:$0xff]
  %v551 = vld [vmem:[%s1 + $0x150] sm:$0xff]
  %v552 = vld [vmem:[%s1 + $0x158] sm:$0xff]
  %v553 = vld [vmem:[%s1 + $0x160] sm:$0xff]
  %v554 = vld [vmem:[%s1 + $0x168] sm:$0xff]
  %v555 = vld [vmem:[%s1 + $0x170] sm:$0xff]
  %v556 = vld [vmem:[%s1 + $0x178] sm:$0xff]
  %v557 = vld [vmem:[%s1 + $0x180] sm:$0xff]
  %v558 = vld [vmem:[%s1 + $0x188] sm:$0xff]
  %v559 = vld [vmem:[%s1 + $0x190] sm:$0xff]
  %v560 = vld [vmem:[%s1 + $0x198] sm:$0xff]
  %v561 = vld [vmem:[%s1 + $0x1a0] sm:$0xff]
  %v562 = vld [vmem:[%s1 + $0x1a8] sm:$0xff]
  %v563 = vld [vmem:[%s1 + $0x1b0] sm:$0xff]
  %v564 = vld [vmem:[%s1 + $0x1b8] sm:$0xff]
  %v565 = vld [vmem:[%s1 + $0x1c0] sm:$0xff]
  %v566 = vld [vmem:[%s1 + $0x1c8] sm:$0xff]
  %v567 = vld [vmem:[%s1 + $0x1d0] sm:$0xff]
  %v568 = vld [vmem:[%s1 + $0x1d8] sm:$0xff]
  %v569 = vld [vmem:[%s1 + $0x1e0] sm:$0xff]
  %v570 = vld [vmem:[%s1 + $0x1e8] sm:$0xff]
  %v571 = vld [vmem:[%s1 + $0x1f0] sm:$0xff]
  %v572 = vld [vmem:[%s1 + $0x1f8] sm:$0xff]
  %v573 = vadd.f32 %v509, %v318
  %v574 = vadd.f32 %v510, %v321
  %v575 = vadd.f32 %v511, %v324
  %v576 = vadd.f32 %v512, %v327
  %v577 = vadd.f32 %v513, %v330
  %v578 = vadd.f32 %v514, %v333
  %v579 = vadd.f32 %v515, %v336
  %v580 = vadd.f32 %v516, %v339
  %v581 = vadd.f32 %v517, %v342
  %v582 = vadd.f32 %v518, %v345
  %v583 = vadd.f32 %v519, %v348
  %v584 = vadd.f32 %v520, %v351
  %v585 = vadd.f32 %v521, %v354
  %v586 = vadd.f32 %v522, %v357
  %v587 = vadd.f32 %v523, %v360
  %v588 = vadd.f32 %v524, %v363
  %v589 = vadd.f32 %v525, %v366
  %v590 = vadd.f32 %v526, %v369
  %v591 = vadd.f32 %v527, %v372
  %v592 = vadd.f32 %v528, %v375
  %v593 = vadd.f32 %v529, %v378
  %v594 = vadd.f32 %v530, %v381
  %v595 = vadd.f32 %v531, %v384
  %v596 = vadd.f32 %v532, %v387
  %v597 = vadd.f32 %v533, %v390
  %v598 = vadd.f32 %v534, %v393
  %v599 = vadd.f32 %v535, %v396
  %v600 = vadd.f32 %v536, %v399
  %v601 = vadd.f32 %v537, %v402
  %v602 = vadd.f32 %v538, %v405
  %v603 = vadd.f32 %v539, %v408
  %v604 = vadd.f32 %v540, %v411
  %v605 = vadd.f32 %v541, %v414
  %v606 = vadd.f32 %v542, %v417
  %v607 = vadd.f32 %v543, %v420
  %v608 = vadd.f32 %v544, %v423
  %v609 = vadd.f32 %v545, %v426
  %v610 = vadd.f32 %v546, %v429
  %v611 = vadd.f32 %v547, %v432
  %v612 = vadd.f32 %v548, %v435
  %v613 = vadd.f32 %v549, %v438
  %v614 = vadd.f32 %v550, %v441
  %v615 = vadd.f32 %v551, %v444
  %v616 = vadd.f32 %v552, %v447
  %v617 = vadd.f32 %v553, %v450
  %v618 = vadd.f32 %v554, %v453
  %v619 = vadd.f32 %v555, %v456
  %v620 = vadd.f32 %v556, %v459
  %v621 = vadd.f32 %v557, %v462
  %v622 = vadd.f32 %v558, %v465
  %v623 = vadd.f32 %v559, %v468
  %v624 = vadd.f32 %v560, %v471
  %v625 = vadd.f32 %v561, %v474
  %v626 = vadd.f32 %v562, %v477
  %v627 = vadd.f32 %v563, %v480
  %v628 = vadd.f32 %v564, %v483
  %v629 = vadd.f32 %v565, %v486
  %v630 = vadd.f32 %v566, %v489
  %v631 = vadd.f32 %v567, %v492
  %v632 = vadd.f32 %v568, %v495
  %v633 = vadd.f32 %v569, %v498
  %v634 = vadd.f32 %v570, %v501
  %v635 = vadd.f32 %v571, %v504
  %v636 = vadd.f32 %v572, %v507
  %v637 = vld [vmem:[%s4] sm:$0x1]
  %v638 = vld [vmem:[%s5] sm:$0x1]
  %v639 = vsel %vm107, %v573, 0.0
  %640 = vadd.xlane.f32.xlu0 %v639
  %v641 = vpop.xlane.xlu0 %640
  %v642 = vsel %vm107, %v574, 0.0
  %643 = vadd.xlane.f32.xlu0 %v642
  %v644 = vpop.xlane.xlu0 %643
  %v645 = vsel %vm107, %v575, 0.0
  %646 = vadd.xlane.f32.xlu0 %v645
  %v647 = vpop.xlane.xlu0 %646
  %v648 = vsel %vm107, %v576, 0.0
  %649 = vadd.xlane.f32.xlu0 %v648
  %v650 = vpop.xlane.xlu0 %649
  %v651 = vsel %vm107, %v577, 0.0
  %652 = vadd.xlane.f32.xlu0 %v651
  %v653 = vpop.xlane.xlu0 %652
  %v654 = vsel %vm107, %v578, 0.0
  %655 = vadd.xlane.f32.xlu0 %v654
  %v656 = vpop.xlane.xlu0 %655
  %v657 = vsel %vm107, %v579, 0.0
  %658 = vadd.xlane.f32.xlu0 %v657
  %v659 = vpop.xlane.xlu0 %658
  %v660 = vsel %vm107, %v580, 0.0
  %661 = vadd.xlane.f32.xlu0 %v660
  %v662 = vpop.xlane.xlu0 %661
  %v663 = vsel %vm107, %v581, 0.0
  %664 = vadd.xlane.f32.xlu0 %v663
  %v665 = vpop.xlane.xlu0 %664
  %v666 = vsel %vm107, %v582, 0.0
  %667 = vadd.xlane.f32.xlu0 %v666
  %v668 = vpop.xlane.xlu0 %667
  %v669 = vsel %vm107, %v583, 0.0
  %670 = vadd.xlane.f32.xlu0 %v669
  %v671 = vpop.xlane.xlu0 %670
  %v672 = vsel %vm107, %v584, 0.0
  %673 = vadd.xlane.f32.xlu0 %v672
  %v674 = vpop.xlane.xlu0 %673
  %v675 = vsel %vm107, %v585, 0.0
  %676 = vadd.xlane.f32.xlu0 %v675
  %v677 = vpop.xlane.xlu0 %676
  %v678 = vsel %vm107, %v586, 0.0
  %679 = vadd.xlane.f32.xlu0 %v678
  %v680 = vpop.xlane.xlu0 %679
  %v681 = vsel %vm107, %v587, 0.0
  %682 = vadd.xlane.f32.xlu0 %v681
  %v683 = vpop.xlane.xlu0 %682
  %v684 = vsel %vm107, %v588, 0.0
  %685 = vadd.xlane.f32.xlu0 %v684
  %v686 = vpop.xlane.xlu0 %685
  %v687 = vsel %vm107, %v589, 0.0
  %688 = vadd.xlane.f32.xlu0 %v687
  %v689 = vpop.xlane.xlu0 %688
  %v690 = vsel %vm107, %v590, 0.0
  %691 = vadd.xlane.f32.xlu0 %v690
  %v692 = vpop.xlane.xlu0 %691
  %v693 = vsel %vm107, %v591, 0.0
  %694 = vadd.xlane.f32.xlu0 %v693
  %v695 = vpop.xlane.xlu0 %694
  %v696 = vsel %vm107, %v592, 0.0
  %697 = vadd.xlane.f32.xlu0 %v696
  %v698 = vpop.xlane.xlu0 %697
  %v699 = vsel %vm107, %v593, 0.0
  %700 = vadd.xlane.f32.xlu0 %v699
  %v701 = vpop.xlane.xlu0 %700
  %v702 = vsel %vm107, %v594, 0.0
  %703 = vadd.xlane.f32.xlu0 %v702
  %v704 = vpop.xlane.xlu0 %703
  %v705 = vsel %vm107, %v595, 0.0
  %706 = vadd.xlane.f32.xlu0 %v705
  %v707 = vpop.xlane.xlu0 %706
  %v708 = vsel %vm107, %v596, 0.0
  %709 = vadd.xlane.f32.xlu0 %v708
  %v710 = vpop.xlane.xlu0 %709
  %v711 = vsel %vm107, %v597, 0.0
  %712 = vadd.xlane.f32.xlu0 %v711
  %v713 = vpop.xlane.xlu0 %712
  %v714 = vsel %vm107, %v598, 0.0
  %715 = vadd.xlane.f32.xlu0 %v714
  %v716 = vpop.xlane.xlu0 %715
  %v717 = vsel %vm107, %v599, 0.0
  %718 = vadd.xlane.f32.xlu0 %v717
  %v719 = vpop.xlane.xlu0 %718
  %v720 = vsel %vm107, %v600, 0.0
  %721 = vadd.xlane.f32.xlu0 %v720
  %v722 = vpop.xlane.xlu0 %721
  %v723 = vsel %vm107, %v601, 0.0
  %724 = vadd.xlane.f32.xlu0 %v723
  %v725 = vpop.xlane.xlu0 %724
  %v726 = vsel %vm107, %v602, 0.0
  %727 = vadd.xlane.f32.xlu0 %v726
  %v728 = vpop.xlane.xlu0 %727
  %v729 = vsel %vm107, %v603, 0.0
  %730 = vadd.xlane.f32.xlu0 %v729
  %v731 = vpop.xlane.xlu0 %730
  %v732 = vsel %vm107, %v604, 0.0
  %733 = vadd.xlane.f32.xlu0 %v732
  %v734 = vpop.xlane.xlu0 %733
  %v735 = vsel %vm107, %v605, 0.0
  %736 = vadd.xlane.f32.xlu0 %v735
  %v737 = vpop.xlane.xlu0 %736
  %v738 = vsel %vm107, %v606, 0.0
  %739 = vadd.xlane.f32.xlu0 %v738
  %v740 = vpop.xlane.xlu0 %739
  %v741 = vsel %vm107, %v607, 0.0
  %742 = vadd.xlane.f32.xlu0 %v741
  %v743 = vpop.xlane.xlu0 %742
  %v744 = vsel %vm107, %v608, 0.0
  %745 = vadd.xlane.f32.xlu0 %v744
  %v746 = vpop.xlane.xlu0 %745
  %v747 = vsel %vm107, %v609, 0.0
  %748 = vadd.xlane.f32.xlu0 %v747
  %v749 = vpop.xlane.xlu0 %748
  %v750 = vsel %vm107, %v610, 0.0
  %751 = vadd.xlane.f32.xlu0 %v750
  %v752 = vpop.xlane.xlu0 %751
  %v753 = vsel %vm107, %v611, 0.0
  %754 = vadd.xlane.f32.xlu0 %v753
  %v755 = vpop.xlane.xlu0 %754
  %v756 = vsel %vm107, %v612, 0.0
  %757 = vadd.xlane.f32.xlu0 %v756
  %v758 = vpop.xlane.xlu0 %757
  %v759 = vsel %vm107, %v613, 0.0
  %760 = vadd.xlane.f32.xlu0 %v759
  %v761 = vpop.xlane.xlu0 %760
  %v762 = vsel %vm107, %v614, 0.0
  %763 = vadd.xlane.f32.xlu0 %v762
  %v764 = vpop.xlane.xlu0 %763
  %v765 = vsel %vm107, %v615, 0.0
  %766 = vadd.xlane.f32.xlu0 %v765
  %v767 = vpop.xlane.xlu0 %766
  %v768 = vsel %vm107, %v616, 0.0
  %769 = vadd.xlane.f32.xlu0 %v768
  %v770 = vpop.xlane.xlu0 %769
  %v771 = vsel %vm107, %v617, 0.0
  %772 = vadd.xlane.f32.xlu0 %v771
  %v773 = vpop.xlane.xlu0 %772
  %v774 = vsel %vm107, %v618, 0.0
  %775 = vadd.xlane.f32.xlu0 %v774
  %v776 = vpop.xlane.xlu0 %775
  %v777 = vsel %vm107, %v619, 0.0
  %778 = vadd.xlane.f32.xlu0 %v777
  %v779 = vpop.xlane.xlu0 %778
  %v780 = vsel %vm107, %v620, 0.0
  %781 = vadd.xlane.f32.xlu0 %v780
  %v782 = vpop.xlane.xlu0 %781
  %v783 = vsel %vm107, %v621, 0.0
  %784 = vadd.xlane.f32.xlu0 %v783
  %v785 = vpop.xlane.xlu0 %784
  %v786 = vsel %vm107, %v622, 0.0
  %787 = vadd.xlane.f32.xlu0 %v786
  %v788 = vpop.xlane.xlu0 %787
  %v789 = vsel %vm107, %v623, 0.0
  %790 = vadd.xlane.f32.xlu0 %v789
  %v791 = vpop.xlane.xlu0 %790
  %v792 = vsel %vm107, %v624, 0.0
  %793 = vadd.xlane.f32.xlu0 %v792
  %v794 = vpop.xlane.xlu0 %793
  %v795 = vsel %vm107, %v625, 0.0
  %796 = vadd.xlane.f32.xlu0 %v795
  %v797 = vpop.xlane.xlu0 %796
  %v798 = vsel %vm107, %v626, 0.0
  %799 = vadd.xlane.f32.xlu0 %v798
  %v800 = vpop.xlane.xlu0 %799
  %v801 = vsel %vm107, %v627, 0.0
  %802 = vadd.xlane.f32.xlu0 %v801
  %v803 = vpop.xlane.xlu0 %802
  %v804 = vsel %vm107, %v628, 0.0
  %805 = vadd.xlane.f32.xlu0 %v804
  %v806 = vpop.xlane.xlu0 %805
  %v807 = vsel %vm107, %v629, 0.0
  %808 = vadd.xlane.f32.xlu0 %v807
  %v809 = vpop.xlane.xlu0 %808
  %v810 = vsel %vm107, %v630, 0.0
  %811 = vadd.xlane.f32.xlu0 %v810
  %v812 = vpop.xlane.xlu0 %811
  %v813 = vsel %vm107, %v631, 0.0
  %814 = vadd.xlane.f32.xlu0 %v813
  %v815 = vpop.xlane.xlu0 %814
  %v816 = vsel %vm107, %v632, 0.0
  %817 = vadd.xlane.f32.xlu0 %v816
  %v818 = vpop.xlane.xlu0 %817
  %v819 = vsel %vm107, %v633, 0.0
  %820 = vadd.xlane.f32.xlu0 %v819
  %v821 = vpop.xlane.xlu0 %820
  %v822 = vsel %vm107, %v634, 0.0
  %823 = vadd.xlane.f32.xlu0 %v822
  %v824 = vpop.xlane.xlu0 %823
  %v825 = vsel %vm107, %v635, 0.0
  %826 = vadd.xlane.f32.xlu0 %v825
  %v827 = vpop.xlane.xlu0 %826
  %v828 = vsel %vm107, %v636, 0.0
  %829 = vadd.xlane.f32.xlu0 %v828
  %v830 = vpop.xlane.xlu0 %829
  %v831 = vrcp.pop 32.0
  %v832 = vmul.f32 32.0, %v831
  %v833 = vsub.f32 1.0, %v832
  %v834 = vmul.f32 %v831, %v833
  %v835 = vadd.f32 %v831, %v834
  %vm836 = vweird.f32 %v831
  %v837 = vsel %vm836, %v831, %v835
  %v838 = vmul.f32 %v641, %v837
  %v839 = vmul.f32 %v644, %v837
  %v840 = vmul.f32 %v647, %v837
  %v841 = vmul.f32 %v650, %v837
  %v842 = vmul.f32 %v653, %v837
  %v843 = vmul.f32 %v656, %v837
  %v844 = vmul.f32 %v659, %v837
  %v845 = vmul.f32 %v662, %v837
  %v846 = vmul.f32 %v665, %v837
  %v847 = vmul.f32 %v668, %v837
  %v848 = vmul.f32 %v671, %v837
  %v849 = vmul.f32 %v674, %v837
  %v850 = vmul.f32 %v677, %v837
  %v851 = vmul.f32 %v680, %v837
  %v852 = vmul.f32 %v683, %v837
  %v853 = vmul.f32 %v686, %v837
  %v854 = vmul.f32 %v689, %v837
  %v855 = vmul.f32 %v692, %v837
  %v856 = vmul.f32 %v695, %v837
  %v857 = vmul.f32 %v698, %v837
  %v858 = vmul.f32 %v701, %v837
  %v859 = vmul.f32 %v704, %v837
  %v860 = vmul.f32 %v707, %v837
  %v861 = vmul.f32 %v710, %v837
  %v862 = vmul.f32 %v713, %v837
  %v863 = vmul.f32 %v716, %v837
  %v864 = vmul.f32 %v719, %v837
  %v865 = vmul.f32 %v722, %v837
  %v866 = vmul.f32 %v725, %v837
  %v867 = vmul.f32 %v728, %v837
  %v868 = vmul.f32 %v731, %v837
  %v869 = vmul.f32 %v734, %v837
  %v870 = vmul.f32 %v737, %v837
  %v871 = vmul.f32 %v740, %v837
  %v872 = vmul.f32 %v743, %v837
  %v873 = vmul.f32 %v746, %v837
  %v874 = vmul.f32 %v749, %v837
  %v875 = vmul.f32 %v752, %v837
  %v876 = vmul.f32 %v755, %v837
  %v877 = vmul.f32 %v758, %v837
  %v878 = vmul.f32 %v761, %v837
  %v879 = vmul.f32 %v764, %v837
  %v880 = vmul.f32 %v767, %v837
  %v881 = vmul.f32 %v770, %v837
  %v882 = vmul.f32 %v773, %v837
  %v883 = vmul.f32 %v776, %v837
  %v884 = vmul.f32 %v779, %v837
  %v885 = vmul.f32 %v782, %v837
  %v886 = vmul.f32 %v785, %v837
  %v887 = vmul.f32 %v788, %v837
  %v888 = vmul.f32 %v791, %v837
  %v889 = vmul.f32 %v794, %v837
  %v890 = vmul.f32 %v797, %v837
  %v891 = vmul.f32 %v800, %v837
  %v892 = vmul.f32 %v803, %v837
  %v893 = vmul.f32 %v806, %v837
  %v894 = vmul.f32 %v809, %v837
  %v895 = vmul.f32 %v812, %v837
  %v896 = vmul.f32 %v815, %v837
  %v897 = vmul.f32 %v818, %v837
  %v898 = vmul.f32 %v821, %v837
  %v899 = vmul.f32 %v824, %v837
  %v900 = vmul.f32 %v827, %v837
  %v901 = vmul.f32 %v830, %v837
  %v902 = vsub.f32 %v573, %v838
  %v903 = vsub.f32 %v574, %v839
  %v904 = vsub.f32 %v575, %v840
  %v905 = vsub.f32 %v576, %v841
  %v906 = vsub.f32 %v577, %v842
  %v907 = vsub.f32 %v578, %v843
  %v908 = vsub.f32 %v579, %v844
  %v909 = vsub.f32 %v580, %v845
  %v910 = vsub.f32 %v581, %v846
  %v911 = vsub.f32 %v582, %v847
  %v912 = vsub.f32 %v583, %v848
  %v913 = vsub.f32 %v584, %v849
  %v914 = vsub.f32 %v585, %v850
  %v915 = vsub.f32 %v586, %v851
  %v916 = vsub.f32 %v587, %v852
  %v917 = vsub.f32 %v588, %v853
  %v918 = vsub.f32 %v589, %v854
  %v919 = vsub.f32 %v590, %v855
  %v920 = vsub.f32 %v591, %v856
  %v921 = vsub.f32 %v592, %v857
  %v922 = vsub.f32 %v593, %v858
  %v923 = vsub.f32 %v594, %v859
  %v924 = vsub.f32 %v595, %v860
  %v925 = vsub.f32 %v596, %v861
  %v926 = vsub.f32 %v597, %v862
  %v927 = vsub.f32 %v598, %v863
  %v928 = vsub.f32 %v599, %v864
  %v929 = vsub.f32 %v600, %v865
  %v930 = vsub.f32 %v601, %v866
  %v931 = vsub.f32 %v602, %v867
  %v932 = vsub.f32 %v603, %v868
  %v933 = vsub.f32 %v604, %v869
  %v934 = vsub.f32 %v605, %v870
  %v935 = vsub.f32 %v606, %v871
  %v936 = vsub.f32 %v607, %v872
  %v937 = vsub.f32 %v608, %v873
  %v938 = vsub.f32 %v609, %v874
  %v939 = vsub.f32 %v610, %v875
  %v940 = vsub.f32 %v611, %v876
  %v941 = vsub.f32 %v612, %v877
  %v942 = vsub.f32 %v613, %v878
  %v943 = vsub.f32 %v614, %v879
  %v944 = vsub.f32 %v615, %v880
  %v945 = vsub.f32 %v616, %v881
  %v946 = vsub.f32 %v617, %v882
  %v947 = vsub.f32 %v618, %v883
  %v948 = vsub.f32 %v619, %v884
  %v949 = vsub.f32 %v620, %v885
  %v950 = vsub.f32 %v621, %v886
  %v951 = vsub.f32 %v622, %v887
  %v952 = vsub.f32 %v623, %v888
  %v953 = vsub.f32 %v624, %v889
  %v954 = vsub.f32 %v625, %v890
  %v955 = vsub.f32 %v626, %v891
  %v956 = vsub.f32 %v627, %v892
  %v957 = vsub.f32 %v628, %v893
  %v958 = vsub.f32 %v629, %v894
  %v959 = vsub.f32 %v630, %v895
  %v960 = vsub.f32 %v631, %v896
  %v961 = vsub.f32 %v632, %v897
  %v962 = vsub.f32 %v633, %v898
  %v963 = vsub.f32 %v634, %v899
  %v964 = vsub.f32 %v635, %v900
  %v965 = vsub.f32 %v636, %v901
  %v966 = vmul.f32 %v902, %v902
  %v967 = vmul.f32 %v903, %v903
  %v968 = vmul.f32 %v904, %v904
  %v969 = vmul.f32 %v905, %v905
  %v970 = vmul.f32 %v906, %v906
  %v971 = vmul.f32 %v907, %v907
  %v972 = vmul.f32 %v908, %v908
  %v973 = vmul.f32 %v909, %v909
  %v974 = vmul.f32 %v910, %v910
  %v975 = vmul.f32 %v911, %v911
  %v976 = vmul.f32 %v912, %v912
  %v977 = vmul.f32 %v913, %v913
  %v978 = vmul.f32 %v914, %v914
  %v979 = vmul.f32 %v915, %v915
  %v980 = vmul.f32 %v916, %v916
  %v981 = vmul.f32 %v917, %v917
  %v982 = vmul.f32 %v918, %v918
  %v983 = vmul.f32 %v919, %v919
  %v984 = vmul.f32 %v920, %v920
  %v985 = vmul.f32 %v921, %v921
  %v986 = vmul.f32 %v922, %v922
  %v987 = vmul.f32 %v923, %v923
  %v988 = vmul.f32 %v924, %v924
  %v989 = vmul.f32 %v925, %v925
  %v990 = vmul.f32 %v926, %v926
  %v991 = vmul.f32 %v927, %v927
  %v992 = vmul.f32 %v928, %v928
  %v993 = vmul.f32 %v929, %v929
  %v994 = vmul.f32 %v930, %v930
  %v995 = vmul.f32 %v931, %v931
  %v996 = vmul.f32 %v932, %v932
  %v997 = vmul.f32 %v933, %v933
  %v998 = vmul.f32 %v934, %v934
  %v999 = vmul.f32 %v935, %v935
  %v1000 = vmul.f32 %v936, %v936
  %v1001 = vmul.f32 %v937, %v937
  %v1002 = vmul.f32 %v938, %v938
  %v1003 = vmul.f32 %v939, %v939
  %v1004 = vmul.f32 %v940, %v940
  %v1005 = vmul.f32 %v941, %v941
  %v1006 = vmul.f32 %v942, %v942
  %v1007 = vmul.f32 %v943, %v943
  %v1008 = vmul.f32 %v944, %v944
  %v1009 = vmul.f32 %v945, %v945
  %v1010 = vmul.f32 %v946, %v946
  %v1011 = vmul.f32 %v947, %v947
  %v1012 = vmul.f32 %v948, %v948
  %v1013 = vmul.f32 %v949, %v949
  %v1014 = vmul.f32 %v950, %v950
  %v1015 = vmul.f32 %v951, %v951
  %v1016 = vmul.f32 %v952, %v952
  %v1017 = vmul.f32 %v953, %v953
  %v1018 = vmul.f32 %v954, %v954
  %v1019 = vmul.f32 %v955, %v955
  %v1020 = vmul.f32 %v956, %v956
  %v1021 = vmul.f32 %v957, %v957
  %v1022 = vmul.f32 %v958, %v958
  %v1023 = vmul.f32 %v959, %v959
  %v1024 = vmul.f32 %v960, %v960
  %v1025 = vmul.f32 %v961, %v961
  %v1026 = vmul.f32 %v962, %v962
  %v1027 = vmul.f32 %v963, %v963
  %v1028 = vmul.f32 %v964, %v964
  %v1029 = vmul.f32 %v965, %v965
  %v1030 = vsel %vm107, %v966, 0.0
  %1031 = vadd.xlane.f32.xlu0 %v1030
  %v1032 = vpop.xlane.xlu0 %1031
  %v1033 = vsel %vm107, %v967, 0.0
  %1034 = vadd.xlane.f32.xlu0 %v1033
  %v1035 = vpop.xlane.xlu0 %1034
  %v1036 = vsel %vm107, %v968, 0.0
  %1037 = vadd.xlane.f32.xlu0 %v1036
  %v1038 = vpop.xlane.xlu0 %1037
  %v1039 = vsel %vm107, %v969, 0.0
  %1040 = vadd.xlane.f32.xlu0 %v1039
  %v1041 = vpop.xlane.xlu0 %1040
  %v1042 = vsel %vm107, %v970, 0.0
  %1043 = vadd.xlane.f32.xlu0 %v1042
  %v1044 = vpop.xlane.xlu0 %1043
  %v1045 = vsel %vm107, %v971, 0.0
  %1046 = vadd.xlane.f32.xlu0 %v1045
  %v1047 = vpop.xlane.xlu0 %1046
  %v1048 = vsel %vm107, %v972, 0.0
  %1049 = vadd.xlane.f32.xlu0 %v1048
  %v1050 = vpop.xlane.xlu0 %1049
  %v1051 = vsel %vm107, %v973, 0.0
  %1052 = vadd.xlane.f32.xlu0 %v1051
  %v1053 = vpop.xlane.xlu0 %1052
  %v1054 = vsel %vm107, %v974, 0.0
  %1055 = vadd.xlane.f32.xlu0 %v1054
  %v1056 = vpop.xlane.xlu0 %1055
  %v1057 = vsel %vm107, %v975, 0.0
  %1058 = vadd.xlane.f32.xlu0 %v1057
  %v1059 = vpop.xlane.xlu0 %1058
  %v1060 = vsel %vm107, %v976, 0.0
  %1061 = vadd.xlane.f32.xlu0 %v1060
  %v1062 = vpop.xlane.xlu0 %1061
  %v1063 = vsel %vm107, %v977, 0.0
  %1064 = vadd.xlane.f32.xlu0 %v1063
  %v1065 = vpop.xlane.xlu0 %1064
  %v1066 = vsel %vm107, %v978, 0.0
  %1067 = vadd.xlane.f32.xlu0 %v1066
  %v1068 = vpop.xlane.xlu0 %1067
  %v1069 = vsel %vm107, %v979, 0.0
  %1070 = vadd.xlane.f32.xlu0 %v1069
  %v1071 = vpop.xlane.xlu0 %1070
  %v1072 = vsel %vm107, %v980, 0.0
  %1073 = vadd.xlane.f32.xlu0 %v1072
  %v1074 = vpop.xlane.xlu0 %1073
  %v1075 = vsel %vm107, %v981, 0.0
  %1076 = vadd.xlane.f32.xlu0 %v1075
  %v1077 = vpop.xlane.xlu0 %1076
  %v1078 = vsel %vm107, %v982, 0.0
  %1079 = vadd.xlane.f32.xlu0 %v1078
  %v1080 = vpop.xlane.xlu0 %1079
  %v1081 = vsel %vm107, %v983, 0.0
  %1082 = vadd.xlane.f32.xlu0 %v1081
  %v1083 = vpop.xlane.xlu0 %1082
  %v1084 = vsel %vm107, %v984, 0.0
  %1085 = vadd.xlane.f32.xlu0 %v1084
  %v1086 = vpop.xlane.xlu0 %1085
  %v1087 = vsel %vm107, %v985, 0.0
  %1088 = vadd.xlane.f32.xlu0 %v1087
  %v1089 = vpop.xlane.xlu0 %1088
  %v1090 = vsel %vm107, %v986, 0.0
  %1091 = vadd.xlane.f32.xlu0 %v1090
  %v1092 = vpop.xlane.xlu0 %1091
  %v1093 = vsel %vm107, %v987, 0.0
  %1094 = vadd.xlane.f32.xlu0 %v1093
  %v1095 = vpop.xlane.xlu0 %1094
  %v1096 = vsel %vm107, %v988, 0.0
  %1097 = vadd.xlane.f32.xlu0 %v1096
  %v1098 = vpop.xlane.xlu0 %1097
  %v1099 = vsel %vm107, %v989, 0.0
  %1100 = vadd.xlane.f32.xlu0 %v1099
  %v1101 = vpop.xlane.xlu0 %1100
  %v1102 = vsel %vm107, %v990, 0.0
  %1103 = vadd.xlane.f32.xlu0 %v1102
  %v1104 = vpop.xlane.xlu0 %1103
  %v1105 = vsel %vm107, %v991, 0.0
  %1106 = vadd.xlane.f32.xlu0 %v1105
  %v1107 = vpop.xlane.xlu0 %1106
  %v1108 = vsel %vm107, %v992, 0.0
  %1109 = vadd.xlane.f32.xlu0 %v1108
  %v1110 = vpop.xlane.xlu0 %1109
  %v1111 = vsel %vm107, %v993, 0.0
  %1112 = vadd.xlane.f32.xlu0 %v1111
  %v1113 = vpop.xlane.xlu0 %1112
  %v1114 = vsel %vm107, %v994, 0.0
  %1115 = vadd.xlane.f32.xlu0 %v1114
  %v1116 = vpop.xlane.xlu0 %1115
  %v1117 = vsel %vm107, %v995, 0.0
  %1118 = vadd.xlane.f32.xlu0 %v1117
  %v1119 = vpop.xlane.xlu0 %1118
  %v1120 = vsel %vm107, %v996, 0.0
  %1121 = vadd.xlane.f32.xlu0 %v1120
  %v1122 = vpop.xlane.xlu0 %1121
  %v1123 = vsel %vm107, %v997, 0.0
  %1124 = vadd.xlane.f32.xlu0 %v1123
  %v1125 = vpop.xlane.xlu0 %1124
  %v1126 = vsel %vm107, %v998, 0.0
  %1127 = vadd.xlane.f32.xlu0 %v1126
  %v1128 = vpop.xlane.xlu0 %1127
  %v1129 = vsel %vm107, %v999, 0.0
  %1130 = vadd.xlane.f32.xlu0 %v1129
  %v1131 = vpop.xlane.xlu0 %1130
  %v1132 = vsel %vm107, %v1000, 0.0
  %1133 = vadd.xlane.f32.xlu0 %v1132
  %v1134 = vpop.xlane.xlu0 %1133
  %v1135 = vsel %vm107, %v1001, 0.0
  %1136 = vadd.xlane.f32.xlu0 %v1135
  %v1137 = vpop.xlane.xlu0 %1136
  %v1138 = vsel %vm107, %v1002, 0.0
  %1139 = vadd.xlane.f32.xlu0 %v1138
  %v1140 = vpop.xlane.xlu0 %1139
  %v1141 = vsel %vm107, %v1003, 0.0
  %1142 = vadd.xlane.f32.xlu0 %v1141
  %v1143 = vpop.xlane.xlu0 %1142
  %v1144 = vsel %vm107, %v1004, 0.0
  %1145 = vadd.xlane.f32.xlu0 %v1144
  %v1146 = vpop.xlane.xlu0 %1145
  %v1147 = vsel %vm107, %v1005, 0.0
  %1148 = vadd.xlane.f32.xlu0 %v1147
  %v1149 = vpop.xlane.xlu0 %1148
  %v1150 = vsel %vm107, %v1006, 0.0
  %1151 = vadd.xlane.f32.xlu0 %v1150
  %v1152 = vpop.xlane.xlu0 %1151
  %v1153 = vsel %vm107, %v1007, 0.0
  %1154 = vadd.xlane.f32.xlu0 %v1153
  %v1155 = vpop.xlane.xlu0 %1154
  %v1156 = vsel %vm107, %v1008, 0.0
  %1157 = vadd.xlane.f32.xlu0 %v1156
  %v1158 = vpop.xlane.xlu0 %1157
  %v1159 = vsel %vm107, %v1009, 0.0
  %1160 = vadd.xlane.f32.xlu0 %v1159
  %v1161 = vpop.xlane.xlu0 %1160
  %v1162 = vsel %vm107, %v1010, 0.0
  %1163 = vadd.xlane.f32.xlu0 %v1162
  %v1164 = vpop.xlane.xlu0 %1163
  %v1165 = vsel %vm107, %v1011, 0.0
  %1166 = vadd.xlane.f32.xlu0 %v1165
  %v1167 = vpop.xlane.xlu0 %1166
  %v1168 = vsel %vm107, %v1012, 0.0
  %1169 = vadd.xlane.f32.xlu0 %v1168
  %v1170 = vpop.xlane.xlu0 %1169
  %v1171 = vsel %vm107, %v1013, 0.0
  %1172 = vadd.xlane.f32.xlu0 %v1171
  %v1173 = vpop.xlane.xlu0 %1172
  %v1174 = vsel %vm107, %v1014, 0.0
  %1175 = vadd.xlane.f32.xlu0 %v1174
  %v1176 = vpop.xlane.xlu0 %1175
  %v1177 = vsel %vm107, %v1015, 0.0
  %1178 = vadd.xlane.f32.xlu0 %v1177
  %v1179 = vpop.xlane.xlu0 %1178
  %v1180 = vsel %vm107, %v1016, 0.0
  %1181 = vadd.xlane.f32.xlu0 %v1180
  %v1182 = vpop.xlane.xlu0 %1181
  %v1183 = vsel %vm107, %v1017, 0.0
  %1184 = vadd.xlane.f32.xlu0 %v1183
  %v1185 = vpop.xlane.xlu0 %1184
  %v1186 = vsel %vm107, %v1018, 0.0
  %1187 = vadd.xlane.f32.xlu0 %v1186
  %v1188 = vpop.xlane.xlu0 %1187
  %v1189 = vsel %vm107, %v1019, 0.0
  %1190 = vadd.xlane.f32.xlu0 %v1189
  %v1191 = vpop.xlane.xlu0 %1190
  %v1192 = vsel %vm107, %v1020, 0.0
  %1193 = vadd.xlane.f32.xlu0 %v1192
  %v1194 = vpop.xlane.xlu0 %1193
  %v1195 = vsel %vm107, %v1021, 0.0
  %1196 = vadd.xlane.f32.xlu0 %v1195
  %v1197 = vpop.xlane.xlu0 %1196
  %v1198 = vsel %vm107, %v1022, 0.0
  %1199 = vadd.xlane.f32.xlu0 %v1198
  %v1200 = vpop.xlane.xlu0 %1199
  %v1201 = vsel %vm107, %v1023, 0.0
  %1202 = vadd.xlane.f32.xlu0 %v1201
  %v1203 = vpop.xlane.xlu0 %1202
  %v1204 = vsel %vm107, %v1024, 0.0
  %1205 = vadd.xlane.f32.xlu0 %v1204
  %v1206 = vpop.xlane.xlu0 %1205
  %v1207 = vsel %vm107, %v1025, 0.0
  %1208 = vadd.xlane.f32.xlu0 %v1207
  %v1209 = vpop.xlane.xlu0 %1208
  %v1210 = vsel %vm107, %v1026, 0.0
  %1211 = vadd.xlane.f32.xlu0 %v1210
  %v1212 = vpop.xlane.xlu0 %1211
  %v1213 = vsel %vm107, %v1027, 0.0
  %1214 = vadd.xlane.f32.xlu0 %v1213
  %v1215 = vpop.xlane.xlu0 %1214
  %v1216 = vsel %vm107, %v1028, 0.0
  %1217 = vadd.xlane.f32.xlu0 %v1216
  %v1218 = vpop.xlane.xlu0 %1217
  %v1219 = vsel %vm107, %v1029, 0.0
  %1220 = vadd.xlane.f32.xlu0 %v1219
  %v1221 = vpop.xlane.xlu0 %1220
  %v1222 = vmul.f32 %v1032, %v837
  %v1223 = vmul.f32 %v1035, %v837
  %v1224 = vmul.f32 %v1038, %v837
  %v1225 = vmul.f32 %v1041, %v837
  %v1226 = vmul.f32 %v1044, %v837
  %v1227 = vmul.f32 %v1047, %v837
  %v1228 = vmul.f32 %v1050, %v837
  %v1229 = vmul.f32 %v1053, %v837
  %v1230 = vmul.f32 %v1056, %v837
  %v1231 = vmul.f32 %v1059, %v837
  %v1232 = vmul.f32 %v1062, %v837
  %v1233 = vmul.f32 %v1065, %v837
  %v1234 = vmul.f32 %v1068, %v837
  %v1235 = vmul.f32 %v1071, %v837
  %v1236 = vmul.f32 %v1074, %v837
  %v1237 = vmul.f32 %v1077, %v837
  %v1238 = vmul.f32 %v1080, %v837
  %v1239 = vmul.f32 %v1083, %v837
  %v1240 = vmul.f32 %v1086, %v837
  %v1241 = vmul.f32 %v1089, %v837
  %v1242 = vmul.f32 %v1092, %v837
  %v1243 = vmul.f32 %v1095, %v837
  %v1244 = vmul.f32 %v1098, %v837
  %v1245 = vmul.f32 %v1101, %v837
  %v1246 = vmul.f32 %v1104, %v837
  %v1247 = vmul.f32 %v1107, %v837
  %v1248 = vmul.f32 %v1110, %v837
  %v1249 = vmul.f32 %v1113, %v837
  %v1250 = vmul.f32 %v1116, %v837
  %v1251 = vmul.f32 %v1119, %v837
  %v1252 = vmul.f32 %v1122, %v837
  %v1253 = vmul.f32 %v1125, %v837
  %v1254 = vmul.f32 %v1128, %v837
  %v1255 = vmul.f32 %v1131, %v837
  %v1256 = vmul.f32 %v1134, %v837
  %v1257 = vmul.f32 %v1137, %v837
  %v1258 = vmul.f32 %v1140, %v837
  %v1259 = vmul.f32 %v1143, %v837
  %v1260 = vmul.f32 %v1146, %v837
  %v1261 = vmul.f32 %v1149, %v837
  %v1262 = vmul.f32 %v1152, %v837
  %v1263 = vmul.f32 %v1155, %v837
  %v1264 = vmul.f32 %v1158, %v837
  %v1265 = vmul.f32 %v1161, %v837
  %v1266 = vmul.f32 %v1164, %v837
  %v1267 = vmul.f32 %v1167, %v837
  %v1268 = vmul.f32 %v1170, %v837
  %v1269 = vmul.f32 %v1173, %v837
  %v1270 = vmul.f32 %v1176, %v837
  %v1271 = vmul.f32 %v1179, %v837
  %v1272 = vmul.f32 %v1182, %v837
  %v1273 = vmul.f32 %v1185, %v837
  %v1274 = vmul.f32 %v1188, %v837
  %v1275 = vmul.f32 %v1191, %v837
  %v1276 = vmul.f32 %v1194, %v837
  %v1277 = vmul.f32 %v1197, %v837
  %v1278 = vmul.f32 %v1200, %v837
  %v1279 = vmul.f32 %v1203, %v837
  %v1280 = vmul.f32 %v1206, %v837
  %v1281 = vmul.f32 %v1209, %v837
  %v1282 = vmul.f32 %v1212, %v837
  %v1283 = vmul.f32 %v1215, %v837
  %v1284 = vmul.f32 %v1218, %v837
  %v1285 = vmul.f32 %v1221, %v837
  %v1286 = vadd.f32 %v1222, 1e-05
  %v1287 = vadd.f32 %v1223, 1e-05
  %v1288 = vadd.f32 %v1224, 1e-05
  %v1289 = vadd.f32 %v1225, 1e-05
  %v1290 = vadd.f32 %v1226, 1e-05
  %v1291 = vadd.f32 %v1227, 1e-05
  %v1292 = vadd.f32 %v1228, 1e-05
  %v1293 = vadd.f32 %v1229, 1e-05
  %v1294 = vadd.f32 %v1230, 1e-05
  %v1295 = vadd.f32 %v1231, 1e-05
  %v1296 = vadd.f32 %v1232, 1e-05
  %v1297 = vadd.f32 %v1233, 1e-05
  %v1298 = vadd.f32 %v1234, 1e-05
  %v1299 = vadd.f32 %v1235, 1e-05
  %v1300 = vadd.f32 %v1236, 1e-05
  %v1301 = vadd.f32 %v1237, 1e-05
  %v1302 = vadd.f32 %v1238, 1e-05
  %v1303 = vadd.f32 %v1239, 1e-05
  %v1304 = vadd.f32 %v1240, 1e-05
  %v1305 = vadd.f32 %v1241, 1e-05
  %v1306 = vadd.f32 %v1242, 1e-05
  %v1307 = vadd.f32 %v1243, 1e-05
  %v1308 = vadd.f32 %v1244, 1e-05
  %v1309 = vadd.f32 %v1245, 1e-05
  %v1310 = vadd.f32 %v1246, 1e-05
  %v1311 = vadd.f32 %v1247, 1e-05
  %v1312 = vadd.f32 %v1248, 1e-05
  %v1313 = vadd.f32 %v1249, 1e-05
  %v1314 = vadd.f32 %v1250, 1e-05
  %v1315 = vadd.f32 %v1251, 1e-05
  %v1316 = vadd.f32 %v1252, 1e-05
  %v1317 = vadd.f32 %v1253, 1e-05
  %v1318 = vadd.f32 %v1254, 1e-05
  %v1319 = vadd.f32 %v1255, 1e-05
  %v1320 = vadd.f32 %v1256, 1e-05
  %v1321 = vadd.f32 %v1257, 1e-05
  %v1322 = vadd.f32 %v1258, 1e-05
  %v1323 = vadd.f32 %v1259, 1e-05
  %v1324 = vadd.f32 %v1260, 1e-05
  %v1325 = vadd.f32 %v1261, 1e-05
  %v1326 = vadd.f32 %v1262, 1e-05
  %v1327 = vadd.f32 %v1263, 1e-05
  %v1328 = vadd.f32 %v1264, 1e-05
  %v1329 = vadd.f32 %v1265, 1e-05
  %v1330 = vadd.f32 %v1266, 1e-05
  %v1331 = vadd.f32 %v1267, 1e-05
  %v1332 = vadd.f32 %v1268, 1e-05
  %v1333 = vadd.f32 %v1269, 1e-05
  %v1334 = vadd.f32 %v1270, 1e-05
  %v1335 = vadd.f32 %v1271, 1e-05
  %v1336 = vadd.f32 %v1272, 1e-05
  %v1337 = vadd.f32 %v1273, 1e-05
  %v1338 = vadd.f32 %v1274, 1e-05
  %v1339 = vadd.f32 %v1275, 1e-05
  %v1340 = vadd.f32 %v1276, 1e-05
  %v1341 = vadd.f32 %v1277, 1e-05
  %v1342 = vadd.f32 %v1278, 1e-05
  %v1343 = vadd.f32 %v1279, 1e-05
  %v1344 = vadd.f32 %v1280, 1e-05
  %v1345 = vadd.f32 %v1281, 1e-05
  %v1346 = vadd.f32 %v1282, 1e-05
  %v1347 = vadd.f32 %v1283, 1e-05
  %v1348 = vadd.f32 %v1284, 1e-05
  %v1349 = vadd.f32 %v1285, 1e-05
  %v1350 = vrsqrt.pop %v1286
  %v1351 = vmul.f32 %v1350, %v1286
  %v1352 = vmul.f32 %v1351, %v1350
  %v1353 = vmul.f32 0.5, %v1352
  %v1354 = vsub.f32 1.5, %v1353
  %v1355 = vmul.f32 %v1350, %v1354
  %vm1356 = vweird.f32 %v1286
  %vm1357 = vweird.f32 %v1350
  %vm1358 = vmor %vm1356, %vm1357
  %v1359 = vsel %vm1358, %v1350, %v1355
  %v1360 = vrsqrt.pop %v1287
  %v1361 = vmul.f32 %v1360, %v1287
  %v1362 = vmul.f32 %v1361, %v1360
  %v1363 = vmul.f32 0.5, %v1362
  %v1364 = vsub.f32 1.5, %v1363
  %v1365 = vmul.f32 %v1360, %v1364
  %vm1366 = vweird.f32 %v1287
  %vm1367 = vweird.f32 %v1360
  %vm1368 = vmor %vm1366, %vm1367
  %v1369 = vsel %vm1368, %v1360, %v1365
  %v1370 = vrsqrt.pop %v1288
  %v1371 = vmul.f32 %v1370, %v1288
  %v1372 = vmul.f32 %v1371, %v1370
  %v1373 = vmul.f32 0.5, %v1372
  %v1374 = vsub.f32 1.5, %v1373
  %v1375 = vmul.f32 %v1370, %v1374
  %vm1376 = vweird.f32 %v1288
  %vm1377 = vweird.f32 %v1370
  %vm1378 = vmor %vm1376, %vm1377
  %v1379 = vsel %vm1378, %v1370, %v1375
  %v1380 = vrsqrt.pop %v1289
  %v1381 = vmul.f32 %v1380, %v1289
  %v1382 = vmul.f32 %v1381, %v1380
  %v1383 = vmul.f32 0.5, %v1382
  %v1384 = vsub.f32 1.5, %v1383
  %v1385 = vmul.f32 %v1380, %v1384
  %vm1386 = vweird.f32 %v1289
  %vm1387 = vweird.f32 %v1380
  %vm1388 = vmor %vm1386, %vm1387
  %v1389 = vsel %vm1388, %v1380, %v1385
  %v1390 = vrsqrt.pop %v1290
  %v1391 = vmul.f32 %v1390, %v1290
  %v1392 = vmul.f32 %v1391, %v1390
  %v1393 = vmul.f32 0.5, %v1392
  %v1394 = vsub.f32 1.5, %v1393
  %v1395 = vmul.f32 %v1390, %v1394
  %vm1396 = vweird.f32 %v1290
  %vm1397 = vweird.f32 %v1390
  %vm1398 = vmor %vm1396, %vm1397
  %v1399 = vsel %vm1398, %v1390, %v1395
  %v1400 = vrsqrt.pop %v1291
  %v1401 = vmul.f32 %v1400, %v1291
  %v1402 = vmul.f32 %v1401, %v1400
  %v1403 = vmul.f32 0.5, %v1402
  %v1404 = vsub.f32 1.5, %v1403
  %v1405 = vmul.f32 %v1400, %v1404
  %vm1406 = vweird.f32 %v1291
  %vm1407 = vweird.f32 %v1400
  %vm1408 = vmor %vm1406, %vm1407
  %v1409 = vsel %vm1408, %v1400, %v1405
  %v1410 = vrsqrt.pop %v1292
  %v1411 = vmul.f32 %v1410, %v1292
  %v1412 = vmul.f32 %v1411, %v1410
  %v1413 = vmul.f32 0.5, %v1412
  %v1414 = vsub.f32 1.5, %v1413
  %v1415 = vmul.f32 %v1410, %v1414
  %vm1416 = vweird.f32 %v1292
  %vm1417 = vweird.f32 %v1410
  %vm1418 = vmor %vm1416, %vm1417
  %v1419 = vsel %vm1418, %v1410, %v1415
  %v1420 = vrsqrt.pop %v1293
  %v1421 = vmul.f32 %v1420, %v1293
  %v1422 = vmul.f32 %v1421, %v1420
  %v1423 = vmul.f32 0.5, %v1422
  %v1424 = vsub.f32 1.5, %v1423
  %v1425 = vmul.f32 %v1420, %v1424
  %vm1426 = vweird.f32 %v1293
  %vm1427 = vweird.f32 %v1420
  %vm1428 = vmor %vm1426, %vm1427
  %v1429 = vsel %vm1428, %v1420, %v1425
  %v1430 = vrsqrt.pop %v1294
  %v1431 = vmul.f32 %v1430, %v1294
  %v1432 = vmul.f32 %v1431, %v1430
  %v1433 = vmul.f32 0.5, %v1432
  %v1434 = vsub.f32 1.5, %v1433
  %v1435 = vmul.f32 %v1430, %v1434
  %vm1436 = vweird.f32 %v1294
  %vm1437 = vweird.f32 %v1430
  %vm1438 = vmor %vm1436, %vm1437
  %v1439 = vsel %vm1438, %v1430, %v1435
  %v1440 = vrsqrt.pop %v1295
  %v1441 = vmul.f32 %v1440, %v1295
  %v1442 = vmul.f32 %v1441, %v1440
  %v1443 = vmul.f32 0.5, %v1442
  %v1444 = vsub.f32 1.5, %v1443
  %v1445 = vmul.f32 %v1440, %v1444
  %vm1446 = vweird.f32 %v1295
  %vm1447 = vweird.f32 %v1440
  %vm1448 = vmor %vm1446, %vm1447
  %v1449 = vsel %vm1448, %v1440, %v1445
  %v1450 = vrsqrt.pop %v1296
  %v1451 = vmul.f32 %v1450, %v1296
  %v1452 = vmul.f32 %v1451, %v1450
  %v1453 = vmul.f32 0.5, %v1452
  %v1454 = vsub.f32 1.5, %v1453
  %v1455 = vmul.f32 %v1450, %v1454
  %vm1456 = vweird.f32 %v1296
  %vm1457 = vweird.f32 %v1450
  %vm1458 = vmor %vm1456, %vm1457
  %v1459 = vsel %vm1458, %v1450, %v1455
  %v1460 = vrsqrt.pop %v1297
  %v1461 = vmul.f32 %v1460, %v1297
  %v1462 = vmul.f32 %v1461, %v1460
  %v1463 = vmul.f32 0.5, %v1462
  %v1464 = vsub.f32 1.5, %v1463
  %v1465 = vmul.f32 %v1460, %v1464
  %vm1466 = vweird.f32 %v1297
  %vm1467 = vweird.f32 %v1460
  %vm1468 = vmor %vm1466, %vm1467
  %v1469 = vsel %vm1468, %v1460, %v1465
  %v1470 = vrsqrt.pop %v1298
  %v1471 = vmul.f32 %v1470, %v1298
  %v1472 = vmul.f32 %v1471, %v1470
  %v1473 = vmul.f32 0.5, %v1472
  %v1474 = vsub.f32 1.5, %v1473
  %v1475 = vmul.f32 %v1470, %v1474
  %vm1476 = vweird.f32 %v1298
  %vm1477 = vweird.f32 %v1470
  %vm1478 = vmor %vm1476, %vm1477
  %v1479 = vsel %vm1478, %v1470, %v1475
  %v1480 = vrsqrt.pop %v1299
  %v1481 = vmul.f32 %v1480, %v1299
  %v1482 = vmul.f32 %v1481, %v1480
  %v1483 = vmul.f32 0.5, %v1482
  %v1484 = vsub.f32 1.5, %v1483
  %v1485 = vmul.f32 %v1480, %v1484
  %vm1486 = vweird.f32 %v1299
  %vm1487 = vweird.f32 %v1480
  %vm1488 = vmor %vm1486, %vm1487
  %v1489 = vsel %vm1488, %v1480, %v1485
  %v1490 = vrsqrt.pop %v1300
  %v1491 = vmul.f32 %v1490, %v1300
  %v1492 = vmul.f32 %v1491, %v1490
  %v1493 = vmul.f32 0.5, %v1492
  %v1494 = vsub.f32 1.5, %v1493
  %v1495 = vmul.f32 %v1490, %v1494
  %vm1496 = vweird.f32 %v1300
  %vm1497 = vweird.f32 %v1490
  %vm1498 = vmor %vm1496, %vm1497
  %v1499 = vsel %vm1498, %v1490, %v1495
  %v1500 = vrsqrt.pop %v1301
  %v1501 = vmul.f32 %v1500, %v1301
  %v1502 = vmul.f32 %v1501, %v1500
  %v1503 = vmul.f32 0.5, %v1502
  %v1504 = vsub.f32 1.5, %v1503
  %v1505 = vmul.f32 %v1500, %v1504
  %vm1506 = vweird.f32 %v1301
  %vm1507 = vweird.f32 %v1500
  %vm1508 = vmor %vm1506, %vm1507
  %v1509 = vsel %vm1508, %v1500, %v1505
  %v1510 = vrsqrt.pop %v1302
  %v1511 = vmul.f32 %v1510, %v1302
  %v1512 = vmul.f32 %v1511, %v1510
  %v1513 = vmul.f32 0.5, %v1512
  %v1514 = vsub.f32 1.5, %v1513
  %v1515 = vmul.f32 %v1510, %v1514
  %vm1516 = vweird.f32 %v1302
  %vm1517 = vweird.f32 %v1510
  %vm1518 = vmor %vm1516, %vm1517
  %v1519 = vsel %vm1518, %v1510, %v1515
  %v1520 = vrsqrt.pop %v1303
  %v1521 = vmul.f32 %v1520, %v1303
  %v1522 = vmul.f32 %v1521, %v1520
  %v1523 = vmul.f32 0.5, %v1522
  %v1524 = vsub.f32 1.5, %v1523
  %v1525 = vmul.f32 %v1520, %v1524
  %vm1526 = vweird.f32 %v1303
  %vm1527 = vweird.f32 %v1520
  %vm1528 = vmor %vm1526, %vm1527
  %v1529 = vsel %vm1528, %v1520, %v1525
  %v1530 = vrsqrt.pop %v1304
  %v1531 = vmul.f32 %v1530, %v1304
  %v1532 = vmul.f32 %v1531, %v1530
  %v1533 = vmul.f32 0.5, %v1532
  %v1534 = vsub.f32 1.5, %v1533
  %v1535 = vmul.f32 %v1530, %v1534
  %vm1536 = vweird.f32 %v1304
  %vm1537 = vweird.f32 %v1530
  %vm1538 = vmor %vm1536, %vm1537
  %v1539 = vsel %vm1538, %v1530, %v1535
  %v1540 = vrsqrt.pop %v1305
  %v1541 = vmul.f32 %v1540, %v1305
  %v1542 = vmul.f32 %v1541, %v1540
  %v1543 = vmul.f32 0.5, %v1542
  %v1544 = vsub.f32 1.5, %v1543
  %v1545 = vmul.f32 %v1540, %v1544
  %vm1546 = vweird.f32 %v1305
  %vm1547 = vweird.f32 %v1540
  %vm1548 = vmor %vm1546, %vm1547
  %v1549 = vsel %vm1548, %v1540, %v1545
  %v1550 = vrsqrt.pop %v1306
  %v1551 = vmul.f32 %v1550, %v1306
  %v1552 = vmul.f32 %v1551, %v1550
  %v1553 = vmul.f32 0.5, %v1552
  %v1554 = vsub.f32 1.5, %v1553
  %v1555 = vmul.f32 %v1550, %v1554
  %vm1556 = vweird.f32 %v1306
  %vm1557 = vweird.f32 %v1550
  %vm1558 = vmor %vm1556, %vm1557
  %v1559 = vsel %vm1558, %v1550, %v1555
  %v1560 = vrsqrt.pop %v1307
  %v1561 = vmul.f32 %v1560, %v1307
  %v1562 = vmul.f32 %v1561, %v1560
  %v1563 = vmul.f32 0.5, %v1562
  %v1564 = vsub.f32 1.5, %v1563
  %v1565 = vmul.f32 %v1560, %v1564
  %vm1566 = vweird.f32 %v1307
  %vm1567 = vweird.f32 %v1560
  %vm1568 = vmor %vm1566, %vm1567
  %v1569 = vsel %vm1568, %v1560, %v1565
  %v1570 = vrsqrt.pop %v1308
  %v1571 = vmul.f32 %v1570, %v1308
  %v1572 = vmul.f32 %v1571, %v1570
  %v1573 = vmul.f32 0.5, %v1572
  %v1574 = vsub.f32 1.5, %v1573
  %v1575 = vmul.f32 %v1570, %v1574
  %vm1576 = vweird.f32 %v1308
  %vm1577 = vweird.f32 %v1570
  %vm1578 = vmor %vm1576, %vm1577
  %v1579 = vsel %vm1578, %v1570, %v1575
  %v1580 = vrsqrt.pop %v1309
  %v1581 = vmul.f32 %v1580, %v1309
  %v1582 = vmul.f32 %v1581, %v1580
  %v1583 = vmul.f32 0.5, %v1582
  %v1584 = vsub.f32 1.5, %v1583
  %v1585 = vmul.f32 %v1580, %v1584
  %vm1586 = vweird.f32 %v1309
  %vm1587 = vweird.f32 %v1580
  %vm1588 = vmor %vm1586, %vm1587
  %v1589 = vsel %vm1588, %v1580, %v1585
  %v1590 = vrsqrt.pop %v1310
  %v1591 = vmul.f32 %v1590, %v1310
  %v1592 = vmul.f32 %v1591, %v1590
  %v1593 = vmul.f32 0.5, %v1592
  %v1594 = vsub.f32 1.5, %v1593
  %v1595 = vmul.f32 %v1590, %v1594
  %vm1596 = vweird.f32 %v1310
  %vm1597 = vweird.f32 %v1590
  %vm1598 = vmor %vm1596, %vm1597
  %v1599 = vsel %vm1598, %v1590, %v1595
  %v1600 = vrsqrt.pop %v1311
  %v1601 = vmul.f32 %v1600, %v1311
  %v1602 = vmul.f32 %v1601, %v1600
  %v1603 = vmul.f32 0.5, %v1602
  %v1604 = vsub.f32 1.5, %v1603
  %v1605 = vmul.f32 %v1600, %v1604
  %vm1606 = vweird.f32 %v1311
  %vm1607 = vweird.f32 %v1600
  %vm1608 = vmor %vm1606, %vm1607
  %v1609 = vsel %vm1608, %v1600, %v1605
  %v1610 = vrsqrt.pop %v1312
  %v1611 = vmul.f32 %v1610, %v1312
  %v1612 = vmul.f32 %v1611, %v1610
  %v1613 = vmul.f32 0.5, %v1612
  %v1614 = vsub.f32 1.5, %v1613
  %v1615 = vmul.f32 %v1610, %v1614
  %vm1616 = vweird.f32 %v1312
  %vm1617 = vweird.f32 %v1610
  %vm1618 = vmor %vm1616, %vm1617
  %v1619 = vsel %vm1618, %v1610, %v1615
  %v1620 = vrsqrt.pop %v1313
  %v1621 = vmul.f32 %v1620, %v1313
  %v1622 = vmul.f32 %v1621, %v1620
  %v1623 = vmul.f32 0.5, %v1622
  %v1624 = vsub.f32 1.5, %v1623
  %v1625 = vmul.f32 %v1620, %v1624
  %vm1626 = vweird.f32 %v1313
  %vm1627 = vweird.f32 %v1620
  %vm1628 = vmor %vm1626, %vm1627
  %v1629 = vsel %vm1628, %v1620, %v1625
  %v1630 = vrsqrt.pop %v1314
  %v1631 = vmul.f32 %v1630, %v1314
  %v1632 = vmul.f32 %v1631, %v1630
  %v1633 = vmul.f32 0.5, %v1632
  %v1634 = vsub.f32 1.5, %v1633
  %v1635 = vmul.f32 %v1630, %v1634
  %vm1636 = vweird.f32 %v1314
  %vm1637 = vweird.f32 %v1630
  %vm1638 = vmor %vm1636, %vm1637
  %v1639 = vsel %vm1638, %v1630, %v1635
  %v1640 = vrsqrt.pop %v1315
  %v1641 = vmul.f32 %v1640, %v1315
  %v1642 = vmul.f32 %v1641, %v1640
  %v1643 = vmul.f32 0.5, %v1642
  %v1644 = vsub.f32 1.5, %v1643
  %v1645 = vmul.f32 %v1640, %v1644
  %vm1646 = vweird.f32 %v1315
  %vm1647 = vweird.f32 %v1640
  %vm1648 = vmor %vm1646, %vm1647
  %v1649 = vsel %vm1648, %v1640, %v1645
  %v1650 = vrsqrt.pop %v1316
  %v1651 = vmul.f32 %v1650, %v1316
  %v1652 = vmul.f32 %v1651, %v1650
  %v1653 = vmul.f32 0.5, %v1652
  %v1654 = vsub.f32 1.5, %v1653
  %v1655 = vmul.f32 %v1650, %v1654
  %vm1656 = vweird.f32 %v1316
  %vm1657 = vweird.f32 %v1650
  %vm1658 = vmor %vm1656, %vm1657
  %v1659 = vsel %vm1658, %v1650, %v1655
  %v1660 = vrsqrt.pop %v1317
  %v1661 = vmul.f32 %v1660, %v1317
  %v1662 = vmul.f32 %v1661, %v1660
  %v1663 = vmul.f32 0.5, %v1662
  %v1664 = vsub.f32 1.5, %v1663
  %v1665 = vmul.f32 %v1660, %v1664
  %vm1666 = vweird.f32 %v1317
  %vm1667 = vweird.f32 %v1660
  %vm1668 = vmor %vm1666, %vm1667
  %v1669 = vsel %vm1668, %v1660, %v1665
  %v1670 = vrsqrt.pop %v1318
  %v1671 = vmul.f32 %v1670, %v1318
  %v1672 = vmul.f32 %v1671, %v1670
  %v1673 = vmul.f32 0.5, %v1672
  %v1674 = vsub.f32 1.5, %v1673
  %v1675 = vmul.f32 %v1670, %v1674
  %vm1676 = vweird.f32 %v1318
  %vm1677 = vweird.f32 %v1670
  %vm1678 = vmor %vm1676, %vm1677
  %v1679 = vsel %vm1678, %v1670, %v1675
  %v1680 = vrsqrt.pop %v1319
  %v1681 = vmul.f32 %v1680, %v1319
  %v1682 = vmul.f32 %v1681, %v1680
  %v1683 = vmul.f32 0.5, %v1682
  %v1684 = vsub.f32 1.5, %v1683
  %v1685 = vmul.f32 %v1680, %v1684
  %vm1686 = vweird.f32 %v1319
  %vm1687 = vweird.f32 %v1680
  %vm1688 = vmor %vm1686, %vm1687
  %v1689 = vsel %vm1688, %v1680, %v1685
  %v1690 = vrsqrt.pop %v1320
  %v1691 = vmul.f32 %v1690, %v1320
  %v1692 = vmul.f32 %v1691, %v1690
  %v1693 = vmul.f32 0.5, %v1692
  %v1694 = vsub.f32 1.5, %v1693
  %v1695 = vmul.f32 %v1690, %v1694
  %vm1696 = vweird.f32 %v1320
  %vm1697 = vweird.f32 %v1690
  %vm1698 = vmor %vm1696, %vm1697
  %v1699 = vsel %vm1698, %v1690, %v1695
  %v1700 = vrsqrt.pop %v1321
  %v1701 = vmul.f32 %v1700, %v1321
  %v1702 = vmul.f32 %v1701, %v1700
  %v1703 = vmul.f32 0.5, %v1702
  %v1704 = vsub.f32 1.5, %v1703
  %v1705 = vmul.f32 %v1700, %v1704
  %vm1706 = vweird.f32 %v1321
  %vm1707 = vweird.f32 %v1700
  %vm1708 = vmor %vm1706, %vm1707
  %v1709 = vsel %vm1708, %v1700, %v1705
  %v1710 = vrsqrt.pop %v1322
  %v1711 = vmul.f32 %v1710, %v1322
  %v1712 = vmul.f32 %v1711, %v1710
  %v1713 = vmul.f32 0.5, %v1712
  %v1714 = vsub.f32 1.5, %v1713
  %v1715 = vmul.f32 %v1710, %v1714
  %vm1716 = vweird.f32 %v1322
  %vm1717 = vweird.f32 %v1710
  %vm1718 = vmor %vm1716, %vm1717
  %v1719 = vsel %vm1718, %v1710, %v1715
  %v1720 = vrsqrt.pop %v1323
  %v1721 = vmul.f32 %v1720, %v1323
  %v1722 = vmul.f32 %v1721, %v1720
  %v1723 = vmul.f32 0.5, %v1722
  %v1724 = vsub.f32 1.5, %v1723
  %v1725 = vmul.f32 %v1720, %v1724
  %vm1726 = vweird.f32 %v1323
  %vm1727 = vweird.f32 %v1720
  %vm1728 = vmor %vm1726, %vm1727
  %v1729 = vsel %vm1728, %v1720, %v1725
  %v1730 = vrsqrt.pop %v1324
  %v1731 = vmul.f32 %v1730, %v1324
  %v1732 = vmul.f32 %v1731, %v1730
  %v1733 = vmul.f32 0.5, %v1732
  %v1734 = vsub.f32 1.5, %v1733
  %v1735 = vmul.f32 %v1730, %v1734
  %vm1736 = vweird.f32 %v1324
  %vm1737 = vweird.f32 %v1730
  %vm1738 = vmor %vm1736, %vm1737
  %v1739 = vsel %vm1738, %v1730, %v1735
  %v1740 = vrsqrt.pop %v1325
  %v1741 = vmul.f32 %v1740, %v1325
  %v1742 = vmul.f32 %v1741, %v1740
  %v1743 = vmul.f32 0.5, %v1742
  %v1744 = vsub.f32 1.5, %v1743
  %v1745 = vmul.f32 %v1740, %v1744
  %vm1746 = vweird.f32 %v1325
  %vm1747 = vweird.f32 %v1740
  %vm1748 = vmor %vm1746, %vm1747
  %v1749 = vsel %vm1748, %v1740, %v1745
  %v1750 = vrsqrt.pop %v1326
  %v1751 = vmul.f32 %v1750, %v1326
  %v1752 = vmul.f32 %v1751, %v1750
  %v1753 = vmul.f32 0.5, %v1752
  %v1754 = vsub.f32 1.5, %v1753
  %v1755 = vmul.f32 %v1750, %v1754
  %vm1756 = vweird.f32 %v1326
  %vm1757 = vweird.f32 %v1750
  %vm1758 = vmor %vm1756, %vm1757
  %v1759 = vsel %vm1758, %v1750, %v1755
  %v1760 = vrsqrt.pop %v1327
  %v1761 = vmul.f32 %v1760, %v1327
  %v1762 = vmul.f32 %v1761, %v1760
  %v1763 = vmul.f32 0.5, %v1762
  %v1764 = vsub.f32 1.5, %v1763
  %v1765 = vmul.f32 %v1760, %v1764
  %vm1766 = vweird.f32 %v1327
  %vm1767 = vweird.f32 %v1760
  %vm1768 = vmor %vm1766, %vm1767
  %v1769 = vsel %vm1768, %v1760, %v1765
  %v1770 = vrsqrt.pop %v1328
  %v1771 = vmul.f32 %v1770, %v1328
  %v1772 = vmul.f32 %v1771, %v1770
  %v1773 = vmul.f32 0.5, %v1772
  %v1774 = vsub.f32 1.5, %v1773
  %v1775 = vmul.f32 %v1770, %v1774
  %vm1776 = vweird.f32 %v1328
  %vm1777 = vweird.f32 %v1770
  %vm1778 = vmor %vm1776, %vm1777
  %v1779 = vsel %vm1778, %v1770, %v1775
  %v1780 = vrsqrt.pop %v1329
  %v1781 = vmul.f32 %v1780, %v1329
  %v1782 = vmul.f32 %v1781, %v1780
  %v1783 = vmul.f32 0.5, %v1782
  %v1784 = vsub.f32 1.5, %v1783
  %v1785 = vmul.f32 %v1780, %v1784
  %vm1786 = vweird.f32 %v1329
  %vm1787 = vweird.f32 %v1780
  %vm1788 = vmor %vm1786, %vm1787
  %v1789 = vsel %vm1788, %v1780, %v1785
  %v1790 = vrsqrt.pop %v1330
  %v1791 = vmul.f32 %v1790, %v1330
  %v1792 = vmul.f32 %v1791, %v1790
  %v1793 = vmul.f32 0.5, %v1792
  %v1794 = vsub.f32 1.5, %v1793
  %v1795 = vmul.f32 %v1790, %v1794
  %vm1796 = vweird.f32 %v1330
  %vm1797 = vweird.f32 %v1790
  %vm1798 = vmor %vm1796, %vm1797
  %v1799 = vsel %vm1798, %v1790, %v1795
  %v1800 = vrsqrt.pop %v1331
  %v1801 = vmul.f32 %v1800, %v1331
  %v1802 = vmul.f32 %v1801, %v1800
  %v1803 = vmul.f32 0.5, %v1802
  %v1804 = vsub.f32 1.5, %v1803
  %v1805 = vmul.f32 %v1800, %v1804
  %vm1806 = vweird.f32 %v1331
  %vm1807 = vweird.f32 %v1800
  %vm1808 = vmor %vm1806, %vm1807
  %v1809 = vsel %vm1808, %v1800, %v1805
  %v1810 = vrsqrt.pop %v1332
  %v1811 = vmul.f32 %v1810, %v1332
  %v1812 = vmul.f32 %v1811, %v1810
  %v1813 = vmul.f32 0.5, %v1812
  %v1814 = vsub.f32 1.5, %v1813
  %v1815 = vmul.f32 %v1810, %v1814
  %vm1816 = vweird.f32 %v1332
  %vm1817 = vweird.f32 %v1810
  %vm1818 = vmor %vm1816, %vm1817
  %v1819 = vsel %vm1818, %v1810, %v1815
  %v1820 = vrsqrt.pop %v1333
  %v1821 = vmul.f32 %v1820, %v1333
  %v1822 = vmul.f32 %v1821, %v1820
  %v1823 = vmul.f32 0.5, %v1822
  %v1824 = vsub.f32 1.5, %v1823
  %v1825 = vmul.f32 %v1820, %v1824
  %vm1826 = vweird.f32 %v1333
  %vm1827 = vweird.f32 %v1820
  %vm1828 = vmor %vm1826, %vm1827
  %v1829 = vsel %vm1828, %v1820, %v1825
  %v1830 = vrsqrt.pop %v1334
  %v1831 = vmul.f32 %v1830, %v1334
  %v1832 = vmul.f32 %v1831, %v1830
  %v1833 = vmul.f32 0.5, %v1832
  %v1834 = vsub.f32 1.5, %v1833
  %v1835 = vmul.f32 %v1830, %v1834
  %vm1836 = vweird.f32 %v1334
  %vm1837 = vweird.f32 %v1830
  %vm1838 = vmor %vm1836, %vm1837
  %v1839 = vsel %vm1838, %v1830, %v1835
  %v1840 = vrsqrt.pop %v1335
  %v1841 = vmul.f32 %v1840, %v1335
  %v1842 = vmul.f32 %v1841, %v1840
  %v1843 = vmul.f32 0.5, %v1842
  %v1844 = vsub.f32 1.5, %v1843
  %v1845 = vmul.f32 %v1840, %v1844
  %vm1846 = vweird.f32 %v1335
  %vm1847 = vweird.f32 %v1840
  %vm1848 = vmor %vm1846, %vm1847
  %v1849 = vsel %vm1848, %v1840, %v1845
  %v1850 = vrsqrt.pop %v1336
  %v1851 = vmul.f32 %v1850, %v1336
  %v1852 = vmul.f32 %v1851, %v1850
  %v1853 = vmul.f32 0.5, %v1852
  %v1854 = vsub.f32 1.5, %v1853
  %v1855 = vmul.f32 %v1850, %v1854
  %vm1856 = vweird.f32 %v1336
  %vm1857 = vweird.f32 %v1850
  %vm1858 = vmor %vm1856, %vm1857
  %v1859 = vsel %vm1858, %v1850, %v1855
  %v1860 = vrsqrt.pop %v1337
  %v1861 = vmul.f32 %v1860, %v1337
  %v1862 = vmul.f32 %v1861, %v1860
  %v1863 = vmul.f32 0.5, %v1862
  %v1864 = vsub.f32 1.5, %v1863
  %v1865 = vmul.f32 %v1860, %v1864
  %vm1866 = vweird.f32 %v1337
  %vm1867 = vweird.f32 %v1860
  %vm1868 = vmor %vm1866, %vm1867
  %v1869 = vsel %vm1868, %v1860, %v1865
  %v1870 = vrsqrt.pop %v1338
  %v1871 = vmul.f32 %v1870, %v1338
  %v1872 = vmul.f32 %v1871, %v1870
  %v1873 = vmul.f32 0.5, %v1872
  %v1874 = vsub.f32 1.5, %v1873
  %v1875 = vmul.f32 %v1870, %v1874
  %vm1876 = vweird.f32 %v1338
  %vm1877 = vweird.f32 %v1870
  %vm1878 = vmor %vm1876, %vm1877
  %v1879 = vsel %vm1878, %v1870, %v1875
  %v1880 = vrsqrt.pop %v1339
  %v1881 = vmul.f32 %v1880, %v1339
  %v1882 = vmul.f32 %v1881, %v1880
  %v1883 = vmul.f32 0.5, %v1882
  %v1884 = vsub.f32 1.5, %v1883
  %v1885 = vmul.f32 %v1880, %v1884
  %vm1886 = vweird.f32 %v1339
  %vm1887 = vweird.f32 %v1880
  %vm1888 = vmor %vm1886, %vm1887
  %v1889 = vsel %vm1888, %v1880, %v1885
  %v1890 = vrsqrt.pop %v1340
  %v1891 = vmul.f32 %v1890, %v1340
  %v1892 = vmul.f32 %v1891, %v1890
  %v1893 = vmul.f32 0.5, %v1892
  %v1894 = vsub.f32 1.5, %v1893
  %v1895 = vmul.f32 %v1890, %v1894
  %vm1896 = vweird.f32 %v1340
  %vm1897 = vweird.f32 %v1890
  %vm1898 = vmor %vm1896, %vm1897
  %v1899 = vsel %vm1898, %v1890, %v1895
  %v1900 = vrsqrt.pop %v1341
  %v1901 = vmul.f32 %v1900, %v1341
  %v1902 = vmul.f32 %v1901, %v1900
  %v1903 = vmul.f32 0.5, %v1902
  %v1904 = vsub.f32 1.5, %v1903
  %v1905 = vmul.f32 %v1900, %v1904
  %vm1906 = vweird.f32 %v1341
  %vm1907 = vweird.f32 %v1900
  %vm1908 = vmor %vm1906, %vm1907
  %v1909 = vsel %vm1908, %v1900, %v1905
  %v1910 = vrsqrt.pop %v1342
  %v1911 = vmul.f32 %v1910, %v1342
  %v1912 = vmul.f32 %v1911, %v1910
  %v1913 = vmul.f32 0.5, %v1912
  %v1914 = vsub.f32 1.5, %v1913
  %v1915 = vmul.f32 %v1910, %v1914
  %vm1916 = vweird.f32 %v1342
  %vm1917 = vweird.f32 %v1910
  %vm1918 = vmor %vm1916, %vm1917
  %v1919 = vsel %vm1918, %v1910, %v1915
  %v1920 = vrsqrt.pop %v1343
  %v1921 = vmul.f32 %v1920, %v1343
  %v1922 = vmul.f32 %v1921, %v1920
  %v1923 = vmul.f32 0.5, %v1922
  %v1924 = vsub.f32 1.5, %v1923
  %v1925 = vmul.f32 %v1920, %v1924
  %vm1926 = vweird.f32 %v1343
  %vm1927 = vweird.f32 %v1920
  %vm1928 = vmor %vm1926, %vm1927
  %v1929 = vsel %vm1928, %v1920, %v1925
  %v1930 = vrsqrt.pop %v1344
  %v1931 = vmul.f32 %v1930, %v1344
  %v1932 = vmul.f32 %v1931, %v1930
  %v1933 = vmul.f32 0.5, %v1932
  %v1934 = vsub.f32 1.5, %v1933
  %v1935 = vmul.f32 %v1930, %v1934
  %vm1936 = vweird.f32 %v1344
  %vm1937 = vweird.f32 %v1930
  %vm1938 = vmor %vm1936, %vm1937
  %v1939 = vsel %vm1938, %v1930, %v1935
  %v1940 = vrsqrt.pop %v1345
  %v1941 = vmul.f32 %v1940, %v1345
  %v1942 = vmul.f32 %v1941, %v1940
  %v1943 = vmul.f32 0.5, %v1942
  %v1944 = vsub.f32 1.5, %v1943
  %v1945 = vmul.f32 %v1940, %v1944
  %vm1946 = vweird.f32 %v1345
  %vm1947 = vweird.f32 %v1940
  %vm1948 = vmor %vm1946, %vm1947
  %v1949 = vsel %vm1948, %v1940, %v1945
  %v1950 = vrsqrt.pop %v1346
  %v1951 = vmul.f32 %v1950, %v1346
  %v1952 = vmul.f32 %v1951, %v1950
  %v1953 = vmul.f32 0.5, %v1952
  %v1954 = vsub.f32 1.5, %v1953
  %v1955 = vmul.f32 %v1950, %v1954
  %vm1956 = vweird.f32 %v1346
  %vm1957 = vweird.f32 %v1950
  %vm1958 = vmor %vm1956, %vm1957
  %v1959 = vsel %vm1958, %v1950, %v1955
  %v1960 = vrsqrt.pop %v1347
  %v1961 = vmul.f32 %v1960, %v1347
  %v1962 = vmul.f32 %v1961, %v1960
  %v1963 = vmul.f32 0.5, %v1962
  %v1964 = vsub.f32 1.5, %v1963
  %v1965 = vmul.f32 %v1960, %v1964
  %vm1966 = vweird.f32 %v1347
  %vm1967 = vweird.f32 %v1960
  %vm1968 = vmor %vm1966, %vm1967
  %v1969 = vsel %vm1968, %v1960, %v1965
  %v1970 = vrsqrt.pop %v1348
  %v1971 = vmul.f32 %v1970, %v1348
  %v1972 = vmul.f32 %v1971, %v1970
  %v1973 = vmul.f32 0.5, %v1972
  %v1974 = vsub.f32 1.5, %v1973
  %v1975 = vmul.f32 %v1970, %v1974
  %vm1976 = vweird.f32 %v1348
  %vm1977 = vweird.f32 %v1970
  %vm1978 = vmor %vm1976, %vm1977
  %v1979 = vsel %vm1978, %v1970, %v1975
  %v1980 = vrsqrt.pop %v1349
  %v1981 = vmul.f32 %v1980, %v1349
  %v1982 = vmul.f32 %v1981, %v1980
  %v1983 = vmul.f32 0.5, %v1982
  %v1984 = vsub.f32 1.5, %v1983
  %v1985 = vmul.f32 %v1980, %v1984
  %vm1986 = vweird.f32 %v1349
  %vm1987 = vweird.f32 %v1980
  %vm1988 = vmor %vm1986, %vm1987
  %v1989 = vsel %vm1988, %v1980, %v1985
  %v1990 = vmul.f32 %v902, %v1359
  %v1991 = vmul.f32 %v903, %v1369
  %v1992 = vmul.f32 %v904, %v1379
  %v1993 = vmul.f32 %v905, %v1389
  %v1994 = vmul.f32 %v906, %v1399
  %v1995 = vmul.f32 %v907, %v1409
  %v1996 = vmul.f32 %v908, %v1419
  %v1997 = vmul.f32 %v909, %v1429
  %v1998 = vmul.f32 %v910, %v1439
  %v1999 = vmul.f32 %v911, %v1449
  %v2000 = vmul.f32 %v912, %v1459
  %v2001 = vmul.f32 %v913, %v1469
  %v2002 = vmul.f32 %v914, %v1479
  %v2003 = vmul.f32 %v915, %v1489
  %v2004 = vmul.f32 %v916, %v1499
  %v2005 = vmul.f32 %v917, %v1509
  %v2006 = vmul.f32 %v918, %v1519
  %v2007 = vmul.f32 %v919, %v1529
  %v2008 = vmul.f32 %v920, %v1539
  %v2009 = vmul.f32 %v921, %v1549
  %v2010 = vmul.f32 %v922, %v1559
  %v2011 = vmul.f32 %v923, %v1569
  %v2012 = vmul.f32 %v924, %v1579
  %v2013 = vmul.f32 %v925, %v1589
  %v2014 = vmul.f32 %v926, %v1599
  %v2015 = vmul.f32 %v927, %v1609
  %v2016 = vmul.f32 %v928, %v1619
  %v2017 = vmul.f32 %v929, %v1629
  %v2018 = vmul.f32 %v930, %v1639
  %v2019 = vmul.f32 %v931, %v1649
  %v2020 = vmul.f32 %v932, %v1659
  %v2021 = vmul.f32 %v933, %v1669
  %v2022 = vmul.f32 %v934, %v1679
  %v2023 = vmul.f32 %v935, %v1689
  %v2024 = vmul.f32 %v936, %v1699
  %v2025 = vmul.f32 %v937, %v1709
  %v2026 = vmul.f32 %v938, %v1719
  %v2027 = vmul.f32 %v939, %v1729
  %v2028 = vmul.f32 %v940, %v1739
  %v2029 = vmul.f32 %v941, %v1749
  %v2030 = vmul.f32 %v942, %v1759
  %v2031 = vmul.f32 %v943, %v1769
  %v2032 = vmul.f32 %v944, %v1779
  %v2033 = vmul.f32 %v945, %v1789
  %v2034 = vmul.f32 %v946, %v1799
  %v2035 = vmul.f32 %v947, %v1809
  %v2036 = vmul.f32 %v948, %v1819
  %v2037 = vmul.f32 %v949, %v1829
  %v2038 = vmul.f32 %v950, %v1839
  %v2039 = vmul.f32 %v951, %v1849
  %v2040 = vmul.f32 %v952, %v1859
  %v2041 = vmul.f32 %v953, %v1869
  %v2042 = vmul.f32 %v954, %v1879
  %v2043 = vmul.f32 %v955, %v1889
  %v2044 = vmul.f32 %v956, %v1899
  %v2045 = vmul.f32 %v957, %v1909
  %v2046 = vmul.f32 %v958, %v1919
  %v2047 = vmul.f32 %v959, %v1929
  %v2048 = vmul.f32 %v960, %v1939
  %v2049 = vmul.f32 %v961, %v1949
  %v2050 = vmul.f32 %v962, %v1959
  %v2051 = vmul.f32 %v963, %v1969
  %v2052 = vmul.f32 %v964, %v1979
  %v2053 = vmul.f32 %v965, %v1989
  %v2055 = vperm.slane %v637, 0
  %v2057 = vmul.f32 %v1990, %v2055
  %v2058 = vmul.f32 %v1991, %v2055
  %v2059 = vmul.f32 %v1992, %v2055
  %v2060 = vmul.f32 %v1993, %v2055
  %v2061 = vmul.f32 %v1994, %v2055
  %v2062 = vmul.f32 %v1995, %v2055
  %v2063 = vmul.f32 %v1996, %v2055
  %v2064 = vmul.f32 %v1997, %v2055
  %v2065 = vmul.f32 %v1998, %v2055
  %v2066 = vmul.f32 %v1999, %v2055
  %v2067 = vmul.f32 %v2000, %v2055
  %v2068 = vmul.f32 %v2001, %v2055
  %v2069 = vmul.f32 %v2002, %v2055
  %v2070 = vmul.f32 %v2003, %v2055
  %v2071 = vmul.f32 %v2004, %v2055
  %v2072 = vmul.f32 %v2005, %v2055
  %v2073 = vmul.f32 %v2006, %v2055
  %v2074 = vmul.f32 %v2007, %v2055
  %v2075 = vmul.f32 %v2008, %v2055
  %v2076 = vmul.f32 %v2009, %v2055
  %v2077 = vmul.f32 %v2010, %v2055
  %v2078 = vmul.f32 %v2011, %v2055
  %v2079 = vmul.f32 %v2012, %v2055
  %v2080 = vmul.f32 %v2013, %v2055
  %v2081 = vmul.f32 %v2014, %v2055
  %v2082 = vmul.f32 %v2015, %v2055
  %v2083 = vmul.f32 %v2016, %v2055
  %v2084 = vmul.f32 %v2017, %v2055
  %v2085 = vmul.f32 %v2018, %v2055
  %v2086 = vmul.f32 %v2019, %v2055
  %v2087 = vmul.f32 %v2020, %v2055
  %v2088 = vmul.f32 %v2021, %v2055
  %v2089 = vmul.f32 %v2022, %v2055
  %v2090 = vmul.f32 %v2023, %v2055
  %v2091 = vmul.f32 %v2024, %v2055
  %v2092 = vmul.f32 %v2025, %v2055
  %v2093 = vmul.f32 %v2026, %v2055
  %v2094 = vmul.f32 %v2027, %v2055
  %v2095 = vmul.f32 %v2028, %v2055
  %v2096 = vmul.f32 %v2029, %v2055
  %v2097 = vmul.f32 %v2030, %v2055
  %v2098 = vmul.f32 %v2031, %v2055
  %v2099 = vmul.f32 %v2032, %v2055
  %v2100 = vmul.f32 %v2033, %v2055
  %v2101 = vmul.f32 %v2034, %v2055
  %v2102 = vmul.f32 %v2035, %v2055
  %v2103 = vmul.f32 %v2036, %v2055
  %v2104 = vmul.f32 %v2037, %v2055
  %v2105 = vmul.f32 %v2038, %v2055
  %v2106 = vmul.f32 %v2039, %v2055
  %v2107 = vmul.f32 %v2040, %v2055
  %v2108 = vmul.f32 %v2041, %v2055
  %v2109 = vmul.f32 %v2042, %v2055
  %v2110 = vmul.f32 %v2043, %v2055
  %v2111 = vmul.f32 %v2044, %v2055
  %v2112 = vmul.f32 %v2045, %v2055
  %v2113 = vmul.f32 %v2046, %v2055
  %v2114 = vmul.f32 %v2047, %v2055
  %v2115 = vmul.f32 %v2048, %v2055
  %v2116 = vmul.f32 %v2049, %v2055
  %v2117 = vmul.f32 %v2050, %v2055
  %v2118 = vmul.f32 %v2051, %v2055
  %v2119 = vmul.f32 %v2052, %v2055
  %v2120 = vmul.f32 %v2053, %v2055
  %v2122 = vperm.slane %v638, 0
  %v2124 = vadd.f32 %v2057, %v2122
  %v2125 = vadd.f32 %v2058, %v2122
  %v2126 = vadd.f32 %v2059, %v2122
  %v2127 = vadd.f32 %v2060, %v2122
  %v2128 = vadd.f32 %v2061, %v2122
  %v2129 = vadd.f32 %v2062, %v2122
  %v2130 = vadd.f32 %v2063, %v2122
  %v2131 = vadd.f32 %v2064, %v2122
  %v2132 = vadd.f32 %v2065, %v2122
  %v2133 = vadd.f32 %v2066, %v2122
  %v2134 = vadd.f32 %v2067, %v2122
  %v2135 = vadd.f32 %v2068, %v2122
  %v2136 = vadd.f32 %v2069, %v2122
  %v2137 = vadd.f32 %v2070, %v2122
  %v2138 = vadd.f32 %v2071, %v2122
  %v2139 = vadd.f32 %v2072, %v2122
  %v2140 = vadd.f32 %v2073, %v2122
  %v2141 = vadd.f32 %v2074, %v2122
  %v2142 = vadd.f32 %v2075, %v2122
  %v2143 = vadd.f32 %v2076, %v2122
  %v2144 = vadd.f32 %v2077, %v2122
  %v2145 = vadd.f32 %v2078, %v2122
  %v2146 = vadd.f32 %v2079, %v2122
  %v2147 = vadd.f32 %v2080, %v2122
  %v2148 = vadd.f32 %v2081, %v2122
  %v2149 = vadd.f32 %v2082, %v2122
  %v2150 = vadd.f32 %v2083, %v2122
  %v2151 = vadd.f32 %v2084, %v2122
  %v2152 = vadd.f32 %v2085, %v2122
  %v2153 = vadd.f32 %v2086, %v2122
  %v2154 = vadd.f32 %v2087, %v2122
  %v2155 = vadd.f32 %v2088, %v2122
  %v2156 = vadd.f32 %v2089, %v2122
  %v2157 = vadd.f32 %v2090, %v2122
  %v2158 = vadd.f32 %v2091, %v2122
  %v2159 = vadd.f32 %v2092, %v2122
  %v2160 = vadd.f32 %v2093, %v2122
  %v2161 = vadd.f32 %v2094, %v2122
  %v2162 = vadd.f32 %v2095, %v2122
  %v2163 = vadd.f32 %v2096, %v2122
  %v2164 = vadd.f32 %v2097, %v2122
  %v2165 = vadd.f32 %v2098, %v2122
  %v2166 = vadd.f32 %v2099, %v2122
  %v2167 = vadd.f32 %v2100, %v2122
  %v2168 = vadd.f32 %v2101, %v2122
  %v2169 = vadd.f32 %v2102, %v2122
  %v2170 = vadd.f32 %v2103, %v2122
  %v2171 = vadd.f32 %v2104, %v2122
  %v2172 = vadd.f32 %v2105, %v2122
  %v2173 = vadd.f32 %v2106, %v2122
  %v2174 = vadd.f32 %v2107, %v2122
  %v2175 = vadd.f32 %v2108, %v2122
  %v2176 = vadd.f32 %v2109, %v2122
  %v2177 = vadd.f32 %v2110, %v2122
  %v2178 = vadd.f32 %v2111, %v2122
  %v2179 = vadd.f32 %v2112, %v2122
  %v2180 = vadd.f32 %v2113, %v2122
  %v2181 = vadd.f32 %v2114, %v2122
  %v2182 = vadd.f32 %v2115, %v2122
  %v2183 = vadd.f32 %v2116, %v2122
  %v2184 = vadd.f32 %v2117, %v2122
  %v2185 = vadd.f32 %v2118, %v2122
  %v2186 = vadd.f32 %v2119, %v2122
  %v2187 = vadd.f32 %v2120, %v2122
  %v2188 = vld [vmem:[%s6] sm:$0xff]
  %v2189 = vld [vmem:[%s6 + $0x8] sm:$0xff]
  %v2190 = vld [vmem:[%s6 + $0x10] sm:$0xff]
  %v2191 = vld [vmem:[%s6 + $0x18] sm:$0xff]
  %v2192 = vld [vmem:[%s7] sm:$0x1]
  %v2194 = vperm.slane %v2192, 0
  %v2197 = vsel %vm107, %v2124, 0
  %v2200 = vsel %vm107, %v2125, 0
  %v2203 = vsel %vm107, %v2126, 0
  %v2206 = vsel %vm107, %v2127, 0
  %v2209 = vsel %vm107, %v2128, 0
  %v2212 = vsel %vm107, %v2129, 0
  %v2215 = vsel %vm107, %v2130, 0
  %v2218 = vsel %vm107, %v2131, 0
  %v2221 = vsel %vm107, %v2132, 0
  %v2224 = vsel %vm107, %v2133, 0
  %v2227 = vsel %vm107, %v2134, 0
  %v2230 = vsel %vm107, %v2135, 0
  %v2233 = vsel %vm107, %v2136, 0
  %v2236 = vsel %vm107, %v2137, 0
  %v2239 = vsel %vm107, %v2138, 0
  %v2242 = vsel %vm107, %v2139, 0
  %v2245 = vsel %vm107, %v2140, 0
  %v2248 = vsel %vm107, %v2141, 0
  %v2251 = vsel %vm107, %v2142, 0
  %v2254 = vsel %vm107, %v2143, 0
  %v2257 = vsel %vm107, %v2144, 0
  %v2260 = vsel %vm107, %v2145, 0
  %v2263 = vsel %vm107, %v2146, 0
  %v2266 = vsel %vm107, %v2147, 0
  %v2269 = vsel %vm107, %v2148, 0
  %v2272 = vsel %vm107, %v2149, 0
  %v2275 = vsel %vm107, %v2150, 0
  %v2278 = vsel %vm107, %v2151, 0
  %v2281 = vsel %vm107, %v2152, 0
  %v2284 = vsel %vm107, %v2153, 0
  %v2287 = vsel %vm107, %v2154, 0
  %v2290 = vsel %vm107, %v2155, 0
  %v2293 = vsel %vm107, %v2156, 0
  %v2296 = vsel %vm107, %v2157, 0
  %v2299 = vsel %vm107, %v2158, 0
  %v2302 = vsel %vm107, %v2159, 0
  %v2305 = vsel %vm107, %v2160, 0
  %v2308 = vsel %vm107, %v2161, 0
  %v2311 = vsel %vm107, %v2162, 0
  %v2314 = vsel %vm107, %v2163, 0
  %v2317 = vsel %vm107, %v2164, 0
  %v2320 = vsel %vm107, %v2165, 0
  %v2323 = vsel %vm107, %v2166, 0
  %v2326 = vsel %vm107, %v2167, 0
  %v2329 = vsel %vm107, %v2168, 0
  %v2332 = vsel %vm107, %v2169, 0
  %v2335 = vsel %vm107, %v2170, 0
  %v2338 = vsel %vm107, %v2171, 0
  %v2341 = vsel %vm107, %v2172, 0
  %v2344 = vsel %vm107, %v2173, 0
  %v2347 = vsel %vm107, %v2174, 0
  %v2350 = vsel %vm107, %v2175, 0
  %v2353 = vsel %vm107, %v2176, 0
  %v2356 = vsel %vm107, %v2177, 0
  %v2359 = vsel %vm107, %v2178, 0
  %v2362 = vsel %vm107, %v2179, 0
  %v2365 = vsel %vm107, %v2180, 0
  %v2368 = vsel %vm107, %v2181, 0
  %v2371 = vsel %vm107, %v2182, 0
  %v2374 = vsel %vm107, %v2183, 0
  %v2377 = vsel %vm107, %v2184, 0
  %v2380 = vsel %vm107, %v2185, 0
  %v2383 = vsel %vm107, %v2186, 0
  %v2386 = vsel %vm107, %v2187, 0
  %2388 = vmatpush.msra.mxu0 0.0
  %2389 = vmatpush.msra.mxu0 0.0
  %2390 = vmatpush.msra.mxu0 0.0
  %2391 = vmatpush.msra.mxu0 0.0
  %2392 = vmatpush.msra.mxu0 0.0
  %2393 = vmatpush.msra.mxu0 0.0
  %2394 = vmatpush.msra.mxu0 0.0
  %2395 = vmatpush.msra.mxu0 0.0
  %2396 = vmatpush.msra.mxu0 0.0
  %2397 = vmatpush.msra.mxu0 0.0
  %2398 = vmatpush.msra.mxu0 0.0
  %2399 = vmatpush.msra.mxu0 0.0
  %2400 = vmatpush.msra.mxu0 %v2191
  %2401 = vmatpush.msra.mxu0 %v2190
  %2402 = vmatpush.msra.mxu0 %v2189
  %2403 = vmatpush.msra.mxu0 %v2188
  %2404 = vmatmul.f32.gmra.mxu0 %v2197
  %v2405 = vpop.f32.mrf.mxu0
  %v2406 = vadd.f32 %v2194, %v2405
  %2407 = vmatmul.f32.gmra.mxu0 %v2200
  %v2408 = vpop.f32.mrf.mxu0
  %v2409 = vadd.f32 %v2194, %v2408
  %2410 = vmatmul.f32.gmra.mxu0 %v2203
  %v2411 = vpop.f32.mrf.mxu0
  %v2412 = vadd.f32 %v2194, %v2411
  %2413 = vmatmul.f32.gmra.mxu0 %v2206
  %v2414 = vpop.f32.mrf.mxu0
  %v2415 = vadd.f32 %v2194, %v2414
  %2416 = vmatmul.f32.gmra.mxu0 %v2209
  %v2417 = vpop.f32.mrf.mxu0
  %v2418 = vadd.f32 %v2194, %v2417
  %2419 = vmatmul.f32.gmra.mxu0 %v2212
  %v2420 = vpop.f32.mrf.mxu0
  %v2421 = vadd.f32 %v2194, %v2420
  %2422 = vmatmul.f32.gmra.mxu0 %v2215
  %v2423 = vpop.f32.mrf.mxu0
  %v2424 = vadd.f32 %v2194, %v2423
  %2425 = vmatmul.f32.gmra.mxu0 %v2218
  %v2426 = vpop.f32.mrf.mxu0
  %v2427 = vadd.f32 %v2194, %v2426
  %2428 = vmatmul.f32.gmra.mxu0 %v2221
  %v2429 = vpop.f32.mrf.mxu0
  %v2430 = vadd.f32 %v2194, %v2429
  %2431 = vmatmul.f32.gmra.mxu0 %v2224
  %v2432 = vpop.f32.mrf.mxu0
  %v2433 = vadd.f32 %v2194, %v2432
  %2434 = vmatmul.f32.gmra.mxu0 %v2227
  %v2435 = vpop.f32.mrf.mxu0
  %v2436 = vadd.f32 %v2194, %v2435
  %2437 = vmatmul.f32.gmra.mxu0 %v2230
  %v2438 = vpop.f32.mrf.mxu0
  %v2439 = vadd.f32 %v2194, %v2438
  %2440 = vmatmul.f32.gmra.mxu0 %v2233
  %v2441 = vpop.f32.mrf.mxu0
  %v2442 = vadd.f32 %v2194, %v2441
  %2443 = vmatmul.f32.gmra.mxu0 %v2236
  %v2444 = vpop.f32.mrf.mxu0
  %v2445 = vadd.f32 %v2194, %v2444
  %2446 = vmatmul.f32.gmra.mxu0 %v2239
  %v2447 = vpop.f32.mrf.mxu0
  %v2448 = vadd.f32 %v2194, %v2447
  %2449 = vmatmul.f32.gmra.mxu0 %v2242
  %v2450 = vpop.f32.mrf.mxu0
  %v2451 = vadd.f32 %v2194, %v2450
  %2452 = vmatmul.f32.gmra.mxu0 %v2245
  %v2453 = vpop.f32.mrf.mxu0
  %v2454 = vadd.f32 %v2194, %v2453
  %2455 = vmatmul.f32.gmra.mxu0 %v2248
  %v2456 = vpop.f32.mrf.mxu0
  %v2457 = vadd.f32 %v2194, %v2456
  %2458 = vmatmul.f32.gmra.mxu0 %v2251
  %v2459 = vpop.f32.mrf.mxu0
  %v2460 = vadd.f32 %v2194, %v2459
  %2461 = vmatmul.f32.gmra.mxu0 %v2254
  %v2462 = vpop.f32.mrf.mxu0
  %v2463 = vadd.f32 %v2194, %v2462
  %2464 = vmatmul.f32.gmra.mxu0 %v2257
  %v2465 = vpop.f32.mrf.mxu0
  %v2466 = vadd.f32 %v2194, %v2465
  %2467 = vmatmul.f32.gmra.mxu0 %v2260
  %v2468 = vpop.f32.mrf.mxu0
  %v2469 = vadd.f32 %v2194, %v2468
  %2470 = vmatmul.f32.gmra.mxu0 %v2263
  %v2471 = vpop.f32.mrf.mxu0
  %v2472 = vadd.f32 %v2194, %v2471
  %2473 = vmatmul.f32.gmra.mxu0 %v2266
  %v2474 = vpop.f32.mrf.mxu0
  %v2475 = vadd.f32 %v2194, %v2474
  %2476 = vmatmul.f32.gmra.mxu0 %v2269
  %v2477 = vpop.f32.mrf.mxu0
  %v2478 = vadd.f32 %v2194, %v2477
  %2479 = vmatmul.f32.gmra.mxu0 %v2272
  %v2480 = vpop.f32.mrf.mxu0
  %v2481 = vadd.f32 %v2194, %v2480
  %2482 = vmatmul.f32.gmra.mxu0 %v2275
  %v2483 = vpop.f32.mrf.mxu0
  %v2484 = vadd.f32 %v2194, %v2483
  %2485 = vmatmul.f32.gmra.mxu0 %v2278
  %v2486 = vpop.f32.mrf.mxu0
  %v2487 = vadd.f32 %v2194, %v2486
  %2488 = vmatmul.f32.gmra.mxu0 %v2281
  %v2489 = vpop.f32.mrf.mxu0
  %v2490 = vadd.f32 %v2194, %v2489
  %2491 = vmatmul.f32.gmra.mxu0 %v2284
  %v2492 = vpop.f32.mrf.mxu0
  %v2493 = vadd.f32 %v2194, %v2492
  %2494 = vmatmul.f32.gmra.mxu0 %v2287
  %v2495 = vpop.f32.mrf.mxu0
  %v2496 = vadd.f32 %v2194, %v2495
  %2497 = vmatmul.f32.gmra.mxu0 %v2290
  %v2498 = vpop.f32.mrf.mxu0
  %v2499 = vadd.f32 %v2194, %v2498
  %2500 = vmatmul.f32.gmra.mxu0 %v2293
  %v2501 = vpop.f32.mrf.mxu0
  %v2502 = vadd.f32 %v2194, %v2501
  %2503 = vmatmul.f32.gmra.mxu0 %v2296
  %v2504 = vpop.f32.mrf.mxu0
  %v2505 = vadd.f32 %v2194, %v2504
  %2506 = vmatmul.f32.gmra.mxu0 %v2299
  %v2507 = vpop.f32.mrf.mxu0
  %v2508 = vadd.f32 %v2194, %v2507
  %2509 = vmatmul.f32.gmra.mxu0 %v2302
  %v2510 = vpop.f32.mrf.mxu0
  %v2511 = vadd.f32 %v2194, %v2510
  %2512 = vmatmul.f32.gmra.mxu0 %v2305
  %v2513 = vpop.f32.mrf.mxu0
  %v2514 = vadd.f32 %v2194, %v2513
  %2515 = vmatmul.f32.gmra.mxu0 %v2308
  %v2516 = vpop.f32.mrf.mxu0
  %v2517 = vadd.f32 %v2194, %v2516
  %2518 = vmatmul.f32.gmra.mxu0 %v2311
  %v2519 = vpop.f32.mrf.mxu0
  %v2520 = vadd.f32 %v2194, %v2519
  %2521 = vmatmul.f32.gmra.mxu0 %v2314
  %v2522 = vpop.f32.mrf.mxu0
  %v2523 = vadd.f32 %v2194, %v2522
  %2524 = vmatmul.f32.gmra.mxu0 %v2317
  %v2525 = vpop.f32.mrf.mxu0
  %v2526 = vadd.f32 %v2194, %v2525
  %2527 = vmatmul.f32.gmra.mxu0 %v2320
  %v2528 = vpop.f32.mrf.mxu0
  %v2529 = vadd.f32 %v2194, %v2528
  %2530 = vmatmul.f32.gmra.mxu0 %v2323
  %v2531 = vpop.f32.mrf.mxu0
  %v2532 = vadd.f32 %v2194, %v2531
  %2533 = vmatmul.f32.gmra.mxu0 %v2326
  %v2534 = vpop.f32.mrf.mxu0
  %v2535 = vadd.f32 %v2194, %v2534
  %2536 = vmatmul.f32.gmra.mxu0 %v2329
  %v2537 = vpop.f32.mrf.mxu0
  %v2538 = vadd.f32 %v2194, %v2537
  %2539 = vmatmul.f32.gmra.mxu0 %v2332
  %v2540 = vpop.f32.mrf.mxu0
  %v2541 = vadd.f32 %v2194, %v2540
  %2542 = vmatmul.f32.gmra.mxu0 %v2335
  %v2543 = vpop.f32.mrf.mxu0
  %v2544 = vadd.f32 %v2194, %v2543
  %2545 = vmatmul.f32.gmra.mxu0 %v2338
  %v2546 = vpop.f32.mrf.mxu0
  %v2547 = vadd.f32 %v2194, %v2546
  %2548 = vmatmul.f32.gmra.mxu0 %v2341
  %v2549 = vpop.f32.mrf.mxu0
  %v2550 = vadd.f32 %v2194, %v2549
  %2551 = vmatmul.f32.gmra.mxu0 %v2344
  %v2552 = vpop.f32.mrf.mxu0
  %v2553 = vadd.f32 %v2194, %v2552
  %2554 = vmatmul.f32.gmra.mxu0 %v2347
  %v2555 = vpop.f32.mrf.mxu0
  %v2556 = vadd.f32 %v2194, %v2555
  %2557 = vmatmul.f32.gmra.mxu0 %v2350
  %v2558 = vpop.f32.mrf.mxu0
  %v2559 = vadd.f32 %v2194, %v2558
  %2560 = vmatmul.f32.gmra.mxu0 %v2353
  %v2561 = vpop.f32.mrf.mxu0
  %v2562 = vadd.f32 %v2194, %v2561
  %2563 = vmatmul.f32.gmra.mxu0 %v2356
  %v2564 = vpop.f32.mrf.mxu0
  %v2565 = vadd.f32 %v2194, %v2564
  %2566 = vmatmul.f32.gmra.mxu0 %v2359
  %v2567 = vpop.f32.mrf.mxu0
  %v2568 = vadd.f32 %v2194, %v2567
  %2569 = vmatmul.f32.gmra.mxu0 %v2362
  %v2570 = vpop.f32.mrf.mxu0
  %v2571 = vadd.f32 %v2194, %v2570
  %2572 = vmatmul.f32.gmra.mxu0 %v2365
  %v2573 = vpop.f32.mrf.mxu0
  %v2574 = vadd.f32 %v2194, %v2573
  %2575 = vmatmul.f32.gmra.mxu0 %v2368
  %v2576 = vpop.f32.mrf.mxu0
  %v2577 = vadd.f32 %v2194, %v2576
  %2578 = vmatmul.f32.gmra.mxu0 %v2371
  %v2579 = vpop.f32.mrf.mxu0
  %v2580 = vadd.f32 %v2194, %v2579
  %2581 = vmatmul.f32.gmra.mxu0 %v2374
  %v2582 = vpop.f32.mrf.mxu0
  %v2583 = vadd.f32 %v2194, %v2582
  %2584 = vmatmul.f32.gmra.mxu0 %v2377
  %v2585 = vpop.f32.mrf.mxu0
  %v2586 = vadd.f32 %v2194, %v2585
  %2587 = vmatmul.f32.gmra.mxu0 %v2380
  %v2588 = vpop.f32.mrf.mxu0
  %v2589 = vadd.f32 %v2194, %v2588
  %2590 = vmatmul.f32.gmra.mxu0 %v2383
  %v2591 = vpop.f32.mrf.mxu0
  %v2592 = vadd.f32 %v2194, %v2591
  %2593 = vmatmul.f32.gmra.mxu0 %v2386
  %v2594 = vpop.f32.mrf.mxu0
  %v2595 = vadd.f32 %v2194, %v2594
  %2596 = vdwg.mxu0
  %v2597 = vmul.f32 %v2406, 0.5
  %v2598 = vmul.f32 %v2409, 0.5
  %v2599 = vmul.f32 %v2412, 0.5
  %v2600 = vmul.f32 %v2415, 0.5
  %v2601 = vmul.f32 %v2418, 0.5
  %v2602 = vmul.f32 %v2421, 0.5
  %v2603 = vmul.f32 %v2424, 0.5
  %v2604 = vmul.f32 %v2427, 0.5
  %v2605 = vmul.f32 %v2430, 0.5
  %v2606 = vmul.f32 %v2433, 0.5
  %v2607 = vmul.f32 %v2436, 0.5
  %v2608 = vmul.f32 %v2439, 0.5
  %v2609 = vmul.f32 %v2442, 0.5
  %v2610 = vmul.f32 %v2445, 0.5
  %v2611 = vmul.f32 %v2448, 0.5
  %v2612 = vmul.f32 %v2451, 0.5
  %v2613 = vmul.f32 %v2454, 0.5
  %v2614 = vmul.f32 %v2457, 0.5
  %v2615 = vmul.f32 %v2460, 0.5
  %v2616 = vmul.f32 %v2463, 0.5
  %v2617 = vmul.f32 %v2466, 0.5
  %v2618 = vmul.f32 %v2469, 0.5
  %v2619 = vmul.f32 %v2472, 0.5
  %v2620 = vmul.f32 %v2475, 0.5
  %v2621 = vmul.f32 %v2478, 0.5
  %v2622 = vmul.f32 %v2481, 0.5
  %v2623 = vmul.f32 %v2484, 0.5
  %v2624 = vmul.f32 %v2487, 0.5
  %v2625 = vmul.f32 %v2490, 0.5
  %v2626 = vmul.f32 %v2493, 0.5
  %v2627 = vmul.f32 %v2496, 0.5
  %v2628 = vmul.f32 %v2499, 0.5
  %v2629 = vmul.f32 %v2502, 0.5
  %v2630 = vmul.f32 %v2505, 0.5
  %v2631 = vmul.f32 %v2508, 0.5
  %v2632 = vmul.f32 %v2511, 0.5
  %v2633 = vmul.f32 %v2514, 0.5
  %v2634 = vmul.f32 %v2517, 0.5
  %v2635 = vmul.f32 %v2520, 0.5
  %v2636 = vmul.f32 %v2523, 0.5
  %v2637 = vmul.f32 %v2526, 0.5
  %v2638 = vmul.f32 %v2529, 0.5
  %v2639 = vmul.f32 %v2532, 0.5
  %v2640 = vmul.f32 %v2535, 0.5
  %v2641 = vmul.f32 %v2538, 0.5
  %v2642 = vmul.f32 %v2541, 0.5
  %v2643 = vmul.f32 %v2544, 0.5
  %v2644 = vmul.f32 %v2547, 0.5
  %v2645 = vmul.f32 %v2550, 0.5
  %v2646 = vmul.f32 %v2553, 0.5
  %v2647 = vmul.f32 %v2556, 0.5
  %v2648 = vmul.f32 %v2559, 0.5
  %v2649 = vmul.f32 %v2562, 0.5
  %v2650 = vmul.f32 %v2565, 0.5
  %v2651 = vmul.f32 %v2568, 0.5
  %v2652 = vmul.f32 %v2571, 0.5
  %v2653 = vmul.f32 %v2574, 0.5
  %v2654 = vmul.f32 %v2577, 0.5
  %v2655 = vmul.f32 %v2580, 0.5
  %v2656 = vmul.f32 %v2583, 0.5
  %v2657 = vmul.f32 %v2586, 0.5
  %v2658 = vmul.f32 %v2589, 0.5
  %v2659 = vmul.f32 %v2592, 0.5
  %v2660 = vmul.f32 %v2595, 0.5
  %v2661 = vmul.f32 %v2406, 0.044715
  %v2662 = vmul.f32 %v2409, 0.044715
  %v2663 = vmul.f32 %v2412, 0.044715
  %v2664 = vmul.f32 %v2415, 0.044715
  %v2665 = vmul.f32 %v2418, 0.044715
  %v2666 = vmul.f32 %v2421, 0.044715
  %v2667 = vmul.f32 %v2424, 0.044715
  %v2668 = vmul.f32 %v2427, 0.044715
  %v2669 = vmul.f32 %v2430, 0.044715
  %v2670 = vmul.f32 %v2433, 0.044715
  %v2671 = vmul.f32 %v2436, 0.044715
  %v2672 = vmul.f32 %v2439, 0.044715
  %v2673 = vmul.f32 %v2442, 0.044715
  %v2674 = vmul.f32 %v2445, 0.044715
  %v2675 = vmul.f32 %v2448, 0.044715
  %v2676 = vmul.f32 %v2451, 0.044715
  %v2677 = vmul.f32 %v2454, 0.044715
  %v2678 = vmul.f32 %v2457, 0.044715
  %v2679 = vmul.f32 %v2460, 0.044715
  %v2680 = vmul.f32 %v2463, 0.044715
  %v2681 = vmul.f32 %v2466, 0.044715
  %v2682 = vmul.f32 %v2469, 0.044715
  %v2683 = vmul.f32 %v2472, 0.044715
  %v2684 = vmul.f32 %v2475, 0.044715
  %v2685 = vmul.f32 %v2478, 0.044715
  %v2686 = vmul.f32 %v2481, 0.044715
  %v2687 = vmul.f32 %v2484, 0.044715
  %v2688 = vmul.f32 %v2487, 0.044715
  %v2689 = vmul.f32 %v2490, 0.044715
  %v2690 = vmul.f32 %v2493, 0.044715
  %v2691 = vmul.f32 %v2496, 0.044715
  %v2692 = vmul.f32 %v2499, 0.044715
  %v2693 = vmul.f32 %v2502, 0.044715
  %v2694 = vmul.f32 %v2505, 0.044715
  %v2695 = vmul.f32 %v2508, 0.044715
  %v2696 = vmul.f32 %v2511, 0.044715
  %v2697 = vmul.f32 %v2514, 0.044715
  %v2698 = vmul.f32 %v2517, 0.044715
  %v2699 = vmul.f32 %v2520, 0.044715
  %v2700 = vmul.f32 %v2523, 0.044715
  %v2701 = vmul.f32 %v2526, 0.044715
  %v2702 = vmul.f32 %v2529, 0.044715
  %v2703 = vmul.f32 %v2532, 0.044715
  %v2704 = vmul.f32 %v2535, 0.044715
  %v2705 = vmul.f32 %v2538, 0.044715
  %v2706 = vmul.f32 %v2541, 0.044715
  %v2707 = vmul.f32 %v2544, 0.044715
  %v2708 = vmul.f32 %v2547, 0.044715
  %v2709 = vmul.f32 %v2550, 0.044715
  %v2710 = vmul.f32 %v2553, 0.044715
  %v2711 = vmul.f32 %v2556, 0.044715
  %v2712 = vmul.f32 %v2559, 0.044715
  %v2713 = vmul.f32 %v2562, 0.044715
  %v2714 = vmul.f32 %v2565, 0.044715
  %v2715 = vmul.f32 %v2568, 0.044715
  %v2716 = vmul.f32 %v2571, 0.044715
  %v2717 = vmul.f32 %v2574, 0.044715
  %v2718 = vmul.f32 %v2577, 0.044715
  %v2719 = vmul.f32 %v2580, 0.044715
  %v2720 = vmul.f32 %v2583, 0.044715
  %v2721 = vmul.f32 %v2586, 0.044715
  %v2722 = vmul.f32 %v2589, 0.044715
  %v2723 = vmul.f32 %v2592, 0.044715
  %v2724 = vmul.f32 %v2595, 0.044715
  %v2725 = vmul.f32 %v2661, %v2406
  %v2726 = vmul.f32 %v2662, %v2409
  %v2727 = vmul.f32 %v2663, %v2412
  %v2728 = vmul.f32 %v2664, %v2415
  %v2729 = vmul.f32 %v2665, %v2418
  %v2730 = vmul.f32 %v2666, %v2421
  %v2731 = vmul.f32 %v2667, %v2424
  %v2732 = vmul.f32 %v2668, %v2427
  %v2733 = vmul.f32 %v2669, %v2430
  %v2734 = vmul.f32 %v2670, %v2433
  %v2735 = vmul.f32 %v2671, %v2436
  %v2736 = vmul.f32 %v2672, %v2439
  %v2737 = vmul.f32 %v2673, %v2442
  %v2738 = vmul.f32 %v2674, %v2445
  %v2739 = vmul.f32 %v2675, %v2448
  %v2740 = vmul.f32 %v2676, %v2451
  %v2741 = vmul.f32 %v2677, %v2454
  %v2742 = vmul.f32 %v2678, %v2457
  %v2743 = vmul.f32 %v2679, %v2460
  %v2744 = vmul.f32 %v2680, %v2463
  %v2745 = vmul.f32 %v2681, %v2466
  %v2746 = vmul.f32 %v2682, %v2469
  %v2747 = vmul.f32 %v2683, %v2472
  %v2748 = vmul.f32 %v2684, %v2475
  %v2749 = vmul.f32 %v2685, %v2478
  %v2750 = vmul.f32 %v2686, %v2481
  %v2751 = vmul.f32 %v2687, %v2484
  %v2752 = vmul.f32 %v2688, %v2487
  %v2753 = vmul.f32 %v2689, %v2490
  %v2754 = vmul.f32 %v2690, %v2493
  %v2755 = vmul.f32 %v2691, %v2496
  %v2756 = vmul.f32 %v2692, %v2499
  %v2757 = vmul.f32 %v2693, %v2502
  %v2758 = vmul.f32 %v2694, %v2505
  %v2759 = vmul.f32 %v2695, %v2508
  %v2760 = vmul.f32 %v2696, %v2511
  %v2761 = vmul.f32 %v2697, %v2514
  %v2762 = vmul.f32 %v2698, %v2517
  %v2763 = vmul.f32 %v2699, %v2520
  %v2764 = vmul.f32 %v2700, %v2523
  %v2765 = vmul.f32 %v2701, %v2526
  %v2766 = vmul.f32 %v2702, %v2529
  %v2767 = vmul.f32 %v2703, %v2532
  %v2768 = vmul.f32 %v2704, %v2535
  %v2769 = vmul.f32 %v2705, %v2538
  %v2770 = vmul.f32 %v2706, %v2541
  %v2771 = vmul.f32 %v2707, %v2544
  %v2772 = vmul.f32 %v2708, %v2547
  %v2773 = vmul.f32 %v2709, %v2550
  %v2774 = vmul.f32 %v2710, %v2553
  %v2775 = vmul.f32 %v2711, %v2556
  %v2776 = vmul.f32 %v2712, %v2559
  %v2777 = vmul.f32 %v2713, %v2562
  %v2778 = vmul.f32 %v2714, %v2565
  %v2779 = vmul.f32 %v2715, %v2568
  %v2780 = vmul.f32 %v2716, %v2571
  %v2781 = vmul.f32 %v2717, %v2574
  %v2782 = vmul.f32 %v2718, %v2577
  %v2783 = vmul.f32 %v2719, %v2580
  %v2784 = vmul.f32 %v2720, %v2583
  %v2785 = vmul.f32 %v2721, %v2586
  %v2786 = vmul.f32 %v2722, %v2589
  %v2787 = vmul.f32 %v2723, %v2592
  %v2788 = vmul.f32 %v2724, %v2595
  %v2789 = vmul.f32 %v2725, %v2406
  %v2790 = vmul.f32 %v2726, %v2409
  %v2791 = vmul.f32 %v2727, %v2412
  %v2792 = vmul.f32 %v2728, %v2415
  %v2793 = vmul.f32 %v2729, %v2418
  %v2794 = vmul.f32 %v2730, %v2421
  %v2795 = vmul.f32 %v2731, %v2424
  %v2796 = vmul.f32 %v2732, %v2427
  %v2797 = vmul.f32 %v2733, %v2430
  %v2798 = vmul.f32 %v2734, %v2433
  %v2799 = vmul.f32 %v2735, %v2436
  %v2800 = vmul.f32 %v2736, %v2439
  %v2801 = vmul.f32 %v2737, %v2442
  %v2802 = vmul.f32 %v2738, %v2445
  %v2803 = vmul.f32 %v2739, %v2448
  %v2804 = vmul.f32 %v2740, %v2451
  %v2805 = vmul.f32 %v2741, %v2454
  %v2806 = vmul.f32 %v2742, %v2457
  %v2807 = vmul.f32 %v2743, %v2460
  %v2808 = vmul.f32 %v2744, %v2463
  %v2809 = vmul.f32 %v2745, %v2466
  %v2810 = vmul.f32 %v2746, %v2469
  %v2811 = vmul.f32 %v2747, %v2472
  %v2812 = vmul.f32 %v2748, %v2475
  %v2813 = vmul.f32 %v2749, %v2478
  %v2814 = vmul.f32 %v2750, %v2481
  %v2815 = vmul.f32 %v2751, %v2484
  %v2816 = vmul.f32 %v2752, %v2487
  %v2817 = vmul.f32 %v2753, %v2490
  %v2818 = vmul.f32 %v2754, %v2493
  %v2819 = vmul.f32 %v2755, %v2496
  %v2820 = vmul.f32 %v2756, %v2499
  %v2821 = vmul.f32 %v2757, %v2502
  %v2822 = vmul.f32 %v2758, %v2505
  %v2823 = vmul.f32 %v2759, %v2508
  %v2824 = vmul.f32 %v2760, %v2511
  %v2825 = vmul.f32 %v2761, %v2514
  %v2826 = vmul.f32 %v2762, %v2517
  %v2827 = vmul.f32 %v2763, %v2520
  %v2828 = vmul.f32 %v2764, %v2523
  %v2829 = vmul.f32 %v2765, %v2526
  %v2830 = vmul.f32 %v2766, %v2529
  %v2831 = vmul.f32 %v2767, %v2532
  %v2832 = vmul.f32 %v2768, %v2535
  %v2833 = vmul.f32 %v2769, %v2538
  %v2834 = vmul.f32 %v2770, %v2541
  %v2835 = vmul.f32 %v2771, %v2544
  %v2836 = vmul.f32 %v2772, %v2547
  %v2837 = vmul.f32 %v2773, %v2550
  %v2838 = vmul.f32 %v2774, %v2553
  %v2839 = vmul.f32 %v2775, %v2556
  %v2840 = vmul.f32 %v2776, %v2559
  %v2841 = vmul.f32 %v2777, %v2562
  %v2842 = vmul.f32 %v2778, %v2565
  %v2843 = vmul.f32 %v2779, %v2568
  %v2844 = vmul.f32 %v2780, %v2571
  %v2845 = vmul.f32 %v2781, %v2574
  %v2846 = vmul.f32 %v2782, %v2577
  %v2847 = vmul.f32 %v2783, %v2580
  %v2848 = vmul.f32 %v2784, %v2583
  %v2849 = vmul.f32 %v2785, %v2586
  %v2850 = vmul.f32 %v2786, %v2589
  %v2851 = vmul.f32 %v2787, %v2592
  %v2852 = vmul.f32 %v2788, %v2595
  %v2853 = vadd.f32 %v2406, %v2789
  %v2854 = vadd.f32 %v2409, %v2790
  %v2855 = vadd.f32 %v2412, %v2791
  %v2856 = vadd.f32 %v2415, %v2792
  %v2857 = vadd.f32 %v2418, %v2793
  %v2858 = vadd.f32 %v2421, %v2794
  %v2859 = vadd.f32 %v2424, %v2795
  %v2860 = vadd.f32 %v2427, %v2796
  %v2861 = vadd.f32 %v2430, %v2797
  %v2862 = vadd.f32 %v2433, %v2798
  %v2863 = vadd.f32 %v2436, %v2799
  %v2864 = vadd.f32 %v2439, %v2800
  %v2865 = vadd.f32 %v2442, %v2801
  %v2866 = vadd.f32 %v2445, %v2802
  %v2867 = vadd.f32 %v2448, %v2803
  %v2868 = vadd.f32 %v2451, %v2804
  %v2869 = vadd.f32 %v2454, %v2805
  %v2870 = vadd.f32 %v2457, %v2806
  %v2871 = vadd.f32 %v2460, %v2807
  %v2872 = vadd.f32 %v2463, %v2808
  %v2873 = vadd.f32 %v2466, %v2809
  %v2874 = vadd.f32 %v2469, %v2810
  %v2875 = vadd.f32 %v2472, %v2811
  %v2876 = vadd.f32 %v2475, %v2812
  %v2877 = vadd.f32 %v2478, %v2813
  %v2878 = vadd.f32 %v2481, %v2814
  %v2879 = vadd.f32 %v2484, %v2815
  %v2880 = vadd.f32 %v2487, %v2816
  %v2881 = vadd.f32 %v2490, %v2817
  %v2882 = vadd.f32 %v2493, %v2818
  %v2883 = vadd.f32 %v2496, %v2819
  %v2884 = vadd.f32 %v2499, %v2820
  %v2885 = vadd.f32 %v2502, %v2821
  %v2886 = vadd.f32 %v2505, %v2822
  %v2887 = vadd.f32 %v2508, %v2823
  %v2888 = vadd.f32 %v2511, %v2824
  %v2889 = vadd.f32 %v2514, %v2825
  %v2890 = vadd.f32 %v2517, %v2826
  %v2891 = vadd.f32 %v2520, %v2827
  %v2892 = vadd.f32 %v2523, %v2828
  %v2893 = vadd.f32 %v2526, %v2829
  %v2894 = vadd.f32 %v2529, %v2830
  %v2895 = vadd.f32 %v2532, %v2831
  %v2896 = vadd.f32 %v2535, %v2832
  %v2897 = vadd.f32 %v2538, %v2833
  %v2898 = vadd.f32 %v2541, %v2834
  %v2899 = vadd.f32 %v2544, %v2835
  %v2900 = vadd.f32 %v2547, %v2836
  %v2901 = vadd.f32 %v2550, %v2837
  %v2902 = vadd.f32 %v2553, %v2838
  %v2903 = vadd.f32 %v2556, %v2839
  %v2904 = vadd.f32 %v2559, %v2840
  %v2905 = vadd.f32 %v2562, %v2841
  %v2906 = vadd.f32 %v2565, %v2842
  %v2907 = vadd.f32 %v2568, %v2843
  %v2908 = vadd.f32 %v2571, %v2844
  %v2909 = vadd.f32 %v2574, %v2845
  %v2910 = vadd.f32 %v2577, %v2846
  %v2911 = vadd.f32 %v2580, %v2847
  %v2912 = vadd.f32 %v2583, %v2848
  %v2913 = vadd.f32 %v2586, %v2849
  %v2914 = vadd.f32 %v2589, %v2850
  %v2915 = vadd.f32 %v2592, %v2851
  %v2916 = vadd.f32 %v2595, %v2852
  %v2917 = vmul.f32 %v2853, 0.7978846
  %v2918 = vmul.f32 %v2854, 0.7978846
  %v2919 = vmul.f32 %v2855, 0.7978846
  %v2920 = vmul.f32 %v2856, 0.7978846
  %v2921 = vmul.f32 %v2857, 0.7978846
  %v2922 = vmul.f32 %v2858, 0.7978846
  %v2923 = vmul.f32 %v2859, 0.7978846
  %v2924 = vmul.f32 %v2860, 0.7978846
  %v2925 = vmul.f32 %v2861, 0.7978846
  %v2926 = vmul.f32 %v2862, 0.7978846
  %v2927 = vmul.f32 %v2863, 0.7978846
  %v2928 = vmul.f32 %v2864, 0.7978846
  %v2929 = vmul.f32 %v2865, 0.7978846
  %v2930 = vmul.f32 %v2866, 0.7978846
  %v2931 = vmul.f32 %v2867, 0.7978846
  %v2932 = vmul.f32 %v2868, 0.7978846
  %v2933 = vmul.f32 %v2869, 0.7978846
  %v2934 = vmul.f32 %v2870, 0.7978846
  %v2935 = vmul.f32 %v2871, 0.7978846
  %v2936 = vmul.f32 %v2872, 0.7978846
  %v2937 = vmul.f32 %v2873, 0.7978846
  %v2938 = vmul.f32 %v2874, 0.7978846
  %v2939 = vmul.f32 %v2875, 0.7978846
  %v2940 = vmul.f32 %v2876, 0.7978846
  %v2941 = vmul.f32 %v2877, 0.7978846
  %v2942 = vmul.f32 %v2878, 0.7978846
  %v2943 = vmul.f32 %v2879, 0.7978846
  %v2944 = vmul.f32 %v2880, 0.7978846
  %v2945 = vmul.f32 %v2881, 0.7978846
  %v2946 = vmul.f32 %v2882, 0.7978846
  %v2947 = vmul.f32 %v2883, 0.7978846
  %v2948 = vmul.f32 %v2884, 0.7978846
  %v2949 = vmul.f32 %v2885, 0.7978846
  %v2950 = vmul.f32 %v2886, 0.7978846
  %v2951 = vmul.f32 %v2887, 0.7978846
  %v2952 = vmul.f32 %v2888, 0.7978846
  %v2953 = vmul.f32 %v2889, 0.7978846
  %v2954 = vmul.f32 %v2890, 0.7978846
  %v2955 = vmul.f32 %v2891, 0.7978846
  %v2956 = vmul.f32 %v2892, 0.7978846
  %v2957 = vmul.f32 %v2893, 0.7978846
  %v2958 = vmul.f32 %v2894, 0.7978846
  %v2959 = vmul.f32 %v2895, 0.7978846
  %v2960 = vmul.f32 %v2896, 0.7978846
  %v2961 = vmul.f32 %v2897, 0.7978846
  %v2962 = vmul.f32 %v2898, 0.7978846
  %v2963 = vmul.f32 %v2899, 0.7978846
  %v2964 = vmul.f32 %v2900, 0.7978846
  %v2965 = vmul.f32 %v2901, 0.7978846
  %v2966 = vmul.f32 %v2902, 0.7978846
  %v2967 = vmul.f32 %v2903, 0.7978846
  %v2968 = vmul.f32 %v2904, 0.7978846
  %v2969 = vmul.f32 %v2905, 0.7978846
  %v2970 = vmul.f32 %v2906, 0.7978846
  %v2971 = vmul.f32 %v2907, 0.7978846
  %v2972 = vmul.f32 %v2908, 0.7978846
  %v2973 = vmul.f32 %v2909, 0.7978846
  %v2974 = vmul.f32 %v2910, 0.7978846
  %v2975 = vmul.f32 %v2911, 0.7978846
  %v2976 = vmul.f32 %v2912, 0.7978846
  %v2977 = vmul.f32 %v2913, 0.7978846
  %v2978 = vmul.f32 %v2914, 0.7978846
  %v2979 = vmul.f32 %v2915, 0.7978846
  %v2980 = vmul.f32 %v2916, 0.7978846
  %v2981 = vtanh.pop %v2917
  %v2982 = vtanh.pop %v2918
  %v2983 = vtanh.pop %v2919
  %v2984 = vtanh.pop %v2920
  %v2985 = vtanh.pop %v2921
  %v2986 = vtanh.pop %v2922
  %v2987 = vtanh.pop %v2923
  %v2988 = vtanh.pop %v2924
  %v2989 = vtanh.pop %v2925
  %v2990 = vtanh.pop %v2926
  %v2991 = vtanh.pop %v2927
  %v2992 = vtanh.pop %v2928
  %v2993 = vtanh.pop %v2929
  %v2994 = vtanh.pop %v2930
  %v2995 = vtanh.pop %v2931
  %v2996 = vtanh.pop %v2932
  %v2997 = vtanh.pop %v2933
  %v2998 = vtanh.pop %v2934
  %v2999 = vtanh.pop %v2935
  %v3000 = vtanh.pop %v2936
  %v3001 = vtanh.pop %v2937
  %v3002 = vtanh.pop %v2938
  %v3003 = vtanh.pop %v2939
  %v3004 = vtanh.pop %v2940
  %v3005 = vtanh.pop %v2941
  %v3006 = vtanh.pop %v2942
  %v3007 = vtanh.pop %v2943
  %v3008 = vtanh.pop %v2944
  %v3009 = vtanh.pop %v2945
  %v3010 = vtanh.pop %v2946
  %v3011 = vtanh.pop %v2947
  %v3012 = vtanh.pop %v2948
  %v3013 = vtanh.pop %v2949
  %v3014 = vtanh.pop %v2950
  %v3015 = vtanh.pop %v2951
  %v3016 = vtanh.pop %v2952
  %v3017 = vtanh.pop %v2953
  %v3018 = vtanh.pop %v2954
  %v3019 = vtanh.pop %v2955
  %v3020 = vtanh.pop %v2956
  %v3021 = vtanh.pop %v2957
  %v3022 = vtanh.pop %v2958
  %v3023 = vtanh.pop %v2959
  %v3024 = vtanh.pop %v2960
  %v3025 = vtanh.pop %v2961
  %v3026 = vtanh.pop %v2962
  %v3027 = vtanh.pop %v2963
  %v3028 = vtanh.pop %v2964
  %v3029 = vtanh.pop %v2965
  %v3030 = vtanh.pop %v2966
  %v3031 = vtanh.pop %v2967
  %v3032 = vtanh.pop %v2968
  %v3033 = vtanh.pop %v2969
  %v3034 = vtanh.pop %v2970
  %v3035 = vtanh.pop %v2971
  %v3036 = vtanh.pop %v2972
  %v3037 = vtanh.pop %v2973
  %v3038 = vtanh.pop %v2974
  %v3039 = vtanh.pop %v2975
  %v3040 = vtanh.pop %v2976
  %v3041 = vtanh.pop %v2977
  %v3042 = vtanh.pop %v2978
  %v3043 = vtanh.pop %v2979
  %v3044 = vtanh.pop %v2980
  %v3045 = vadd.f32 %v2981, 1.0
  %v3046 = vadd.f32 %v2982, 1.0
  %v3047 = vadd.f32 %v2983, 1.0
  %v3048 = vadd.f32 %v2984, 1.0
  %v3049 = vadd.f32 %v2985, 1.0
  %v3050 = vadd.f32 %v2986, 1.0
  %v3051 = vadd.f32 %v2987, 1.0
  %v3052 = vadd.f32 %v2988, 1.0
  %v3053 = vadd.f32 %v2989, 1.0
  %v3054 = vadd.f32 %v2990, 1.0
  %v3055 = vadd.f32 %v2991, 1.0
  %v3056 = vadd.f32 %v2992, 1.0
  %v3057 = vadd.f32 %v2993, 1.0
  %v3058 = vadd.f32 %v2994, 1.0
  %v3059 = vadd.f32 %v2995, 1.0
  %v3060 = vadd.f32 %v2996, 1.0
  %v3061 = vadd.f32 %v2997, 1.0
  %v3062 = vadd.f32 %v2998, 1.0
  %v3063 = vadd.f32 %v2999, 1.0
  %v3064 = vadd.f32 %v3000, 1.0
  %v3065 = vadd.f32 %v3001, 1.0
  %v3066 = vadd.f32 %v3002, 1.0
  %v3067 = vadd.f32 %v3003, 1.0
  %v3068 = vadd.f32 %v3004, 1.0
  %v3069 = vadd.f32 %v3005, 1.0
  %v3070 = vadd.f32 %v3006, 1.0
  %v3071 = vadd.f32 %v3007, 1.0
  %v3072 = vadd.f32 %v3008, 1.0
  %v3073 = vadd.f32 %v3009, 1.0
  %v3074 = vadd.f32 %v3010, 1.0
  %v3075 = vadd.f32 %v3011, 1.0
  %v3076 = vadd.f32 %v3012, 1.0
  %v3077 = vadd.f32 %v3013, 1.0
  %v3078 = vadd.f32 %v3014, 1.0
  %v3079 = vadd.f32 %v3015, 1.0
  %v3080 = vadd.f32 %v3016, 1.0
  %v3081 = vadd.f32 %v3017, 1.0
  %v3082 = vadd.f32 %v3018, 1.0
  %v3083 = vadd.f32 %v3019, 1.0
  %v3084 = vadd.f32 %v3020, 1.0
  %v3085 = vadd.f32 %v3021, 1.0
  %v3086 = vadd.f32 %v3022, 1.0
  %v3087 = vadd.f32 %v3023, 1.0
  %v3088 = vadd.f32 %v3024, 1.0
  %v3089 = vadd.f32 %v3025, 1.0
  %v3090 = vadd.f32 %v3026, 1.0
  %v3091 = vadd.f32 %v3027, 1.0
  %v3092 = vadd.f32 %v3028, 1.0
  %v3093 = vadd.f32 %v3029, 1.0
  %v3094 = vadd.f32 %v3030, 1.0
  %v3095 = vadd.f32 %v3031, 1.0
  %v3096 = vadd.f32 %v3032, 1.0
  %v3097 = vadd.f32 %v3033, 1.0
  %v3098 = vadd.f32 %v3034, 1.0
  %v3099 = vadd.f32 %v3035, 1.0
  %v3100 = vadd.f32 %v3036, 1.0
  %v3101 = vadd.f32 %v3037, 1.0
  %v3102 = vadd.f32 %v3038, 1.0
  %v3103 = vadd.f32 %v3039, 1.0
  %v3104 = vadd.f32 %v3040, 1.0
  %v3105 = vadd.f32 %v3041, 1.0
  %v3106 = vadd.f32 %v3042, 1.0
  %v3107 = vadd.f32 %v3043, 1.0
  %v3108 = vadd.f32 %v3044, 1.0
  %v3109 = vmul.f32 %v2597, %v3045
  %v3110 = vmul.f32 %v2598, %v3046
  %v3111 = vmul.f32 %v2599, %v3047
  %v3112 = vmul.f32 %v2600, %v3048
  %v3113 = vmul.f32 %v2601, %v3049
  %v3114 = vmul.f32 %v2602, %v3050
  %v3115 = vmul.f32 %v2603, %v3051
  %v3116 = vmul.f32 %v2604, %v3052
  %v3117 = vmul.f32 %v2605, %v3053
  %v3118 = vmul.f32 %v2606, %v3054
  %v3119 = vmul.f32 %v2607, %v3055
  %v3120 = vmul.f32 %v2608, %v3056
  %v3121 = vmul.f32 %v2609, %v3057
  %v3122 = vmul.f32 %v2610, %v3058
  %v3123 = vmul.f32 %v2611, %v3059
  %v3124 = vmul.f32 %v2612, %v3060
  %v3125 = vmul.f32 %v2613, %v3061
  %v3126 = vmul.f32 %v2614, %v3062
  %v3127 = vmul.f32 %v2615, %v3063
  %v3128 = vmul.f32 %v2616, %v3064
  %v3129 = vmul.f32 %v2617, %v3065
  %v3130 = vmul.f32 %v2618, %v3066
  %v3131 = vmul.f32 %v2619, %v3067
  %v3132 = vmul.f32 %v2620, %v3068
  %v3133 = vmul.f32 %v2621, %v3069
  %v3134 = vmul.f32 %v2622, %v3070
  %v3135 = vmul.f32 %v2623, %v3071
  %v3136 = vmul.f32 %v2624, %v3072
  %v3137 = vmul.f32 %v2625, %v3073
  %v3138 = vmul.f32 %v2626, %v3074
  %v3139 = vmul.f32 %v2627, %v3075
  %v3140 = vmul.f32 %v2628, %v3076
  %v3141 = vmul.f32 %v2629, %v3077
  %v3142 = vmul.f32 %v2630, %v3078
  %v3143 = vmul.f32 %v2631, %v3079
  %v3144 = vmul.f32 %v2632, %v3080
  %v3145 = vmul.f32 %v2633, %v3081
  %v3146 = vmul.f32 %v2634, %v3082
  %v3147 = vmul.f32 %v2635, %v3083
  %v3148 = vmul.f32 %v2636, %v3084
  %v3149 = vmul.f32 %v2637, %v3085
  %v3150 = vmul.f32 %v2638, %v3086
  %v3151 = vmul.f32 %v2639, %v3087
  %v3152 = vmul.f32 %v2640, %v3088
  %v3153 = vmul.f32 %v2641, %v3089
  %v3154 = vmul.f32 %v2642, %v3090
  %v3155 = vmul.f32 %v2643, %v3091
  %v3156 = vmul.f32 %v2644, %v3092
  %v3157 = vmul.f32 %v2645, %v3093
  %v3158 = vmul.f32 %v2646, %v3094
  %v3159 = vmul.f32 %v2647, %v3095
  %v3160 = vmul.f32 %v2648, %v3096
  %v3161 = vmul.f32 %v2649, %v3097
  %v3162 = vmul.f32 %v2650, %v3098
  %v3163 = vmul.f32 %v2651, %v3099
  %v3164 = vmul.f32 %v2652, %v3100
  %v3165 = vmul.f32 %v2653, %v3101
  %v3166 = vmul.f32 %v2654, %v3102
  %v3167 = vmul.f32 %v2655, %v3103
  %v3168 = vmul.f32 %v2656, %v3104
  %v3169 = vmul.f32 %v2657, %v3105
  %v3170 = vmul.f32 %v2658, %v3106
  %v3171 = vmul.f32 %v2659, %v3107
  %v3172 = vmul.f32 %v2660, %v3108
  %v3173 = vld [vmem:[%s8] sm:$0xff]
  %v3174 = vld [vmem:[%s8 + $0x8] sm:$0xff]
  %v3175 = vld [vmem:[%s8 + $0x10] sm:$0xff]
  %v3176 = vld [vmem:[%s8 + $0x18] sm:$0xff]
  %v3177 = vld [vmem:[%s9] sm:$0x1]
  %v3179 = vperm.slane %v3177, 0
  %v3182 = vsel %vm107, %v3109, 0
  %v3185 = vsel %vm107, %v3110, 0
  %v3188 = vsel %vm107, %v3111, 0
  %v3191 = vsel %vm107, %v3112, 0
  %v3194 = vsel %vm107, %v3113, 0
  %v3197 = vsel %vm107, %v3114, 0
  %v3200 = vsel %vm107, %v3115, 0
  %v3203 = vsel %vm107, %v3116, 0
  %v3206 = vsel %vm107, %v3117, 0
  %v3209 = vsel %vm107, %v3118, 0
  %v3212 = vsel %vm107, %v3119, 0
  %v3215 = vsel %vm107, %v3120, 0
  %v3218 = vsel %vm107, %v3121, 0
  %v3221 = vsel %vm107, %v3122, 0
  %v3224 = vsel %vm107, %v3123, 0
  %v3227 = vsel %vm107, %v3124, 0
  %v3230 = vsel %vm107, %v3125, 0
  %v3233 = vsel %vm107, %v3126, 0
  %v3236 = vsel %vm107, %v3127, 0
  %v3239 = vsel %vm107, %v3128, 0
  %v3242 = vsel %vm107, %v3129, 0
  %v3245 = vsel %vm107, %v3130, 0
  %v3248 = vsel %vm107, %v3131, 0
  %v3251 = vsel %vm107, %v3132, 0
  %v3254 = vsel %vm107, %v3133, 0
  %v3257 = vsel %vm107, %v3134, 0
  %v3260 = vsel %vm107, %v3135, 0
  %v3263 = vsel %vm107, %v3136, 0
  %v3266 = vsel %vm107, %v3137, 0
  %v3269 = vsel %vm107, %v3138, 0
  %v3272 = vsel %vm107, %v3139, 0
  %v3275 = vsel %vm107, %v3140, 0
  %v3278 = vsel %vm107, %v3141, 0
  %v3281 = vsel %vm107, %v3142, 0
  %v3284 = vsel %vm107, %v3143, 0
  %v3287 = vsel %vm107, %v3144, 0
  %v3290 = vsel %vm107, %v3145, 0
  %v3293 = vsel %vm107, %v3146, 0
  %v3296 = vsel %vm107, %v3147, 0
  %v3299 = vsel %vm107, %v3148, 0
  %v3302 = vsel %vm107, %v3149, 0
  %v3305 = vsel %vm107, %v3150, 0
  %v3308 = vsel %vm107, %v3151, 0
  %v3311 = vsel %vm107, %v3152, 0
  %v3314 = vsel %vm107, %v3153, 0
  %v3317 = vsel %vm107, %v3154, 0
  %v3320 = vsel %vm107, %v3155, 0
  %v3323 = vsel %vm107, %v3156, 0
  %v3326 = vsel %vm107, %v3157, 0
  %v3329 = vsel %vm107, %v3158, 0
  %v3332 = vsel %vm107, %v3159, 0
  %v3335 = vsel %vm107, %v3160, 0
  %v3338 = vsel %vm107, %v3161, 0
  %v3341 = vsel %vm107, %v3162, 0
  %v3344 = vsel %vm107, %v3163, 0
  %v3347 = vsel %vm107, %v3164, 0
  %v3350 = vsel %vm107, %v3165, 0
  %v3353 = vsel %vm107, %v3166, 0
  %v3356 = vsel %vm107, %v3167, 0
  %v3359 = vsel %vm107, %v3168, 0
  %v3362 = vsel %vm107, %v3169, 0
  %v3365 = vsel %vm107, %v3170, 0
  %v3368 = vsel %vm107, %v3171, 0
  %v3371 = vsel %vm107, %v3172, 0
  %3373 = vmatpush.msra.mxu0 0.0
  %3374 = vmatpush.msra.mxu0 0.0
  %3375 = vmatpush.msra.mxu0 0.0
  %3376 = vmatpush.msra.mxu0 0.0
  %3377 = vmatpush.msra.mxu0 0.0
  %3378 = vmatpush.msra.mxu0 0.0
  %3379 = vmatpush.msra.mxu0 0.0
  %3380 = vmatpush.msra.mxu0 0.0
  %3381 = vmatpush.msra.mxu0 0.0
  %3382 = vmatpush.msra.mxu0 0.0
  %3383 = vmatpush.msra.mxu0 0.0
  %3384 = vmatpush.msra.mxu0 0.0
  %3385 = vmatpush.msra.mxu0 %v3176
  %3386 = vmatpush.msra.mxu0 %v3175
  %3387 = vmatpush.msra.mxu0 %v3174
  %3388 = vmatpush.msra.mxu0 %v3173
  %3389 = vmatmul.f32.gmra.mxu0 %v3182
  %v3390 = vpop.f32.mrf.mxu0
  %v3391 = vadd.f32 %v3179, %v3390
  %3392 = vmatmul.f32.gmra.mxu0 %v3185
  %v3393 = vpop.f32.mrf.mxu0
  %v3394 = vadd.f32 %v3179, %v3393
  %3395 = vmatmul.f32.gmra.mxu0 %v3188
  %v3396 = vpop.f32.mrf.mxu0
  %v3397 = vadd.f32 %v3179, %v3396
  %3398 = vmatmul.f32.gmra.mxu0 %v3191
  %v3399 = vpop.f32.mrf.mxu0
  %v3400 = vadd.f32 %v3179, %v3399
  %3401 = vmatmul.f32.gmra.mxu0 %v3194
  %v3402 = vpop.f32.mrf.mxu0
  %v3403 = vadd.f32 %v3179, %v3402
  %3404 = vmatmul.f32.gmra.mxu0 %v3197
  %v3405 = vpop.f32.mrf.mxu0
  %v3406 = vadd.f32 %v3179, %v3405
  %3407 = vmatmul.f32.gmra.mxu0 %v3200
  %v3408 = vpop.f32.mrf.mxu0
  %v3409 = vadd.f32 %v3179, %v3408
  %3410 = vmatmul.f32.gmra.mxu0 %v3203
  %v3411 = vpop.f32.mrf.mxu0
  %v3412 = vadd.f32 %v3179, %v3411
  %3413 = vmatmul.f32.gmra.mxu0 %v3206
  %v3414 = vpop.f32.mrf.mxu0
  %v3415 = vadd.f32 %v3179, %v3414
  %3416 = vmatmul.f32.gmra.mxu0 %v3209
  %v3417 = vpop.f32.mrf.mxu0
  %v3418 = vadd.f32 %v3179, %v3417
  %3419 = vmatmul.f32.gmra.mxu0 %v3212
  %v3420 = vpop.f32.mrf.mxu0
  %v3421 = vadd.f32 %v3179, %v3420
  %3422 = vmatmul.f32.gmra.mxu0 %v3215
  %v3423 = vpop.f32.mrf.mxu0
  %v3424 = vadd.f32 %v3179, %v3423
  %3425 = vmatmul.f32.gmra.mxu0 %v3218
  %v3426 = vpop.f32.mrf.mxu0
  %v3427 = vadd.f32 %v3179, %v3426
  %3428 = vmatmul.f32.gmra.mxu0 %v3221
  %v3429 = vpop.f32.mrf.mxu0
  %v3430 = vadd.f32 %v3179, %v3429
  %3431 = vmatmul.f32.gmra.mxu0 %v3224
  %v3432 = vpop.f32.mrf.mxu0
  %v3433 = vadd.f32 %v3179, %v3432
  %3434 = vmatmul.f32.gmra.mxu0 %v3227
  %v3435 = vpop.f32.mrf.mxu0
  %v3436 = vadd.f32 %v3179, %v3435
  %3437 = vmatmul.f32.gmra.mxu0 %v3230
  %v3438 = vpop.f32.mrf.mxu0
  %v3439 = vadd.f32 %v3179, %v3438
  %3440 = vmatmul.f32.gmra.mxu0 %v3233
  %v3441 = vpop.f32.mrf.mxu0
  %v3442 = vadd.f32 %v3179, %v3441
  %3443 = vmatmul.f32.gmra.mxu0 %v3236
  %v3444 = vpop.f32.mrf.mxu0
  %v3445 = vadd.f32 %v3179, %v3444
  %3446 = vmatmul.f32.gmra.mxu0 %v3239
  %v3447 = vpop.f32.mrf.mxu0
  %v3448 = vadd.f32 %v3179, %v3447
  %3449 = vmatmul.f32.gmra.mxu0 %v3242
  %v3450 = vpop.f32.mrf.mxu0
  %v3451 = vadd.f32 %v3179, %v3450
  %3452 = vmatmul.f32.gmra.mxu0 %v3245
  %v3453 = vpop.f32.mrf.mxu0
  %v3454 = vadd.f32 %v3179, %v3453
  %3455 = vmatmul.f32.gmra.mxu0 %v3248
  %v3456 = vpop.f32.mrf.mxu0
  %v3457 = vadd.f32 %v3179, %v3456
  %3458 = vmatmul.f32.gmra.mxu0 %v3251
  %v3459 = vpop.f32.mrf.mxu0
  %v3460 = vadd.f32 %v3179, %v3459
  %3461 = vmatmul.f32.gmra.mxu0 %v3254
  %v3462 = vpop.f32.mrf.mxu0
  %v3463 = vadd.f32 %v3179, %v3462
  %3464 = vmatmul.f32.gmra.mxu0 %v3257
  %v3465 = vpop.f32.mrf.mxu0
  %v3466 = vadd.f32 %v3179, %v3465
  %3467 = vmatmul.f32.gmra.mxu0 %v3260
  %v3468 = vpop.f32.mrf.mxu0
  %v3469 = vadd.f32 %v3179, %v3468
  %3470 = vmatmul.f32.gmra.mxu0 %v3263
  %v3471 = vpop.f32.mrf.mxu0
  %v3472 = vadd.f32 %v3179, %v3471
  %3473 = vmatmul.f32.gmra.mxu0 %v3266
  %v3474 = vpop.f32.mrf.mxu0
  %v3475 = vadd.f32 %v3179, %v3474
  %3476 = vmatmul.f32.gmra.mxu0 %v3269
  %v3477 = vpop.f32.mrf.mxu0
  %v3478 = vadd.f32 %v3179, %v3477
  %3479 = vmatmul.f32.gmra.mxu0 %v3272
  %v3480 = vpop.f32.mrf.mxu0
  %v3481 = vadd.f32 %v3179, %v3480
  %3482 = vmatmul.f32.gmra.mxu0 %v3275
  %v3483 = vpop.f32.mrf.mxu0
  %v3484 = vadd.f32 %v3179, %v3483
  %3485 = vmatmul.f32.gmra.mxu0 %v3278
  %v3486 = vpop.f32.mrf.mxu0
  %v3487 = vadd.f32 %v3179, %v3486
  %3488 = vmatmul.f32.gmra.mxu0 %v3281
  %v3489 = vpop.f32.mrf.mxu0
  %v3490 = vadd.f32 %v3179, %v3489
  %3491 = vmatmul.f32.gmra.mxu0 %v3284
  %v3492 = vpop.f32.mrf.mxu0
  %v3493 = vadd.f32 %v3179, %v3492
  %3494 = vmatmul.f32.gmra.mxu0 %v3287
  %v3495 = vpop.f32.mrf.mxu0
  %v3496 = vadd.f32 %v3179, %v3495
  %3497 = vmatmul.f32.gmra.mxu0 %v3290
  %v3498 = vpop.f32.mrf.mxu0
  %v3499 = vadd.f32 %v3179, %v3498
  %3500 = vmatmul.f32.gmra.mxu0 %v3293
  %v3501 = vpop.f32.mrf.mxu0
  %v3502 = vadd.f32 %v3179, %v3501
  %3503 = vmatmul.f32.gmra.mxu0 %v3296
  %v3504 = vpop.f32.mrf.mxu0
  %v3505 = vadd.f32 %v3179, %v3504
  %3506 = vmatmul.f32.gmra.mxu0 %v3299
  %v3507 = vpop.f32.mrf.mxu0
  %v3508 = vadd.f32 %v3179, %v3507
  %3509 = vmatmul.f32.gmra.mxu0 %v3302
  %v3510 = vpop.f32.mrf.mxu0
  %v3511 = vadd.f32 %v3179, %v3510
  %3512 = vmatmul.f32.gmra.mxu0 %v3305
  %v3513 = vpop.f32.mrf.mxu0
  %v3514 = vadd.f32 %v3179, %v3513
  %3515 = vmatmul.f32.gmra.mxu0 %v3308
  %v3516 = vpop.f32.mrf.mxu0
  %v3517 = vadd.f32 %v3179, %v3516
  %3518 = vmatmul.f32.gmra.mxu0 %v3311
  %v3519 = vpop.f32.mrf.mxu0
  %v3520 = vadd.f32 %v3179, %v3519
  %3521 = vmatmul.f32.gmra.mxu0 %v3314
  %v3522 = vpop.f32.mrf.mxu0
  %v3523 = vadd.f32 %v3179, %v3522
  %3524 = vmatmul.f32.gmra.mxu0 %v3317
  %v3525 = vpop.f32.mrf.mxu0
  %v3526 = vadd.f32 %v3179, %v3525
  %3527 = vmatmul.f32.gmra.mxu0 %v3320
  %v3528 = vpop.f32.mrf.mxu0
  %v3529 = vadd.f32 %v3179, %v3528
  %3530 = vmatmul.f32.gmra.mxu0 %v3323
  %v3531 = vpop.f32.mrf.mxu0
  %v3532 = vadd.f32 %v3179, %v3531
  %3533 = vmatmul.f32.gmra.mxu0 %v3326
  %v3534 = vpop.f32.mrf.mxu0
  %v3535 = vadd.f32 %v3179, %v3534
  %3536 = vmatmul.f32.gmra.mxu0 %v3329
  %v3537 = vpop.f32.mrf.mxu0
  %v3538 = vadd.f32 %v3179, %v3537
  %3539 = vmatmul.f32.gmra.mxu0 %v3332
  %v3540 = vpop.f32.mrf.mxu0
  %v3541 = vadd.f32 %v3179, %v3540
  %3542 = vmatmul.f32.gmra.mxu0 %v3335
  %v3543 = vpop.f32.mrf.mxu0
  %v3544 = vadd.f32 %v3179, %v3543
  %3545 = vmatmul.f32.gmra.mxu0 %v3338
  %v3546 = vpop.f32.mrf.mxu0
  %v3547 = vadd.f32 %v3179, %v3546
  %3548 = vmatmul.f32.gmra.mxu0 %v3341
  %v3549 = vpop.f32.mrf.mxu0
  %v3550 = vadd.f32 %v3179, %v3549
  %3551 = vmatmul.f32.gmra.mxu0 %v3344
  %v3552 = vpop.f32.mrf.mxu0
  %v3553 = vadd.f32 %v3179, %v3552
  %3554 = vmatmul.f32.gmra.mxu0 %v3347
  %v3555 = vpop.f32.mrf.mxu0
  %v3556 = vadd.f32 %v3179, %v3555
  %3557 = vmatmul.f32.gmra.mxu0 %v3350
  %v3558 = vpop.f32.mrf.mxu0
  %v3559 = vadd.f32 %v3179, %v3558
  %3560 = vmatmul.f32.gmra.mxu0 %v3353
  %v3561 = vpop.f32.mrf.mxu0
  %v3562 = vadd.f32 %v3179, %v3561
  %3563 = vmatmul.f32.gmra.mxu0 %v3356
  %v3564 = vpop.f32.mrf.mxu0
  %v3565 = vadd.f32 %v3179, %v3564
  %3566 = vmatmul.f32.gmra.mxu0 %v3359
  %v3567 = vpop.f32.mrf.mxu0
  %v3568 = vadd.f32 %v3179, %v3567
  %3569 = vmatmul.f32.gmra.mxu0 %v3362
  %v3570 = vpop.f32.mrf.mxu0
  %v3571 = vadd.f32 %v3179, %v3570
  %3572 = vmatmul.f32.gmra.mxu0 %v3365
  %v3573 = vpop.f32.mrf.mxu0
  %v3574 = vadd.f32 %v3179, %v3573
  %3575 = vmatmul.f32.gmra.mxu0 %v3368
  %v3576 = vpop.f32.mrf.mxu0
  %v3577 = vadd.f32 %v3179, %v3576
  %3578 = vmatmul.f32.gmra.mxu0 %v3371
  %v3579 = vpop.f32.mrf.mxu0
  %v3580 = vadd.f32 %v3179, %v3579
  %3581 = vdwg.mxu0
  %v3582 = vadd.f32 %v573, %v3391
  %v3583 = vadd.f32 %v574, %v3394
  %v3584 = vadd.f32 %v575, %v3397
  %v3585 = vadd.f32 %v576, %v3400
  %v3586 = vadd.f32 %v577, %v3403
  %v3587 = vadd.f32 %v578, %v3406
  %v3588 = vadd.f32 %v579, %v3409
  %v3589 = vadd.f32 %v580, %v3412
  %v3590 = vadd.f32 %v581, %v3415
  %v3591 = vadd.f32 %v582, %v3418
  %v3592 = vadd.f32 %v583, %v3421
  %v3593 = vadd.f32 %v584, %v3424
  %v3594 = vadd.f32 %v585, %v3427
  %v3595 = vadd.f32 %v586, %v3430
  %v3596 = vadd.f32 %v587, %v3433
  %v3597 = vadd.f32 %v588, %v3436
  %v3598 = vadd.f32 %v589, %v3439
  %v3599 = vadd.f32 %v590, %v3442
  %v3600 = vadd.f32 %v591, %v3445
  %v3601 = vadd.f32 %v592, %v3448
  %v3602 = vadd.f32 %v593, %v3451
  %v3603 = vadd.f32 %v594, %v3454
  %v3604 = vadd.f32 %v595, %v3457
  %v3605 = vadd.f32 %v596, %v3460
  %v3606 = vadd.f32 %v597, %v3463
  %v3607 = vadd.f32 %v598, %v3466
  %v3608 = vadd.f32 %v599, %v3469
  %v3609 = vadd.f32 %v600, %v3472
  %v3610 = vadd.f32 %v601, %v3475
  %v3611 = vadd.f32 %v602, %v3478
  %v3612 = vadd.f32 %v603, %v3481
  %v3613 = vadd.f32 %v604, %v3484
  %v3614 = vadd.f32 %v605, %v3487
  %v3615 = vadd.f32 %v606, %v3490
  %v3616 = vadd.f32 %v607, %v3493
  %v3617 = vadd.f32 %v608, %v3496
  %v3618 = vadd.f32 %v609, %v3499
  %v3619 = vadd.f32 %v610, %v3502
  %v3620 = vadd.f32 %v611, %v3505
  %v3621 = vadd.f32 %v612, %v3508
  %v3622 = vadd.f32 %v613, %v3511
  %v3623 = vadd.f32 %v614, %v3514
  %v3624 = vadd.f32 %v615, %v3517
  %v3625 = vadd.f32 %v616, %v3520
  %v3626 = vadd.f32 %v617, %v3523
  %v3627 = vadd.f32 %v618, %v3526
  %v3628 = vadd.f32 %v619, %v3529
  %v3629 = vadd.f32 %v620, %v3532
  %v3630 = vadd.f32 %v621, %v3535
  %v3631 = vadd.f32 %v622, %v3538
  %v3632 = vadd.f32 %v623, %v3541
  %v3633 = vadd.f32 %v624, %v3544
  %v3634 = vadd.f32 %v625, %v3547
  %v3635 = vadd.f32 %v626, %v3550
  %v3636 = vadd.f32 %v627, %v3553
  %v3637 = vadd.f32 %v628, %v3556
  %v3638 = vadd.f32 %v629, %v3559
  %v3639 = vadd.f32 %v630, %v3562
  %v3640 = vadd.f32 %v631, %v3565
  %v3641 = vadd.f32 %v632, %v3568
  %v3642 = vadd.f32 %v633, %v3571
  %v3643 = vadd.f32 %v634, %v3574
  %v3644 = vadd.f32 %v635, %v3577
  %v3645 = vadd.f32 %v636, %v3580
  %3646 = vst.msk [vmem:[%s10] sm:$0xff] %vm107, %v3582
  %3647 = vst.msk [vmem:[%s10 + $0x8] sm:$0xff] %vm107, %v3583
  %3648 = vst.msk [vmem:[%s10 + $0x10] sm:$0xff] %vm107, %v3584
  %3649 = vst.msk [vmem:[%s10 + $0x18] sm:$0xff] %vm107, %v3585
  %3650 = vst.msk [vmem:[%s10 + $0x20] sm:$0xff] %vm107, %v3586
  %3651 = vst.msk [vmem:[%s10 + $0x28] sm:$0xff] %vm107, %v3587
  %3652 = vst.msk [vmem:[%s10 + $0x30] sm:$0xff] %vm107, %v3588
  %3653 = vst.msk [vmem:[%s10 + $0x38] sm:$0xff] %vm107, %v3589
  %3654 = vst.msk [vmem:[%s10 + $0x40] sm:$0xff] %vm107, %v3590
  %3655 = vst.msk [vmem:[%s10 + $0x48] sm:$0xff] %vm107, %v3591
  %3656 = vst.msk [vmem:[%s10 + $0x50] sm:$0xff] %vm107, %v3592
  %3657 = vst.msk [vmem:[%s10 + $0x58] sm:$0xff] %vm107, %v3593
  %3658 = vst.msk [vmem:[%s10 + $0x60] sm:$0xff] %vm107, %v3594
  %3659 = vst.msk [vmem:[%s10 + $0x68] sm:$0xff] %vm107, %v3595
  %3660 = vst.msk [vmem:[%s10 + $0x70] sm:$0xff] %vm107, %v3596
  %3661 = vst.msk [vmem:[%s10 + $0x78] sm:$0xff] %vm107, %v3597
  %3662 = vst.msk [vmem:[%s10 + $0x80] sm:$0xff] %vm107, %v3598
  %3663 = vst.msk [vmem:[%s10 + $0x88] sm:$0xff] %vm107, %v3599
  %3664 = vst.msk [vmem:[%s10 + $0x90] sm:$0xff] %vm107, %v3600
  %3665 = vst.msk [vmem:[%s10 + $0x98] sm:$0xff] %vm107, %v3601
  %3666 = vst.msk [vmem:[%s10 + $0xa0] sm:$0xff] %vm107, %v3602
  %3667 = vst.msk [vmem:[%s10 + $0xa8] sm:$0xff] %vm107, %v3603
  %3668 = vst.msk [vmem:[%s10 + $0xb0] sm:$0xff] %vm107, %v3604
  %3669 = vst.msk [vmem:[%s10 + $0xb8] sm:$0xff] %vm107, %v3605
  %3670 = vst.msk [vmem:[%s10 + $0xc0] sm:$0xff] %vm107, %v3606
  %3671 = vst.msk [vmem:[%s10 + $0xc8] sm:$0xff] %vm107, %v3607
  %3672 = vst.msk [vmem:[%s10 + $0xd0] sm:$0xff] %vm107, %v3608
  %3673 = vst.msk [vmem:[%s10 + $0xd8] sm:$0xff] %vm107, %v3609
  %3674 = vst.msk [vmem:[%s10 + $0xe0] sm:$0xff] %vm107, %v3610
  %3675 = vst.msk [vmem:[%s10 + $0xe8] sm:$0xff] %vm107, %v3611
  %3676 = vst.msk [vmem:[%s10 + $0xf0] sm:$0xff] %vm107, %v3612
  %3677 = vst.msk [vmem:[%s10 + $0xf8] sm:$0xff] %vm107, %v3613
  %3678 = vst.msk [vmem:[%s10 + $0x100] sm:$0xff] %vm107, %v3614
  %3679 = vst.msk [vmem:[%s10 + $0x108] sm:$0xff] %vm107, %v3615
  %3680 = vst.msk [vmem:[%s10 + $0x110] sm:$0xff] %vm107, %v3616
  %3681 = vst.msk [vmem:[%s10 + $0x118] sm:$0xff] %vm107, %v3617
  %3682 = vst.msk [vmem:[%s10 + $0x120] sm:$0xff] %vm107, %v3618
  %3683 = vst.msk [vmem:[%s10 + $0x128] sm:$0xff] %vm107, %v3619
  %3684 = vst.msk [vmem:[%s10 + $0x130] sm:$0xff] %vm107, %v3620
  %3685 = vst.msk [vmem:[%s10 + $0x138] sm:$0xff] %vm107, %v3621
  %3686 = vst.msk [vmem:[%s10 + $0x140] sm:$0xff] %vm107, %v3622
  %3687 = vst.msk [vmem:[%s10 + $0x148] sm:$0xff] %vm107, %v3623
  %3688 = vst.msk [vmem:[%s10 + $0x150] sm:$0xff] %vm107, %v3624
  %3689 = vst.msk [vmem:[%s10 + $0x158] sm:$0xff] %vm107, %v3625
  %3690 = vst.msk [vmem:[%s10 + $0x160] sm:$0xff] %vm107, %v3626
  %3691 = vst.msk [vmem:[%s10 + $0x168] sm:$0xff] %vm107, %v3627
  %3692 = vst.msk [vmem:[%s10 + $0x170] sm:$0xff] %vm107, %v3628
  %3693 = vst.msk [vmem:[%s10 + $0x178] sm:$0xff] %vm107, %v3629
  %3694 = vst.msk [vmem:[%s10 + $0x180] sm:$0xff] %vm107, %v3630
  %3695 = vst.msk [vmem:[%s10 + $0x188] sm:$0xff] %vm107, %v3631
  %3696 = vst.msk [vmem:[%s10 + $0x190] sm:$0xff] %vm107, %v3632
  %3697 = vst.msk [vmem:[%s10 + $0x198] sm:$0xff] %vm107, %v3633
  %3698 = vst.msk [vmem:[%s10 + $0x1a0] sm:$0xff] %vm107, %v3634
  %3699 = vst.msk [vmem:[%s10 + $0x1a8] sm:$0xff] %vm107, %v3635
  %3700 = vst.msk [vmem:[%s10 + $0x1b0] sm:$0xff] %vm107, %v3636
  %3701 = vst.msk [vmem:[%s10 + $0x1b8] sm:$0xff] %vm107, %v3637
  %3702 = vst.msk [vmem:[%s10 + $0x1c0] sm:$0xff] %vm107, %v3638
  %3703 = vst.msk [vmem:[%s10 + $0x1c8] sm:$0xff] %vm107, %v3639
  %3704 = vst.msk [vmem:[%s10 + $0x1d0] sm:$0xff] %vm107, %v3640
  %3705 = vst.msk [vmem:[%s10 + $0x1d8] sm:$0xff] %vm107, %v3641
  %3706 = vst.msk [vmem:[%s10 + $0x1e0] sm:$0xff] %vm107, %v3642
  %3707 = vst.msk [vmem:[%s10 + $0x1e8] sm:$0xff] %vm107, %v3643
  %3708 = vst.msk [vmem:[%s10 + $0x1f0] sm:$0xff] %vm107, %v3644
  %3709 = vst.msk [vmem:[%s10 + $0x1f8] sm:$0xff] %vm107, %v3645
  // Predicated region
  $region42: #{down_block_forward.9} parent=0 // pred_check
    _
  $region43: #{down_block_forward.9} parent=0 // pred_check_branch
    %3711 = sbr.rel (0) target = $region45
  $region44: #{down_block_forward.9} parent=0 // pred_region
    _
  $region45: #{down_block_forward.9} parent=0 // pred_fallthru
    _
  // Predicated region
  $region46: #{down_block_forward.9} parent=0 // pred_check
    _
  $region47: #{down_block_forward.9} parent=0 // pred_check_branch
    %3713 = sbr.rel (0) target = $region49
  $region48: #{down_block_forward.9} parent=0 // pred_region
    _
  $region49: #{down_block_forward.9} parent=0 // pred_fallthru
    _

// kernel: down_block_forward.11
$region0: #{down_block_forward.11}
  #allocation0 [shape = 'u32[]', space=smem, size = 0x4, offset = 0x4, fixed_abs, tag = 'smem constant byte address 0x4 - core index']
  #allocation1 [shape = 'u32[72,128]{1,0:T(1,128)}', space=vmem, size = 0x9000, scoped, tag = 'internal scratch']
  %s0 = inlined_call_operand.vmem [shape: f32[2,16,16,96], index: 0, kind: input, shape index: {}]
  %s1 = inlined_call_operand.vmem [shape: f32[4,1,64,64], index: 1, kind: input, shape index: {}]
  %s2 = inlined_call_operand.vmem [shape: f32[2,16,16,32], index: 2, kind: output, shape index: {}]
  %s3 = sld [smem:[#allocation0]]
  $region113: #{down_block_forward.11} parent=0
    _
  %s5 = ssub.s32 1, %s3
  %s6 = scalar_select 0, %s5, %s3
  $region1: #{down_block_forward.11} parent=0
    #allocation2 [shape = 'u8[65536]{0}', space=vmem, size = 0x10000, scoped, tag = 'input window, operand 0']
    #allocation3 [shape = 'u8[65536]{0}', space=vmem, size = 0x10000, scoped, tag = 'output window, operand 0']
    loop: start=0, step=1, limit=10
    $region2: #{down_block_forward.11} parent=1 // loop_pre_header
      _
    $region3: #{down_block_forward.11} parent=1 // loop_header
      %s8 = sphi 0, %s12
      %p9 = scmp.ge.s32.totalorder %s8, 10
      %s15 = sphi 0, %s34
      %s16 = sphi 0, %s30
      %s17 = sphi 0, %s26
      %s18 = sphi 0, %s15
      %s19 = sphi 0, %s16
      %s20 = sphi 0, %s17
      %s21 = sphi 0, %s18
      %s22 = sphi 0, %s19
      %s23 = sphi 0, %s20
      %s41 = sphi 0, %s43
      %s44 = sphi 0, %s41
      %s45 = sphi 0, %s44
      %s61 = sphi 0, %s45
      %s71 = sphi 0, %s73
      %s74 = sphi 0, %s71
      %s75 = sphi 0, %s74
      %s91 = sphi 0, %s75
      %s101 = sphi 0, %s103
      %s104 = sphi 0, %s101
      %s105 = sphi 0, %s104
      %s121 = sphi 0, %s105
    $region4: #{down_block_forward.11} parent=1 // loop_header_branch
      %11 = sbr.rel (%p9) target = $region8
    $region5: #{down_block_forward.11} parent=1 // loop_body
      %s13 = ssub.s32 %s8, 1
      %s14 = ssub.s32 %s8, 2
      %s24 = sadd.s32 1, %s17
      %p25 = scmp.ge.s32.totalorder %s24, 2
      %s26 = scalar_select %p25, 0, %s24
      %s27 = sadd.s32 1, %s16
      %s28 = scalar_select %p25, %s27, %s16
      %p29 = scmp.ge.s32.totalorder %s28, 2
      %s30 = scalar_select %p29, 0, %s28
      %s31 = sadd.s32 1, %s15
      %s32 = scalar_select %p29, %s31, %s15
      %p33 = scmp.ge.s32.totalorder %s32, 2
      %s34 = scalar_select %p33, 0, %s32
      %s35 = ssub.s32 %s15, %s34
      %s36 = ssub.s32 %s16, %s30
      %s37 = sor.u32 %s35, %s36
      %s38 = ssub.s32 %s17, %s26
      %s39 = sor.u32 %s37, %s38
      %p40 = scmp.eq.s32.totalorder %s39, 0
      %s42 = sadd.s32 %s41, 1
      %s43 = scalar_select %p40, %s41, %s42
      %p46 = pneg %p40
      %p47 = scmp.eq.s32.totalorder %s8, 7
      %p48 = por %p46, %p47
      %p49 = scmp.ne.s32.totalorder %s41, %s44
      %p50 = scmp.eq.s32.totalorder %s8, 0
      %p51 = por %p49, %p50
      %p52 = scmp.ne.s32.totalorder %s41, %s44
      %p53 = scmp.eq.s32.totalorder %s13, 7
      %p54 = por %p52, %p53
      %p55 = scmp.ne.s32.totalorder %s44, %s45
      %p56 = scmp.eq.s32.totalorder %s13, 0
      %p57 = por %p55, %p56
      %p58 = scmp.ne.s32.totalorder %s44, %s45
      %p59 = scmp.eq.s32.totalorder %s14, 7
      %p60 = por %p58, %p59
      %p62 = scmp.ne.s32.totalorder %s45, %s61
      %p63 = scmp.eq.s32.totalorder %s14, 0
      %p64 = por %p62, %p63
      %s65 = smul.u32 %s16, 2
      %s66 = sadd.s32 %s65, %s17
      %s67 = smul.u32 %s30, 2
      %s68 = sadd.s32 %s67, %s26
      %s69 = ssub.s32 %s66, %s68
      %p70 = scmp.eq.s32.totalorder %s69, 0
      %s72 = sadd.s32 %s71, 1
      %s73 = scalar_select %p70, %s71, %s72
      %p76 = pneg %p70
      %p77 = scmp.eq.s32.totalorder %s8, 7
      %p78 = por %p76, %p77
      %p79 = scmp.ne.s32.totalorder %s71, %s74
      %p80 = scmp.eq.s32.totalorder %s8, 0
      %p81 = por %p79, %p80
      %p82 = scmp.ne.s32.totalorder %s71, %s74
      %p83 = scmp.eq.s32.totalorder %s13, 7
      %p84 = por %p82, %p83
      %p85 = scmp.ne.s32.totalorder %s74, %s75
      %p86 = scmp.eq.s32.totalorder %s13, 0
      %p87 = por %p85, %p86
      %p88 = scmp.ne.s32.totalorder %s74, %s75
      %p89 = scmp.eq.s32.totalorder %s14, 7
      %p90 = por %p88, %p89
      %p92 = scmp.ne.s32.totalorder %s75, %s91
      %p93 = scmp.eq.s32.totalorder %s14, 0
      %p94 = por %p92, %p93
      %s95 = ssub.s32 %s15, %s34
      %s96 = ssub.s32 %s16, %s30
      %s97 = sor.u32 %s95, %s96
      %s98 = ssub.s32 %s17, %s26
      %s99 = sor.u32 %s97, %s98
      %p100 = scmp.eq.s32.totalorder %s99, 0
      %s102 = sadd.s32 %s101, 1
      %s103 = scalar_select %p100, %s101, %s102
      %p106 = pneg %p100
      %p107 = scmp.eq.s32.totalorder %s8, 7
      %p108 = por %p106, %p107
      %p109 = scmp.ne.s32.totalorder %s101, %s104
      %p110 = scmp.eq.s32.totalorder %s8, 0
      %p111 = por %p109, %p110
      %p112 = scmp.ne.s32.totalorder %s101, %s104
      %p113 = scmp.eq.s32.totalorder %s13, 7
      %p114 = por %p112, %p113
      %p115 = scmp.ne.s32.totalorder %s104, %s105
      %p116 = scmp.eq.s32.totalorder %s13, 0
      %p117 = por %p115, %p116
      %p118 = scmp.ne.s32.totalorder %s104, %s105
      %p119 = scmp.eq.s32.totalorder %s14, 7
      %p120 = por %p118, %p119
      %p122 = scmp.ne.s32.totalorder %s105, %s121
      %p123 = scmp.eq.s32.totalorder %s14, 0
      %p124 = por %p122, %p123
      %p125 = scmp.le.s32.totalorder 1, %s8
      %p126 = scmp.lt.s32.totalorder %s8, 9
      %p127 = pnand %p125, %p126
      %p128 = pneg %p127
      // Predicated region
      $region9: #{down_block_forward.11} parent=5 // pred_check
        _
      $region10: #{down_block_forward.11} parent=5 // pred_check_branch
        %130 = sbr.rel (%p127) target = $region12
      $region11: #{down_block_forward.11} parent=5 // pred_region
        %s131 = ssub.s32 %s8, 1
      $region12: #{down_block_forward.11} parent=5 // pred_fallthru
        _
      %p132 = scmp.lt.s32.totalorder %s8, 8
      // Predicated region
      $region13: #{down_block_forward.11} parent=5 // pred_check
        %p133 = pneg %p132
      $region14: #{down_block_forward.11} parent=5 // pred_check_branch
        %135 = sbr.rel (%p133) target = $region16
      $region15: #{down_block_forward.11} parent=5 // pred_region
        // Predicated region
        $region17: #{down_block_forward.11} parent=15 // pred_check
          %p136 = pneg %p51
        $region18: #{down_block_forward.11} parent=15 // pred_check_branch
          %138 = sbr.rel (%p136) target = $region20
        $region19: #{down_block_forward.11} parent=15 // pred_region
          %s139 = sand.u32 %s41, 1
          %s140 = sand.u32 %s41, 1
          %s141 = smul.addr %s140, 64
          %s142 = scalar_lea.vmem [#allocation2], %s141
          %s143 = smul.u32 8, %s16
          %s144 = smul.addr %s143, 2
          %s145 = sadd.s32 %s17, %s144
          %s146 = smul.addr %s15, 32
          %s147 = sadd.s32 %s145, %s146
          %s148 = smul.addr %s147, 8
          %s149 = scalar_lea.vmem %s0, %s148
          // Predicated region
          $region21: #{down_block_forward.11} parent=19 // pred_check
            _
          $region22: #{down_block_forward.11} parent=19 // pred_check_branch
            %151 = sbr.rel (0) target = $region24
          $region23: #{down_block_forward.11} parent=19 // pred_region
            // Predicated region
            $region25: #{down_block_forward.11} parent=23 // pred_check
              _
            $region26: #{down_block_forward.11} parent=23 // pred_check_branch
              %153 = sbr.rel (0) target = $region28
            $region27: #{down_block_forward.11} parent=23 // pred_region
              // Predicated region
              $region40: #{down_block_forward.11} parent=27 // pred_check
                _
              $region41: #{down_block_forward.11} parent=27 // pred_check_branch
                %183 = sbr.rel (0) target = $region43
              $region42: #{down_block_forward.11} parent=27 // pred_region
                loop: start=0, step=1, limit=1
                $region44: #{down_block_forward.11} parent=42 // loop_pre_header
                  _
                $region45: #{down_block_forward.11} parent=42 // loop_header
                  %s185 = sphi 0, %s189
                  %p186 = scmp.ge.s32.totalorder %s185, 1
                  %s190 = sphi %s149, %s149
                  %s191 = sphi %s142, %s142
                $region46: #{down_block_forward.11} parent=42 // loop_header_branch
                  %188 = sbr.rel (%p186) target = $region50
                $region47: #{down_block_forward.11} parent=42 // loop_body
                  %v192 = vld [vmem:[%s190] sm:$0xff]
                  %193 = vst [vmem:[%s191] sm:$0xff] %v192
                  %v194 = vld [vmem:[%s190 + $0x10] sm:$0xff]
                  %195 = vst [vmem:[%s191 + $0x8] sm:$0xff] %v194
                  %v196 = vld [vmem:[%s190 + $0x20] sm:$0xff]
                  %197 = vst [vmem:[%s191 + $0x10] sm:$0xff] %v196
                  %v198 = vld [vmem:[%s190 + $0x30] sm:$0xff]
                  %199 = vst [vmem:[%s191 + $0x18] sm:$0xff] %v198
                  %v200 = vld [vmem:[%s190 + $0x40] sm:$0xff]
                  %201 = vst [vmem:[%s191 + $0x20] sm:$0xff] %v200
                  %v202 = vld [vmem:[%s190 + $0x50] sm:$0xff]
                  %203 = vst [vmem:[%s191 + $0x28] sm:$0xff] %v202
                  %v204 = vld [vmem:[%s190 + $0x60] sm:$0xff]
                  %205 = vst [vmem:[%s191 + $0x30] sm:$0xff] %v204
                  %v206 = vld [vmem:[%s190 + $0x70] sm:$0xff]
                  %207 = vst [vmem:[%s191 + $0x38] sm:$0xff] %v206
                $region48: #{down_block_forward.11} parent=42 // loop_footer
                  %s189 = sadd.s32 1, %s185
                $region49: #{down_block_forward.11} parent=42 // loop_footer_branch
                  %184 = sbr.rel target = $region45
                $region50: #{down_block_forward.11} parent=42 // loop_exit
                  _
              $region43: #{down_block_forward.11} parent=27 // pred_fallthru
                _
              // Predicated region
              $region51: #{down_block_forward.11} parent=27 // pred_check
                _
              $region52: #{down_block_forward.11} parent=27 // pred_check_branch
                %209 = sbr.rel target = $region54
              $region53: #{down_block_forward.11} parent=27 // pred_region
                _
              $region54: #{down_block_forward.11} parent=27 // pred_fallthru
                _
            $region28: #{down_block_forward.11} parent=23 // pred_fallthru
              _
            // Predicated region
            $region29: #{down_block_forward.11} parent=23 // pred_check
              _
            $region30: #{down_block_forward.11} parent=23 // pred_check_branch
              %155 = sbr.rel target = $region32
            $region31: #{down_block_forward.11} parent=23 // pred_region
              %s157 = ssub.s32 256, 1
              loop: start=0, step=1, limit=1
              $region33: #{down_block_forward.11} parent=31 // loop_pre_header
                _
              $region34: #{down_block_forward.11} parent=31 // loop_header
                %s159 = sphi 0, %s163
                %p160 = scmp.ge.s32.totalorder %s159, 1
                %s164 = sphi %s149, %s149
                %s165 = sphi %s142, %s142
              $region35: #{down_block_forward.11} parent=31 // loop_header_branch
                %162 = sbr.rel (%p160) target = $region39
              $region36: #{down_block_forward.11} parent=31 // loop_body
                %v166 = vld [vmem:[%s164] sm:%s157]
                %167 = vst [vmem:[%s165] sm:%s157] %v166
                %v168 = vld [vmem:[%s164 + $0x10] sm:%s157]
                %169 = vst [vmem:[%s165 + $0x8] sm:%s157] %v168
                %v170 = vld [vmem:[%s164 + $0x20] sm:%s157]
                %171 = vst [vmem:[%s165 + $0x10] sm:%s157] %v170
                %v172 = vld [vmem:[%s164 + $0x30] sm:%s157]
                %173 = vst [vmem:[%s165 + $0x18] sm:%s157] %v172
                %v174 = vld [vmem:[%s164 + $0x40] sm:%s157]
                %175 = vst [vmem:[%s165 + $0x20] sm:%s157] %v174
                %v176 = vld [vmem:[%s164 + $0x50] sm:%s157]
                %177 = vst [vmem:[%s165 + $0x28] sm:%s157] %v176
                %v178 = vld [vmem:[%s164 + $0x60] sm:%s157]
                %179 = vst [vmem:[%s165 + $0x30] sm:%s157] %v178
                %v180 = vld [vmem:[%s164 + $0x70] sm:%s157]
                %181 = vst [vmem:[%s165 + $0x38] sm:%s157] %v180
              $region37: #{down_block_forward.11} parent=31 // loop_footer
                %s163 = sadd.s32 1, %s159
              $region38: #{down_block_forward.11} parent=31 // loop_footer_branch
                %158 = sbr.rel target = $region34
              $region39: #{down_block_forward.11} parent=31 // loop_exit
                _
            $region32: #{down_block_forward.11} parent=23 // pred_fallthru
              _
          $region24: #{down_block_forward.11} parent=19 // pred_fallthru
            _
          %210 = vnop
        $region20: #{down_block_forward.11} parent=15 // pred_fallthru
          _
        // Predicated region
        $region55: #{down_block_forward.11} parent=15 // pred_check
          %p211 = pneg %p81
        $region56: #{down_block_forward.11} parent=15 // pred_check_branch
          %213 = sbr.rel (%p211) target = $region58
        $region57: #{down_block_forward.11} parent=15 // pred_region
          %s214 = smul.u32 %s16, 2
          %s215 = sadd.s32 %s214, %s17
          %p216 = scmp.lt.s32.totalorder %s215, 3
          %s217 = scalar_select %p216, %s215, 3
          %s218 = smul.addr %s217, 8
          %s219 = smul.addr %s218, 8
          %s220 = scalar_lea.vmem %s1, %s219
          %s221 = smul.u32 %s16, 2
          %s222 = sadd.s32 %s221, %s17
        $region58: #{down_block_forward.11} parent=15 // pred_fallthru
          _
      $region16: #{down_block_forward.11} parent=5 // pred_fallthru
        _
      %p223 = scmp.le.s32.totalorder 1, %s8
      %p224 = scmp.lt.s32.totalorder %s8, 9
      %p225 = pnand %p223, %p224
      %p226 = pneg %p225
      // Predicated region
      $region59: #{down_block_forward.11} parent=5 // pred_check
        _
      $region60: #{down_block_forward.11} parent=5 // pred_check_branch
        %228 = sbr.rel (%p225) target = $region62
      $region61: #{down_block_forward.11} parent=5 // pred_region
        %s229 = ssub.s32 %s8, 1
        %s230 = sand.u32 %s44, 1
        %s231 = sand.u32 %s44, 1
        %s232 = smul.addr %s231, 64
        %s233 = scalar_lea.vmem [#allocation2], %s232
        // Predicated region
        $region63: #{down_block_forward.11} parent=61 // pred_check
          %p234 = pneg %p57
        $region64: #{down_block_forward.11} parent=61 // pred_check_branch
          %236 = sbr.rel (%p234) target = $region66
        $region65: #{down_block_forward.11} parent=61 // pred_region
          _
        $region66: #{down_block_forward.11} parent=61 // pred_fallthru
          _
        %s237 = sand.u32 %s44, 1
        %s238 = sand.u32 %s44, 1
        %s239 = smul.addr %s238, 64
        %s240 = scalar_lea.vmem [#allocation2], %s239
        %p241 = pneg %p57
        %p242 = pneg %p54
        %s243 = smul.u32 %s19, 2
        %s244 = sadd.s32 %s243, %s20
        %p245 = scmp.lt.s32.totalorder %s244, 3
        %s246 = scalar_select %p245, %s244, 3
        %s247 = smul.addr %s246, 8
        %s248 = smul.addr %s247, 8
        %s249 = scalar_lea.vmem %s1, %s248
        %p250 = pneg %p87
        %p251 = pneg %p84
        %p252 = pneg %p117
        %p253 = pneg %p114
        %s254 = sand.u32 %s104, 1
        %s255 = sand.u32 %s104, 1
        %s256 = smul.addr %s255, 64
        %s257 = scalar_lea.vmem [#allocation3], %s256
        %s258 = smul.u32 8, %s19
        %s259 = smul.u32 %s19, 2
        %s260 = sadd.s32 %s259, %s20
        %p261 = scmp.lt.s32.totalorder %s260, 3
        %s262 = scalar_select %p261, %s260, 3
        %s263 = smul.addr %s262, 8
        %s264 = smul.addr %s263, 8
        %s265 = scalar_lea.vmem %s1, %s264
        %s266 = smul.u32 %s19, 2
        %s267 = sadd.s32 %s266, %s20
        %s268 = smul.u32 8, %s19
        %v269 = vld [vmem:[%s233] sm:$0xff]
        %v270 = vld [vmem:[%s233 + $0x8] sm:$0xff]
        %v271 = vld [vmem:[%s233 + $0x10] sm:$0xff]
        %v272 = vld [vmem:[%s233 + $0x18] sm:$0xff]
        %v273 = vld [vmem:[%s233 + $0x20] sm:$0xff]
        %v274 = vld [vmem:[%s233 + $0x28] sm:$0xff]
        %v275 = vld [vmem:[%s233 + $0x30] sm:$0xff]
        %v276 = vld [vmem:[%s233 + $0x38] sm:$0xff]
        %v277 = vmul.f32 %v269, 0.17677669
        %v278 = vmul.f32 %v270, 0.17677669
        %v279 = vmul.f32 %v271, 0.17677669
        %v280 = vmul.f32 %v272, 0.17677669
        %v281 = vmul.f32 %v273, 0.17677669
        %v282 = vmul.f32 %v274, 0.17677669
        %v283 = vmul.f32 %v275, 0.17677669
        %v284 = vmul.f32 %v276, 0.17677669
        %v285 = vld [vmem:[%s265] sm:$0xff]
        %v286 = vld [vmem:[%s265 + $0x8] sm:$0xff]
        %v287 = vld [vmem:[%s265 + $0x10] sm:$0xff]
        %v288 = vld [vmem:[%s265 + $0x18] sm:$0xff]
        %v289 = vld [vmem:[%s265 + $0x20] sm:$0xff]
        %v290 = vld [vmem:[%s265 + $0x28] sm:$0xff]
        %v291 = vld [vmem:[%s265 + $0x30] sm:$0xff]
        %v292 = vld [vmem:[%s265 + $0x38] sm:$0xff]
        %301 = vrot.lane.b32.xlu0 %v269, 96
        %v302 = vpop.permute.xlu0 %301
        %303 = vrot.lane.b32.xlu0 %v270, 96
        %v304 = vpop.permute.xlu0 %303
        %305 = vrot.lane.b32.xlu0 %v271, 96
        %v306 = vpop.permute.xlu0 %305
        %307 = vrot.lane.b32.xlu0 %v272, 96
        %v308 = vpop.permute.xlu0 %307
        %309 = vrot.lane.b32.xlu0 %v273, 96
        %v310 = vpop.permute.xlu0 %309
        %311 = vrot.lane.b32.xlu0 %v274, 96
        %v312 = vpop.permute.xlu0 %311
        %313 = vrot.lane.b32.xlu0 %v275, 96
        %v314 = vpop.permute.xlu0 %313
        %315 = vrot.lane.b32.xlu0 %v276, 96
        %v316 = vpop.permute.xlu0 %315
        %vm317 = vcmask 261120
        %v319 = vsel %vm317, %v277, 0
        %v322 = vsel %vm317, %v278, 0
        %v325 = vsel %vm317, %v279, 0
        %v328 = vsel %vm317, %v280, 0
        %v331 = vsel %vm317, %v281, 0
        %v334 = vsel %vm317, %v282, 0
        %v337 = vsel %vm317, %v283, 0
        %v340 = vsel %vm317, %v284, 0
        %v342 = vsel %vm317, %v302, 0
        %v344 = vsel %vm317, %v304, 0
        %v346 = vsel %vm317, %v306, 0
        %v348 = vsel %vm317, %v308, 0
        %v350 = vsel %vm317, %v310, 0
        %v352 = vsel %vm317, %v312, 0
        %v354 = vsel %vm317, %v314, 0
        %v356 = vsel %vm317, %v316, 0
        %358 = vmatpush.xpose.msra.mxu0 0.0
        %359 = vmatpush.xpose.msra.mxu0 0.0
        %360 = vmatpush.xpose.msra.mxu0 0.0
        %361 = vmatpush.xpose.msra.mxu0 0.0
        %362 = vmatpush.xpose.msra.mxu0 0.0
        %363 = vmatpush.xpose.msra.mxu0 0.0
        %364 = vmatpush.xpose.msra.mxu0 0.0
        %365 = vmatpush.xpose.msra.mxu0 0.0
        %366 = vmatpush.xpose.msra.mxu0 %v356
        %367 = vmatpush.xpose.msra.mxu0 %v354
        %368 = vmatpush.xpose.msra.mxu0 %v352
        %369 = vmatpush.xpose.msra.mxu0 %v350
        %370 = vmatpush.xpose.msra.mxu0 %v348
        %371 = vmatpush.xpose.msra.mxu0 %v346
        %372 = vmatpush.xpose.msra.mxu0 %v344
        %373 = vmatpush.xpose.msra.mxu0 %v342
        %374 = vmatmul.f32.gmra.mxu0 %v319
        %v375 = vpop.f32.mrf.mxu0
        %v376 = vadd.f32 %v285, %v375
        %377 = vmatmul.f32.gmra.mxu0 %v322
        %v378 = vpop.f32.mrf.mxu0
        %v379 = vadd.f32 %v286, %v378
        %380 = vmatmul.f32.gmra.mxu0 %v325
        %v381 = vpop.f32.mrf.mxu0
        %v382 = vadd.f32 %v287, %v381
        %383 = vmatmul.f32.gmra.mxu0 %v328
        %v384 = vpop.f32.mrf.mxu0
        %v385 = vadd.f32 %v288, %v384
        %386 = vmatmul.f32.gmra.mxu0 %v331
        %v387 = vpop.f32.mrf.mxu0
        %v388 = vadd.f32 %v289, %v387
        %389 = vmatmul.f32.gmra.mxu0 %v334
        %v390 = vpop.f32.mrf.mxu0
        %v391 = vadd.f32 %v290, %v390
        %392 = vmatmul.f32.gmra.mxu0 %v337
        %v393 = vpop.f32.mrf.mxu0
        %v394 = vadd.f32 %v291, %v393
        %395 = vmatmul.f32.gmra.mxu0 %v340
        %v396 = vpop.f32.mrf.mxu0
        %v397 = vadd.f32 %v292, %v396
        %398 = vdwg.mxu0
        %vm399 = vcmask 523264
        %v400 = vsel %vm399, %v376, -inf
        %401 = vmax.xlane.f32.xlu0 %v400
        %v402 = vpop.xlane.xlu0 %401
        %v403 = vsel %vm399, %v379, -inf
        %404 = vmax.xlane.f32.xlu0 %v403
        %v405 = vpop.xlane.xlu0 %404
        %v406 = vsel %vm399, %v382, -inf
        %407 = vmax.xlane.f32.xlu0 %v406
        %v408 = vpop.xlane.xlu0 %407
        %v409 = vsel %vm399, %v385, -inf
        %410 = vmax.xlane.f32.xlu0 %v409
        %v411 = vpop.xlane.xlu0 %410
        %v412 = vsel %vm399, %v388, -inf
        %413 = vmax.xlane.f32.xlu0 %v412
        %v414 = vpop.xlane.xlu0 %413
        %v415 = vsel %vm399, %v391, -inf
        %416 = vmax.xlane.f32.xlu0 %v415
        %v417 = vpop.xlane.xlu0 %416
        %v418 = vsel %vm399, %v394, -inf
        %419 = vmax.xlane.f32.xlu0 %v418
        %v420 = vpop.xlane.xlu0 %419
        %v421 = vsel %vm399, %v397, -inf
        %422 = vmax.xlane.f32.xlu0 %v421
        %v423 = vpop.xlane.xlu0 %422
        %v424 = vsub.f32 %v376, %v402
        %v425 = vsub.f32 %v379, %v405
        %v426 = vsub.f32 %v382, %v408
        %v427 = vsub.f32 %v385, %v411
        %v428 = vsub.f32 %v388, %v414
        %v429 = vsub.f32 %v391, %v417
        %v430 = vsub.f32 %v394, %v420
        %v431 = vsub.f32 %v397, %v423
        %v432 = vmul.f32 %v424, 1.442695
        %v433 = vpow.pop %v432
        %v434 = vmul.f32 %v425, 1.442695
        %v435 = vpow.pop %v434
        %v436 = vmul.f32 %v426, 1.442695
        %v437 = vpow.pop %v436
        %v438 = vmul.f32 %v427, 1.442695
        %v439 = vpow.pop %v438
        %v440 = vmul.f32 %v428, 1.442695
        %v441 = vpow.pop %v440
        %v442 = vmul.f32 %v429, 1.442695
        %v443 = vpow.pop %v442
        %v444 = vmul.f32 %v430, 1.442695
        %v445 = vpow.pop %v444
        %v446 = vmul.f32 %v431, 1.442695
        %v447 = vpow.pop %v446
        %v448 = vsel %vm399, %v433, 0.0
        %449 = vadd.xlane.f32.xlu0 %v448
        %v450 = vpop.xlane.xlu0 %449
        %v451 = vsel %vm399, %v435, 0.0
        %452 = vadd.xlane.f32.xlu0 %v451
        %v453 = vpop.xlane.xlu0 %452
        %v454 = vsel %vm399, %v437, 0.0
        %455 = vadd.xlane.f32.xlu0 %v454
        %v456 = vpop.xlane.xlu0 %455
        %v457 = vsel %vm399, %v439, 0.0
        %458 = vadd.xlane.f32.xlu0 %v457
        %v459 = vpop.xlane.xlu0 %458
        %v460 = vsel %vm399, %v441, 0.0
        %461 = vadd.xlane.f32.xlu0 %v460
        %v462 = vpop.xlane.xlu0 %461
        %v463 = vsel %vm399, %v443, 0.0
        %464 = vadd.xlane.f32.xlu0 %v463
        %v465 = vpop.xlane.xlu0 %464
        %v466 = vsel %vm399, %v445, 0.0
        %467 = vadd.xlane.f32.xlu0 %v466
        %v468 = vpop.xlane.xlu0 %467
        %v469 = vsel %vm399, %v447, 0.0
        %470 = vadd.xlane.f32.xlu0 %v469
        %v471 = vpop.xlane.xlu0 %470
        %v472 = vrcp.pop %v450
        %v473 = vrcp.pop %v453
        %v474 = vrcp.pop %v456
        %v475 = vrcp.pop %v459
        %v476 = vrcp.pop %v462
        %v477 = vrcp.pop %v465
        %v478 = vrcp.pop %v468
        %v479 = vrcp.pop %v471
        %v480 = vmul.f32 %v433, %v472
        %v481 = vmul.f32 %v435, %v473
        %v482 = vmul.f32 %v437, %v474
        %v483 = vmul.f32 %v439, %v475
        %v484 = vmul.f32 %v441, %v476
        %v485 = vmul.f32 %v443, %v477
        %v486 = vmul.f32 %v445, %v478
        %v487 = vmul.f32 %v447, %v479
        %488 = vrot.lane.b32.xlu0 %v269, 64
        %v489 = vpop.permute.xlu0 %488
        %490 = vrot.lane.b32.xlu0 %v270, 64
        %v491 = vpop.permute.xlu0 %490
        %492 = vrot.lane.b32.xlu0 %v271, 64
        %v493 = vpop.permute.xlu0 %492
        %494 = vrot.lane.b32.xlu0 %v272, 64
        %v495 = vpop.permute.xlu0 %494
        %496 = vrot.lane.b32.xlu0 %v273, 64
        %v497 = vpop.permute.xlu0 %496
        %498 = vrot.lane.b32.xlu0 %v274, 64
        %v499 = vpop.permute.xlu0 %498
        %500 = vrot.lane.b32.xlu0 %v275, 64
        %v501 = vpop.permute.xlu0 %500
        %502 = vrot.lane.b32.xlu0 %v276, 64
        %v503 = vpop.permute.xlu0 %502
        %v513 = vsel %vm399, %v480, 0
        %v516 = vsel %vm399, %v481, 0
        %v519 = vsel %vm399, %v482, 0
        %v522 = vsel %vm399, %v483, 0
        %v525 = vsel %vm399, %v484, 0
        %v528 = vsel %vm399, %v485, 0
        %v531 = vsel %vm399, %v486, 0
        %v534 = vsel %vm399, %v487, 0
        %536 = vmatpush.msra.mxu0 0.0
        %537 = vmatpush.msra.mxu0 0.0
        %538 = vmatpush.msra.mxu0 0.0
        %539 = vmatpush.msra.mxu0 0.0
        %540 = vmatpush.msra.mxu0 0.0
        %541 = vmatpush.msra.mxu0 0.0
        %542 = vmatpush.msra.mxu0 0.0
        %543 = vmatpush.msra.mxu0 0.0
        %544 = vmatpush.msra.mxu0 %v503
        %545 = vmatpush.msra.mxu0 %v501
        %546 = vmatpush.msra.mxu0 %v499
        %547 = vmatpush.msra.mxu0 %v497
        %548 = vmatpush.msra.mxu0 %v495
        %549 = vmatpush.msra.mxu0 %v493
        %550 = vmatpush.msra.mxu0 %v491
        %551 = vmatpush.msra.mxu0 %v489
        %552 = vmatmul.f32.gmra.mxu0 %v513
        %v553 = vpop.f32.mrf.mxu0
        %v554 = vadd.f32 0.0, %v553
        %555 = vmatmul.f32.gmra.mxu0 %v516
        %v556 = vpop.f32.mrf.mxu0
        %v557 = vadd.f32 0.0, %v556
        %558 = vmatmul.f32.gmra.mxu0 %v519
        %v559 = vpop.f32.mrf.mxu0
        %v560 = vadd.f32 0.0, %v559
        %561 = vmatmul.f32.gmra.mxu0 %v522
        %v562 = vpop.f32.mrf.mxu0
        %v563 = vadd.f32 0.0, %v562
        %564 = vmatmul.f32.gmra.mxu0 %v525
        %v565 = vpop.f32.mrf.mxu0
        %v566 = vadd.f32 0.0, %v565
        %567 = vmatmul.f32.gmra.mxu0 %v528
        %v568 = vpop.f32.mrf.mxu0
        %v569 = vadd.f32 0.0, %v568
        %570 = vmatmul.f32.gmra.mxu0 %v531
        %v571 = vpop.f32.mrf.mxu0
        %v572 = vadd.f32 0.0, %v571
        %573 = vmatmul.f32.gmra.mxu0 %v534
        %v574 = vpop.f32.mrf.mxu0
        %v575 = vadd.f32 0.0, %v574
        %576 = vdwg.mxu0
        %577 = vst.msk [vmem:[%s257] sm:$0xff] %vm317, %v554
        %578 = vst.msk [vmem:[%s257 + $0x8] sm:$0xff] %vm317, %v557
        %579 = vst.msk [vmem:[%s257 + $0x10] sm:$0xff] %vm317, %v560
        %580 = vst.msk [vmem:[%s257 + $0x18] sm:$0xff] %vm317, %v563
        %581 = vst.msk [vmem:[%s257 + $0x20] sm:$0xff] %vm317, %v566
        %582 = vst.msk [vmem:[%s257 + $0x28] sm:$0xff] %vm317, %v569
        %583 = vst.msk [vmem:[%s257 + $0x30] sm:$0xff] %vm317, %v572
        %584 = vst.msk [vmem:[%s257 + $0x38] sm:$0xff] %vm317, %v575
        %s585 = sand.u32 %s104, 1
        %s586 = sand.u32 %s104, 1
        %s587 = smul.addr %s586, 64
        %s588 = scalar_lea.vmem [#allocation3], %s587
        // Predicated region
        $region67: #{down_block_forward.11} parent=61 // pred_check
          %p589 = pneg %p114
        $region68: #{down_block_forward.11} parent=61 // pred_check_branch
          %591 = sbr.rel (%p589) target = $region70
        $region69: #{down_block_forward.11} parent=61 // pred_region
          %s592 = smul.u32 8, %s19
          %s593 = smul.addr %s592, 2
          %s594 = sadd.s32 %s20, %s593
          %s595 = smul.addr %s18, 32
          %s596 = sadd.s32 %s594, %s595
          %s597 = smul.addr %s596, 8
          %s598 = scalar_lea.vmem %s2, %s597
          // Predicated region
          $region71: #{down_block_forward.11} parent=69 // pred_check
            _
          $region72: #{down_block_forward.11} parent=69 // pred_check_branch
            %600 = sbr.rel (0) target = $region74
          $region73: #{down_block_forward.11} parent=69 // pred_region
            // Predicated region
            $region75: #{down_block_forward.11} parent=73 // pred_check
              _
            $region76: #{down_block_forward.11} parent=73 // pred_check_branch
              %602 = sbr.rel (0) target = $region78
            $region77: #{down_block_forward.11} parent=73 // pred_region
              // Predicated region
              $region90: #{down_block_forward.11} parent=77 // pred_check
                _
              $region91: #{down_block_forward.11} parent=77 // pred_check_branch
                %632 = sbr.rel (0) target = $region93
              $region92: #{down_block_forward.11} parent=77 // pred_region
                loop: start=0, step=1, limit=1
                $region94: #{down_block_forward.11} parent=92 // loop_pre_header
                  _
                $region95: #{down_block_forward.11} parent=92 // loop_header
                  %s634 = sphi 0, %s638
                  %p635 = scmp.ge.s32.totalorder %s634, 1
                  %s639 = sphi %s588, %s588
                  %s640 = sphi %s598, %s598
                $region96: #{down_block_forward.11} parent=92 // loop_header_branch
                  %637 = sbr.rel (%p635) target = $region100
                $region97: #{down_block_forward.11} parent=92 // loop_body
                  %v641 = vld [vmem:[%s639] sm:$0xff]
                  %642 = vst [vmem:[%s640] sm:$0xff] %v641
                  %v643 = vld [vmem:[%s639 + $0x8] sm:$0xff]
                  %644 = vst [vmem:[%s640 + $0x10] sm:$0xff] %v643
                  %v645 = vld [vmem:[%s639 + $0x10] sm:$0xff]
                  %646 = vst [vmem:[%s640 + $0x20] sm:$0xff] %v645
                  %v647 = vld [vmem:[%s639 + $0x18] sm:$0xff]
                  %648 = vst [vmem:[%s640 + $0x30] sm:$0xff] %v647
                  %v649 = vld [vmem:[%s639 + $0x20] sm:$0xff]
                  %650 = vst [vmem:[%s640 + $0x40] sm:$0xff] %v649
                  %v651 = vld [vmem:[%s639 + $0x28] sm:$0xff]
                  %652 = vst [vmem:[%s640 + $0x50] sm:$0xff] %v651
                  %v653 = vld [vmem:[%s639 + $0x30] sm:$0xff]
                  %654 = vst [vmem:[%s640 + $0x60] sm:$0xff] %v653
                  %v655 = vld [vmem:[%s639 + $0x38] sm:$0xff]
                  %656 = vst [vmem:[%s640 + $0x70] sm:$0xff] %v655
                $region98: #{down_block_forward.11} parent=92 // loop_footer
                  %s638 = sadd.s32 1, %s634
                $region99: #{down_block_forward.11} parent=92 // loop_footer_branch
                  %633 = sbr.rel target = $region95
                $region100: #{down_block_forward.11} parent=92 // loop_exit
                  _
              $region93: #{down_block_forward.11} parent=77 // pred_fallthru
                _
              // Predicated region
              $region101: #{down_block_forward.11} parent=77 // pred_check
                _
              $region102: #{down_block_forward.11} parent=77 // pred_check_branch
                %658 = sbr.rel target = $region104
              $region103: #{down_block_forward.11} parent=77 // pred_region
                _
              $region104: #{down_block_forward.11} parent=77 // pred_fallthru
                _
            $region78: #{down_block_forward.11} parent=73 // pred_fallthru
              _
            // Predicated region
            $region79: #{down_block_forward.11} parent=73 // pred_check
              _
            $region80: #{down_block_forward.11} parent=73 // pred_check_branch
              %604 = sbr.rel target = $region82
            $region81: #{down_block_forward.11} parent=73 // pred_region
              %s606 = ssub.s32 256, 1
              loop: start=0, step=1, limit=1
              $region83: #{down_block_forward.11} parent=81 // loop_pre_header
                _
              $region84: #{down_block_forward.11} parent=81 // loop_header
                %s608 = sphi 0, %s612
                %p609 = scmp.ge.s32.totalorder %s608, 1
                %s613 = sphi %s588, %s588
                %s614 = sphi %s598, %s598
              $region85: #{down_block_forward.11} parent=81 // loop_header_branch
                %611 = sbr.rel (%p609) target = $region89
              $region86: #{down_block_forward.11} parent=81 // loop_body
                %v615 = vld [vmem:[%s613] sm:%s606]
                %616 = vst [vmem:[%s614] sm:%s606] %v615
                %v617 = vld [vmem:[%s613 + $0x8] sm:%s606]
                %618 = vst [vmem:[%s614 + $0x10] sm:%s606] %v617
                %v619 = vld [vmem:[%s613 + $0x10] sm:%s606]
                %620 = vst [vmem:[%s614 + $0x20] sm:%s606] %v619
                %v621 = vld [vmem:[%s613 + $0x18] sm:%s606]
                %622 = vst [vmem:[%s614 + $0x30] sm:%s606] %v621
                %v623 = vld [vmem:[%s613 + $0x20] sm:%s606]
                %624 = vst [vmem:[%s614 + $0x40] sm:%s606] %v623
                %v625 = vld [vmem:[%s613 + $0x28] sm:%s606]
                %626 = vst [vmem:[%s614 + $0x50] sm:%s606] %v625
                %v627 = vld [vmem:[%s613 + $0x30] sm:%s606]
                %628 = vst [vmem:[%s614 + $0x60] sm:%s606] %v627
                %v629 = vld [vmem:[%s613 + $0x38] sm:%s606]
                %630 = vst [vmem:[%s614 + $0x70] sm:%s606] %v629
              $region87: #{down_block_forward.11} parent=81 // loop_footer
                %s612 = sadd.s32 1, %s608
              $region88: #{down_block_forward.11} parent=81 // loop_footer_branch
                %607 = sbr.rel target = $region84
              $region89: #{down_block_forward.11} parent=81 // loop_exit
                _
            $region82: #{down_block_forward.11} parent=73 // pred_fallthru
              _
          $region74: #{down_block_forward.11} parent=69 // pred_fallthru
            _
          %659 = vnop
        $region70: #{down_block_forward.11} parent=61 // pred_fallthru
          _
      $region62: #{down_block_forward.11} parent=5 // pred_fallthru
        _
      %p660 = scmp.le.s32.totalorder 2, %s8
      // Predicated region
      $region105: #{down_block_forward.11} parent=5 // pred_check
        %p661 = pneg %p660
      $region106: #{down_block_forward.11} parent=5 // pred_check_branch
        %663 = sbr.rel (%p661) target = $region108
      $region107: #{down_block_forward.11} parent=5 // pred_region
        %s664 = ssub.s32 %s8, 2
        // Predicated region
        $region109: #{down_block_forward.11} parent=107 // pred_check
          %p665 = pneg %p120
        $region110: #{down_block_forward.11} parent=107 // pred_check_branch
          %667 = sbr.rel (%p665) target = $region112
        $region111: #{down_block_forward.11} parent=107 // pred_region
          %s668 = sand.u32 %s105, 1
          %s669 = sand.u32 %s105, 1
          %s670 = smul.addr %s669, 64
          %s671 = scalar_lea.vmem [#allocation3], %s670
        $region112: #{down_block_forward.11} parent=107 // pred_fallthru
          _
      $region108: #{down_block_forward.11} parent=5 // pred_fallthru
        _
    $region6: #{down_block_forward.11} parent=1 // loop_footer
      %s12 = sadd.s32 1, %s8
    $region7: #{down_block_forward.11} parent=1 // loop_footer_branch
      %7 = sbr.rel target = $region3
    $region8: #{down_block_forward.11} parent=1 // loop_exit
      _

// kernel: down_block_forward.13
$region0: #{down_block_forward.13}
  #allocation0 [shape = 'u32[]', space=smem, size = 0x4, offset = 0x4, fixed_abs, tag = 'smem constant byte address 0x4 - core index']
  #allocation1 [shape = 'u32[72,128]{1,0:T(1,128)}', space=vmem, size = 0x9000, scoped, tag = 'internal scratch']
  %s0 = inlined_call_operand.vmem [shape: f32[128,128], index: 0, kind: input, shape index: {}]
  %s1 = inlined_call_operand.vmem [shape: f32[1,128], index: 1, kind: input, shape index: {}]
  %s2 = inlined_call_operand.vmem [shape: f32[1,128], index: 2, kind: input, shape index: {}]
  %s3 = inlined_call_operand.vmem [shape: f32[128,64], index: 3, kind: input, shape index: {}]
  %s4 = inlined_call_operand.vmem [shape: f32[1,64], index: 4, kind: input, shape index: {}]
  %s5 = inlined_call_operand.hbm [shape: f32[128,64], index: 5, kind: output, shape index: {}]
  %s6 = sld [smem:[#allocation0]]
  $region30: #{down_block_forward.13} parent=0
    _
  %s8 = ssub.s32 1, %s6
  %s9 = scalar_select 0, %s8, %s6
  $region1: #{down_block_forward.13} parent=0
    #allocation2 [shape = 'u8[65536]{0}', space=vmem, size = 0x10000, scoped, tag = 'output window, operand 0, single buffered']
    #allocation3 [shape = 's32[1]{0}', space=sflag, size = 0x4, scoped, tag = 'scoped memory for down_block_forward.13']
    %10 = vsyncpa [#allocation3], 0
    // Predicated region
    $region2: #{down_block_forward.13} parent=1 // pred_check
      _
    $region3: #{down_block_forward.13} parent=1 // pred_check_branch
      %12 = sbr.rel (0) target = $region5
    $region4: #{down_block_forward.13} parent=1 // pred_region
      _
    $region5: #{down_block_forward.13} parent=1 // pred_fallthru
      _
    // Predicated region
    $region6: #{down_block_forward.13} parent=1 // pred_check
      _
    $region7: #{down_block_forward.13} parent=1 // pred_check_branch
      %14 = sbr.rel (0) target = $region9
    $region8: #{down_block_forward.13} parent=1 // pred_region
      _
    $region9: #{down_block_forward.13} parent=1 // pred_fallthru
      _
    // Predicated region
    $region10: #{down_block_forward.13} parent=1 // pred_check
      _
    $region11: #{down_block_forward.13} parent=1 // pred_check_branch
      %16 = sbr.rel (0) target = $region13
    $region12: #{down_block_forward.13} parent=1 // pred_region
      _
    $region13: #{down_block_forward.13} parent=1 // pred_fallthru
      _
    // Predicated region
    $region14: #{down_block_forward.13} parent=1 // pred_check
      _
    $region15: #{down_block_forward.13} parent=1 // pred_check_branch
      %18 = sbr.rel (0) target = $region17
    $region16: #{down_block_forward.13} parent=1 // pred_region
      _
    $region17: #{down_block_forward.13} parent=1 // pred_fallthru
      _
    // Predicated region
    $region18: #{down_block_forward.13} parent=1 // pred_check
      _
    $region19: #{down_block_forward.13} parent=1 // pred_check_branch
      %20 = sbr.rel (0) target = $region21
    $region20: #{down_block_forward.13} parent=1 // pred_region
      _
    $region21: #{down_block_forward.13} parent=1 // pred_fallthru
      _
    %v21 = vld [vmem:[%s0] sm:$0xff]
    %v22 = vld [vmem:[%s0 + $0x8] sm:$0xff]
    %v23 = vld [vmem:[%s0 + $0x10] sm:$0xff]
    %v24 = vld [vmem:[%s0 + $0x18] sm:$0xff]
    %v25 = vld [vmem:[%s0 + $0x20] sm:$0xff]
    %v26 = vld [vmem:[%s0 + $0x28] sm:$0xff]
    %v27 = vld [vmem:[%s0 + $0x30] sm:$0xff]
    %v28 = vld [vmem:[%s0 + $0x38] sm:$0xff]
    %v29 = vld [vmem:[%s0 + $0x40] sm:$0xff]
    %v30 = vld [vmem:[%s0 + $0x48] sm:$0xff]
    %v31 = vld [vmem:[%s0 + $0x50] sm:$0xff]
    %v32 = vld [vmem:[%s0 + $0x58] sm:$0xff]
    %v33 = vld [vmem:[%s0 + $0x60] sm:$0xff]
    %v34 = vld [vmem:[%s0 + $0x68] sm:$0xff]
    %v35 = vld [vmem:[%s0 + $0x70] sm:$0xff]
    %v36 = vld [vmem:[%s0 + $0x78] sm:$0xff]
    %v37 = vld [vmem:[%s1] sm:$0x1]
    %v38 = vld [vmem:[%s2] sm:$0x1]
    %39 = vadd.xlane.f32.xlu0 %v21
    %v40 = vpop.xlane.xlu0 %39
    %41 = vadd.xlane.f32.xlu0 %v22
    %v42 = vpop.xlane.xlu0 %41
    %43 = vadd.xlane.f32.xlu0 %v23
    %v44 = vpop.xlane.xlu0 %43
    %45 = vadd.xlane.f32.xlu0 %v24
    %v46 = vpop.xlane.xlu0 %45
    %47 = vadd.xlane.f32.xlu0 %v25
    %v48 = vpop.xlane.xlu0 %47
    %49 = vadd.xlane.f32.xlu0 %v26
    %v50 = vpop.xlane.xlu0 %49
    %51 = vadd.xlane.f32.xlu0 %v27
    %v52 = vpop.xlane.xlu0 %51
    %53 = vadd.xlane.f32.xlu0 %v28
    %v54 = vpop.xlane.xlu0 %53
    %55 = vadd.xlane.f32.xlu0 %v29
    %v56 = vpop.xlane.xlu0 %55
    %57 = vadd.xlane.f32.xlu0 %v30
    %v58 = vpop.xlane.xlu0 %57
    %59 = vadd.xlane.f32.xlu0 %v31
    %v60 = vpop.xlane.xlu0 %59
    %61 = vadd.xlane.f32.xlu0 %v32
    %v62 = vpop.xlane.xlu0 %61
    %63 = vadd.xlane.f32.xlu0 %v33
    %v64 = vpop.xlane.xlu0 %63
    %65 = vadd.xlane.f32.xlu0 %v34
    %v66 = vpop.xlane.xlu0 %65
    %67 = vadd.xlane.f32.xlu0 %v35
    %v68 = vpop.xlane.xlu0 %67
    %69 = vadd.xlane.f32.xlu0 %v36
    %v70 = vpop.xlane.xlu0 %69
    %v71 = vrcp.pop 128.0
    %v72 = vmul.f32 128.0, %v71
    %v73 = vsub.f32 1.0, %v72
    %v74 = vmul.f32 %v71, %v73
    %v75 = vadd.f32 %v71, %v74
    %vm76 = vweird.f32 %v71
    %v77 = vsel %vm76, %v71, %v75
    %v78 = vmul.f32 %v40, %v77
    %v79 = vmul.f32 %v42, %v77
    %v80 = vmul.f32 %v44, %v77
    %v81 = vmul.f32 %v46, %v77
    %v82 = vmul.f32 %v48, %v77
    %v83 = vmul.f32 %v50, %v77
    %v84 = vmul.f32 %v52, %v77
    %v85 = vmul.f32 %v54, %v77
    %v86 = vmul.f32 %v56, %v77
    %v87 = vmul.f32 %v58, %v77
    %v88 = vmul.f32 %v60, %v77
    %v89 = vmul.f32 %v62, %v77
    %v90 = vmul.f32 %v64, %v77
    %v91 = vmul.f32 %v66, %v77
    %v92 = vmul.f32 %v68, %v77
    %v93 = vmul.f32 %v70, %v77
    %v94 = vsub.f32 %v21, %v78
    %v95 = vsub.f32 %v22, %v79
    %v96 = vsub.f32 %v23, %v80
    %v97 = vsub.f32 %v24, %v81
    %v98 = vsub.f32 %v25, %v82
    %v99 = vsub.f32 %v26, %v83
    %v100 = vsub.f32 %v27, %v84
    %v101 = vsub.f32 %v28, %v85
    %v102 = vsub.f32 %v29, %v86
    %v103 = vsub.f32 %v30, %v87
    %v104 = vsub.f32 %v31, %v88
    %v105 = vsub.f32 %v32, %v89
    %v106 = vsub.f32 %v33, %v90
    %v107 = vsub.f32 %v34, %v91
    %v108 = vsub.f32 %v35, %v92
    %v109 = vsub.f32 %v36, %v93
    %v110 = vmul.f32 %v94, %v94
    %v111 = vmul.f32 %v95, %v95
    %v112 = vmul.f32 %v96, %v96
    %v113 = vmul.f32 %v97, %v97
    %v114 = vmul.f32 %v98, %v98
    %v115 = vmul.f32 %v99, %v99
    %v116 = vmul.f32 %v100, %v100
    %v117 = vmul.f32 %v101, %v101
    %v118 = vmul.f32 %v102, %v102
    %v119 = vmul.f32 %v103, %v103
    %v120 = vmul.f32 %v104, %v104
    %v121 = vmul.f32 %v105, %v105
    %v122 = vmul.f32 %v106, %v106
    %v123 = vmul.f32 %v107, %v107
    %v124 = vmul.f32 %v108, %v108
    %v125 = vmul.f32 %v109, %v109
    %126 = vadd.xlane.f32.xlu0 %v110
    %v127 = vpop.xlane.xlu0 %126
    %128 = vadd.xlane.f32.xlu0 %v111
    %v129 = vpop.xlane.xlu0 %128
    %130 = vadd.xlane.f32.xlu0 %v112
    %v131 = vpop.xlane.xlu0 %130
    %132 = vadd.xlane.f32.xlu0 %v113
    %v133 = vpop.xlane.xlu0 %132
    %134 = vadd.xlane.f32.xlu0 %v114
    %v135 = vpop.xlane.xlu0 %134
    %136 = vadd.xlane.f32.xlu0 %v115
    %v137 = vpop.xlane.xlu0 %136
    %138 = vadd.xlane.f32.xlu0 %v116
    %v139 = vpop.xlane.xlu0 %138
    %140 = vadd.xlane.f32.xlu0 %v117
    %v141 = vpop.xlane.xlu0 %140
    %142 = vadd.xlane.f32.xlu0 %v118
    %v143 = vpop.xlane.xlu0 %142
    %144 = vadd.xlane.f32.xlu0 %v119
    %v145 = vpop.xlane.xlu0 %144
    %146 = vadd.xlane.f32.xlu0 %v120
    %v147 = vpop.xlane.xlu0 %146
    %148 = vadd.xlane.f32.xlu0 %v121
    %v149 = vpop.xlane.xlu0 %148
    %150 = vadd.xlane.f32.xlu0 %v122
    %v151 = vpop.xlane.xlu0 %150
    %152 = vadd.xlane.f32.xlu0 %v123
    %v153 = vpop.xlane.xlu0 %152
    %154 = vadd.xlane.f32.xlu0 %v124
    %v155 = vpop.xlane.xlu0 %154
    %156 = vadd.xlane.f32.xlu0 %v125
    %v157 = vpop.xlane.xlu0 %156
    %v158 = vmul.f32 %v127, %v77
    %v159 = vmul.f32 %v129, %v77
    %v160 = vmul.f32 %v131, %v77
    %v161 = vmul.f32 %v133, %v77
    %v162 = vmul.f32 %v135, %v77
    %v163 = vmul.f32 %v137, %v77
    %v164 = vmul.f32 %v139, %v77
    %v165 = vmul.f32 %v141, %v77
    %v166 = vmul.f32 %v143, %v77
    %v167 = vmul.f32 %v145, %v77
    %v168 = vmul.f32 %v147, %v77
    %v169 = vmul.f32 %v149, %v77
    %v170 = vmul.f32 %v151, %v77
    %v171 = vmul.f32 %v153, %v77
    %v172 = vmul.f32 %v155, %v77
    %v173 = vmul.f32 %v157, %v77
    %v174 = vadd.f32 %v158, 1e-05
    %v175 = vadd.f32 %v159, 1e-05
    %v176 = vadd.f32 %v160, 1e-05
    %v177 = vadd.f32 %v161, 1e-05
    %v178 = vadd.f32 %v162, 1e-05
    %v179 = vadd.f32 %v163, 1e-05
    %v180 = vadd.f32 %v164, 1e-05
    %v181 = vadd.f32 %v165, 1e-05
    %v182 = vadd.f32 %v166, 1e-05
    %v183 = vadd.f32 %v167, 1e-05
    %v184 = vadd.f32 %v168, 1e-05
    %v185 = vadd.f32 %v169, 1e-05
    %v186 = vadd.f32 %v170, 1e-05
    %v187 = vadd.f32 %v171, 1e-05
    %v188 = vadd.f32 %v172, 1e-05
    %v189 = vadd.f32 %v173, 1e-05
    %v190 = vrsqrt.pop %v174
    %v191 = vmul.f32 %v190, %v174
    %v192 = vmul.f32 %v191, %v190
    %v193 = vmul.f32 0.5, %v192
    %v194 = vsub.f32 1.5, %v193
    %v195 = vmul.f32 %v190, %v194
    %vm196 = vweird.f32 %v174
    %vm197 = vweird.f32 %v190
    %vm198 = vmor %vm196, %vm197
    %v199 = vsel %vm198, %v190, %v195
    %v200 = vrsqrt.pop %v175
    %v201 = vmul.f32 %v200, %v175
    %v202 = vmul.f32 %v201, %v200
    %v203 = vmul.f32 0.5, %v202
    %v204 = vsub.f32 1.5, %v203
    %v205 = vmul.f32 %v200, %v204
    %vm206 = vweird.f32 %v175
    %vm207 = vweird.f32 %v200
    %vm208 = vmor %vm206, %vm207
    %v209 = vsel %vm208, %v200, %v205
    %v210 = vrsqrt.pop %v176
    %v211 = vmul.f32 %v210, %v176
    %v212 = vmul.f32 %v211, %v210
    %v213 = vmul.f32 0.5, %v212
    %v214 = vsub.f32 1.5, %v213
    %v215 = vmul.f32 %v210, %v214
    %vm216 = vweird.f32 %v176
    %vm217 = vweird.f32 %v210
    %vm218 = vmor %vm216, %vm217
    %v219 = vsel %vm218, %v210, %v215
    %v220 = vrsqrt.pop %v177
    %v221 = vmul.f32 %v220, %v177
    %v222 = vmul.f32 %v221, %v220
    %v223 = vmul.f32 0.5, %v222
    %v224 = vsub.f32 1.5, %v223
    %v225 = vmul.f32 %v220, %v224
    %vm226 = vweird.f32 %v177
    %vm227 = vweird.f32 %v220
    %vm228 = vmor %vm226, %vm227
    %v229 = vsel %vm228, %v220, %v225
    %v230 = vrsqrt.pop %v178
    %v231 = vmul.f32 %v230, %v178
    %v232 = vmul.f32 %v231, %v230
    %v233 = vmul.f32 0.5, %v232
    %v234 = vsub.f32 1.5, %v233
    %v235 = vmul.f32 %v230, %v234
    %vm236 = vweird.f32 %v178
    %vm237 = vweird.f32 %v230
    %vm238 = vmor %vm236, %vm237
    %v239 = vsel %vm238, %v230, %v235
    %v240 = vrsqrt.pop %v179
    %v241 = vmul.f32 %v240, %v179
    %v242 = vmul.f32 %v241, %v240
    %v243 = vmul.f32 0.5, %v242
    %v244 = vsub.f32 1.5, %v243
    %v245 = vmul.f32 %v240, %v244
    %vm246 = vweird.f32 %v179
    %vm247 = vweird.f32 %v240
    %vm248 = vmor %vm246, %vm247
    %v249 = vsel %vm248, %v240, %v245
    %v250 = vrsqrt.pop %v180
    %v251 = vmul.f32 %v250, %v180
    %v252 = vmul.f32 %v251, %v250
    %v253 = vmul.f32 0.5, %v252
    %v254 = vsub.f32 1.5, %v253
    %v255 = vmul.f32 %v250, %v254
    %vm256 = vweird.f32 %v180
    %vm257 = vweird.f32 %v250
    %vm258 = vmor %vm256, %vm257
    %v259 = vsel %vm258, %v250, %v255
    %v260 = vrsqrt.pop %v181
    %v261 = vmul.f32 %v260, %v181
    %v262 = vmul.f32 %v261, %v260
    %v263 = vmul.f32 0.5, %v262
    %v264 = vsub.f32 1.5, %v263
    %v265 = vmul.f32 %v260, %v264
    %vm266 = vweird.f32 %v181
    %vm267 = vweird.f32 %v260
    %vm268 = vmor %vm266, %vm267
    %v269 = vsel %vm268, %v260, %v265
    %v270 = vrsqrt.pop %v182
    %v271 = vmul.f32 %v270, %v182
    %v272 = vmul.f32 %v271, %v270
    %v273 = vmul.f32 0.5, %v272
    %v274 = vsub.f32 1.5, %v273
    %v275 = vmul.f32 %v270, %v274
    %vm276 = vweird.f32 %v182
    %vm277 = vweird.f32 %v270
    %vm278 = vmor %vm276, %vm277
    %v279 = vsel %vm278, %v270, %v275
    %v280 = vrsqrt.pop %v183
    %v281 = vmul.f32 %v280, %v183
    %v282 = vmul.f32 %v281, %v280
    %v283 = vmul.f32 0.5, %v282
    %v284 = vsub.f32 1.5, %v283
    %v285 = vmul.f32 %v280, %v284
    %vm286 = vweird.f32 %v183
    %vm287 = vweird.f32 %v280
    %vm288 = vmor %vm286, %vm287
    %v289 = vsel %vm288, %v280, %v285
    %v290 = vrsqrt.pop %v184
    %v291 = vmul.f32 %v290, %v184
    %v292 = vmul.f32 %v291, %v290
    %v293 = vmul.f32 0.5, %v292
    %v294 = vsub.f32 1.5, %v293
    %v295 = vmul.f32 %v290, %v294
    %vm296 = vweird.f32 %v184
    %vm297 = vweird.f32 %v290
    %vm298 = vmor %vm296, %vm297
    %v299 = vsel %vm298, %v290, %v295
    %v300 = vrsqrt.pop %v185
    %v301 = vmul.f32 %v300, %v185
    %v302 = vmul.f32 %v301, %v300
    %v303 = vmul.f32 0.5, %v302
    %v304 = vsub.f32 1.5, %v303
    %v305 = vmul.f32 %v300, %v304
    %vm306 = vweird.f32 %v185
    %vm307 = vweird.f32 %v300
    %vm308 = vmor %vm306, %vm307
    %v309 = vsel %vm308, %v300, %v305
    %v310 = vrsqrt.pop %v186
    %v311 = vmul.f32 %v310, %v186
    %v312 = vmul.f32 %v311, %v310
    %v313 = vmul.f32 0.5, %v312
    %v314 = vsub.f32 1.5, %v313
    %v315 = vmul.f32 %v310, %v314
    %vm316 = vweird.f32 %v186
    %vm317 = vweird.f32 %v310
    %vm318 = vmor %vm316, %vm317
    %v319 = vsel %vm318, %v310, %v315
    %v320 = vrsqrt.pop %v187
    %v321 = vmul.f32 %v320, %v187
    %v322 = vmul.f32 %v321, %v320
    %v323 = vmul.f32 0.5, %v322
    %v324 = vsub.f32 1.5, %v323
    %v325 = vmul.f32 %v320, %v324
    %vm326 = vweird.f32 %v187
    %vm327 = vweird.f32 %v320
    %vm328 = vmor %vm326, %vm327
    %v329 = vsel %vm328, %v320, %v325
    %v330 = vrsqrt.pop %v188
    %v331 = vmul.f32 %v330, %v188
    %v332 = vmul.f32 %v331, %v330
    %v333 = vmul.f32 0.5, %v332
    %v334 = vsub.f32 1.5, %v333
    %v335 = vmul.f32 %v330, %v334
    %vm336 = vweird.f32 %v188
    %vm337 = vweird.f32 %v330
    %vm338 = vmor %vm336, %vm337
    %v339 = vsel %vm338, %v330, %v335
    %v340 = vrsqrt.pop %v189
    %v341 = vmul.f32 %v340, %v189
    %v342 = vmul.f32 %v341, %v340
    %v343 = vmul.f32 0.5, %v342
    %v344 = vsub.f32 1.5, %v343
    %v345 = vmul.f32 %v340, %v344
    %vm346 = vweird.f32 %v189
    %vm347 = vweird.f32 %v340
    %vm348 = vmor %vm346, %vm347
    %v349 = vsel %vm348, %v340, %v345
    %v350 = vmul.f32 %v94, %v199
    %v351 = vmul.f32 %v95, %v209
    %v352 = vmul.f32 %v96, %v219
    %v353 = vmul.f32 %v97, %v229
    %v354 = vmul.f32 %v98, %v239
    %v355 = vmul.f32 %v99, %v249
    %v356 = vmul.f32 %v100, %v259
    %v357 = vmul.f32 %v101, %v269
    %v358 = vmul.f32 %v102, %v279
    %v359 = vmul.f32 %v103, %v289
    %v360 = vmul.f32 %v104, %v299
    %v361 = vmul.f32 %v105, %v309
    %v362 = vmul.f32 %v106, %v319
    %v363 = vmul.f32 %v107, %v329
    %v364 = vmul.f32 %v108, %v339
    %v365 = vmul.f32 %v109, %v349
    %v367 = vperm.slane %v37, 0
    %v369 = vmul.f32 %v350, %v367
    %v370 = vmul.f32 %v351, %v367
    %v371 = vmul.f32 %v352, %v367
    %v372 = vmul.f32 %v353, %v367
    %v373 = vmul.f32 %v354, %v367
    %v374 = vmul.f32 %v355, %v367
    %v375 = vmul.f32 %v356, %v367
    %v376 = vmul.f32 %v357, %v367
    %v377 = vmul.f32 %v358, %v367
    %v378 = vmul.f32 %v359, %v367
    %v379 = vmul.f32 %v360, %v367
    %v380 = vmul.f32 %v361, %v367
    %v381 = vmul.f32 %v362, %v367
    %v382 = vmul.f32 %v363, %v367
    %v383 = vmul.f32 %v364, %v367
    %v384 = vmul.f32 %v365, %v367
    %v386 = vperm.slane %v38, 0
    %v388 = vadd.f32 %v369, %v386
    %v389 = vadd.f32 %v370, %v386
    %v390 = vadd.f32 %v371, %v386
    %v391 = vadd.f32 %v372, %v386
    %v392 = vadd.f32 %v373, %v386
    %v393 = vadd.f32 %v374, %v386
    %v394 = vadd.f32 %v375, %v386
    %v395 = vadd.f32 %v376, %v386
    %v396 = vadd.f32 %v377, %v386
    %v397 = vadd.f32 %v378, %v386
    %v398 = vadd.f32 %v379, %v386
    %v399 = vadd.f32 %v380, %v386
    %v400 = vadd.f32 %v381, %v386
    %v401 = vadd.f32 %v382, %v386
    %v402 = vadd.f32 %v383, %v386
    %v403 = vadd.f32 %v384, %v386
    %v404 = vld [vmem:[%s3] sm:$0xff]
    %v405 = vld [vmem:[%s3 + $0x8] sm:$0xff]
    %v406 = vld [vmem:[%s3 + $0x10] sm:$0xff]
    %v407 = vld [vmem:[%s3 + $0x18] sm:$0xff]
    %v408 = vld [vmem:[%s3 + $0x20] sm:$0xff]
    %v409 = vld [vmem:[%s3 + $0x28] sm:$0xff]
    %v410 = vld [vmem:[%s3 + $0x30] sm:$0xff]
    %v411 = vld [vmem:[%s3 + $0x38] sm:$0xff]
    %v412 = vld [vmem:[%s3 + $0x40] sm:$0xff]
    %v413 = vld [vmem:[%s3 + $0x48] sm:$0xff]
    %v414 = vld [vmem:[%s3 + $0x50] sm:$0xff]
    %v415 = vld [vmem:[%s3 + $0x58] sm:$0xff]
    %v416 = vld [vmem:[%s3 + $0x60] sm:$0xff]
    %v417 = vld [vmem:[%s3 + $0x68] sm:$0xff]
    %v418 = vld [vmem:[%s3 + $0x70] sm:$0xff]
    %v419 = vld [vmem:[%s3 + $0x78] sm:$0xff]
    %v420 = vld [vmem:[%s4] sm:$0x1]
    %v422 = vperm.slane %v420, 0
    %424 = vmatpush.msra.mxu0 %v419
    %425 = vmatpush.msra.mxu0 %v418
    %426 = vmatpush.msra.mxu0 %v417
    %427 = vmatpush.msra.mxu0 %v416
    %428 = vmatpush.msra.mxu0 %v415
    %429 = vmatpush.msra.mxu0 %v414
    %430 = vmatpush.msra.mxu0 %v413
    %431 = vmatpush.msra.mxu0 %v412
    %432 = vmatpush.msra.mxu0 %v411
    %433 = vmatpush.msra.mxu0 %v410
    %434 = vmatpush.msra.mxu0 %v409
    %435 = vmatpush.msra.mxu0 %v408
    %436 = vmatpush.msra.mxu0 %v407
    %437 = vmatpush.msra.mxu0 %v406
    %438 = vmatpush.msra.mxu0 %v405
    %439 = vmatpush.msra.mxu0 %v404
    %440 = vmatmul.f32.gmra.mxu0 %v388
    %v441 = vpop.f32.mrf.mxu0
    %v442 = vadd.f32 %v422, %v441
    %443 = vmatmul.f32.gmra.mxu0 %v389
    %v444 = vpop.f32.mrf.mxu0
    %v445 = vadd.f32 %v422, %v444
    %446 = vmatmul.f32.gmra.mxu0 %v390
    %v447 = vpop.f32.mrf.mxu0
    %v448 = vadd.f32 %v422, %v447
    %449 = vmatmul.f32.gmra.mxu0 %v391
    %v450 = vpop.f32.mrf.mxu0
    %v451 = vadd.f32 %v422, %v450
    %452 = vmatmul.f32.gmra.mxu0 %v392
    %v453 = vpop.f32.mrf.mxu0
    %v454 = vadd.f32 %v422, %v453
    %455 = vmatmul.f32.gmra.mxu0 %v393
    %v456 = vpop.f32.mrf.mxu0
    %v457 = vadd.f32 %v422, %v456
    %458 = vmatmul.f32.gmra.mxu0 %v394
    %v459 = vpop.f32.mrf.mxu0
    %v460 = vadd.f32 %v422, %v459
    %461 = vmatmul.f32.gmra.mxu0 %v395
    %v462 = vpop.f32.mrf.mxu0
    %v463 = vadd.f32 %v422, %v462
    %464 = vmatmul.f32.gmra.mxu0 %v396
    %v465 = vpop.f32.mrf.mxu0
    %v466 = vadd.f32 %v422, %v465
    %467 = vmatmul.f32.gmra.mxu0 %v397
    %v468 = vpop.f32.mrf.mxu0
    %v469 = vadd.f32 %v422, %v468
    %470 = vmatmul.f32.gmra.mxu0 %v398
    %v471 = vpop.f32.mrf.mxu0
    %v472 = vadd.f32 %v422, %v471
    %473 = vmatmul.f32.gmra.mxu0 %v399
    %v474 = vpop.f32.mrf.mxu0
    %v475 = vadd.f32 %v422, %v474
    %476 = vmatmul.f32.gmra.mxu0 %v400
    %v477 = vpop.f32.mrf.mxu0
    %v478 = vadd.f32 %v422, %v477
    %479 = vmatmul.f32.gmra.mxu0 %v401
    %v480 = vpop.f32.mrf.mxu0
    %v481 = vadd.f32 %v422, %v480
    %482 = vmatmul.f32.gmra.mxu0 %v402
    %v483 = vpop.f32.mrf.mxu0
    %v484 = vadd.f32 %v422, %v483
    %485 = vmatmul.f32.gmra.mxu0 %v403
    %v486 = vpop.f32.mrf.mxu0
    %v487 = vadd.f32 %v422, %v486
    %488 = vdwg.mxu0
    %vm489 = vcmask 523264
    %490 = vst.msk [vmem:[#allocation2] sm:$0xff] %vm489, %v442
    %491 = vst.msk [vmem:[#allocation2 + $0x8] sm:$0xff] %vm489, %v445
    %492 = vst.msk [vmem:[#allocation2 + $0x10] sm:$0xff] %vm489, %v448
    %493 = vst.msk [vmem:[#allocation2 + $0x18] sm:$0xff] %vm489, %v451
    %494 = vst.msk [vmem:[#allocation2 + $0x20] sm:$0xff] %vm489, %v454
    %495 = vst.msk [vmem:[#allocation2 + $0x28] sm:$0xff] %vm489, %v457
    %496 = vst.msk [vmem:[#allocation2 + $0x30] sm:$0xff] %vm489, %v460
    %497 = vst.msk [vmem:[#allocation2 + $0x38] sm:$0xff] %vm489, %v463
    %498 = vst.msk [vmem:[#allocation2 + $0x40] sm:$0xff] %vm489, %v466
    %499 = vst.msk [vmem:[#allocation2 + $0x48] sm:$0xff] %vm489, %v469
    %500 = vst.msk [vmem:[#allocation2 + $0x50] sm:$0xff] %vm489, %v472
    %501 = vst.msk [vmem:[#allocation2 + $0x58] sm:$0xff] %vm489, %v475
    %502 = vst.msk [vmem:[#allocation2 + $0x60] sm:$0xff] %vm489, %v478
    %503 = vst.msk [vmem:[#allocation2 + $0x68] sm:$0xff] %vm489, %v481
    %504 = vst.msk [vmem:[#allocation2 + $0x70] sm:$0xff] %vm489, %v484
    %505 = vst.msk [vmem:[#allocation2 + $0x78] sm:$0xff] %vm489, %v487
    // Predicated region
    $region22: #{down_block_forward.13} parent=1 // pred_check
      _
    $region23: #{down_block_forward.13} parent=1 // pred_check_branch
      %507 = sbr.rel (0) target = $region25
    $region24: #{down_block_forward.13} parent=1 // pred_region
      %509 = vsyncadd [#allocation3], 0
      %s510 = sshll.u32 [#allocation2], 4
      %s511 = int_to_ptr.vmem [resolvable:$true] %s510
      %s512 = sshll.u32 %s5, 4
      %s513 = int_to_ptr.hbm [resolvable:$true] %s512
      %518 = dma.vmem_to_hbm [thread:$0]  %s511, 2048, %s513, [#allocation3], 128, 128, 8
    $region25: #{down_block_forward.13} parent=1 // pred_fallthru
      _
    // Predicated region
    $region26: #{down_block_forward.13} parent=1 // pred_check
      _
    $region27: #{down_block_forward.13} parent=1 // pred_check_branch
      %520 = sbr.rel (0) target = $region29
    $region28: #{down_block_forward.13} parent=1 // pred_region
      %522 = dma.done [#allocation3], 2048
    $region29: #{down_block_forward.13} parent=1 // pred_fallthru
      _
    %523 = vsyncpa [#allocation3], 1

</llo_original>
